<compile_context>
chip_gen: v6e
topology: v6e:2x2x1
jax: 0.10.0
libtpu: 0.0.40
codegen_flags: <defaults>
</compile_context>

<pallas_src>
import math

import jax
import jax.numpy as jnp
import numpy as np
from jax.experimental import pallas as pl
from jax.experimental.pallas import tpu as pltpu


def _round_up(x, m):
    return ((x + m - 1) // m) * m


def _tpu_defaults(dim_hidden):
    """Pick lane pack width and minimum grid size from the TPU generation."""
    lane_w, min_grid = 128, 1
    try:
        kind = jax.devices()[0].device_kind.lower()
    except Exception:
        kind = ""
    # v6e / v7x: 256-wide MXU -> pack 256 lanes.  v5e and older: keep 128.
    if "tpu" in kind and not any(t in kind for t in ("v2", "v3", "v4", "v5")):
        lane_w = 256
    # v7x: two TensorCores per chip -> want an even grid on the "parallel" axis.
    if "v7" in kind or "7x" in kind:
        min_grid = 2
    if dim_hidden > lane_w or lane_w % dim_hidden != 0:
        lane_w = 128 if (dim_hidden <= 128 and 128 % dim_hidden == 0) else dim_hidden
    return lane_w, min_grid


def _pick_tile(n_packed, *, lane_w, p_dim_in, num_outputs, max_tile=2048, min_grid=1):
    """Largest multiple-of-8 packed-row tile <= max_tile fitting the per-step VMEM
    budget, with at least `min_grid` grid steps (v7x: 2 TensorCores)."""
    # Double-buffered input + double-buffered lane-dense outputs, bytes per packed row.
    bytes_per_row = 4 * (2 * p_dim_in + 2 * num_outputs * lane_w)
    # Stay under the scoped VMEM default of every generation (16 MiB on v5e,
    # 32 MiB on v6e/v7x), leaving headroom for the (small) weight stacks.
    budget = (26 << 20) if lane_w > 128 else (13 << 20)
    tm = min(max_tile, _round_up(pl.cdiv(n_packed, max(min_grid, 1)), 8))
    tm = max(tm, 8)
    while tm > 8 and tm * bytes_per_row > budget:
        tm = max(8, _round_up(tm // 2, 8))
    grid = pl.cdiv(n_packed, tm)
    if min_grid > 1:
        grid = _round_up(grid, min_grid)
    return tm, grid, tm * grid


def _pack_params(weights, biases, cfgs, dim_out, lane_w):
    """Block-diagonal row packing (kron(I_P, W)) + w0 folding of the static params.

    Returns (w_first, w_stack, b_stack, sine_flags, P):
      w_first : (P*dim_in, lane_w)            -- first layer
      w_stack : (n_layers-1, lane_w, lane_w)  -- remaining layers (last zero-padded)
      b_stack : (n_layers, 1, lane_w)
    """
    dim_hidden = weights[0].shape[1]
    assert lane_w % dim_hidden == 0, "dim_hidden must divide the lane pack width"
    P = lane_w // dim_hidden
    assert P * dim_out <= lane_w, "packed final output must fit in one lane block"

    eye = jnp.eye(P, dtype=jnp.float32)
    w_packed, b_packed, sine_flags = [], [], []
    for W, b, (w0, apply_sine) in zip(weights, biases, cfgs):
        Wbd = jnp.kron(eye, W.astype(jnp.float32))      # (P*d_in, P*d_out)
        bbd = jnp.tile(b.astype(jnp.float32), (1, P))   # (1, P*d_out)
        if apply_sine:
            # sin(w0*(hW+b)) == sin(h(w0 W) + (w0 b)) -> fold w0 into the constants.
            Wbd = Wbd * jnp.float32(w0)
            bbd = bbd * jnp.float32(w0)
        if Wbd.shape[1] < lane_w:                        # final layer: zero-pad to lane_w
            pad = lane_w - Wbd.shape[1]
            Wbd = jnp.pad(Wbd, ((0, 0), (0, pad)))
            bbd = jnp.pad(bbd, ((0, 0), (0, pad)))
        w_packed.append(Wbd)
        b_packed.append(bbd)
        sine_flags.append(bool(apply_sine))

    w_first = w_packed[0]
    w_stack = jnp.stack(w_packed[1:], axis=0)            # (n_layers-1, lane_w, lane_w)
    b_stack = jnp.stack(b_packed, axis=0)                 # (n_layers, 1, lane_w)
    return w_first, w_stack, b_stack, tuple(sine_flags), P


def _make_siren_kernel(sine_flags, num_record):
    """sine_flags: static tuple[bool] per linear layer (w0 already folded into W/b)."""
    n_layers = len(sine_flags)

    def kernel(x_ref, w_first_ref, w_rest_ref, b_ref, *out_refs):
        h = x_ref[...]
        for j in range(n_layers):
            w = w_first_ref[...] if j == 0 else w_rest_ref[j - 1]
            # Lane-dense MXU matmul: (tm, .) x (., lane_w), f32 accumulate.
            h = jnp.dot(h, w, preferred_element_type=jnp.float32) + b_ref[j]
            if sine_flags[j]:
                h = jnp.sin(h)           # w0 folded into W/b; VPU-bound at scale
            if j < num_record:
                out_refs[j][...] = h     # unmasked lane-dense store, own output DMA
        out_refs[num_record][...] = h    # final (identity) layer, zero-padded to lane_w

    return kernel


def siren_net_forward(x, weights, biases, cfgs, num_record, dim_out,
                      *, lane_w=None, max_tile=2048):
    """Fused SirenNet forward (mods=None). Returns (final_out, out_arr)."""
    N, dim_in = x.shape
    dim_hidden = weights[0].shape[1]
    auto_lane_w, min_grid = _tpu_defaults(dim_hidden)
    if lane_w is None:
        lane_w = auto_lane_w

    w_first, w_stack, b_stack, sine_flags, P = _pack_params(
        weights, biases, cfgs, dim_out, lane_w)
    num_outputs = num_record + 1

    # Row packing + padding to a whole number of tiles (works for any N).
    n_packed = pl.cdiv(N, P)
    tm, grid_m, n_packed_pad = _pick_tile(
        n_packed, lane_w=lane_w, p_dim_in=P * dim_in,
        num_outputs=num_outputs, max_tile=max_tile, min_grid=min_grid)
    n_rows_pad = n_packed_pad * P
    if n_rows_pad != N:
        x = jnp.pad(x, ((0, n_rows_pad - N), (0, 0)))   # sin is bounded -> finite garbage
    x_packed = x.reshape(n_packed_pad, P * dim_in)

    out_shapes = tuple(jax.ShapeDtypeStruct((n_packed_pad, lane_w), jnp.float32)
                       for _ in range(num_outputs))
    out_specs = tuple(pl.BlockSpec((tm, lane_w), lambda i: (i, 0))
                      for _ in range(num_outputs))

    kernel = _make_siren_kernel(sine_flags, num_record)

    def _build_in_specs(single_buffer_consts):
        def const_spec(shape):
            zeros = (0,) * len(shape)
            index_map = lambda i, _z=zeros: _z
            if single_buffer_consts:
                # Constant operands (index_map always 0): the revolving second buffer
                # is never used -> single-buffer them to free VMEM.
                return pl.BlockSpec(shape, index_map, pipeline_mode=pl.Buffered(1))
            return pl.BlockSpec(shape, index_map)

        return [
            pl.BlockSpec((tm, P * dim_in), lambda i: (i, 0)),
            const_spec(w_first.shape),
            const_spec(w_stack.shape),
            const_spec(b_stack.shape),
        ]

    def _run(single_buffer_consts):
        return pl.pallas_call(
            kernel,
            out_shape=out_shapes,
            grid_spec=pltpu.PrefetchScalarGridSpec(
                num_scalar_prefetch=0,
                grid=(grid_m,),
                in_specs=_build_in_specs(single_buffer_consts),
                out_specs=out_specs,
            ),
            compiler_params=pltpu.CompilerParams(
                dimension_semantics=("parallel",)),
        )(x_packed, w_first, w_stack, b_stack)

    try:
        outs = _run(True)
    except Exception:
        # pl.Buffered(1) not supported on this jax/libtpu -> fall back to default
        # double-buffering of the (small) constant operands.
        outs = _run(False)

    # Unpack: free full-array reshapes (plus a row trim only when N was padded).
    out_arr = [o.reshape(-1, dim_hidden)[:N] for o in outs[:num_record]]
    final = outs[num_record][:, :P * dim_out].reshape(-1, dim_out)[:N]
    return final, out_arr


def init_siren_net(key, dim_in, dim_hidden, dim_out, num_layers,
                   w0=30.0, w0_initial=30.0, c=6.0, weight_decay=2):
    """Deterministic init matching the PyTorch module's __init__ shapes/bounds.
    Weights are stored pre-transposed as (d_in, d_out)."""
    weights, biases, cfgs = [], [], []
    n_body = num_layers - weight_decay

    def make_layer(k, d_in, d_out, w_std, w0_layer, apply_sine):
        k1, k2 = jax.random.split(k)
        W = jax.random.uniform(k1, (d_in, d_out), jnp.float32, -w_std, w_std)
        b = jax.random.uniform(k2, (1, d_out), jnp.float32, -w_std, w_std)
        return W, b, (w0_layer, apply_sine)

    keys = jax.random.split(key, num_layers + 1)
    ki = 0

    layer_w0 = w0_initial
    is_first = True
    for ind in range(n_body):
        is_first = ind == 0
        layer_w0 = w0_initial if is_first else w0
        d_in = dim_in if is_first else dim_hidden
        w_std = (1.0 / d_in) if is_first else (math.sqrt(c / d_in) / layer_w0)
        W, b, cfg = make_layer(keys[ki], d_in, dim_hidden, w_std, layer_w0, True)
        ki += 1
        weights.append(W); biases.append(b); cfgs.append(cfg)

    # Decay layers reuse the *leftover* layer_w0 / is_first, exactly like the PyTorch loop.
    for _ in range(weight_decay):
        w_std = (1.0 / dim_hidden) if is_first else (math.sqrt(c / dim_hidden) / layer_w0)
        W, b, cfg = make_layer(keys[ki], dim_hidden, dim_hidden, w_std, layer_w0, True)
        ki += 1
        weights.append(W); biases.append(b); cfgs.append(cfg)

    # Last layer: w0=w0, is_first=False, Identity activation.
    w_std = math.sqrt(c / dim_hidden) / w0
    W, b, cfg = make_layer(keys[ki], dim_hidden, dim_out, w_std, w0, False)
    weights.append(W); biases.append(b); cfgs.append(cfg)

    return weights, biases, cfgs, n_body


def reference_forward(x, weights, biases, cfgs, n_body):
    """Pure-JAX reference matching the PyTorch forward (mods=None)."""
    h = x
    out_arr = []
    for i, (W, b, (w0, apply_sine)) in enumerate(zip(weights, biases, cfgs)):
        h = h @ W + b
        if apply_sine:
            h = jnp.sin(w0 * h)
        if i < n_body:
            out_arr.append(h)
    return h, out_arr


if __name__ == "__main__":
    dim_in, dim_hidden, dim_out = 4, 32, 4
    num_layers, weight_decay = 5, 2
    N = 256  # number of input coordinates (rows)

    key = jax.random.PRNGKey(0)
    kx, kp = jax.random.split(key)
    x = jax.random.uniform(kx, (N, dim_in), jnp.float32, -1.0, 1.0)

    weights, biases, cfgs, n_body = init_siren_net(
        kp, dim_in, dim_hidden, dim_out, num_layers,
        w0=30.0, w0_initial=30.0, c=6.0, weight_decay=weight_decay)

    final, out_arr = siren_net_forward(x, weights, biases, cfgs, n_body, dim_out)
    jax.block_until_ready(final)
    jax.block_until_ready(out_arr)

    ref_final, ref_arr = reference_forward(x, weights, biases, cfgs, n_body)
    # w0 is folded into the weights in-kernel, so allow a slightly looser (few-ulp) atol.
    np.testing.assert_allclose(np.asarray(final), np.asarray(ref_final),
                               rtol=1e-5, atol=2e-5)
    assert len(out_arr) == len(ref_arr) == n_body
    for a, r in zip(out_arr, ref_arr):
        np.testing.assert_allclose(np.asarray(a), np.asarray(r),
                                   rtol=1e-5, atol=2e-5)

    print("KERNEL_OK")
</pallas_src>

<mosaic_0001>
module attributes {stable_mosaic.version = 11 : i64} {
  func.func @kernel(%arg0: i32, %arg1: memref<64x16xf32, #tpu.memory_space<vmem>>, %arg2: memref<16x128xf32, #tpu.memory_space<vmem>>, %arg3: memref<5x128x128xf32, #tpu.memory_space<vmem>>, %arg4: memref<6x1x128xf32, #tpu.memory_space<vmem>>, %arg5: memref<64x128xf32, #tpu.memory_space<vmem>>, %arg6: memref<64x128xf32, #tpu.memory_space<vmem>>, %arg7: memref<64x128xf32, #tpu.memory_space<vmem>>, %arg8: memref<64x128xf32, #tpu.memory_space<vmem>>) attributes {dimension_semantics = [#tpu.dimension_semantics<parallel>], iteration_bounds = array<i64: 1>, scalar_prefetch = 0 : i64, scratch_operands = 0 : i64, tpu.core_type = #tpu.core_type<tc>, window_params = [{transform_indices = @transform_0, window_bounds = array<i64: 64, 16>}, {pipeline_mode = #tpu.pipeline_mode<synchronous>, transform_indices = @transform_1, window_bounds = array<i64: 16, 128>}, {pipeline_mode = #tpu.pipeline_mode<synchronous>, transform_indices = @transform_2, window_bounds = array<i64: 5, 128, 128>}, {pipeline_mode = #tpu.pipeline_mode<synchronous>, transform_indices = @transform_3, window_bounds = array<i64: 6, 1, 128>}, {transform_indices = @transform_4, window_bounds = array<i64: 64, 128>}, {transform_indices = @transform_5, window_bounds = array<i64: 64, 128>}, {transform_indices = @transform_6, window_bounds = array<i64: 64, 128>}, {transform_indices = @transform_7, window_bounds = array<i64: 64, 128>}]} {
    %c0 = arith.constant 0 : index
    %c0_0 = arith.constant 0 : index
    %0 = vector.load %arg1[%c0, %c0_0] : memref<64x16xf32, #tpu.memory_space<vmem>>, vector<64x16xf32>
    %c0_1 = arith.constant 0 : index
    %c0_2 = arith.constant 0 : index
    %1 = vector.load %arg2[%c0_1, %c0_2] : memref<16x128xf32, #tpu.memory_space<vmem>>, vector<16x128xf32>
    %cst = arith.constant dense<0.000000e+00> : vector<64x128xf32>
    %2 = tpu.matmul %0, %1, %cst {dimension_numbers = #tpu.dot_dimension_numbers<[1], [0], [0], [1], [0, 0, 1, 1], [], []>} : vector<64x16xf32>, vector<16x128xf32>, vector<64x128xf32> -> vector<64x128xf32>
    %c0_3 = arith.constant 0 : index
    %c0_4 = arith.constant 0 : index
    %c0_5 = arith.constant 0 : index
    %3 = vector.load %arg4[%c0_3, %c0_4, %c0_5] : memref<6x1x128xf32, #tpu.memory_space<vmem>>, vector<1x1x128xf32>
    %4 = vector.shape_cast %3 : vector<1x1x128xf32> to vector<1x128xf32>
    %5 = vector.broadcast %4 : vector<1x128xf32> to vector<64x128xf32>
    %6 = arith.addf %2, %5 : vector<64x128xf32>
    %7 = math.sin %6 : vector<64x128xf32>
    %c0_6 = arith.constant 0 : index
    %c0_7 = arith.constant 0 : index
    %8 = vector.load %arg5[%c0_6, %c0_7] : memref<64x128xf32, #tpu.memory_space<vmem>>, vector<64x128xf32>
    tpu.vector_store %arg5[%c0_6, %c0_7], %7 {strides = array<i32>} : memref<64x128xf32, #tpu.memory_space<vmem>>, vector<64x128xf32>,
    %c0_8 = arith.constant 0 : index
    %c0_9 = arith.constant 0 : index
    %c0_10 = arith.constant 0 : index
    %9 = vector.load %arg3[%c0_8, %c0_9, %c0_10] : memref<5x128x128xf32, #tpu.memory_space<vmem>>, vector<1x128x128xf32>
    %10 = vector.shape_cast %9 : vector<1x128x128xf32> to vector<128x128xf32>
    %cst_11 = arith.constant dense<0.000000e+00> : vector<64x128xf32>
    %11 = tpu.matmul %7, %10, %cst_11 {dimension_numbers = #tpu.dot_dimension_numbers<[1], [0], [0], [1], [0, 0, 1, 1], [], []>} : vector<64x128xf32>, vector<128x128xf32>, vector<64x128xf32> -> vector<64x128xf32>
    %c1 = arith.constant 1 : index
    %c0_12 = arith.constant 0 : index
    %c0_13 = arith.constant 0 : index
    %12 = vector.load %arg4[%c1, %c0_12, %c0_13] : memref<6x1x128xf32, #tpu.memory_space<vmem>>, vector<1x1x128xf32>
    %13 = vector.shape_cast %12 : vector<1x1x128xf32> to vector<1x128xf32>
    %14 = vector.broadcast %13 : vector<1x128xf32> to vector<64x128xf32>
    %15 = arith.addf %11, %14 : vector<64x128xf32>
    %16 = math.sin %15 : vector<64x128xf32>
    %c0_14 = arith.constant 0 : index
    %c0_15 = arith.constant 0 : index
    %17 = vector.load %arg6[%c0_14, %c0_15] : memref<64x128xf32, #tpu.memory_space<vmem>>, vector<64x128xf32>
    tpu.vector_store %arg6[%c0_14, %c0_15], %16 {strides = array<i32>} : memref<64x128xf32, #tpu.memory_space<vmem>>, vector<64x128xf32>,
    %c1_16 = arith.constant 1 : index
    %c0_17 = arith.constant 0 : index
    %c0_18 = arith.constant 0 : index
    %18 = vector.load %arg3[%c1_16, %c0_17, %c0_18] : memref<5x128x128xf32, #tpu.memory_space<vmem>>, vector<1x128x128xf32>
    %19 = vector.shape_cast %18 : vector<1x128x128xf32> to vector<128x128xf32>
    %cst_19 = arith.constant dense<0.000000e+00> : vector<64x128xf32>
    %20 = tpu.matmul %16, %19, %cst_19 {dimension_numbers = #tpu.dot_dimension_numbers<[1], [0], [0], [1], [0, 0, 1, 1], [], []>} : vector<64x128xf32>, vector<128x128xf32>, vector<64x128xf32> -> vector<64x128xf32>
    %c2 = arith.constant 2 : index
    %c0_20 = arith.constant 0 : index
    %c0_21 = arith.constant 0 : index
    %21 = vector.load %arg4[%c2, %c0_20, %c0_21] : memref<6x1x128xf32, #tpu.memory_space<vmem>>, vector<1x1x128xf32>
    %22 = vector.shape_cast %21 : vector<1x1x128xf32> to vector<1x128xf32>
    %23 = vector.broadcast %22 : vector<1x128xf32> to vector<64x128xf32>
    %24 = arith.addf %20, %23 : vector<64x128xf32>
    %25 = math.sin %24 : vector<64x128xf32>
    %c0_22 = arith.constant 0 : index
    %c0_23 = arith.constant 0 : index
    %26 = vector.load %arg7[%c0_22, %c0_23] : memref<64x128xf32, #tpu.memory_space<vmem>>, vector<64x128xf32>
    tpu.vector_store %arg7[%c0_22, %c0_23], %25 {strides = array<i32>} : memref<64x128xf32, #tpu.memory_space<vmem>>, vector<64x128xf32>,
    %c2_24 = arith.constant 2 : index
    %c0_25 = arith.constant 0 : index
    %c0_26 = arith.constant 0 : index
    %27 = vector.load %arg3[%c2_24, %c0_25, %c0_26] : memref<5x128x128xf32, #tpu.memory_space<vmem>>, vector<1x128x128xf32>
    %28 = vector.shape_cast %27 : vector<1x128x128xf32> to vector<128x128xf32>
    %cst_27 = arith.constant dense<0.000000e+00> : vector<64x128xf32>
    %29 = tpu.matmul %25, %28, %cst_27 {dimension_numbers = #tpu.dot_dimension_numbers<[1], [0], [0], [1], [0, 0, 1, 1], [], []>} : vector<64x128xf32>, vector<128x128xf32>, vector<64x128xf32> -> vector<64x128xf32>
    %c3 = arith.constant 3 : index
    %c0_28 = arith.constant 0 : index
    %c0_29 = arith.constant 0 : index
    %30 = vector.load %arg4[%c3, %c0_28, %c0_29] : memref<6x1x128xf32, #tpu.memory_space<vmem>>, vector<1x1x128xf32>
    %31 = vector.shape_cast %30 : vector<1x1x128xf32> to vector<1x128xf32>
    %32 = vector.broadcast %31 : vector<1x128xf32> to vector<64x128xf32>
    %33 = arith.addf %29, %32 : vector<64x128xf32>
    %34 = math.sin %33 : vector<64x128xf32>
    %c3_30 = arith.constant 3 : index
    %c0_31 = arith.constant 0 : index
    %c0_32 = arith.constant 0 : index
    %35 = vector.load %arg3[%c3_30, %c0_31, %c0_32] : memref<5x128x128xf32, #tpu.memory_space<vmem>>, vector<1x128x128xf32>
    %36 = vector.shape_cast %35 : vector<1x128x128xf32> to vector<128x128xf32>
    %cst_33 = arith.constant dense<0.000000e+00> : vector<64x128xf32>
    %37 = tpu.matmul %34, %36, %cst_33 {dimension_numbers = #tpu.dot_dimension_numbers<[1], [0], [0], [1], [0, 0, 1, 1], [], []>} : vector<64x128xf32>, vector<128x128xf32>, vector<64x128xf32> -> vector<64x128xf32>
    %c4 = arith.constant 4 : index
    %c0_34 = arith.constant 0 : index
    %c0_35 = arith.constant 0 : index
    %38 = vector.load %arg4[%c4, %c0_34, %c0_35] : memref<6x1x128xf32, #tpu.memory_space<vmem>>, vector<1x1x128xf32>
    %39 = vector.shape_cast %38 : vector<1x1x128xf32> to vector<1x128xf32>
    %40 = vector.broadcast %39 : vector<1x128xf32> to vector<64x128xf32>
    %41 = arith.addf %37, %40 : vector<64x128xf32>
    %42 = math.sin %41 : vector<64x128xf32>
    %c4_36 = arith.constant 4 : index
    %c0_37 = arith.constant 0 : index
    %c0_38 = arith.constant 0 : index
    %43 = vector.load %arg3[%c4_36, %c0_37, %c0_38] : memref<5x128x128xf32, #tpu.memory_space<vmem>>, vector<1x128x128xf32>
    %44 = vector.shape_cast %43 : vector<1x128x128xf32> to vector<128x128xf32>
    %cst_39 = arith.constant dense<0.000000e+00> : vector<64x128xf32>
    %45 = tpu.matmul %42, %44, %cst_39 {dimension_numbers = #tpu.dot_dimension_numbers<[1], [0], [0], [1], [0, 0, 1, 1], [], []>} : vector<64x128xf32>, vector<128x128xf32>, vector<64x128xf32> -> vector<64x128xf32>
    %c5 = arith.constant 5 : index
    %c0_40 = arith.constant 0 : index
    %c0_41 = arith.constant 0 : index
    %46 = vector.load %arg4[%c5, %c0_40, %c0_41] : memref<6x1x128xf32, #tpu.memory_space<vmem>>, vector<1x1x128xf32>
    %47 = vector.shape_cast %46 : vector<1x1x128xf32> to vector<1x128xf32>
    %48 = vector.broadcast %47 : vector<1x128xf32> to vector<64x128xf32>
    %49 = arith.addf %45, %48 : vector<64x128xf32>
    %c0_42 = arith.constant 0 : index
    %c0_43 = arith.constant 0 : index
    %50 = vector.load %arg8[%c0_42, %c0_43] : memref<64x128xf32, #tpu.memory_space<vmem>>, vector<64x128xf32>
    tpu.vector_store %arg8[%c0_42, %c0_43], %49 {strides = array<i32>} : memref<64x128xf32, #tpu.memory_space<vmem>>, vector<64x128xf32>,
    return
  }
  func.func @transform_0(%arg0: i32) -> (i32, i32) {
    %c0_i32 = arith.constant 0 : i32
    %c0_i32_0 = arith.constant 0 : i32
    return %arg0, %c0_i32 : i32, i32
  }
  func.func @transform_1(%arg0: i32) -> (i32, i32) {
    %c0_i32 = arith.constant 0 : i32
    %c0_i32_0 = arith.constant 0 : i32
    %c0_i32_1 = arith.constant 0 : i32
    return %c0_i32, %c0_i32_0 : i32, i32
  }
  func.func @transform_2(%arg0: i32) -> (i32, i32, i32) {
    %c0_i32 = arith.constant 0 : i32
    %c0_i32_0 = arith.constant 0 : i32
    %c0_i32_1 = arith.constant 0 : i32
    %c0_i32_2 = arith.constant 0 : i32
    return %c0_i32, %c0_i32_0, %c0_i32_1 : i32, i32, i32
  }
  func.func @transform_3(%arg0: i32) -> (i32, i32, i32) {
    %c0_i32 = arith.constant 0 : i32
    %c0_i32_0 = arith.constant 0 : i32
    %c0_i32_1 = arith.constant 0 : i32
    %c0_i32_2 = arith.constant 0 : i32
    return %c0_i32, %c0_i32_0, %c0_i32_1 : i32, i32, i32
  }
  func.func @transform_4(%arg0: i32) -> (i32, i32) {
    %c0_i32 = arith.constant 0 : i32
    %c0_i32_0 = arith.constant 0 : i32
    return %arg0, %c0_i32 : i32, i32
  }
  func.func @transform_5(%arg0: i32) -> (i32, i32) {
    %c0_i32 = arith.constant 0 : i32
    %c0_i32_0 = arith.constant 0 : i32
    return %arg0, %c0_i32 : i32, i32
  }
  func.func @transform_6(%arg0: i32) -> (i32, i32) {
    %c0_i32 = arith.constant 0 : i32
    %c0_i32_0 = arith.constant 0 : i32
    return %arg0, %c0_i32 : i32, i32
  }
  func.func @transform_7(%arg0: i32) -> (i32, i32) {
    %c0_i32 = arith.constant 0 : i32
    %c0_i32_0 = arith.constant 0 : i32
    return %arg0, %c0_i32 : i32, i32
  }
}

module attributes {stable_mosaic.version = 11 : i64} {
  func.func @kernel(%arg0: i32, %arg1: memref<64x16xf32, #tpu.memory_space<vmem>>, %arg2: memref<16x128xf32, #tpu.memory_space<vmem>>, %arg3: memref<5x128x128xf32, #tpu.memory_space<vmem>>, %arg4: memref<6x1x128xf32, #tpu.memory_space<vmem>>, %arg5: memref<64x128xf32, #tpu.memory_space<vmem>>, %arg6: memref<64x128xf32, #tpu.memory_space<vmem>>, %arg7: memref<64x128xf32, #tpu.memory_space<vmem>>, %arg8: memref<64x128xf32, #tpu.memory_space<vmem>>) attributes {dimension_semantics = [#tpu.dimension_semantics<parallel>], iteration_bounds = array<i64: 1>, scalar_prefetch = 0 : i64, scratch_operands = 0 : i64, tpu.core_type = #tpu.core_type<tc>, window_params = [{transform_indices = @transform_0, window_bounds = array<i64: 64, 16>}, {pipeline_mode = #tpu.pipeline_mode<synchronous>, transform_indices = @transform_1, window_bounds = array<i64: 16, 128>}, {pipeline_mode = #tpu.pipeline_mode<synchronous>, transform_indices = @transform_2, window_bounds = array<i64: 5, 128, 128>}, {pipeline_mode = #tpu.pipeline_mode<synchronous>, transform_indices = @transform_3, window_bounds = array<i64: 6, 1, 128>}, {transform_indices = @transform_4, window_bounds = array<i64: 64, 128>}, {transform_indices = @transform_5, window_bounds = array<i64: 64, 128>}, {transform_indices = @transform_6, window_bounds = array<i64: 64, 128>}, {transform_indices = @transform_7, window_bounds = array<i64: 64, 128>}]} {
    %c0 = arith.constant 0 : index
    %c0_0 = arith.constant 0 : index
    %0 = vector.load %arg1[%c0, %c0_0] : memref<64x16xf32, #tpu.memory_space<vmem>>, vector<64x16xf32>
    %c0_1 = arith.constant 0 : index
    %c0_2 = arith.constant 0 : index
    %1 = vector.load %arg2[%c0_1, %c0_2] : memref<16x128xf32, #tpu.memory_space<vmem>>, vector<16x128xf32>
    %cst = arith.constant dense<0.000000e+00> : vector<64x128xf32>
    %2 = tpu.matmul %0, %1, %cst {dimension_numbers = #tpu.dot_dimension_numbers<[1], [0], [0], [1], [0, 0, 1, 1], [], []>} : vector<64x16xf32>, vector<16x128xf32>, vector<64x128xf32> -> vector<64x128xf32>
    %c0_3 = arith.constant 0 : index
    %c0_4 = arith.constant 0 : index
    %c0_5 = arith.constant 0 : index
    %3 = vector.load %arg4[%c0_3, %c0_4, %c0_5] : memref<6x1x128xf32, #tpu.memory_space<vmem>>, vector<1x1x128xf32>
    %4 = vector.shape_cast %3 : vector<1x1x128xf32> to vector<1x128xf32>
    %5 = vector.broadcast %4 : vector<1x128xf32> to vector<64x128xf32>
    %6 = arith.addf %2, %5 : vector<64x128xf32>
    %7 = math.sin %6 : vector<64x128xf32>
    %c0_6 = arith.constant 0 : index
    %c0_7 = arith.constant 0 : index
    %8 = vector.load %arg5[%c0_6, %c0_7] : memref<64x128xf32, #tpu.memory_space<vmem>>, vector<64x128xf32>
    tpu.vector_store %arg5[%c0_6, %c0_7], %7 {strides = array<i32>} : memref<64x128xf32, #tpu.memory_space<vmem>>, vector<64x128xf32>,
    %c0_8 = arith.constant 0 : index
    %c0_9 = arith.constant 0 : index
    %c0_10 = arith.constant 0 : index
    %9 = vector.load %arg3[%c0_8, %c0_9, %c0_10] : memref<5x128x128xf32, #tpu.memory_space<vmem>>, vector<1x128x128xf32>
    %10 = vector.shape_cast %9 : vector<1x128x128xf32> to vector<128x128xf32>
    %cst_11 = arith.constant dense<0.000000e+00> : vector<64x128xf32>
    %11 = tpu.matmul %7, %10, %cst_11 {dimension_numbers = #tpu.dot_dimension_numbers<[1], [0], [0], [1], [0, 0, 1, 1], [], []>} : vector<64x128xf32>, vector<128x128xf32>, vector<64x128xf32> -> vector<64x128xf32>
    %c1 = arith.constant 1 : index
    %c0_12 = arith.constant 0 : index
    %c0_13 = arith.constant 0 : index
    %12 = vector.load %arg4[%c1, %c0_12, %c0_13] : memref<6x1x128xf32, #tpu.memory_space<vmem>>, vector<1x1x128xf32>
    %13 = vector.shape_cast %12 : vector<1x1x128xf32> to vector<1x128xf32>
    %14 = vector.broadcast %13 : vector<1x128xf32> to vector<64x128xf32>
    %15 = arith.addf %11, %14 : vector<64x128xf32>
    %16 = math.sin %15 : vector<64x128xf32>
    %c0_14 = arith.constant 0 : index
    %c0_15 = arith.constant 0 : index
    %17 = vector.load %arg6[%c0_14, %c0_15] : memref<64x128xf32, #tpu.memory_space<vmem>>, vector<64x128xf32>
    tpu.vector_store %arg6[%c0_14, %c0_15], %16 {strides = array<i32>} : memref<64x128xf32, #tpu.memory_space<vmem>>, vector<64x128xf32>,
    %c1_16 = arith.constant 1 : index
    %c0_17 = arith.constant 0 : index
    %c0_18 = arith.constant 0 : index
    %18 = vector.load %arg3[%c1_16, %c0_17, %c0_18] : memref<5x128x128xf32, #tpu.memory_space<vmem>>, vector<1x128x128xf32>
    %19 = vector.shape_cast %18 : vector<1x128x128xf32> to vector<128x128xf32>
    %cst_19 = arith.constant dense<0.000000e+00> : vector<64x128xf32>
    %20 = tpu.matmul %16, %19, %cst_19 {dimension_numbers = #tpu.dot_dimension_numbers<[1], [0], [0], [1], [0, 0, 1, 1], [], []>} : vector<64x128xf32>, vector<128x128xf32>, vector<64x128xf32> -> vector<64x128xf32>
    %c2 = arith.constant 2 : index
    %c0_20 = arith.constant 0 : index
    %c0_21 = arith.constant 0 : index
    %21 = vector.load %arg4[%c2, %c0_20, %c0_21] : memref<6x1x128xf32, #tpu.memory_space<vmem>>, vector<1x1x128xf32>
    %22 = vector.shape_cast %21 : vector<1x1x128xf32> to vector<1x128xf32>
    %23 = vector.broadcast %22 : vector<1x128xf32> to vector<64x128xf32>
    %24 = arith.addf %20, %23 : vector<64x128xf32>
    %25 = math.sin %24 : vector<64x128xf32>
    %c0_22 = arith.constant 0 : index
    %c0_23 = arith.constant 0 : index
    %26 = vector.load %arg7[%c0_22, %c0_23] : memref<64x128xf32, #tpu.memory_space<vmem>>, vector<64x128xf32>
    tpu.vector_store %arg7[%c0_22, %c0_23], %25 {strides = array<i32>} : memref<64x128xf32, #tpu.memory_space<vmem>>, vector<64x128xf32>,
    %c2_24 = arith.constant 2 : index
    %c0_25 = arith.constant 0 : index
    %c0_26 = arith.constant 0 : index
    %27 = vector.load %arg3[%c2_24, %c0_25, %c0_26] : memref<5x128x128xf32, #tpu.memory_space<vmem>>, vector<1x128x128xf32>
    %28 = vector.shape_cast %27 : vector<1x128x128xf32> to vector<128x128xf32>
    %cst_27 = arith.constant dense<0.000000e+00> : vector<64x128xf32>
    %29 = tpu.matmul %25, %28, %cst_27 {dimension_numbers = #tpu.dot_dimension_numbers<[1], [0], [0], [1], [0, 0, 1, 1], [], []>} : vector<64x128xf32>, vector<128x128xf32>, vector<64x128xf32> -> vector<64x128xf32>
    %c3 = arith.constant 3 : index
    %c0_28 = arith.constant 0 : index
    %c0_29 = arith.constant 0 : index
    %30 = vector.load %arg4[%c3, %c0_28, %c0_29] : memref<6x1x128xf32, #tpu.memory_space<vmem>>, vector<1x1x128xf32>
    %31 = vector.shape_cast %30 : vector<1x1x128xf32> to vector<1x128xf32>
    %32 = vector.broadcast %31 : vector<1x128xf32> to vector<64x128xf32>
    %33 = arith.addf %29, %32 : vector<64x128xf32>
    %34 = math.sin %33 : vector<64x128xf32>
    %c3_30 = arith.constant 3 : index
    %c0_31 = arith.constant 0 : index
    %c0_32 = arith.constant 0 : index
    %35 = vector.load %arg3[%c3_30, %c0_31, %c0_32] : memref<5x128x128xf32, #tpu.memory_space<vmem>>, vector<1x128x128xf32>
    %36 = vector.shape_cast %35 : vector<1x128x128xf32> to vector<128x128xf32>
    %cst_33 = arith.constant dense<0.000000e+00> : vector<64x128xf32>
    %37 = tpu.matmul %34, %36, %cst_33 {dimension_numbers = #tpu.dot_dimension_numbers<[1], [0], [0], [1], [0, 0, 1, 1], [], []>} : vector<64x128xf32>, vector<128x128xf32>, vector<64x128xf32> -> vector<64x128xf32>
    %c4 = arith.constant 4 : index
    %c0_34 = arith.constant 0 : index
    %c0_35 = arith.constant 0 : index
    %38 = vector.load %arg4[%c4, %c0_34, %c0_35] : memref<6x1x128xf32, #tpu.memory_space<vmem>>, vector<1x1x128xf32>
    %39 = vector.shape_cast %38 : vector<1x1x128xf32> to vector<1x128xf32>
    %40 = vector.broadcast %39 : vector<1x128xf32> to vector<64x128xf32>
    %41 = arith.addf %37, %40 : vector<64x128xf32>
    %42 = math.sin %41 : vector<64x128xf32>
    %c4_36 = arith.constant 4 : index
    %c0_37 = arith.constant 0 : index
    %c0_38 = arith.constant 0 : index
    %43 = vector.load %arg3[%c4_36, %c0_37, %c0_38] : memref<5x128x128xf32, #tpu.memory_space<vmem>>, vector<1x128x128xf32>
    %44 = vector.shape_cast %43 : vector<1x128x128xf32> to vector<128x128xf32>
    %cst_39 = arith.constant dense<0.000000e+00> : vector<64x128xf32>
    %45 = tpu.matmul %42, %44, %cst_39 {dimension_numbers = #tpu.dot_dimension_numbers<[1], [0], [0], [1], [0, 0, 1, 1], [], []>} : vector<64x128xf32>, vector<128x128xf32>, vector<64x128xf32> -> vector<64x128xf32>
    %c5 = arith.constant 5 : index
    %c0_40 = arith.constant 0 : index
    %c0_41 = arith.constant 0 : index
    %46 = vector.load %arg4[%c5, %c0_40, %c0_41] : memref<6x1x128xf32, #tpu.memory_space<vmem>>, vector<1x1x128xf32>
    %47 = vector.shape_cast %46 : vector<1x1x128xf32> to vector<1x128xf32>
    %48 = vector.broadcast %47 : vector<1x128xf32> to vector<64x128xf32>
    %49 = arith.addf %45, %48 : vector<64x128xf32>
    %c0_42 = arith.constant 0 : index
    %c0_43 = arith.constant 0 : index
    %50 = vector.load %arg8[%c0_42, %c0_43] : memref<64x128xf32, #tpu.memory_space<vmem>>, vector<64x128xf32>
    tpu.vector_store %arg8[%c0_42, %c0_43], %49 {strides = array<i32>} : memref<64x128xf32, #tpu.memory_space<vmem>>, vector<64x128xf32>,
    return
  }
  func.func @transform_0(%arg0: i32) -> (i32, i32) {
    %c0_i32 = arith.constant 0 : i32
    %c0_i32_0 = arith.constant 0 : i32
    return %arg0, %c0_i32 : i32, i32
  }
  func.func @transform_1(%arg0: i32) -> (i32, i32) {
    %c0_i32 = arith.constant 0 : i32
    %c0_i32_0 = arith.constant 0 : i32
    %c0_i32_1 = arith.constant 0 : i32
    return %c0_i32, %c0_i32_0 : i32, i32
  }
  func.func @transform_2(%arg0: i32) -> (i32, i32, i32) {
    %c0_i32 = arith.constant 0 : i32
    %c0_i32_0 = arith.constant 0 : i32
    %c0_i32_1 = arith.constant 0 : i32
    %c0_i32_2 = arith.constant 0 : i32
    return %c0_i32, %c0_i32_0, %c0_i32_1 : i32, i32, i32
  }
  func.func @transform_3(%arg0: i32) -> (i32, i32, i32) {
    %c0_i32 = arith.constant 0 : i32
    %c0_i32_0 = arith.constant 0 : i32
    %c0_i32_1 = arith.constant 0 : i32
    %c0_i32_2 = arith.constant 0 : i32
    return %c0_i32, %c0_i32_0, %c0_i32_1 : i32, i32, i32
  }
  func.func @transform_4(%arg0: i32) -> (i32, i32) {
    %c0_i32 = arith.constant 0 : i32
    %c0_i32_0 = arith.constant 0 : i32
    return %arg0, %c0_i32 : i32, i32
  }
  func.func @transform_5(%arg0: i32) -> (i32, i32) {
    %c0_i32 = arith.constant 0 : i32
    %c0_i32_0 = arith.constant 0 : i32
    return %arg0, %c0_i32 : i32, i32
  }
  func.func @transform_6(%arg0: i32) -> (i32, i32) {
    %c0_i32 = arith.constant 0 : i32
    %c0_i32_0 = arith.constant 0 : i32
    return %arg0, %c0_i32 : i32, i32
  }
  func.func @transform_7(%arg0: i32) -> (i32, i32) {
    %c0_i32 = arith.constant 0 : i32
    %c0_i32_0 = arith.constant 0 : i32
    return %arg0, %c0_i32 : i32, i32
  }
}

</mosaic_0001>

<llo_original>
// kernel: tpu_custom_call.1
$region0: #{tpu_custom_call.1}
  #allocation0 [shape = 'u32[]', space=smem, size = 0x4, offset = 0x4, fixed_abs, tag = 'smem constant byte address 0x4 - core index']
  #allocation1 [shape = 'u32[144,128]{1,0:T(1,128)}', space=vmem, size = 0x12000, scoped, tag = 'internal scratch']
  %s0 = inlined_call_operand.vmem [shape: f32[64,16], index: 0, kind: input, shape index: {}]
  %s1 = inlined_call_operand.vmem [shape: f32[16,128], index: 1, kind: input, shape index: {}]
  %s2 = inlined_call_operand.hbm [shape: f32[5,128,128], index: 2, kind: input, shape index: {}]
  %s3 = inlined_call_operand.vmem [shape: f32[6,1,128], index: 3, kind: input, shape index: {}]
  %s4 = inlined_call_operand.hbm [shape: f32[64,128], index: 4, kind: output, shape index: {0}]
  %s5 = inlined_call_operand.hbm [shape: f32[64,128], index: 5, kind: output, shape index: {1}]
  %s6 = inlined_call_operand.hbm [shape: f32[64,128], index: 6, kind: output, shape index: {2}]
  %s7 = inlined_call_operand.hbm [shape: f32[64,128], index: 7, kind: output, shape index: {3}]
  %8 = xla_tuple %s4, %s5, %s6, %s7
  %s9 = sld [smem:[#allocation0]]
  $region54: #{tpu_custom_call.1} parent=0
    _
  %s11 = ssub.s32 1, %s9
  %s12 = scalar_select 0, %s11, %s9
  $region1: #{tpu_custom_call.1} parent=0
    #allocation2 [shape = 'u8[327680]{0}', space=vmem, size = 0x50000, scoped, tag = 'input window, operand 2, single buffered']
    #allocation3 [shape = 's32[1]{0}', space=sflag, size = 0x4, scoped, tag = 'scoped memory for tpu_custom_call.1']
    #allocation4 [shape = 's32[1]{0}', space=sflag, size = 0x4, scoped, tag = 'scoped memory for tpu_custom_call.1']
    #allocation5 [shape = 'u8[32768]{0}', space=vmem, size = 0x8000, scoped, tag = 'output window, operand 0, single buffered']
    #allocation6 [shape = 'u8[32768]{0}', space=vmem, size = 0x8000, scoped, tag = 'output window, operand 1, single buffered']
    #allocation7 [shape = 's32[1]{0}', space=sflag, size = 0x4, scoped, tag = 'scoped memory for tpu_custom_call.1']
    #allocation8 [shape = 'u8[32768]{0}', space=vmem, size = 0x8000, scoped, tag = 'output window, operand 2, single buffered']
    #allocation9 [shape = 'u8[32768]{0}', space=vmem, size = 0x8000, scoped, tag = 'output window, operand 3, single buffered']
    #allocation10 [shape = 's32[1]{0}', space=sflag, size = 0x4, scoped, tag = 'scoped memory for tpu_custom_call.1']
    %13 = vsyncpa [#allocation3], 0
    %14 = vsyncpa [#allocation4], 0
    %15 = vsyncpa [#allocation7], 0
    %16 = vsyncpa [#allocation10], 0
    // Predicated region
    $region2: #{tpu_custom_call.1} parent=1 // pred_check
      _
    $region3: #{tpu_custom_call.1} parent=1 // pred_check_branch
      %18 = sbr.rel (0) target = $region5
    $region4: #{tpu_custom_call.1} parent=1 // pred_region
      _
    $region5: #{tpu_custom_call.1} parent=1 // pred_fallthru
      _
    // Predicated region
    $region6: #{tpu_custom_call.1} parent=1 // pred_check
      _
    $region7: #{tpu_custom_call.1} parent=1 // pred_check_branch
      %20 = sbr.rel (0) target = $region9
    $region8: #{tpu_custom_call.1} parent=1 // pred_region
      _
    $region9: #{tpu_custom_call.1} parent=1 // pred_fallthru
      _
    // Predicated region
    $region10: #{tpu_custom_call.1} parent=1 // pred_check
      _
    $region11: #{tpu_custom_call.1} parent=1 // pred_check_branch
      %22 = sbr.rel (0) target = $region13
    $region12: #{tpu_custom_call.1} parent=1 // pred_region
      %s24 = ssub.s32 10240, 10240
      %25 = vsyncadd [#allocation3], %s24
      %s26 = sshll.u32 [#allocation2], 4
      %s27 = int_to_ptr.vmem [resolvable:$true] %s26
      %32 = dma.hbm_to_vmem [thread:$0]  %s2, 10240, %s27, [#allocation3], 128, 128, 8
    $region13: #{tpu_custom_call.1} parent=1 // pred_fallthru
      _
    // Predicated region
    $region14: #{tpu_custom_call.1} parent=1 // pred_check
      _
    $region15: #{tpu_custom_call.1} parent=1 // pred_check_branch
      %34 = sbr.rel (0) target = $region17
    $region16: #{tpu_custom_call.1} parent=1 // pred_region
      _
    $region17: #{tpu_custom_call.1} parent=1 // pred_fallthru
      _
    // Predicated region
    $region18: #{tpu_custom_call.1} parent=1 // pred_check
      _
    $region19: #{tpu_custom_call.1} parent=1 // pred_check_branch
      %36 = sbr.rel (0) target = $region21
    $region20: #{tpu_custom_call.1} parent=1 // pred_region
      %37 = dma.done [#allocation3], 10240
    $region21: #{tpu_custom_call.1} parent=1 // pred_fallthru
      _
    %v38 = vld [vmem:[%s0] sm:$0xff]
    %v39 = vld [vmem:[%s0 + $0x8] sm:$0xff]
    %v40 = vld [vmem:[%s0 + $0x10] sm:$0xff]
    %v41 = vld [vmem:[%s0 + $0x18] sm:$0xff]
    %v42 = vld [vmem:[%s0 + $0x20] sm:$0xff]
    %v43 = vld [vmem:[%s0 + $0x28] sm:$0xff]
    %v44 = vld [vmem:[%s0 + $0x30] sm:$0xff]
    %v45 = vld [vmem:[%s0 + $0x38] sm:$0xff]
    %v46 = vld [vmem:[%s1] sm:$0xff]
    %v47 = vld [vmem:[%s1 + $0x8] sm:$0xff]
    %v48 = vld [vmem:[%s3] sm:$0x1]
    %v50 = vlaneseq
    %v51 = vshrl.u32 %v50, 7
    %v52 = vsub.s32 0, %v51
    %v53 = vrot.slane %v48, %v52
    %vm55 = vcmask 130048
    %v57 = vsel %vm55, %v38, 0
    %v60 = vsel %vm55, %v39, 0
    %v63 = vsel %vm55, %v40, 0
    %v66 = vsel %vm55, %v41, 0
    %v69 = vsel %vm55, %v42, 0
    %v72 = vsel %vm55, %v43, 0
    %v75 = vsel %vm55, %v44, 0
    %v78 = vsel %vm55, %v45, 0
    %80 = vmatprep.subr.mxu0 0.0
    %81 = vmatpush1.msra.mxu0 0.0
    %82 = vmatprep.subr.mxu0 0.0
    %83 = vmatpush1.msra.mxu0 0.0
    %84 = vmatprep.subr.mxu0 0.0
    %85 = vmatpush1.msra.mxu0 0.0
    %86 = vmatprep.subr.mxu0 0.0
    %87 = vmatpush1.msra.mxu0 0.0
    %88 = vmatprep.subr.mxu0 0.0
    %89 = vmatpush1.msra.mxu0 0.0
    %90 = vmatprep.subr.mxu0 0.0
    %91 = vmatpush1.msra.mxu0 0.0
    %92 = vmatprep.subr.mxu0 0.0
    %93 = vmatpush1.msra.mxu0 0.0
    %94 = vmatprep.subr.mxu0 0.0
    %95 = vmatpush1.msra.mxu0 0.0
    %96 = vmatprep.subr.mxu0 0.0
    %97 = vmatpush1.msra.mxu0 0.0
    %98 = vmatprep.subr.mxu0 0.0
    %99 = vmatpush1.msra.mxu0 0.0
    %100 = vmatprep.subr.mxu0 0.0
    %101 = vmatpush1.msra.mxu0 0.0
    %102 = vmatprep.subr.mxu0 0.0
    %103 = vmatpush1.msra.mxu0 0.0
    %104 = vmatprep.subr.mxu0 0.0
    %105 = vmatpush1.msra.mxu0 0.0
    %106 = vmatprep.subr.mxu0 0.0
    %107 = vmatpush1.msra.mxu0 0.0
    %108 = vmatprep.subr.mxu0 0.0
    %109 = vmatpush1.msra.mxu0 %v47
    %110 = vmatprep.subr.mxu0 0.0
    %111 = vmatpush1.msra.mxu0 %v46
    %112 = vmatprep.subr.mxu0 0.0
    %113 = vmatpush2.msra.mxu0 0.0
    %114 = vmatprep.subr.mxu0 0.0
    %115 = vmatpush2.msra.mxu0 0.0
    %116 = vmatprep.subr.mxu0 0.0
    %117 = vmatpush2.msra.mxu0 0.0
    %118 = vmatprep.subr.mxu0 0.0
    %119 = vmatpush2.msra.mxu0 0.0
    %120 = vmatprep.subr.mxu0 0.0
    %121 = vmatpush2.msra.mxu0 0.0
    %122 = vmatprep.subr.mxu0 0.0
    %123 = vmatpush2.msra.mxu0 0.0
    %124 = vmatprep.subr.mxu0 0.0
    %125 = vmatpush2.msra.mxu0 0.0
    %126 = vmatprep.subr.mxu0 0.0
    %127 = vmatpush2.msra.mxu0 0.0
    %128 = vmatprep.subr.mxu0 0.0
    %129 = vmatpush2.msra.mxu0 0.0
    %130 = vmatprep.subr.mxu0 0.0
    %131 = vmatpush2.msra.mxu0 0.0
    %132 = vmatprep.subr.mxu0 0.0
    %133 = vmatpush2.msra.mxu0 0.0
    %134 = vmatprep.subr.mxu0 0.0
    %135 = vmatpush2.msra.mxu0 0.0
    %136 = vmatprep.subr.mxu0 0.0
    %137 = vmatpush2.msra.mxu0 0.0
    %138 = vmatprep.subr.mxu0 0.0
    %139 = vmatpush2.msra.mxu0 0.0
    %140 = vmatprep.subr.mxu0 0.0
    %141 = vmatpush2.msra.mxu0 0.0
    %142 = vmatprep.subr.mxu0 0.0
    %143 = vmatpush2.msra.mxu0 0.0
    %144 = vmatprep.mubr.f32.mxu0 0.0
    %145 = vmatmul.mubr.f32.gmra.mxu0 %v57
    %v146 = vpop.f32.mrf.mxu0
    %v147 = vadd.f32 %v53, %v146
    %v148 = vpop.f32.mrf.mxu0
    %149 = vmatprep.mubr.f32.mxu0 0.0
    %150 = vmatmul.mubr.f32.gmra.mxu0 %v60
    %v151 = vpop.f32.mrf.mxu0
    %v152 = vadd.f32 %v53, %v151
    %v153 = vpop.f32.mrf.mxu0
    %154 = vmatprep.mubr.f32.mxu0 0.0
    %155 = vmatmul.mubr.f32.gmra.mxu0 %v63
    %v156 = vpop.f32.mrf.mxu0
    %v157 = vadd.f32 %v53, %v156
    %v158 = vpop.f32.mrf.mxu0
    %159 = vmatprep.mubr.f32.mxu0 0.0
    %160 = vmatmul.mubr.f32.gmra.mxu0 %v66
    %v161 = vpop.f32.mrf.mxu0
    %v162 = vadd.f32 %v53, %v161
    %v163 = vpop.f32.mrf.mxu0
    %164 = vmatprep.mubr.f32.mxu0 0.0
    %165 = vmatmul.mubr.f32.gmra.mxu0 %v69
    %v166 = vpop.f32.mrf.mxu0
    %v167 = vadd.f32 %v53, %v166
    %v168 = vpop.f32.mrf.mxu0
    %169 = vmatprep.mubr.f32.mxu0 0.0
    %170 = vmatmul.mubr.f32.gmra.mxu0 %v72
    %v171 = vpop.f32.mrf.mxu0
    %v172 = vadd.f32 %v53, %v171
    %v173 = vpop.f32.mrf.mxu0
    %174 = vmatprep.mubr.f32.mxu0 0.0
    %175 = vmatmul.mubr.f32.gmra.mxu0 %v75
    %v176 = vpop.f32.mrf.mxu0
    %v177 = vadd.f32 %v53, %v176
    %v178 = vpop.f32.mrf.mxu0
    %179 = vmatprep.mubr.f32.mxu0 0.0
    %180 = vmatmul.mubr.f32.gmra.mxu0 %v78
    %v181 = vpop.f32.mrf.mxu0
    %v182 = vadd.f32 %v53, %v181
    %v183 = vpop.f32.mrf.mxu0
    %184 = vdwg.mxu0
    %v185 = vand.u32 2147483647, %v147
    %vm186 = vcmp.le.f32.partialorder %v185, 0.7853982
    %vm187 = vcmp.lt.s32.totalorder %v147, 0
    %v188 = vand.u32 %v147, 2139095040
    %v189 = vshrl.u32 %v188, 23
    %v190 = vsub.s32 %v189, 127
    %v191 = vand.u32 2147483647, %v147
    %v192 = vand.u32 %v191, 8388607
    %v193 = vor.u32 %v192, 8388608
    %v194 = vsub.s32 0, %v193
    %v195 = vadd.s32 %v190, 1
    %vm196 = vcmp.gt.s32.totalorder %v195, 0
    %v197 = vsel %vm196, %v195, 0
    %v198 = vshrl.u32 %v197, 5
    %v199 = vand.u32 %v197, 31
    %v200 = vsub.s32 32, %v199
    %v201 = vshrl.u32 683565275, %v200
    %v202 = vshll.u32 683565275, %v199
    %v203 = vshrl.u32 2475754826, %v200
    %v204 = vor.u32 %v202, %v203
    %v205 = vshll.u32 2475754826, %v199
    %v206 = vshrl.u32 2131351028, %v200
    %v207 = vor.u32 %v205, %v206
    %v208 = vshll.u32 2131351028, %v199
    %v209 = vshrl.u32 2102212464, %v200
    %v210 = vor.u32 %v208, %v209
    %v211 = vshll.u32 2102212464, %v199
    %v212 = vshrl.u32 920167782, %v200
    %v213 = vor.u32 %v211, %v212
    %v214 = vshll.u32 920167782, %v199
    %v215 = vshrl.u32 1326507024, %v200
    %v216 = vor.u32 %v214, %v215
    %vm217 = vcmp.lt.s32.totalorder %v198, 1
    %vm218 = vcmp.lt.s32.totalorder %v198, 2
    %vm219 = vcmp.lt.s32.totalorder %v198, 3
    %vm220 = vcmp.lt.s32.totalorder %v198, 4
    %v221 = vsel %vm217, %v201, %v204
    %v222 = vsel %vm220, %v210, 2102212464
    %v223 = vsel %vm219, %v207, %v222
    %v224 = vsel %vm218, %v221, %v223
    %v225 = vsel %vm217, %v204, %v207
    %v226 = vsel %vm220, %v213, 920167782
    %v227 = vsel %vm219, %v210, %v226
    %v228 = vsel %vm218, %v225, %v227
    %v229 = vsel %vm217, %v207, %v210
    %v230 = vsel %vm220, %v216, 1326507024
    %v231 = vsel %vm219, %v213, %v230
    %v232 = vsel %vm218, %v229, %v231
    %v233 = vshll.u32 %v193, 8
    %v234 = vmul.u32.u64.compose %v233, %v232
    %v235 = vextract.low.u32 %v234
    %v236 = vextract.high.u32 %v234
    %v237 = vmul.u32.u64.compose %v233, %v228
    %v238 = vextract.low.u32 %v237
    %v239 = vextract.high.u32 %v237
    %v240 = vmul.u32 %v233, %v224
    %v241 = vadd.s32 %v236, %v238
    %vm242 = vc.u32 %v236, %v238
    %v243 = vadd.s32 %v239, 1
    %v244 = vsel %vm242, %v243, %v239
    %v245 = vadd.s32 %v240, %v244
    %v246 = vadd.s32 %v245, 536870912
    %v247 = vshrl.u32 %v246, 30
    %v248 = vshll.u32 %v247, 30
    %v249 = vsub.s32 %v245, %v248
    %vm250 = vcmp.lt.s32.totalorder %v249, 0
    %v251 = vsub.s32 0, %v249
    %v252 = vsel %vm250, %v251, %v249
    %v253 = vclz %v252
    %v254 = vsub.s32 %v253, 2
    %vm255 = vcmp.gt.s32.totalorder 0, %v254
    %v256 = vsel %vm255, 0, %v254
    %v257 = vsub.s32 32, %v256
    %v258 = vshll.u32 %v249, %v256
    %v259 = vshrl.u32 %v241, %v257
    %v260 = vor.u32 %v258, %v259
    %v261 = vsub.s32 4294967266, %v256
    %v262 = vadd.s32 %v261, 127
    %v263 = vshll.u32 %v262, 23
    %v264 = vor.u32 4788187, %v263
    %v265 = vand.u32 2147483647, %v264
    %v267 = vcvt.s32.f32 %v260
    %v268 = vmul.f32 %v267, %v265
    %v269 = vxor.u32 %v268, 2147483648
    %v270 = vsel %vm187, %v269, %v268
    %v271 = vsub.s32 4, %v247
    %v272 = vsel %vm187, %v271, %v247
    %v273 = vsel %vm186, %v147, %v270
    %v274 = vsel %vm186, 0, %v272
    %v275 = vcosq.f32.pop %v273
    %v276 = vsinq.f32.pop %v273
    %vm277 = vweird.f32 %v147
    %v278 = vadd.s32 %v274, 3
    %v279 = vand.u32 %v278, 3
    %vm280 = vcmp.lt.s32.totalorder %v279, 2
    %vm281 = vcmp.eq.s32.totalorder %v279, 0
    %v282 = vxor.u32 %v276, 2147483648
    %v283 = vsel %vm281, %v275, %v282
    %vm284 = vcmp.eq.s32.totalorder %v279, 2
    %v285 = vxor.u32 %v275, 2147483648
    %v286 = vsel %vm284, %v285, %v276
    %v287 = vsel %vm280, %v283, %v286
    %v288 = vsel %vm277, nan, %v287
    %v289 = vand.u32 2147483647, %v152
    %vm290 = vcmp.le.f32.partialorder %v289, 0.7853982
    %vm291 = vcmp.lt.s32.totalorder %v152, 0
    %v292 = vand.u32 %v152, 2139095040
    %v293 = vshrl.u32 %v292, 23
    %v294 = vsub.s32 %v293, 127
    %v295 = vand.u32 2147483647, %v152
    %v296 = vand.u32 %v295, 8388607
    %v297 = vor.u32 %v296, 8388608
    %v298 = vsub.s32 0, %v297
    %v299 = vadd.s32 %v294, 1
    %vm300 = vcmp.gt.s32.totalorder %v299, 0
    %v301 = vsel %vm300, %v299, 0
    %v302 = vshrl.u32 %v301, 5
    %v303 = vand.u32 %v301, 31
    %v304 = vsub.s32 32, %v303
    %v305 = vshrl.u32 683565275, %v304
    %v306 = vshll.u32 683565275, %v303
    %v307 = vshrl.u32 2475754826, %v304
    %v308 = vor.u32 %v306, %v307
    %v309 = vshll.u32 2475754826, %v303
    %v310 = vshrl.u32 2131351028, %v304
    %v311 = vor.u32 %v309, %v310
    %v312 = vshll.u32 2131351028, %v303
    %v313 = vshrl.u32 2102212464, %v304
    %v314 = vor.u32 %v312, %v313
    %v315 = vshll.u32 2102212464, %v303
    %v316 = vshrl.u32 920167782, %v304
    %v317 = vor.u32 %v315, %v316
    %v318 = vshll.u32 920167782, %v303
    %v319 = vshrl.u32 1326507024, %v304
    %v320 = vor.u32 %v318, %v319
    %vm321 = vcmp.lt.s32.totalorder %v302, 1
    %vm322 = vcmp.lt.s32.totalorder %v302, 2
    %vm323 = vcmp.lt.s32.totalorder %v302, 3
    %vm324 = vcmp.lt.s32.totalorder %v302, 4
    %v325 = vsel %vm321, %v305, %v308
    %v326 = vsel %vm324, %v314, 2102212464
    %v327 = vsel %vm323, %v311, %v326
    %v328 = vsel %vm322, %v325, %v327
    %v329 = vsel %vm321, %v308, %v311
    %v330 = vsel %vm324, %v317, 920167782
    %v331 = vsel %vm323, %v314, %v330
    %v332 = vsel %vm322, %v329, %v331
    %v333 = vsel %vm321, %v311, %v314
    %v334 = vsel %vm324, %v320, 1326507024
    %v335 = vsel %vm323, %v317, %v334
    %v336 = vsel %vm322, %v333, %v335
    %v337 = vshll.u32 %v297, 8
    %v338 = vmul.u32.u64.compose %v337, %v336
    %v339 = vextract.low.u32 %v338
    %v340 = vextract.high.u32 %v338
    %v341 = vmul.u32.u64.compose %v337, %v332
    %v342 = vextract.low.u32 %v341
    %v343 = vextract.high.u32 %v341
    %v344 = vmul.u32 %v337, %v328
    %v345 = vadd.s32 %v340, %v342
    %vm346 = vc.u32 %v340, %v342
    %v347 = vadd.s32 %v343, 1
    %v348 = vsel %vm346, %v347, %v343
    %v349 = vadd.s32 %v344, %v348
    %v350 = vadd.s32 %v349, 536870912
    %v351 = vshrl.u32 %v350, 30
    %v352 = vshll.u32 %v351, 30
    %v353 = vsub.s32 %v349, %v352
    %vm354 = vcmp.lt.s32.totalorder %v353, 0
    %v355 = vsub.s32 0, %v353
    %v356 = vsel %vm354, %v355, %v353
    %v357 = vclz %v356
    %v358 = vsub.s32 %v357, 2
    %vm359 = vcmp.gt.s32.totalorder 0, %v358
    %v360 = vsel %vm359, 0, %v358
    %v361 = vsub.s32 32, %v360
    %v362 = vshll.u32 %v353, %v360
    %v363 = vshrl.u32 %v345, %v361
    %v364 = vor.u32 %v362, %v363
    %v365 = vsub.s32 4294967266, %v360
    %v366 = vadd.s32 %v365, 127
    %v367 = vshll.u32 %v366, 23
    %v368 = vor.u32 4788187, %v367
    %v369 = vand.u32 2147483647, %v368
    %v371 = vcvt.s32.f32 %v364
    %v372 = vmul.f32 %v371, %v369
    %v373 = vxor.u32 %v372, 2147483648
    %v374 = vsel %vm291, %v373, %v372
    %v375 = vsub.s32 4, %v351
    %v376 = vsel %vm291, %v375, %v351
    %v377 = vsel %vm290, %v152, %v374
    %v378 = vsel %vm290, 0, %v376
    %v379 = vcosq.f32.pop %v377
    %v380 = vsinq.f32.pop %v377
    %vm381 = vweird.f32 %v152
    %v382 = vadd.s32 %v378, 3
    %v383 = vand.u32 %v382, 3
    %vm384 = vcmp.lt.s32.totalorder %v383, 2
    %vm385 = vcmp.eq.s32.totalorder %v383, 0
    %v386 = vxor.u32 %v380, 2147483648
    %v387 = vsel %vm385, %v379, %v386
    %vm388 = vcmp.eq.s32.totalorder %v383, 2
    %v389 = vxor.u32 %v379, 2147483648
    %v390 = vsel %vm388, %v389, %v380
    %v391 = vsel %vm384, %v387, %v390
    %v392 = vsel %vm381, nan, %v391
    %v393 = vand.u32 2147483647, %v157
    %vm394 = vcmp.le.f32.partialorder %v393, 0.7853982
    %vm395 = vcmp.lt.s32.totalorder %v157, 0
    %v396 = vand.u32 %v157, 2139095040
    %v397 = vshrl.u32 %v396, 23
    %v398 = vsub.s32 %v397, 127
    %v399 = vand.u32 2147483647, %v157
    %v400 = vand.u32 %v399, 8388607
    %v401 = vor.u32 %v400, 8388608
    %v402 = vsub.s32 0, %v401
    %v403 = vadd.s32 %v398, 1
    %vm404 = vcmp.gt.s32.totalorder %v403, 0
    %v405 = vsel %vm404, %v403, 0
    %v406 = vshrl.u32 %v405, 5
    %v407 = vand.u32 %v405, 31
    %v408 = vsub.s32 32, %v407
    %v409 = vshrl.u32 683565275, %v408
    %v410 = vshll.u32 683565275, %v407
    %v411 = vshrl.u32 2475754826, %v408
    %v412 = vor.u32 %v410, %v411
    %v413 = vshll.u32 2475754826, %v407
    %v414 = vshrl.u32 2131351028, %v408
    %v415 = vor.u32 %v413, %v414
    %v416 = vshll.u32 2131351028, %v407
    %v417 = vshrl.u32 2102212464, %v408
    %v418 = vor.u32 %v416, %v417
    %v419 = vshll.u32 2102212464, %v407
    %v420 = vshrl.u32 920167782, %v408
    %v421 = vor.u32 %v419, %v420
    %v422 = vshll.u32 920167782, %v407
    %v423 = vshrl.u32 1326507024, %v408
    %v424 = vor.u32 %v422, %v423
    %vm425 = vcmp.lt.s32.totalorder %v406, 1
    %vm426 = vcmp.lt.s32.totalorder %v406, 2
    %vm427 = vcmp.lt.s32.totalorder %v406, 3
    %vm428 = vcmp.lt.s32.totalorder %v406, 4
    %v429 = vsel %vm425, %v409, %v412
    %v430 = vsel %vm428, %v418, 2102212464
    %v431 = vsel %vm427, %v415, %v430
    %v432 = vsel %vm426, %v429, %v431
    %v433 = vsel %vm425, %v412, %v415
    %v434 = vsel %vm428, %v421, 920167782
    %v435 = vsel %vm427, %v418, %v434
    %v436 = vsel %vm426, %v433, %v435
    %v437 = vsel %vm425, %v415, %v418
    %v438 = vsel %vm428, %v424, 1326507024
    %v439 = vsel %vm427, %v421, %v438
    %v440 = vsel %vm426, %v437, %v439
    %v441 = vshll.u32 %v401, 8
    %v442 = vmul.u32.u64.compose %v441, %v440
    %v443 = vextract.low.u32 %v442
    %v444 = vextract.high.u32 %v442
    %v445 = vmul.u32.u64.compose %v441, %v436
    %v446 = vextract.low.u32 %v445
    %v447 = vextract.high.u32 %v445
    %v448 = vmul.u32 %v441, %v432
    %v449 = vadd.s32 %v444, %v446
    %vm450 = vc.u32 %v444, %v446
    %v451 = vadd.s32 %v447, 1
    %v452 = vsel %vm450, %v451, %v447
    %v453 = vadd.s32 %v448, %v452
    %v454 = vadd.s32 %v453, 536870912
    %v455 = vshrl.u32 %v454, 30
    %v456 = vshll.u32 %v455, 30
    %v457 = vsub.s32 %v453, %v456
    %vm458 = vcmp.lt.s32.totalorder %v457, 0
    %v459 = vsub.s32 0, %v457
    %v460 = vsel %vm458, %v459, %v457
    %v461 = vclz %v460
    %v462 = vsub.s32 %v461, 2
    %vm463 = vcmp.gt.s32.totalorder 0, %v462
    %v464 = vsel %vm463, 0, %v462
    %v465 = vsub.s32 32, %v464
    %v466 = vshll.u32 %v457, %v464
    %v467 = vshrl.u32 %v449, %v465
    %v468 = vor.u32 %v466, %v467
    %v469 = vsub.s32 4294967266, %v464
    %v470 = vadd.s32 %v469, 127
    %v471 = vshll.u32 %v470, 23
    %v472 = vor.u32 4788187, %v471
    %v473 = vand.u32 2147483647, %v472
    %v475 = vcvt.s32.f32 %v468
    %v476 = vmul.f32 %v475, %v473
    %v477 = vxor.u32 %v476, 2147483648
    %v478 = vsel %vm395, %v477, %v476
    %v479 = vsub.s32 4, %v455
    %v480 = vsel %vm395, %v479, %v455
    %v481 = vsel %vm394, %v157, %v478
    %v482 = vsel %vm394, 0, %v480
    %v483 = vcosq.f32.pop %v481
    %v484 = vsinq.f32.pop %v481
    %vm485 = vweird.f32 %v157
    %v486 = vadd.s32 %v482, 3
    %v487 = vand.u32 %v486, 3
    %vm488 = vcmp.lt.s32.totalorder %v487, 2
    %vm489 = vcmp.eq.s32.totalorder %v487, 0
    %v490 = vxor.u32 %v484, 2147483648
    %v491 = vsel %vm489, %v483, %v490
    %vm492 = vcmp.eq.s32.totalorder %v487, 2
    %v493 = vxor.u32 %v483, 2147483648
    %v494 = vsel %vm492, %v493, %v484
    %v495 = vsel %vm488, %v491, %v494
    %v496 = vsel %vm485, nan, %v495
    %v497 = vand.u32 2147483647, %v162
    %vm498 = vcmp.le.f32.partialorder %v497, 0.7853982
    %vm499 = vcmp.lt.s32.totalorder %v162, 0
    %v500 = vand.u32 %v162, 2139095040
    %v501 = vshrl.u32 %v500, 23
    %v502 = vsub.s32 %v501, 127
    %v503 = vand.u32 2147483647, %v162
    %v504 = vand.u32 %v503, 8388607
    %v505 = vor.u32 %v504, 8388608
    %v506 = vsub.s32 0, %v505
    %v507 = vadd.s32 %v502, 1
    %vm508 = vcmp.gt.s32.totalorder %v507, 0
    %v509 = vsel %vm508, %v507, 0
    %v510 = vshrl.u32 %v509, 5
    %v511 = vand.u32 %v509, 31
    %v512 = vsub.s32 32, %v511
    %v513 = vshrl.u32 683565275, %v512
    %v514 = vshll.u32 683565275, %v511
    %v515 = vshrl.u32 2475754826, %v512
    %v516 = vor.u32 %v514, %v515
    %v517 = vshll.u32 2475754826, %v511
    %v518 = vshrl.u32 2131351028, %v512
    %v519 = vor.u32 %v517, %v518
    %v520 = vshll.u32 2131351028, %v511
    %v521 = vshrl.u32 2102212464, %v512
    %v522 = vor.u32 %v520, %v521
    %v523 = vshll.u32 2102212464, %v511
    %v524 = vshrl.u32 920167782, %v512
    %v525 = vor.u32 %v523, %v524
    %v526 = vshll.u32 920167782, %v511
    %v527 = vshrl.u32 1326507024, %v512
    %v528 = vor.u32 %v526, %v527
    %vm529 = vcmp.lt.s32.totalorder %v510, 1
    %vm530 = vcmp.lt.s32.totalorder %v510, 2
    %vm531 = vcmp.lt.s32.totalorder %v510, 3
    %vm532 = vcmp.lt.s32.totalorder %v510, 4
    %v533 = vsel %vm529, %v513, %v516
    %v534 = vsel %vm532, %v522, 2102212464
    %v535 = vsel %vm531, %v519, %v534
    %v536 = vsel %vm530, %v533, %v535
    %v537 = vsel %vm529, %v516, %v519
    %v538 = vsel %vm532, %v525, 920167782
    %v539 = vsel %vm531, %v522, %v538
    %v540 = vsel %vm530, %v537, %v539
    %v541 = vsel %vm529, %v519, %v522
    %v542 = vsel %vm532, %v528, 1326507024
    %v543 = vsel %vm531, %v525, %v542
    %v544 = vsel %vm530, %v541, %v543
    %v545 = vshll.u32 %v505, 8
    %v546 = vmul.u32.u64.compose %v545, %v544
    %v547 = vextract.low.u32 %v546
    %v548 = vextract.high.u32 %v546
    %v549 = vmul.u32.u64.compose %v545, %v540
    %v550 = vextract.low.u32 %v549
    %v551 = vextract.high.u32 %v549
    %v552 = vmul.u32 %v545, %v536
    %v553 = vadd.s32 %v548, %v550
    %vm554 = vc.u32 %v548, %v550
    %v555 = vadd.s32 %v551, 1
    %v556 = vsel %vm554, %v555, %v551
    %v557 = vadd.s32 %v552, %v556
    %v558 = vadd.s32 %v557, 536870912
    %v559 = vshrl.u32 %v558, 30
    %v560 = vshll.u32 %v559, 30
    %v561 = vsub.s32 %v557, %v560
    %vm562 = vcmp.lt.s32.totalorder %v561, 0
    %v563 = vsub.s32 0, %v561
    %v564 = vsel %vm562, %v563, %v561
    %v565 = vclz %v564
    %v566 = vsub.s32 %v565, 2
    %vm567 = vcmp.gt.s32.totalorder 0, %v566
    %v568 = vsel %vm567, 0, %v566
    %v569 = vsub.s32 32, %v568
    %v570 = vshll.u32 %v561, %v568
    %v571 = vshrl.u32 %v553, %v569
    %v572 = vor.u32 %v570, %v571
    %v573 = vsub.s32 4294967266, %v568
    %v574 = vadd.s32 %v573, 127
    %v575 = vshll.u32 %v574, 23
    %v576 = vor.u32 4788187, %v575
    %v577 = vand.u32 2147483647, %v576
    %v579 = vcvt.s32.f32 %v572
    %v580 = vmul.f32 %v579, %v577
    %v581 = vxor.u32 %v580, 2147483648
    %v582 = vsel %vm499, %v581, %v580
    %v583 = vsub.s32 4, %v559
    %v584 = vsel %vm499, %v583, %v559
    %v585 = vsel %vm498, %v162, %v582
    %v586 = vsel %vm498, 0, %v584
    %v587 = vcosq.f32.pop %v585
    %v588 = vsinq.f32.pop %v585
    %vm589 = vweird.f32 %v162
    %v590 = vadd.s32 %v586, 3
    %v591 = vand.u32 %v590, 3
    %vm592 = vcmp.lt.s32.totalorder %v591, 2
    %vm593 = vcmp.eq.s32.totalorder %v591, 0
    %v594 = vxor.u32 %v588, 2147483648
    %v595 = vsel %vm593, %v587, %v594
    %vm596 = vcmp.eq.s32.totalorder %v591, 2
    %v597 = vxor.u32 %v587, 2147483648
    %v598 = vsel %vm596, %v597, %v588
    %v599 = vsel %vm592, %v595, %v598
    %v600 = vsel %vm589, nan, %v599
    %v601 = vand.u32 2147483647, %v167
    %vm602 = vcmp.le.f32.partialorder %v601, 0.7853982
    %vm603 = vcmp.lt.s32.totalorder %v167, 0
    %v604 = vand.u32 %v167, 2139095040
    %v605 = vshrl.u32 %v604, 23
    %v606 = vsub.s32 %v605, 127
    %v607 = vand.u32 2147483647, %v167
    %v608 = vand.u32 %v607, 8388607
    %v609 = vor.u32 %v608, 8388608
    %v610 = vsub.s32 0, %v609
    %v611 = vadd.s32 %v606, 1
    %vm612 = vcmp.gt.s32.totalorder %v611, 0
    %v613 = vsel %vm612, %v611, 0
    %v614 = vshrl.u32 %v613, 5
    %v615 = vand.u32 %v613, 31
    %v616 = vsub.s32 32, %v615
    %v617 = vshrl.u32 683565275, %v616
    %v618 = vshll.u32 683565275, %v615
    %v619 = vshrl.u32 2475754826, %v616
    %v620 = vor.u32 %v618, %v619
    %v621 = vshll.u32 2475754826, %v615
    %v622 = vshrl.u32 2131351028, %v616
    %v623 = vor.u32 %v621, %v622
    %v624 = vshll.u32 2131351028, %v615
    %v625 = vshrl.u32 2102212464, %v616
    %v626 = vor.u32 %v624, %v625
    %v627 = vshll.u32 2102212464, %v615
    %v628 = vshrl.u32 920167782, %v616
    %v629 = vor.u32 %v627, %v628
    %v630 = vshll.u32 920167782, %v615
    %v631 = vshrl.u32 1326507024, %v616
    %v632 = vor.u32 %v630, %v631
    %vm633 = vcmp.lt.s32.totalorder %v614, 1
    %vm634 = vcmp.lt.s32.totalorder %v614, 2
    %vm635 = vcmp.lt.s32.totalorder %v614, 3
    %vm636 = vcmp.lt.s32.totalorder %v614, 4
    %v637 = vsel %vm633, %v617, %v620
    %v638 = vsel %vm636, %v626, 2102212464
    %v639 = vsel %vm635, %v623, %v638
    %v640 = vsel %vm634, %v637, %v639
    %v641 = vsel %vm633, %v620, %v623
    %v642 = vsel %vm636, %v629, 920167782
    %v643 = vsel %vm635, %v626, %v642
    %v644 = vsel %vm634, %v641, %v643
    %v645 = vsel %vm633, %v623, %v626
    %v646 = vsel %vm636, %v632, 1326507024
    %v647 = vsel %vm635, %v629, %v646
    %v648 = vsel %vm634, %v645, %v647
    %v649 = vshll.u32 %v609, 8
    %v650 = vmul.u32.u64.compose %v649, %v648
    %v651 = vextract.low.u32 %v650
    %v652 = vextract.high.u32 %v650
    %v653 = vmul.u32.u64.compose %v649, %v644
    %v654 = vextract.low.u32 %v653
    %v655 = vextract.high.u32 %v653
    %v656 = vmul.u32 %v649, %v640
    %v657 = vadd.s32 %v652, %v654
    %vm658 = vc.u32 %v652, %v654
    %v659 = vadd.s32 %v655, 1
    %v660 = vsel %vm658, %v659, %v655
    %v661 = vadd.s32 %v656, %v660
    %v662 = vadd.s32 %v661, 536870912
    %v663 = vshrl.u32 %v662, 30
    %v664 = vshll.u32 %v663, 30
    %v665 = vsub.s32 %v661, %v664
    %vm666 = vcmp.lt.s32.totalorder %v665, 0
    %v667 = vsub.s32 0, %v665
    %v668 = vsel %vm666, %v667, %v665
    %v669 = vclz %v668
    %v670 = vsub.s32 %v669, 2
    %vm671 = vcmp.gt.s32.totalorder 0, %v670
    %v672 = vsel %vm671, 0, %v670
    %v673 = vsub.s32 32, %v672
    %v674 = vshll.u32 %v665, %v672
    %v675 = vshrl.u32 %v657, %v673
    %v676 = vor.u32 %v674, %v675
    %v677 = vsub.s32 4294967266, %v672
    %v678 = vadd.s32 %v677, 127
    %v679 = vshll.u32 %v678, 23
    %v680 = vor.u32 4788187, %v679
    %v681 = vand.u32 2147483647, %v680
    %v683 = vcvt.s32.f32 %v676
    %v684 = vmul.f32 %v683, %v681
    %v685 = vxor.u32 %v684, 2147483648
    %v686 = vsel %vm603, %v685, %v684
    %v687 = vsub.s32 4, %v663
    %v688 = vsel %vm603, %v687, %v663
    %v689 = vsel %vm602, %v167, %v686
    %v690 = vsel %vm602, 0, %v688
    %v691 = vcosq.f32.pop %v689
    %v692 = vsinq.f32.pop %v689
    %vm693 = vweird.f32 %v167
    %v694 = vadd.s32 %v690, 3
    %v695 = vand.u32 %v694, 3
    %vm696 = vcmp.lt.s32.totalorder %v695, 2
    %vm697 = vcmp.eq.s32.totalorder %v695, 0
    %v698 = vxor.u32 %v692, 2147483648
    %v699 = vsel %vm697, %v691, %v698
    %vm700 = vcmp.eq.s32.totalorder %v695, 2
    %v701 = vxor.u32 %v691, 2147483648
    %v702 = vsel %vm700, %v701, %v692
    %v703 = vsel %vm696, %v699, %v702
    %v704 = vsel %vm693, nan, %v703
    %v705 = vand.u32 2147483647, %v172
    %vm706 = vcmp.le.f32.partialorder %v705, 0.7853982
    %vm707 = vcmp.lt.s32.totalorder %v172, 0
    %v708 = vand.u32 %v172, 2139095040
    %v709 = vshrl.u32 %v708, 23
    %v710 = vsub.s32 %v709, 127
    %v711 = vand.u32 2147483647, %v172
    %v712 = vand.u32 %v711, 8388607
    %v713 = vor.u32 %v712, 8388608
    %v714 = vsub.s32 0, %v713
    %v715 = vadd.s32 %v710, 1
    %vm716 = vcmp.gt.s32.totalorder %v715, 0
    %v717 = vsel %vm716, %v715, 0
    %v718 = vshrl.u32 %v717, 5
    %v719 = vand.u32 %v717, 31
    %v720 = vsub.s32 32, %v719
    %v721 = vshrl.u32 683565275, %v720
    %v722 = vshll.u32 683565275, %v719
    %v723 = vshrl.u32 2475754826, %v720
    %v724 = vor.u32 %v722, %v723
    %v725 = vshll.u32 2475754826, %v719
    %v726 = vshrl.u32 2131351028, %v720
    %v727 = vor.u32 %v725, %v726
    %v728 = vshll.u32 2131351028, %v719
    %v729 = vshrl.u32 2102212464, %v720
    %v730 = vor.u32 %v728, %v729
    %v731 = vshll.u32 2102212464, %v719
    %v732 = vshrl.u32 920167782, %v720
    %v733 = vor.u32 %v731, %v732
    %v734 = vshll.u32 920167782, %v719
    %v735 = vshrl.u32 1326507024, %v720
    %v736 = vor.u32 %v734, %v735
    %vm737 = vcmp.lt.s32.totalorder %v718, 1
    %vm738 = vcmp.lt.s32.totalorder %v718, 2
    %vm739 = vcmp.lt.s32.totalorder %v718, 3
    %vm740 = vcmp.lt.s32.totalorder %v718, 4
    %v741 = vsel %vm737, %v721, %v724
    %v742 = vsel %vm740, %v730, 2102212464
    %v743 = vsel %vm739, %v727, %v742
    %v744 = vsel %vm738, %v741, %v743
    %v745 = vsel %vm737, %v724, %v727
    %v746 = vsel %vm740, %v733, 920167782
    %v747 = vsel %vm739, %v730, %v746
    %v748 = vsel %vm738, %v745, %v747
    %v749 = vsel %vm737, %v727, %v730
    %v750 = vsel %vm740, %v736, 1326507024
    %v751 = vsel %vm739, %v733, %v750
    %v752 = vsel %vm738, %v749, %v751
    %v753 = vshll.u32 %v713, 8
    %v754 = vmul.u32.u64.compose %v753, %v752
    %v755 = vextract.low.u32 %v754
    %v756 = vextract.high.u32 %v754
    %v757 = vmul.u32.u64.compose %v753, %v748
    %v758 = vextract.low.u32 %v757
    %v759 = vextract.high.u32 %v757
    %v760 = vmul.u32 %v753, %v744
    %v761 = vadd.s32 %v756, %v758
    %vm762 = vc.u32 %v756, %v758
    %v763 = vadd.s32 %v759, 1
    %v764 = vsel %vm762, %v763, %v759
    %v765 = vadd.s32 %v760, %v764
    %v766 = vadd.s32 %v765, 536870912
    %v767 = vshrl.u32 %v766, 30
    %v768 = vshll.u32 %v767, 30
    %v769 = vsub.s32 %v765, %v768
    %vm770 = vcmp.lt.s32.totalorder %v769, 0
    %v771 = vsub.s32 0, %v769
    %v772 = vsel %vm770, %v771, %v769
    %v773 = vclz %v772
    %v774 = vsub.s32 %v773, 2
    %vm775 = vcmp.gt.s32.totalorder 0, %v774
    %v776 = vsel %vm775, 0, %v774
    %v777 = vsub.s32 32, %v776
    %v778 = vshll.u32 %v769, %v776
    %v779 = vshrl.u32 %v761, %v777
    %v780 = vor.u32 %v778, %v779
    %v781 = vsub.s32 4294967266, %v776
    %v782 = vadd.s32 %v781, 127
    %v783 = vshll.u32 %v782, 23
    %v784 = vor.u32 4788187, %v783
    %v785 = vand.u32 2147483647, %v784
    %v787 = vcvt.s32.f32 %v780
    %v788 = vmul.f32 %v787, %v785
    %v789 = vxor.u32 %v788, 2147483648
    %v790 = vsel %vm707, %v789, %v788
    %v791 = vsub.s32 4, %v767
    %v792 = vsel %vm707, %v791, %v767
    %v793 = vsel %vm706, %v172, %v790
    %v794 = vsel %vm706, 0, %v792
    %v795 = vcosq.f32.pop %v793
    %v796 = vsinq.f32.pop %v793
    %vm797 = vweird.f32 %v172
    %v798 = vadd.s32 %v794, 3
    %v799 = vand.u32 %v798, 3
    %vm800 = vcmp.lt.s32.totalorder %v799, 2
    %vm801 = vcmp.eq.s32.totalorder %v799, 0
    %v802 = vxor.u32 %v796, 2147483648
    %v803 = vsel %vm801, %v795, %v802
    %vm804 = vcmp.eq.s32.totalorder %v799, 2
    %v805 = vxor.u32 %v795, 2147483648
    %v806 = vsel %vm804, %v805, %v796
    %v807 = vsel %vm800, %v803, %v806
    %v808 = vsel %vm797, nan, %v807
    %v809 = vand.u32 2147483647, %v177
    %vm810 = vcmp.le.f32.partialorder %v809, 0.7853982
    %vm811 = vcmp.lt.s32.totalorder %v177, 0
    %v812 = vand.u32 %v177, 2139095040
    %v813 = vshrl.u32 %v812, 23
    %v814 = vsub.s32 %v813, 127
    %v815 = vand.u32 2147483647, %v177
    %v816 = vand.u32 %v815, 8388607
    %v817 = vor.u32 %v816, 8388608
    %v818 = vsub.s32 0, %v817
    %v819 = vadd.s32 %v814, 1
    %vm820 = vcmp.gt.s32.totalorder %v819, 0
    %v821 = vsel %vm820, %v819, 0
    %v822 = vshrl.u32 %v821, 5
    %v823 = vand.u32 %v821, 31
    %v824 = vsub.s32 32, %v823
    %v825 = vshrl.u32 683565275, %v824
    %v826 = vshll.u32 683565275, %v823
    %v827 = vshrl.u32 2475754826, %v824
    %v828 = vor.u32 %v826, %v827
    %v829 = vshll.u32 2475754826, %v823
    %v830 = vshrl.u32 2131351028, %v824
    %v831 = vor.u32 %v829, %v830
    %v832 = vshll.u32 2131351028, %v823
    %v833 = vshrl.u32 2102212464, %v824
    %v834 = vor.u32 %v832, %v833
    %v835 = vshll.u32 2102212464, %v823
    %v836 = vshrl.u32 920167782, %v824
    %v837 = vor.u32 %v835, %v836
    %v838 = vshll.u32 920167782, %v823
    %v839 = vshrl.u32 1326507024, %v824
    %v840 = vor.u32 %v838, %v839
    %vm841 = vcmp.lt.s32.totalorder %v822, 1
    %vm842 = vcmp.lt.s32.totalorder %v822, 2
    %vm843 = vcmp.lt.s32.totalorder %v822, 3
    %vm844 = vcmp.lt.s32.totalorder %v822, 4
    %v845 = vsel %vm841, %v825, %v828
    %v846 = vsel %vm844, %v834, 2102212464
    %v847 = vsel %vm843, %v831, %v846
    %v848 = vsel %vm842, %v845, %v847
    %v849 = vsel %vm841, %v828, %v831
    %v850 = vsel %vm844, %v837, 920167782
    %v851 = vsel %vm843, %v834, %v850
    %v852 = vsel %vm842, %v849, %v851
    %v853 = vsel %vm841, %v831, %v834
    %v854 = vsel %vm844, %v840, 1326507024
    %v855 = vsel %vm843, %v837, %v854
    %v856 = vsel %vm842, %v853, %v855
    %v857 = vshll.u32 %v817, 8
    %v858 = vmul.u32.u64.compose %v857, %v856
    %v859 = vextract.low.u32 %v858
    %v860 = vextract.high.u32 %v858
    %v861 = vmul.u32.u64.compose %v857, %v852
    %v862 = vextract.low.u32 %v861
    %v863 = vextract.high.u32 %v861
    %v864 = vmul.u32 %v857, %v848
    %v865 = vadd.s32 %v860, %v862
    %vm866 = vc.u32 %v860, %v862
    %v867 = vadd.s32 %v863, 1
    %v868 = vsel %vm866, %v867, %v863
    %v869 = vadd.s32 %v864, %v868
    %v870 = vadd.s32 %v869, 536870912
    %v871 = vshrl.u32 %v870, 30
    %v872 = vshll.u32 %v871, 30
    %v873 = vsub.s32 %v869, %v872
    %vm874 = vcmp.lt.s32.totalorder %v873, 0
    %v875 = vsub.s32 0, %v873
    %v876 = vsel %vm874, %v875, %v873
    %v877 = vclz %v876
    %v878 = vsub.s32 %v877, 2
    %vm879 = vcmp.gt.s32.totalorder 0, %v878
    %v880 = vsel %vm879, 0, %v878
    %v881 = vsub.s32 32, %v880
    %v882 = vshll.u32 %v873, %v880
    %v883 = vshrl.u32 %v865, %v881
    %v884 = vor.u32 %v882, %v883
    %v885 = vsub.s32 4294967266, %v880
    %v886 = vadd.s32 %v885, 127
    %v887 = vshll.u32 %v886, 23
    %v888 = vor.u32 4788187, %v887
    %v889 = vand.u32 2147483647, %v888
    %v891 = vcvt.s32.f32 %v884
    %v892 = vmul.f32 %v891, %v889
    %v893 = vxor.u32 %v892, 2147483648
    %v894 = vsel %vm811, %v893, %v892
    %v895 = vsub.s32 4, %v871
    %v896 = vsel %vm811, %v895, %v871
    %v897 = vsel %vm810, %v177, %v894
    %v898 = vsel %vm810, 0, %v896
    %v899 = vcosq.f32.pop %v897
    %v900 = vsinq.f32.pop %v897
    %vm901 = vweird.f32 %v177
    %v902 = vadd.s32 %v898, 3
    %v903 = vand.u32 %v902, 3
    %vm904 = vcmp.lt.s32.totalorder %v903, 2
    %vm905 = vcmp.eq.s32.totalorder %v903, 0
    %v906 = vxor.u32 %v900, 2147483648
    %v907 = vsel %vm905, %v899, %v906
    %vm908 = vcmp.eq.s32.totalorder %v903, 2
    %v909 = vxor.u32 %v899, 2147483648
    %v910 = vsel %vm908, %v909, %v900
    %v911 = vsel %vm904, %v907, %v910
    %v912 = vsel %vm901, nan, %v911
    %v913 = vand.u32 2147483647, %v182
    %vm914 = vcmp.le.f32.partialorder %v913, 0.7853982
    %vm915 = vcmp.lt.s32.totalorder %v182, 0
    %v916 = vand.u32 %v182, 2139095040
    %v917 = vshrl.u32 %v916, 23
    %v918 = vsub.s32 %v917, 127
    %v919 = vand.u32 2147483647, %v182
    %v920 = vand.u32 %v919, 8388607
    %v921 = vor.u32 %v920, 8388608
    %v922 = vsub.s32 0, %v921
    %v923 = vadd.s32 %v918, 1
    %vm924 = vcmp.gt.s32.totalorder %v923, 0
    %v925 = vsel %vm924, %v923, 0
    %v926 = vshrl.u32 %v925, 5
    %v927 = vand.u32 %v925, 31
    %v928 = vsub.s32 32, %v927
    %v929 = vshrl.u32 683565275, %v928
    %v930 = vshll.u32 683565275, %v927
    %v931 = vshrl.u32 2475754826, %v928
    %v932 = vor.u32 %v930, %v931
    %v933 = vshll.u32 2475754826, %v927
    %v934 = vshrl.u32 2131351028, %v928
    %v935 = vor.u32 %v933, %v934
    %v936 = vshll.u32 2131351028, %v927
    %v937 = vshrl.u32 2102212464, %v928
    %v938 = vor.u32 %v936, %v937
    %v939 = vshll.u32 2102212464, %v927
    %v940 = vshrl.u32 920167782, %v928
    %v941 = vor.u32 %v939, %v940
    %v942 = vshll.u32 920167782, %v927
    %v943 = vshrl.u32 1326507024, %v928
    %v944 = vor.u32 %v942, %v943
    %vm945 = vcmp.lt.s32.totalorder %v926, 1
    %vm946 = vcmp.lt.s32.totalorder %v926, 2
    %vm947 = vcmp.lt.s32.totalorder %v926, 3
    %vm948 = vcmp.lt.s32.totalorder %v926, 4
    %v949 = vsel %vm945, %v929, %v932
    %v950 = vsel %vm948, %v938, 2102212464
    %v951 = vsel %vm947, %v935, %v950
    %v952 = vsel %vm946, %v949, %v951
    %v953 = vsel %vm945, %v932, %v935
    %v954 = vsel %vm948, %v941, 920167782
    %v955 = vsel %vm947, %v938, %v954
    %v956 = vsel %vm946, %v953, %v955
    %v957 = vsel %vm945, %v935, %v938
    %v958 = vsel %vm948, %v944, 1326507024
    %v959 = vsel %vm947, %v941, %v958
    %v960 = vsel %vm946, %v957, %v959
    %v961 = vshll.u32 %v921, 8
    %v962 = vmul.u32.u64.compose %v961, %v960
    %v963 = vextract.low.u32 %v962
    %v964 = vextract.high.u32 %v962
    %v965 = vmul.u32.u64.compose %v961, %v956
    %v966 = vextract.low.u32 %v965
    %v967 = vextract.high.u32 %v965
    %v968 = vmul.u32 %v961, %v952
    %v969 = vadd.s32 %v964, %v966
    %vm970 = vc.u32 %v964, %v966
    %v971 = vadd.s32 %v967, 1
    %v972 = vsel %vm970, %v971, %v967
    %v973 = vadd.s32 %v968, %v972
    %v974 = vadd.s32 %v973, 536870912
    %v975 = vshrl.u32 %v974, 30
    %v976 = vshll.u32 %v975, 30
    %v977 = vsub.s32 %v973, %v976
    %vm978 = vcmp.lt.s32.totalorder %v977, 0
    %v979 = vsub.s32 0, %v977
    %v980 = vsel %vm978, %v979, %v977
    %v981 = vclz %v980
    %v982 = vsub.s32 %v981, 2
    %vm983 = vcmp.gt.s32.totalorder 0, %v982
    %v984 = vsel %vm983, 0, %v982
    %v985 = vsub.s32 32, %v984
    %v986 = vshll.u32 %v977, %v984
    %v987 = vshrl.u32 %v969, %v985
    %v988 = vor.u32 %v986, %v987
    %v989 = vsub.s32 4294967266, %v984
    %v990 = vadd.s32 %v989, 127
    %v991 = vshll.u32 %v990, 23
    %v992 = vor.u32 4788187, %v991
    %v993 = vand.u32 2147483647, %v992
    %v995 = vcvt.s32.f32 %v988
    %v996 = vmul.f32 %v995, %v993
    %v997 = vxor.u32 %v996, 2147483648
    %v998 = vsel %vm915, %v997, %v996
    %v999 = vsub.s32 4, %v975
    %v1000 = vsel %vm915, %v999, %v975
    %v1001 = vsel %vm914, %v182, %v998
    %v1002 = vsel %vm914, 0, %v1000
    %v1003 = vcosq.f32.pop %v1001
    %v1004 = vsinq.f32.pop %v1001
    %vm1005 = vweird.f32 %v182
    %v1006 = vadd.s32 %v1002, 3
    %v1007 = vand.u32 %v1006, 3
    %vm1008 = vcmp.lt.s32.totalorder %v1007, 2
    %vm1009 = vcmp.eq.s32.totalorder %v1007, 0
    %v1010 = vxor.u32 %v1004, 2147483648
    %v1011 = vsel %vm1009, %v1003, %v1010
    %vm1012 = vcmp.eq.s32.totalorder %v1007, 2
    %v1013 = vxor.u32 %v1003, 2147483648
    %v1014 = vsel %vm1012, %v1013, %v1004
    %v1015 = vsel %vm1008, %v1011, %v1014
    %v1016 = vsel %vm1005, nan, %v1015
    %1017 = vst [vmem:[#allocation5] sm:$0xff] %v288
    %1018 = vst [vmem:[#allocation5 + $0x8] sm:$0xff] %v392
    %1019 = vst [vmem:[#allocation5 + $0x10] sm:$0xff] %v496
    %1020 = vst [vmem:[#allocation5 + $0x18] sm:$0xff] %v600
    %1021 = vst [vmem:[#allocation5 + $0x20] sm:$0xff] %v704
    %1022 = vst [vmem:[#allocation5 + $0x28] sm:$0xff] %v808
    %1023 = vst [vmem:[#allocation5 + $0x30] sm:$0xff] %v912
    %1024 = vst [vmem:[#allocation5 + $0x38] sm:$0xff] %v1016
    %v1025 = vld [vmem:[#allocation2] sm:$0xff]
    %v1026 = vld [vmem:[#allocation2 + $0x8] sm:$0xff]
    %v1027 = vld [vmem:[#allocation2 + $0x10] sm:$0xff]
    %v1028 = vld [vmem:[#allocation2 + $0x18] sm:$0xff]
    %v1029 = vld [vmem:[#allocation2 + $0x20] sm:$0xff]
    %v1030 = vld [vmem:[#allocation2 + $0x28] sm:$0xff]
    %v1031 = vld [vmem:[#allocation2 + $0x30] sm:$0xff]
    %v1032 = vld [vmem:[#allocation2 + $0x38] sm:$0xff]
    %v1033 = vld [vmem:[#allocation2 + $0x40] sm:$0xff]
    %v1034 = vld [vmem:[#allocation2 + $0x48] sm:$0xff]
    %v1035 = vld [vmem:[#allocation2 + $0x50] sm:$0xff]
    %v1036 = vld [vmem:[#allocation2 + $0x58] sm:$0xff]
    %v1037 = vld [vmem:[#allocation2 + $0x60] sm:$0xff]
    %v1038 = vld [vmem:[#allocation2 + $0x68] sm:$0xff]
    %v1039 = vld [vmem:[#allocation2 + $0x70] sm:$0xff]
    %v1040 = vld [vmem:[#allocation2 + $0x78] sm:$0xff]
    %s1041 = scalar_lea.vmem %s3, 1
    %v1042 = vld [vmem:[%s1041] sm:$0x1]
    %v1044 = vlaneseq
    %v1045 = vshrl.u32 %v1044, 7
    %v1046 = vsub.s32 0, %v1045
    %v1047 = vrot.slane %v1042, %v1046
    %1049 = vmatprep.subr.mxu0 0.0
    %1050 = vmatpush1.msra.mxu0 %v1040
    %1051 = vmatprep.subr.mxu0 0.0
    %1052 = vmatpush1.msra.mxu0 %v1039
    %1053 = vmatprep.subr.mxu0 0.0
    %1054 = vmatpush1.msra.mxu0 %v1038
    %1055 = vmatprep.subr.mxu0 0.0
    %1056 = vmatpush1.msra.mxu0 %v1037
    %1057 = vmatprep.subr.mxu0 0.0
    %1058 = vmatpush1.msra.mxu0 %v1036
    %1059 = vmatprep.subr.mxu0 0.0
    %1060 = vmatpush1.msra.mxu0 %v1035
    %1061 = vmatprep.subr.mxu0 0.0
    %1062 = vmatpush1.msra.mxu0 %v1034
    %1063 = vmatprep.subr.mxu0 0.0
    %1064 = vmatpush1.msra.mxu0 %v1033
    %1065 = vmatprep.subr.mxu0 0.0
    %1066 = vmatpush1.msra.mxu0 %v1032
    %1067 = vmatprep.subr.mxu0 0.0
    %1068 = vmatpush1.msra.mxu0 %v1031
    %1069 = vmatprep.subr.mxu0 0.0
    %1070 = vmatpush1.msra.mxu0 %v1030
    %1071 = vmatprep.subr.mxu0 0.0
    %1072 = vmatpush1.msra.mxu0 %v1029
    %1073 = vmatprep.subr.mxu0 0.0
    %1074 = vmatpush1.msra.mxu0 %v1028
    %1075 = vmatprep.subr.mxu0 0.0
    %1076 = vmatpush1.msra.mxu0 %v1027
    %1077 = vmatprep.subr.mxu0 0.0
    %1078 = vmatpush1.msra.mxu0 %v1026
    %1079 = vmatprep.subr.mxu0 0.0
    %1080 = vmatpush1.msra.mxu0 %v1025
    %1081 = vmatprep.subr.mxu0 0.0
    %1082 = vmatpush2.msra.mxu0 0.0
    %1083 = vmatprep.subr.mxu0 0.0
    %1084 = vmatpush2.msra.mxu0 0.0
    %1085 = vmatprep.subr.mxu0 0.0
    %1086 = vmatpush2.msra.mxu0 0.0
    %1087 = vmatprep.subr.mxu0 0.0
    %1088 = vmatpush2.msra.mxu0 0.0
    %1089 = vmatprep.subr.mxu0 0.0
    %1090 = vmatpush2.msra.mxu0 0.0
    %1091 = vmatprep.subr.mxu0 0.0
    %1092 = vmatpush2.msra.mxu0 0.0
    %1093 = vmatprep.subr.mxu0 0.0
    %1094 = vmatpush2.msra.mxu0 0.0
    %1095 = vmatprep.subr.mxu0 0.0
    %1096 = vmatpush2.msra.mxu0 0.0
    %1097 = vmatprep.subr.mxu0 0.0
    %1098 = vmatpush2.msra.mxu0 0.0
    %1099 = vmatprep.subr.mxu0 0.0
    %1100 = vmatpush2.msra.mxu0 0.0
    %1101 = vmatprep.subr.mxu0 0.0
    %1102 = vmatpush2.msra.mxu0 0.0
    %1103 = vmatprep.subr.mxu0 0.0
    %1104 = vmatpush2.msra.mxu0 0.0
    %1105 = vmatprep.subr.mxu0 0.0
    %1106 = vmatpush2.msra.mxu0 0.0
    %1107 = vmatprep.subr.mxu0 0.0
    %1108 = vmatpush2.msra.mxu0 0.0
    %1109 = vmatprep.subr.mxu0 0.0
    %1110 = vmatpush2.msra.mxu0 0.0
    %1111 = vmatprep.subr.mxu0 0.0
    %1112 = vmatpush2.msra.mxu0 0.0
    %1113 = vmatprep.mubr.f32.mxu0 0.0
    %1114 = vmatmul.mubr.f32.gmra.mxu0 %v288
    %v1115 = vpop.f32.mrf.mxu0
    %v1116 = vadd.f32 %v1047, %v1115
    %v1117 = vpop.f32.mrf.mxu0
    %1118 = vmatprep.mubr.f32.mxu0 0.0
    %1119 = vmatmul.mubr.f32.gmra.mxu0 %v392
    %v1120 = vpop.f32.mrf.mxu0
    %v1121 = vadd.f32 %v1047, %v1120
    %v1122 = vpop.f32.mrf.mxu0
    %1123 = vmatprep.mubr.f32.mxu0 0.0
    %1124 = vmatmul.mubr.f32.gmra.mxu0 %v496
    %v1125 = vpop.f32.mrf.mxu0
    %v1126 = vadd.f32 %v1047, %v1125
    %v1127 = vpop.f32.mrf.mxu0
    %1128 = vmatprep.mubr.f32.mxu0 0.0
    %1129 = vmatmul.mubr.f32.gmra.mxu0 %v600
    %v1130 = vpop.f32.mrf.mxu0
    %v1131 = vadd.f32 %v1047, %v1130
    %v1132 = vpop.f32.mrf.mxu0
    %1133 = vmatprep.mubr.f32.mxu0 0.0
    %1134 = vmatmul.mubr.f32.gmra.mxu0 %v704
    %v1135 = vpop.f32.mrf.mxu0
    %v1136 = vadd.f32 %v1047, %v1135
    %v1137 = vpop.f32.mrf.mxu0
    %1138 = vmatprep.mubr.f32.mxu0 0.0
    %1139 = vmatmul.mubr.f32.gmra.mxu0 %v808
    %v1140 = vpop.f32.mrf.mxu0
    %v1141 = vadd.f32 %v1047, %v1140
    %v1142 = vpop.f32.mrf.mxu0
    %1143 = vmatprep.mubr.f32.mxu0 0.0
    %1144 = vmatmul.mubr.f32.gmra.mxu0 %v912
    %v1145 = vpop.f32.mrf.mxu0
    %v1146 = vadd.f32 %v1047, %v1145
    %v1147 = vpop.f32.mrf.mxu0
    %1148 = vmatprep.mubr.f32.mxu0 0.0
    %1149 = vmatmul.mubr.f32.gmra.mxu0 %v1016
    %v1150 = vpop.f32.mrf.mxu0
    %v1151 = vadd.f32 %v1047, %v1150
    %v1152 = vpop.f32.mrf.mxu0
    %1153 = vdwg.mxu0
    %v1154 = vand.u32 2147483647, %v1116
    %vm1155 = vcmp.le.f32.partialorder %v1154, 0.7853982
    %vm1156 = vcmp.lt.s32.totalorder %v1116, 0
    %v1157 = vand.u32 %v1116, 2139095040
    %v1158 = vshrl.u32 %v1157, 23
    %v1159 = vsub.s32 %v1158, 127
    %v1160 = vand.u32 2147483647, %v1116
    %v1161 = vand.u32 %v1160, 8388607
    %v1162 = vor.u32 %v1161, 8388608
    %v1163 = vsub.s32 0, %v1162
    %v1164 = vadd.s32 %v1159, 1
    %vm1165 = vcmp.gt.s32.totalorder %v1164, 0
    %v1166 = vsel %vm1165, %v1164, 0
    %v1167 = vshrl.u32 %v1166, 5
    %v1168 = vand.u32 %v1166, 31
    %v1169 = vsub.s32 32, %v1168
    %v1170 = vshrl.u32 683565275, %v1169
    %v1171 = vshll.u32 683565275, %v1168
    %v1172 = vshrl.u32 2475754826, %v1169
    %v1173 = vor.u32 %v1171, %v1172
    %v1174 = vshll.u32 2475754826, %v1168
    %v1175 = vshrl.u32 2131351028, %v1169
    %v1176 = vor.u32 %v1174, %v1175
    %v1177 = vshll.u32 2131351028, %v1168
    %v1178 = vshrl.u32 2102212464, %v1169
    %v1179 = vor.u32 %v1177, %v1178
    %v1180 = vshll.u32 2102212464, %v1168
    %v1181 = vshrl.u32 920167782, %v1169
    %v1182 = vor.u32 %v1180, %v1181
    %v1183 = vshll.u32 920167782, %v1168
    %v1184 = vshrl.u32 1326507024, %v1169
    %v1185 = vor.u32 %v1183, %v1184
    %vm1186 = vcmp.lt.s32.totalorder %v1167, 1
    %vm1187 = vcmp.lt.s32.totalorder %v1167, 2
    %vm1188 = vcmp.lt.s32.totalorder %v1167, 3
    %vm1189 = vcmp.lt.s32.totalorder %v1167, 4
    %v1190 = vsel %vm1186, %v1170, %v1173
    %v1191 = vsel %vm1189, %v1179, 2102212464
    %v1192 = vsel %vm1188, %v1176, %v1191
    %v1193 = vsel %vm1187, %v1190, %v1192
    %v1194 = vsel %vm1186, %v1173, %v1176
    %v1195 = vsel %vm1189, %v1182, 920167782
    %v1196 = vsel %vm1188, %v1179, %v1195
    %v1197 = vsel %vm1187, %v1194, %v1196
    %v1198 = vsel %vm1186, %v1176, %v1179
    %v1199 = vsel %vm1189, %v1185, 1326507024
    %v1200 = vsel %vm1188, %v1182, %v1199
    %v1201 = vsel %vm1187, %v1198, %v1200
    %v1202 = vshll.u32 %v1162, 8
    %v1203 = vmul.u32.u64.compose %v1202, %v1201
    %v1204 = vextract.low.u32 %v1203
    %v1205 = vextract.high.u32 %v1203
    %v1206 = vmul.u32.u64.compose %v1202, %v1197
    %v1207 = vextract.low.u32 %v1206
    %v1208 = vextract.high.u32 %v1206
    %v1209 = vmul.u32 %v1202, %v1193
    %v1210 = vadd.s32 %v1205, %v1207
    %vm1211 = vc.u32 %v1205, %v1207
    %v1212 = vadd.s32 %v1208, 1
    %v1213 = vsel %vm1211, %v1212, %v1208
    %v1214 = vadd.s32 %v1209, %v1213
    %v1215 = vadd.s32 %v1214, 536870912
    %v1216 = vshrl.u32 %v1215, 30
    %v1217 = vshll.u32 %v1216, 30
    %v1218 = vsub.s32 %v1214, %v1217
    %vm1219 = vcmp.lt.s32.totalorder %v1218, 0
    %v1220 = vsub.s32 0, %v1218
    %v1221 = vsel %vm1219, %v1220, %v1218
    %v1222 = vclz %v1221
    %v1223 = vsub.s32 %v1222, 2
    %vm1224 = vcmp.gt.s32.totalorder 0, %v1223
    %v1225 = vsel %vm1224, 0, %v1223
    %v1226 = vsub.s32 32, %v1225
    %v1227 = vshll.u32 %v1218, %v1225
    %v1228 = vshrl.u32 %v1210, %v1226
    %v1229 = vor.u32 %v1227, %v1228
    %v1230 = vsub.s32 4294967266, %v1225
    %v1231 = vadd.s32 %v1230, 127
    %v1232 = vshll.u32 %v1231, 23
    %v1233 = vor.u32 4788187, %v1232
    %v1234 = vand.u32 2147483647, %v1233
    %v1236 = vcvt.s32.f32 %v1229
    %v1237 = vmul.f32 %v1236, %v1234
    %v1238 = vxor.u32 %v1237, 2147483648
    %v1239 = vsel %vm1156, %v1238, %v1237
    %v1240 = vsub.s32 4, %v1216
    %v1241 = vsel %vm1156, %v1240, %v1216
    %v1242 = vsel %vm1155, %v1116, %v1239
    %v1243 = vsel %vm1155, 0, %v1241
    %v1244 = vcosq.f32.pop %v1242
    %v1245 = vsinq.f32.pop %v1242
    %vm1246 = vweird.f32 %v1116
    %v1247 = vadd.s32 %v1243, 3
    %v1248 = vand.u32 %v1247, 3
    %vm1249 = vcmp.lt.s32.totalorder %v1248, 2
    %vm1250 = vcmp.eq.s32.totalorder %v1248, 0
    %v1251 = vxor.u32 %v1245, 2147483648
    %v1252 = vsel %vm1250, %v1244, %v1251
    %vm1253 = vcmp.eq.s32.totalorder %v1248, 2
    %v1254 = vxor.u32 %v1244, 2147483648
    %v1255 = vsel %vm1253, %v1254, %v1245
    %v1256 = vsel %vm1249, %v1252, %v1255
    %v1257 = vsel %vm1246, nan, %v1256
    %v1258 = vand.u32 2147483647, %v1121
    %vm1259 = vcmp.le.f32.partialorder %v1258, 0.7853982
    %vm1260 = vcmp.lt.s32.totalorder %v1121, 0
    %v1261 = vand.u32 %v1121, 2139095040
    %v1262 = vshrl.u32 %v1261, 23
    %v1263 = vsub.s32 %v1262, 127
    %v1264 = vand.u32 2147483647, %v1121
    %v1265 = vand.u32 %v1264, 8388607
    %v1266 = vor.u32 %v1265, 8388608
    %v1267 = vsub.s32 0, %v1266
    %v1268 = vadd.s32 %v1263, 1
    %vm1269 = vcmp.gt.s32.totalorder %v1268, 0
    %v1270 = vsel %vm1269, %v1268, 0
    %v1271 = vshrl.u32 %v1270, 5
    %v1272 = vand.u32 %v1270, 31
    %v1273 = vsub.s32 32, %v1272
    %v1274 = vshrl.u32 683565275, %v1273
    %v1275 = vshll.u32 683565275, %v1272
    %v1276 = vshrl.u32 2475754826, %v1273
    %v1277 = vor.u32 %v1275, %v1276
    %v1278 = vshll.u32 2475754826, %v1272
    %v1279 = vshrl.u32 2131351028, %v1273
    %v1280 = vor.u32 %v1278, %v1279
    %v1281 = vshll.u32 2131351028, %v1272
    %v1282 = vshrl.u32 2102212464, %v1273
    %v1283 = vor.u32 %v1281, %v1282
    %v1284 = vshll.u32 2102212464, %v1272
    %v1285 = vshrl.u32 920167782, %v1273
    %v1286 = vor.u32 %v1284, %v1285
    %v1287 = vshll.u32 920167782, %v1272
    %v1288 = vshrl.u32 1326507024, %v1273
    %v1289 = vor.u32 %v1287, %v1288
    %vm1290 = vcmp.lt.s32.totalorder %v1271, 1
    %vm1291 = vcmp.lt.s32.totalorder %v1271, 2
    %vm1292 = vcmp.lt.s32.totalorder %v1271, 3
    %vm1293 = vcmp.lt.s32.totalorder %v1271, 4
    %v1294 = vsel %vm1290, %v1274, %v1277
    %v1295 = vsel %vm1293, %v1283, 2102212464
    %v1296 = vsel %vm1292, %v1280, %v1295
    %v1297 = vsel %vm1291, %v1294, %v1296
    %v1298 = vsel %vm1290, %v1277, %v1280
    %v1299 = vsel %vm1293, %v1286, 920167782
    %v1300 = vsel %vm1292, %v1283, %v1299
    %v1301 = vsel %vm1291, %v1298, %v1300
    %v1302 = vsel %vm1290, %v1280, %v1283
    %v1303 = vsel %vm1293, %v1289, 1326507024
    %v1304 = vsel %vm1292, %v1286, %v1303
    %v1305 = vsel %vm1291, %v1302, %v1304
    %v1306 = vshll.u32 %v1266, 8
    %v1307 = vmul.u32.u64.compose %v1306, %v1305
    %v1308 = vextract.low.u32 %v1307
    %v1309 = vextract.high.u32 %v1307
    %v1310 = vmul.u32.u64.compose %v1306, %v1301
    %v1311 = vextract.low.u32 %v1310
    %v1312 = vextract.high.u32 %v1310
    %v1313 = vmul.u32 %v1306, %v1297
    %v1314 = vadd.s32 %v1309, %v1311
    %vm1315 = vc.u32 %v1309, %v1311
    %v1316 = vadd.s32 %v1312, 1
    %v1317 = vsel %vm1315, %v1316, %v1312
    %v1318 = vadd.s32 %v1313, %v1317
    %v1319 = vadd.s32 %v1318, 536870912
    %v1320 = vshrl.u32 %v1319, 30
    %v1321 = vshll.u32 %v1320, 30
    %v1322 = vsub.s32 %v1318, %v1321
    %vm1323 = vcmp.lt.s32.totalorder %v1322, 0
    %v1324 = vsub.s32 0, %v1322
    %v1325 = vsel %vm1323, %v1324, %v1322
    %v1326 = vclz %v1325
    %v1327 = vsub.s32 %v1326, 2
    %vm1328 = vcmp.gt.s32.totalorder 0, %v1327
    %v1329 = vsel %vm1328, 0, %v1327
    %v1330 = vsub.s32 32, %v1329
    %v1331 = vshll.u32 %v1322, %v1329
    %v1332 = vshrl.u32 %v1314, %v1330
    %v1333 = vor.u32 %v1331, %v1332
    %v1334 = vsub.s32 4294967266, %v1329
    %v1335 = vadd.s32 %v1334, 127
    %v1336 = vshll.u32 %v1335, 23
    %v1337 = vor.u32 4788187, %v1336
    %v1338 = vand.u32 2147483647, %v1337
    %v1340 = vcvt.s32.f32 %v1333
    %v1341 = vmul.f32 %v1340, %v1338
    %v1342 = vxor.u32 %v1341, 2147483648
    %v1343 = vsel %vm1260, %v1342, %v1341
    %v1344 = vsub.s32 4, %v1320
    %v1345 = vsel %vm1260, %v1344, %v1320
    %v1346 = vsel %vm1259, %v1121, %v1343
    %v1347 = vsel %vm1259, 0, %v1345
    %v1348 = vcosq.f32.pop %v1346
    %v1349 = vsinq.f32.pop %v1346
    %vm1350 = vweird.f32 %v1121
    %v1351 = vadd.s32 %v1347, 3
    %v1352 = vand.u32 %v1351, 3
    %vm1353 = vcmp.lt.s32.totalorder %v1352, 2
    %vm1354 = vcmp.eq.s32.totalorder %v1352, 0
    %v1355 = vxor.u32 %v1349, 2147483648
    %v1356 = vsel %vm1354, %v1348, %v1355
    %vm1357 = vcmp.eq.s32.totalorder %v1352, 2
    %v1358 = vxor.u32 %v1348, 2147483648
    %v1359 = vsel %vm1357, %v1358, %v1349
    %v1360 = vsel %vm1353, %v1356, %v1359
    %v1361 = vsel %vm1350, nan, %v1360
    %v1362 = vand.u32 2147483647, %v1126
    %vm1363 = vcmp.le.f32.partialorder %v1362, 0.7853982
    %vm1364 = vcmp.lt.s32.totalorder %v1126, 0
    %v1365 = vand.u32 %v1126, 2139095040
    %v1366 = vshrl.u32 %v1365, 23
    %v1367 = vsub.s32 %v1366, 127
    %v1368 = vand.u32 2147483647, %v1126
    %v1369 = vand.u32 %v1368, 8388607
    %v1370 = vor.u32 %v1369, 8388608
    %v1371 = vsub.s32 0, %v1370
    %v1372 = vadd.s32 %v1367, 1
    %vm1373 = vcmp.gt.s32.totalorder %v1372, 0
    %v1374 = vsel %vm1373, %v1372, 0
    %v1375 = vshrl.u32 %v1374, 5
    %v1376 = vand.u32 %v1374, 31
    %v1377 = vsub.s32 32, %v1376
    %v1378 = vshrl.u32 683565275, %v1377
    %v1379 = vshll.u32 683565275, %v1376
    %v1380 = vshrl.u32 2475754826, %v1377
    %v1381 = vor.u32 %v1379, %v1380
    %v1382 = vshll.u32 2475754826, %v1376
    %v1383 = vshrl.u32 2131351028, %v1377
    %v1384 = vor.u32 %v1382, %v1383
    %v1385 = vshll.u32 2131351028, %v1376
    %v1386 = vshrl.u32 2102212464, %v1377
    %v1387 = vor.u32 %v1385, %v1386
    %v1388 = vshll.u32 2102212464, %v1376
    %v1389 = vshrl.u32 920167782, %v1377
    %v1390 = vor.u32 %v1388, %v1389
    %v1391 = vshll.u32 920167782, %v1376
    %v1392 = vshrl.u32 1326507024, %v1377
    %v1393 = vor.u32 %v1391, %v1392
    %vm1394 = vcmp.lt.s32.totalorder %v1375, 1
    %vm1395 = vcmp.lt.s32.totalorder %v1375, 2
    %vm1396 = vcmp.lt.s32.totalorder %v1375, 3
    %vm1397 = vcmp.lt.s32.totalorder %v1375, 4
    %v1398 = vsel %vm1394, %v1378, %v1381
    %v1399 = vsel %vm1397, %v1387, 2102212464
    %v1400 = vsel %vm1396, %v1384, %v1399
    %v1401 = vsel %vm1395, %v1398, %v1400
    %v1402 = vsel %vm1394, %v1381, %v1384
    %v1403 = vsel %vm1397, %v1390, 920167782
    %v1404 = vsel %vm1396, %v1387, %v1403
    %v1405 = vsel %vm1395, %v1402, %v1404
    %v1406 = vsel %vm1394, %v1384, %v1387
    %v1407 = vsel %vm1397, %v1393, 1326507024
    %v1408 = vsel %vm1396, %v1390, %v1407
    %v1409 = vsel %vm1395, %v1406, %v1408
    %v1410 = vshll.u32 %v1370, 8
    %v1411 = vmul.u32.u64.compose %v1410, %v1409
    %v1412 = vextract.low.u32 %v1411
    %v1413 = vextract.high.u32 %v1411
    %v1414 = vmul.u32.u64.compose %v1410, %v1405
    %v1415 = vextract.low.u32 %v1414
    %v1416 = vextract.high.u32 %v1414
    %v1417 = vmul.u32 %v1410, %v1401
    %v1418 = vadd.s32 %v1413, %v1415
    %vm1419 = vc.u32 %v1413, %v1415
    %v1420 = vadd.s32 %v1416, 1
    %v1421 = vsel %vm1419, %v1420, %v1416
    %v1422 = vadd.s32 %v1417, %v1421
    %v1423 = vadd.s32 %v1422, 536870912
    %v1424 = vshrl.u32 %v1423, 30
    %v1425 = vshll.u32 %v1424, 30
    %v1426 = vsub.s32 %v1422, %v1425
    %vm1427 = vcmp.lt.s32.totalorder %v1426, 0
    %v1428 = vsub.s32 0, %v1426
    %v1429 = vsel %vm1427, %v1428, %v1426
    %v1430 = vclz %v1429
    %v1431 = vsub.s32 %v1430, 2
    %vm1432 = vcmp.gt.s32.totalorder 0, %v1431
    %v1433 = vsel %vm1432, 0, %v1431
    %v1434 = vsub.s32 32, %v1433
    %v1435 = vshll.u32 %v1426, %v1433
    %v1436 = vshrl.u32 %v1418, %v1434
    %v1437 = vor.u32 %v1435, %v1436
    %v1438 = vsub.s32 4294967266, %v1433
    %v1439 = vadd.s32 %v1438, 127
    %v1440 = vshll.u32 %v1439, 23
    %v1441 = vor.u32 4788187, %v1440
    %v1442 = vand.u32 2147483647, %v1441
    %v1444 = vcvt.s32.f32 %v1437
    %v1445 = vmul.f32 %v1444, %v1442
    %v1446 = vxor.u32 %v1445, 2147483648
    %v1447 = vsel %vm1364, %v1446, %v1445
    %v1448 = vsub.s32 4, %v1424
    %v1449 = vsel %vm1364, %v1448, %v1424
    %v1450 = vsel %vm1363, %v1126, %v1447
    %v1451 = vsel %vm1363, 0, %v1449
    %v1452 = vcosq.f32.pop %v1450
    %v1453 = vsinq.f32.pop %v1450
    %vm1454 = vweird.f32 %v1126
    %v1455 = vadd.s32 %v1451, 3
    %v1456 = vand.u32 %v1455, 3
    %vm1457 = vcmp.lt.s32.totalorder %v1456, 2
    %vm1458 = vcmp.eq.s32.totalorder %v1456, 0
    %v1459 = vxor.u32 %v1453, 2147483648
    %v1460 = vsel %vm1458, %v1452, %v1459
    %vm1461 = vcmp.eq.s32.totalorder %v1456, 2
    %v1462 = vxor.u32 %v1452, 2147483648
    %v1463 = vsel %vm1461, %v1462, %v1453
    %v1464 = vsel %vm1457, %v1460, %v1463
    %v1465 = vsel %vm1454, nan, %v1464
    %v1466 = vand.u32 2147483647, %v1131
    %vm1467 = vcmp.le.f32.partialorder %v1466, 0.7853982
    %vm1468 = vcmp.lt.s32.totalorder %v1131, 0
    %v1469 = vand.u32 %v1131, 2139095040
    %v1470 = vshrl.u32 %v1469, 23
    %v1471 = vsub.s32 %v1470, 127
    %v1472 = vand.u32 2147483647, %v1131
    %v1473 = vand.u32 %v1472, 8388607
    %v1474 = vor.u32 %v1473, 8388608
    %v1475 = vsub.s32 0, %v1474
    %v1476 = vadd.s32 %v1471, 1
    %vm1477 = vcmp.gt.s32.totalorder %v1476, 0
    %v1478 = vsel %vm1477, %v1476, 0
    %v1479 = vshrl.u32 %v1478, 5
    %v1480 = vand.u32 %v1478, 31
    %v1481 = vsub.s32 32, %v1480
    %v1482 = vshrl.u32 683565275, %v1481
    %v1483 = vshll.u32 683565275, %v1480
    %v1484 = vshrl.u32 2475754826, %v1481
    %v1485 = vor.u32 %v1483, %v1484
    %v1486 = vshll.u32 2475754826, %v1480
    %v1487 = vshrl.u32 2131351028, %v1481
    %v1488 = vor.u32 %v1486, %v1487
    %v1489 = vshll.u32 2131351028, %v1480
    %v1490 = vshrl.u32 2102212464, %v1481
    %v1491 = vor.u32 %v1489, %v1490
    %v1492 = vshll.u32 2102212464, %v1480
    %v1493 = vshrl.u32 920167782, %v1481
    %v1494 = vor.u32 %v1492, %v1493
    %v1495 = vshll.u32 920167782, %v1480
    %v1496 = vshrl.u32 1326507024, %v1481
    %v1497 = vor.u32 %v1495, %v1496
    %vm1498 = vcmp.lt.s32.totalorder %v1479, 1
    %vm1499 = vcmp.lt.s32.totalorder %v1479, 2
    %vm1500 = vcmp.lt.s32.totalorder %v1479, 3
    %vm1501 = vcmp.lt.s32.totalorder %v1479, 4
    %v1502 = vsel %vm1498, %v1482, %v1485
    %v1503 = vsel %vm1501, %v1491, 2102212464
    %v1504 = vsel %vm1500, %v1488, %v1503
    %v1505 = vsel %vm1499, %v1502, %v1504
    %v1506 = vsel %vm1498, %v1485, %v1488
    %v1507 = vsel %vm1501, %v1494, 920167782
    %v1508 = vsel %vm1500, %v1491, %v1507
    %v1509 = vsel %vm1499, %v1506, %v1508
    %v1510 = vsel %vm1498, %v1488, %v1491
    %v1511 = vsel %vm1501, %v1497, 1326507024
    %v1512 = vsel %vm1500, %v1494, %v1511
    %v1513 = vsel %vm1499, %v1510, %v1512
    %v1514 = vshll.u32 %v1474, 8
    %v1515 = vmul.u32.u64.compose %v1514, %v1513
    %v1516 = vextract.low.u32 %v1515
    %v1517 = vextract.high.u32 %v1515
    %v1518 = vmul.u32.u64.compose %v1514, %v1509
    %v1519 = vextract.low.u32 %v1518
    %v1520 = vextract.high.u32 %v1518
    %v1521 = vmul.u32 %v1514, %v1505
    %v1522 = vadd.s32 %v1517, %v1519
    %vm1523 = vc.u32 %v1517, %v1519
    %v1524 = vadd.s32 %v1520, 1
    %v1525 = vsel %vm1523, %v1524, %v1520
    %v1526 = vadd.s32 %v1521, %v1525
    %v1527 = vadd.s32 %v1526, 536870912
    %v1528 = vshrl.u32 %v1527, 30
    %v1529 = vshll.u32 %v1528, 30
    %v1530 = vsub.s32 %v1526, %v1529
    %vm1531 = vcmp.lt.s32.totalorder %v1530, 0
    %v1532 = vsub.s32 0, %v1530
    %v1533 = vsel %vm1531, %v1532, %v1530
    %v1534 = vclz %v1533
    %v1535 = vsub.s32 %v1534, 2
    %vm1536 = vcmp.gt.s32.totalorder 0, %v1535
    %v1537 = vsel %vm1536, 0, %v1535
    %v1538 = vsub.s32 32, %v1537
    %v1539 = vshll.u32 %v1530, %v1537
    %v1540 = vshrl.u32 %v1522, %v1538
    %v1541 = vor.u32 %v1539, %v1540
    %v1542 = vsub.s32 4294967266, %v1537
    %v1543 = vadd.s32 %v1542, 127
    %v1544 = vshll.u32 %v1543, 23
    %v1545 = vor.u32 4788187, %v1544
    %v1546 = vand.u32 2147483647, %v1545
    %v1548 = vcvt.s32.f32 %v1541
    %v1549 = vmul.f32 %v1548, %v1546
    %v1550 = vxor.u32 %v1549, 2147483648
    %v1551 = vsel %vm1468, %v1550, %v1549
    %v1552 = vsub.s32 4, %v1528
    %v1553 = vsel %vm1468, %v1552, %v1528
    %v1554 = vsel %vm1467, %v1131, %v1551
    %v1555 = vsel %vm1467, 0, %v1553
    %v1556 = vcosq.f32.pop %v1554
    %v1557 = vsinq.f32.pop %v1554
    %vm1558 = vweird.f32 %v1131
    %v1559 = vadd.s32 %v1555, 3
    %v1560 = vand.u32 %v1559, 3
    %vm1561 = vcmp.lt.s32.totalorder %v1560, 2
    %vm1562 = vcmp.eq.s32.totalorder %v1560, 0
    %v1563 = vxor.u32 %v1557, 2147483648
    %v1564 = vsel %vm1562, %v1556, %v1563
    %vm1565 = vcmp.eq.s32.totalorder %v1560, 2
    %v1566 = vxor.u32 %v1556, 2147483648
    %v1567 = vsel %vm1565, %v1566, %v1557
    %v1568 = vsel %vm1561, %v1564, %v1567
    %v1569 = vsel %vm1558, nan, %v1568
    %v1570 = vand.u32 2147483647, %v1136
    %vm1571 = vcmp.le.f32.partialorder %v1570, 0.7853982
    %vm1572 = vcmp.lt.s32.totalorder %v1136, 0
    %v1573 = vand.u32 %v1136, 2139095040
    %v1574 = vshrl.u32 %v1573, 23
    %v1575 = vsub.s32 %v1574, 127
    %v1576 = vand.u32 2147483647, %v1136
    %v1577 = vand.u32 %v1576, 8388607
    %v1578 = vor.u32 %v1577, 8388608
    %v1579 = vsub.s32 0, %v1578
    %v1580 = vadd.s32 %v1575, 1
    %vm1581 = vcmp.gt.s32.totalorder %v1580, 0
    %v1582 = vsel %vm1581, %v1580, 0
    %v1583 = vshrl.u32 %v1582, 5
    %v1584 = vand.u32 %v1582, 31
    %v1585 = vsub.s32 32, %v1584
    %v1586 = vshrl.u32 683565275, %v1585
    %v1587 = vshll.u32 683565275, %v1584
    %v1588 = vshrl.u32 2475754826, %v1585
    %v1589 = vor.u32 %v1587, %v1588
    %v1590 = vshll.u32 2475754826, %v1584
    %v1591 = vshrl.u32 2131351028, %v1585
    %v1592 = vor.u32 %v1590, %v1591
    %v1593 = vshll.u32 2131351028, %v1584
    %v1594 = vshrl.u32 2102212464, %v1585
    %v1595 = vor.u32 %v1593, %v1594
    %v1596 = vshll.u32 2102212464, %v1584
    %v1597 = vshrl.u32 920167782, %v1585
    %v1598 = vor.u32 %v1596, %v1597
    %v1599 = vshll.u32 920167782, %v1584
    %v1600 = vshrl.u32 1326507024, %v1585
    %v1601 = vor.u32 %v1599, %v1600
    %vm1602 = vcmp.lt.s32.totalorder %v1583, 1
    %vm1603 = vcmp.lt.s32.totalorder %v1583, 2
    %vm1604 = vcmp.lt.s32.totalorder %v1583, 3
    %vm1605 = vcmp.lt.s32.totalorder %v1583, 4
    %v1606 = vsel %vm1602, %v1586, %v1589
    %v1607 = vsel %vm1605, %v1595, 2102212464
    %v1608 = vsel %vm1604, %v1592, %v1607
    %v1609 = vsel %vm1603, %v1606, %v1608
    %v1610 = vsel %vm1602, %v1589, %v1592
    %v1611 = vsel %vm1605, %v1598, 920167782
    %v1612 = vsel %vm1604, %v1595, %v1611
    %v1613 = vsel %vm1603, %v1610, %v1612
    %v1614 = vsel %vm1602, %v1592, %v1595
    %v1615 = vsel %vm1605, %v1601, 1326507024
    %v1616 = vsel %vm1604, %v1598, %v1615
    %v1617 = vsel %vm1603, %v1614, %v1616
    %v1618 = vshll.u32 %v1578, 8
    %v1619 = vmul.u32.u64.compose %v1618, %v1617
    %v1620 = vextract.low.u32 %v1619
    %v1621 = vextract.high.u32 %v1619
    %v1622 = vmul.u32.u64.compose %v1618, %v1613
    %v1623 = vextract.low.u32 %v1622
    %v1624 = vextract.high.u32 %v1622
    %v1625 = vmul.u32 %v1618, %v1609
    %v1626 = vadd.s32 %v1621, %v1623
    %vm1627 = vc.u32 %v1621, %v1623
    %v1628 = vadd.s32 %v1624, 1
    %v1629 = vsel %vm1627, %v1628, %v1624
    %v1630 = vadd.s32 %v1625, %v1629
    %v1631 = vadd.s32 %v1630, 536870912
    %v1632 = vshrl.u32 %v1631, 30
    %v1633 = vshll.u32 %v1632, 30
    %v1634 = vsub.s32 %v1630, %v1633
    %vm1635 = vcmp.lt.s32.totalorder %v1634, 0
    %v1636 = vsub.s32 0, %v1634
    %v1637 = vsel %vm1635, %v1636, %v1634
    %v1638 = vclz %v1637
    %v1639 = vsub.s32 %v1638, 2
    %vm1640 = vcmp.gt.s32.totalorder 0, %v1639
    %v1641 = vsel %vm1640, 0, %v1639
    %v1642 = vsub.s32 32, %v1641
    %v1643 = vshll.u32 %v1634, %v1641
    %v1644 = vshrl.u32 %v1626, %v1642
    %v1645 = vor.u32 %v1643, %v1644
    %v1646 = vsub.s32 4294967266, %v1641
    %v1647 = vadd.s32 %v1646, 127
    %v1648 = vshll.u32 %v1647, 23
    %v1649 = vor.u32 4788187, %v1648
    %v1650 = vand.u32 2147483647, %v1649
    %v1652 = vcvt.s32.f32 %v1645
    %v1653 = vmul.f32 %v1652, %v1650
    %v1654 = vxor.u32 %v1653, 2147483648
    %v1655 = vsel %vm1572, %v1654, %v1653
    %v1656 = vsub.s32 4, %v1632
    %v1657 = vsel %vm1572, %v1656, %v1632
    %v1658 = vsel %vm1571, %v1136, %v1655
    %v1659 = vsel %vm1571, 0, %v1657
    %v1660 = vcosq.f32.pop %v1658
    %v1661 = vsinq.f32.pop %v1658
    %vm1662 = vweird.f32 %v1136
    %v1663 = vadd.s32 %v1659, 3
    %v1664 = vand.u32 %v1663, 3
    %vm1665 = vcmp.lt.s32.totalorder %v1664, 2
    %vm1666 = vcmp.eq.s32.totalorder %v1664, 0
    %v1667 = vxor.u32 %v1661, 2147483648
    %v1668 = vsel %vm1666, %v1660, %v1667
    %vm1669 = vcmp.eq.s32.totalorder %v1664, 2
    %v1670 = vxor.u32 %v1660, 2147483648
    %v1671 = vsel %vm1669, %v1670, %v1661
    %v1672 = vsel %vm1665, %v1668, %v1671
    %v1673 = vsel %vm1662, nan, %v1672
    %v1674 = vand.u32 2147483647, %v1141
    %vm1675 = vcmp.le.f32.partialorder %v1674, 0.7853982
    %vm1676 = vcmp.lt.s32.totalorder %v1141, 0
    %v1677 = vand.u32 %v1141, 2139095040
    %v1678 = vshrl.u32 %v1677, 23
    %v1679 = vsub.s32 %v1678, 127
    %v1680 = vand.u32 2147483647, %v1141
    %v1681 = vand.u32 %v1680, 8388607
    %v1682 = vor.u32 %v1681, 8388608
    %v1683 = vsub.s32 0, %v1682
    %v1684 = vadd.s32 %v1679, 1
    %vm1685 = vcmp.gt.s32.totalorder %v1684, 0
    %v1686 = vsel %vm1685, %v1684, 0
    %v1687 = vshrl.u32 %v1686, 5
    %v1688 = vand.u32 %v1686, 31
    %v1689 = vsub.s32 32, %v1688
    %v1690 = vshrl.u32 683565275, %v1689
    %v1691 = vshll.u32 683565275, %v1688
    %v1692 = vshrl.u32 2475754826, %v1689
    %v1693 = vor.u32 %v1691, %v1692
    %v1694 = vshll.u32 2475754826, %v1688
    %v1695 = vshrl.u32 2131351028, %v1689
    %v1696 = vor.u32 %v1694, %v1695
    %v1697 = vshll.u32 2131351028, %v1688
    %v1698 = vshrl.u32 2102212464, %v1689
    %v1699 = vor.u32 %v1697, %v1698
    %v1700 = vshll.u32 2102212464, %v1688
    %v1701 = vshrl.u32 920167782, %v1689
    %v1702 = vor.u32 %v1700, %v1701
    %v1703 = vshll.u32 920167782, %v1688
    %v1704 = vshrl.u32 1326507024, %v1689
    %v1705 = vor.u32 %v1703, %v1704
    %vm1706 = vcmp.lt.s32.totalorder %v1687, 1
    %vm1707 = vcmp.lt.s32.totalorder %v1687, 2
    %vm1708 = vcmp.lt.s32.totalorder %v1687, 3
    %vm1709 = vcmp.lt.s32.totalorder %v1687, 4
    %v1710 = vsel %vm1706, %v1690, %v1693
    %v1711 = vsel %vm1709, %v1699, 2102212464
    %v1712 = vsel %vm1708, %v1696, %v1711
    %v1713 = vsel %vm1707, %v1710, %v1712
    %v1714 = vsel %vm1706, %v1693, %v1696
    %v1715 = vsel %vm1709, %v1702, 920167782
    %v1716 = vsel %vm1708, %v1699, %v1715
    %v1717 = vsel %vm1707, %v1714, %v1716
    %v1718 = vsel %vm1706, %v1696, %v1699
    %v1719 = vsel %vm1709, %v1705, 1326507024
    %v1720 = vsel %vm1708, %v1702, %v1719
    %v1721 = vsel %vm1707, %v1718, %v1720
    %v1722 = vshll.u32 %v1682, 8
    %v1723 = vmul.u32.u64.compose %v1722, %v1721
    %v1724 = vextract.low.u32 %v1723
    %v1725 = vextract.high.u32 %v1723
    %v1726 = vmul.u32.u64.compose %v1722, %v1717
    %v1727 = vextract.low.u32 %v1726
    %v1728 = vextract.high.u32 %v1726
    %v1729 = vmul.u32 %v1722, %v1713
    %v1730 = vadd.s32 %v1725, %v1727
    %vm1731 = vc.u32 %v1725, %v1727
    %v1732 = vadd.s32 %v1728, 1
    %v1733 = vsel %vm1731, %v1732, %v1728
    %v1734 = vadd.s32 %v1729, %v1733
    %v1735 = vadd.s32 %v1734, 536870912
    %v1736 = vshrl.u32 %v1735, 30
    %v1737 = vshll.u32 %v1736, 30
    %v1738 = vsub.s32 %v1734, %v1737
    %vm1739 = vcmp.lt.s32.totalorder %v1738, 0
    %v1740 = vsub.s32 0, %v1738
    %v1741 = vsel %vm1739, %v1740, %v1738
    %v1742 = vclz %v1741
    %v1743 = vsub.s32 %v1742, 2
    %vm1744 = vcmp.gt.s32.totalorder 0, %v1743
    %v1745 = vsel %vm1744, 0, %v1743
    %v1746 = vsub.s32 32, %v1745
    %v1747 = vshll.u32 %v1738, %v1745
    %v1748 = vshrl.u32 %v1730, %v1746
    %v1749 = vor.u32 %v1747, %v1748
    %v1750 = vsub.s32 4294967266, %v1745
    %v1751 = vadd.s32 %v1750, 127
    %v1752 = vshll.u32 %v1751, 23
    %v1753 = vor.u32 4788187, %v1752
    %v1754 = vand.u32 2147483647, %v1753
    %v1756 = vcvt.s32.f32 %v1749
    %v1757 = vmul.f32 %v1756, %v1754
    %v1758 = vxor.u32 %v1757, 2147483648
    %v1759 = vsel %vm1676, %v1758, %v1757
    %v1760 = vsub.s32 4, %v1736
    %v1761 = vsel %vm1676, %v1760, %v1736
    %v1762 = vsel %vm1675, %v1141, %v1759
    %v1763 = vsel %vm1675, 0, %v1761
    %v1764 = vcosq.f32.pop %v1762
    %v1765 = vsinq.f32.pop %v1762
    %vm1766 = vweird.f32 %v1141
    %v1767 = vadd.s32 %v1763, 3
    %v1768 = vand.u32 %v1767, 3
    %vm1769 = vcmp.lt.s32.totalorder %v1768, 2
    %vm1770 = vcmp.eq.s32.totalorder %v1768, 0
    %v1771 = vxor.u32 %v1765, 2147483648
    %v1772 = vsel %vm1770, %v1764, %v1771
    %vm1773 = vcmp.eq.s32.totalorder %v1768, 2
    %v1774 = vxor.u32 %v1764, 2147483648
    %v1775 = vsel %vm1773, %v1774, %v1765
    %v1776 = vsel %vm1769, %v1772, %v1775
    %v1777 = vsel %vm1766, nan, %v1776
    %v1778 = vand.u32 2147483647, %v1146
    %vm1779 = vcmp.le.f32.partialorder %v1778, 0.7853982
    %vm1780 = vcmp.lt.s32.totalorder %v1146, 0
    %v1781 = vand.u32 %v1146, 2139095040
    %v1782 = vshrl.u32 %v1781, 23
    %v1783 = vsub.s32 %v1782, 127
    %v1784 = vand.u32 2147483647, %v1146
    %v1785 = vand.u32 %v1784, 8388607
    %v1786 = vor.u32 %v1785, 8388608
    %v1787 = vsub.s32 0, %v1786
    %v1788 = vadd.s32 %v1783, 1
    %vm1789 = vcmp.gt.s32.totalorder %v1788, 0
    %v1790 = vsel %vm1789, %v1788, 0
    %v1791 = vshrl.u32 %v1790, 5
    %v1792 = vand.u32 %v1790, 31
    %v1793 = vsub.s32 32, %v1792
    %v1794 = vshrl.u32 683565275, %v1793
    %v1795 = vshll.u32 683565275, %v1792
    %v1796 = vshrl.u32 2475754826, %v1793
    %v1797 = vor.u32 %v1795, %v1796
    %v1798 = vshll.u32 2475754826, %v1792
    %v1799 = vshrl.u32 2131351028, %v1793
    %v1800 = vor.u32 %v1798, %v1799
    %v1801 = vshll.u32 2131351028, %v1792
    %v1802 = vshrl.u32 2102212464, %v1793
    %v1803 = vor.u32 %v1801, %v1802
    %v1804 = vshll.u32 2102212464, %v1792
    %v1805 = vshrl.u32 920167782, %v1793
    %v1806 = vor.u32 %v1804, %v1805
    %v1807 = vshll.u32 920167782, %v1792
    %v1808 = vshrl.u32 1326507024, %v1793
    %v1809 = vor.u32 %v1807, %v1808
    %vm1810 = vcmp.lt.s32.totalorder %v1791, 1
    %vm1811 = vcmp.lt.s32.totalorder %v1791, 2
    %vm1812 = vcmp.lt.s32.totalorder %v1791, 3
    %vm1813 = vcmp.lt.s32.totalorder %v1791, 4
    %v1814 = vsel %vm1810, %v1794, %v1797
    %v1815 = vsel %vm1813, %v1803, 2102212464
    %v1816 = vsel %vm1812, %v1800, %v1815
    %v1817 = vsel %vm1811, %v1814, %v1816
    %v1818 = vsel %vm1810, %v1797, %v1800
    %v1819 = vsel %vm1813, %v1806, 920167782
    %v1820 = vsel %vm1812, %v1803, %v1819
    %v1821 = vsel %vm1811, %v1818, %v1820
    %v1822 = vsel %vm1810, %v1800, %v1803
    %v1823 = vsel %vm1813, %v1809, 1326507024
    %v1824 = vsel %vm1812, %v1806, %v1823
    %v1825 = vsel %vm1811, %v1822, %v1824
    %v1826 = vshll.u32 %v1786, 8
    %v1827 = vmul.u32.u64.compose %v1826, %v1825
    %v1828 = vextract.low.u32 %v1827
    %v1829 = vextract.high.u32 %v1827
    %v1830 = vmul.u32.u64.compose %v1826, %v1821
    %v1831 = vextract.low.u32 %v1830
    %v1832 = vextract.high.u32 %v1830
    %v1833 = vmul.u32 %v1826, %v1817
    %v1834 = vadd.s32 %v1829, %v1831
    %vm1835 = vc.u32 %v1829, %v1831
    %v1836 = vadd.s32 %v1832, 1
    %v1837 = vsel %vm1835, %v1836, %v1832
    %v1838 = vadd.s32 %v1833, %v1837
    %v1839 = vadd.s32 %v1838, 536870912
    %v1840 = vshrl.u32 %v1839, 30
    %v1841 = vshll.u32 %v1840, 30
    %v1842 = vsub.s32 %v1838, %v1841
    %vm1843 = vcmp.lt.s32.totalorder %v1842, 0
    %v1844 = vsub.s32 0, %v1842
    %v1845 = vsel %vm1843, %v1844, %v1842
    %v1846 = vclz %v1845
    %v1847 = vsub.s32 %v1846, 2
    %vm1848 = vcmp.gt.s32.totalorder 0, %v1847
    %v1849 = vsel %vm1848, 0, %v1847
    %v1850 = vsub.s32 32, %v1849
    %v1851 = vshll.u32 %v1842, %v1849
    %v1852 = vshrl.u32 %v1834, %v1850
    %v1853 = vor.u32 %v1851, %v1852
    %v1854 = vsub.s32 4294967266, %v1849
    %v1855 = vadd.s32 %v1854, 127
    %v1856 = vshll.u32 %v1855, 23
    %v1857 = vor.u32 4788187, %v1856
    %v1858 = vand.u32 2147483647, %v1857
    %v1860 = vcvt.s32.f32 %v1853
    %v1861 = vmul.f32 %v1860, %v1858
    %v1862 = vxor.u32 %v1861, 2147483648
    %v1863 = vsel %vm1780, %v1862, %v1861
    %v1864 = vsub.s32 4, %v1840
    %v1865 = vsel %vm1780, %v1864, %v1840
    %v1866 = vsel %vm1779, %v1146, %v1863
    %v1867 = vsel %vm1779, 0, %v1865
    %v1868 = vcosq.f32.pop %v1866
    %v1869 = vsinq.f32.pop %v1866
    %vm1870 = vweird.f32 %v1146
    %v1871 = vadd.s32 %v1867, 3
    %v1872 = vand.u32 %v1871, 3
    %vm1873 = vcmp.lt.s32.totalorder %v1872, 2
    %vm1874 = vcmp.eq.s32.totalorder %v1872, 0
    %v1875 = vxor.u32 %v1869, 2147483648
    %v1876 = vsel %vm1874, %v1868, %v1875
    %vm1877 = vcmp.eq.s32.totalorder %v1872, 2
    %v1878 = vxor.u32 %v1868, 2147483648
    %v1879 = vsel %vm1877, %v1878, %v1869
    %v1880 = vsel %vm1873, %v1876, %v1879
    %v1881 = vsel %vm1870, nan, %v1880
    %v1882 = vand.u32 2147483647, %v1151
    %vm1883 = vcmp.le.f32.partialorder %v1882, 0.7853982
    %vm1884 = vcmp.lt.s32.totalorder %v1151, 0
    %v1885 = vand.u32 %v1151, 2139095040
    %v1886 = vshrl.u32 %v1885, 23
    %v1887 = vsub.s32 %v1886, 127
    %v1888 = vand.u32 2147483647, %v1151
    %v1889 = vand.u32 %v1888, 8388607
    %v1890 = vor.u32 %v1889, 8388608
    %v1891 = vsub.s32 0, %v1890
    %v1892 = vadd.s32 %v1887, 1
    %vm1893 = vcmp.gt.s32.totalorder %v1892, 0
    %v1894 = vsel %vm1893, %v1892, 0
    %v1895 = vshrl.u32 %v1894, 5
    %v1896 = vand.u32 %v1894, 31
    %v1897 = vsub.s32 32, %v1896
    %v1898 = vshrl.u32 683565275, %v1897
    %v1899 = vshll.u32 683565275, %v1896
    %v1900 = vshrl.u32 2475754826, %v1897
    %v1901 = vor.u32 %v1899, %v1900
    %v1902 = vshll.u32 2475754826, %v1896
    %v1903 = vshrl.u32 2131351028, %v1897
    %v1904 = vor.u32 %v1902, %v1903
    %v1905 = vshll.u32 2131351028, %v1896
    %v1906 = vshrl.u32 2102212464, %v1897
    %v1907 = vor.u32 %v1905, %v1906
    %v1908 = vshll.u32 2102212464, %v1896
    %v1909 = vshrl.u32 920167782, %v1897
    %v1910 = vor.u32 %v1908, %v1909
    %v1911 = vshll.u32 920167782, %v1896
    %v1912 = vshrl.u32 1326507024, %v1897
    %v1913 = vor.u32 %v1911, %v1912
    %vm1914 = vcmp.lt.s32.totalorder %v1895, 1
    %vm1915 = vcmp.lt.s32.totalorder %v1895, 2
    %vm1916 = vcmp.lt.s32.totalorder %v1895, 3
    %vm1917 = vcmp.lt.s32.totalorder %v1895, 4
    %v1918 = vsel %vm1914, %v1898, %v1901
    %v1919 = vsel %vm1917, %v1907, 2102212464
    %v1920 = vsel %vm1916, %v1904, %v1919
    %v1921 = vsel %vm1915, %v1918, %v1920
    %v1922 = vsel %vm1914, %v1901, %v1904
    %v1923 = vsel %vm1917, %v1910, 920167782
    %v1924 = vsel %vm1916, %v1907, %v1923
    %v1925 = vsel %vm1915, %v1922, %v1924
    %v1926 = vsel %vm1914, %v1904, %v1907
    %v1927 = vsel %vm1917, %v1913, 1326507024
    %v1928 = vsel %vm1916, %v1910, %v1927
    %v1929 = vsel %vm1915, %v1926, %v1928
    %v1930 = vshll.u32 %v1890, 8
    %v1931 = vmul.u32.u64.compose %v1930, %v1929
    %v1932 = vextract.low.u32 %v1931
    %v1933 = vextract.high.u32 %v1931
    %v1934 = vmul.u32.u64.compose %v1930, %v1925
    %v1935 = vextract.low.u32 %v1934
    %v1936 = vextract.high.u32 %v1934
    %v1937 = vmul.u32 %v1930, %v1921
    %v1938 = vadd.s32 %v1933, %v1935
    %vm1939 = vc.u32 %v1933, %v1935
    %v1940 = vadd.s32 %v1936, 1
    %v1941 = vsel %vm1939, %v1940, %v1936
    %v1942 = vadd.s32 %v1937, %v1941
    %v1943 = vadd.s32 %v1942, 536870912
    %v1944 = vshrl.u32 %v1943, 30
    %v1945 = vshll.u32 %v1944, 30
    %v1946 = vsub.s32 %v1942, %v1945
    %vm1947 = vcmp.lt.s32.totalorder %v1946, 0
    %v1948 = vsub.s32 0, %v1946
    %v1949 = vsel %vm1947, %v1948, %v1946
    %v1950 = vclz %v1949
    %v1951 = vsub.s32 %v1950, 2
    %vm1952 = vcmp.gt.s32.totalorder 0, %v1951
    %v1953 = vsel %vm1952, 0, %v1951
    %v1954 = vsub.s32 32, %v1953
    %v1955 = vshll.u32 %v1946, %v1953
    %v1956 = vshrl.u32 %v1938, %v1954
    %v1957 = vor.u32 %v1955, %v1956
    %v1958 = vsub.s32 4294967266, %v1953
    %v1959 = vadd.s32 %v1958, 127
    %v1960 = vshll.u32 %v1959, 23
    %v1961 = vor.u32 4788187, %v1960
    %v1962 = vand.u32 2147483647, %v1961
    %v1964 = vcvt.s32.f32 %v1957
    %v1965 = vmul.f32 %v1964, %v1962
    %v1966 = vxor.u32 %v1965, 2147483648
    %v1967 = vsel %vm1884, %v1966, %v1965
    %v1968 = vsub.s32 4, %v1944
    %v1969 = vsel %vm1884, %v1968, %v1944
    %v1970 = vsel %vm1883, %v1151, %v1967
    %v1971 = vsel %vm1883, 0, %v1969
    %v1972 = vcosq.f32.pop %v1970
    %v1973 = vsinq.f32.pop %v1970
    %vm1974 = vweird.f32 %v1151
    %v1975 = vadd.s32 %v1971, 3
    %v1976 = vand.u32 %v1975, 3
    %vm1977 = vcmp.lt.s32.totalorder %v1976, 2
    %vm1978 = vcmp.eq.s32.totalorder %v1976, 0
    %v1979 = vxor.u32 %v1973, 2147483648
    %v1980 = vsel %vm1978, %v1972, %v1979
    %vm1981 = vcmp.eq.s32.totalorder %v1976, 2
    %v1982 = vxor.u32 %v1972, 2147483648
    %v1983 = vsel %vm1981, %v1982, %v1973
    %v1984 = vsel %vm1977, %v1980, %v1983
    %v1985 = vsel %vm1974, nan, %v1984
    %1986 = vst [vmem:[#allocation6] sm:$0xff] %v1257
    %1987 = vst [vmem:[#allocation6 + $0x8] sm:$0xff] %v1361
    %1988 = vst [vmem:[#allocation6 + $0x10] sm:$0xff] %v1465
    %1989 = vst [vmem:[#allocation6 + $0x18] sm:$0xff] %v1569
    %1990 = vst [vmem:[#allocation6 + $0x20] sm:$0xff] %v1673
    %1991 = vst [vmem:[#allocation6 + $0x28] sm:$0xff] %v1777
    %1992 = vst [vmem:[#allocation6 + $0x30] sm:$0xff] %v1881
    %1993 = vst [vmem:[#allocation6 + $0x38] sm:$0xff] %v1985
    %s1994 = scalar_lea.vmem [#allocation2], 128
    %v1995 = vld [vmem:[%s1994] sm:$0xff]
    %v1996 = vld [vmem:[%s1994 + $0x8] sm:$0xff]
    %v1997 = vld [vmem:[%s1994 + $0x10] sm:$0xff]
    %v1998 = vld [vmem:[%s1994 + $0x18] sm:$0xff]
    %v1999 = vld [vmem:[%s1994 + $0x20] sm:$0xff]
    %v2000 = vld [vmem:[%s1994 + $0x28] sm:$0xff]
    %v2001 = vld [vmem:[%s1994 + $0x30] sm:$0xff]
    %v2002 = vld [vmem:[%s1994 + $0x38] sm:$0xff]
    %v2003 = vld [vmem:[%s1994 + $0x40] sm:$0xff]
    %v2004 = vld [vmem:[%s1994 + $0x48] sm:$0xff]
    %v2005 = vld [vmem:[%s1994 + $0x50] sm:$0xff]
    %v2006 = vld [vmem:[%s1994 + $0x58] sm:$0xff]
    %v2007 = vld [vmem:[%s1994 + $0x60] sm:$0xff]
    %v2008 = vld [vmem:[%s1994 + $0x68] sm:$0xff]
    %v2009 = vld [vmem:[%s1994 + $0x70] sm:$0xff]
    %v2010 = vld [vmem:[%s1994 + $0x78] sm:$0xff]
    %s2011 = scalar_lea.vmem %s3, 2
    %v2012 = vld [vmem:[%s2011] sm:$0x1]
    %v2014 = vlaneseq
    %v2015 = vshrl.u32 %v2014, 7
    %v2016 = vsub.s32 0, %v2015
    %v2017 = vrot.slane %v2012, %v2016
    %2019 = vmatprep.subr.mxu0 0.0
    %2020 = vmatpush1.msra.mxu0 %v2010
    %2021 = vmatprep.subr.mxu0 0.0
    %2022 = vmatpush1.msra.mxu0 %v2009
    %2023 = vmatprep.subr.mxu0 0.0
    %2024 = vmatpush1.msra.mxu0 %v2008
    %2025 = vmatprep.subr.mxu0 0.0
    %2026 = vmatpush1.msra.mxu0 %v2007
    %2027 = vmatprep.subr.mxu0 0.0
    %2028 = vmatpush1.msra.mxu0 %v2006
    %2029 = vmatprep.subr.mxu0 0.0
    %2030 = vmatpush1.msra.mxu0 %v2005
    %2031 = vmatprep.subr.mxu0 0.0
    %2032 = vmatpush1.msra.mxu0 %v2004
    %2033 = vmatprep.subr.mxu0 0.0
    %2034 = vmatpush1.msra.mxu0 %v2003
    %2035 = vmatprep.subr.mxu0 0.0
    %2036 = vmatpush1.msra.mxu0 %v2002
    %2037 = vmatprep.subr.mxu0 0.0
    %2038 = vmatpush1.msra.mxu0 %v2001
    %2039 = vmatprep.subr.mxu0 0.0
    %2040 = vmatpush1.msra.mxu0 %v2000
    %2041 = vmatprep.subr.mxu0 0.0
    %2042 = vmatpush1.msra.mxu0 %v1999
    %2043 = vmatprep.subr.mxu0 0.0
    %2044 = vmatpush1.msra.mxu0 %v1998
    %2045 = vmatprep.subr.mxu0 0.0
    %2046 = vmatpush1.msra.mxu0 %v1997
    %2047 = vmatprep.subr.mxu0 0.0
    %2048 = vmatpush1.msra.mxu0 %v1996
    %2049 = vmatprep.subr.mxu0 0.0
    %2050 = vmatpush1.msra.mxu0 %v1995
    %2051 = vmatprep.subr.mxu0 0.0
    %2052 = vmatpush2.msra.mxu0 0.0
    %2053 = vmatprep.subr.mxu0 0.0
    %2054 = vmatpush2.msra.mxu0 0.0
    %2055 = vmatprep.subr.mxu0 0.0
    %2056 = vmatpush2.msra.mxu0 0.0
    %2057 = vmatprep.subr.mxu0 0.0
    %2058 = vmatpush2.msra.mxu0 0.0
    %2059 = vmatprep.subr.mxu0 0.0
    %2060 = vmatpush2.msra.mxu0 0.0
    %2061 = vmatprep.subr.mxu0 0.0
    %2062 = vmatpush2.msra.mxu0 0.0
    %2063 = vmatprep.subr.mxu0 0.0
    %2064 = vmatpush2.msra.mxu0 0.0
    %2065 = vmatprep.subr.mxu0 0.0
    %2066 = vmatpush2.msra.mxu0 0.0
    %2067 = vmatprep.subr.mxu0 0.0
    %2068 = vmatpush2.msra.mxu0 0.0
    %2069 = vmatprep.subr.mxu0 0.0
    %2070 = vmatpush2.msra.mxu0 0.0
    %2071 = vmatprep.subr.mxu0 0.0
    %2072 = vmatpush2.msra.mxu0 0.0
    %2073 = vmatprep.subr.mxu0 0.0
    %2074 = vmatpush2.msra.mxu0 0.0
    %2075 = vmatprep.subr.mxu0 0.0
    %2076 = vmatpush2.msra.mxu0 0.0
    %2077 = vmatprep.subr.mxu0 0.0
    %2078 = vmatpush2.msra.mxu0 0.0
    %2079 = vmatprep.subr.mxu0 0.0
    %2080 = vmatpush2.msra.mxu0 0.0
    %2081 = vmatprep.subr.mxu0 0.0
    %2082 = vmatpush2.msra.mxu0 0.0
    %2083 = vmatprep.mubr.f32.mxu0 0.0
    %2084 = vmatmul.mubr.f32.gmra.mxu0 %v1257
    %v2085 = vpop.f32.mrf.mxu0
    %v2086 = vadd.f32 %v2017, %v2085
    %v2087 = vpop.f32.mrf.mxu0
    %2088 = vmatprep.mubr.f32.mxu0 0.0
    %2089 = vmatmul.mubr.f32.gmra.mxu0 %v1361
    %v2090 = vpop.f32.mrf.mxu0
    %v2091 = vadd.f32 %v2017, %v2090
    %v2092 = vpop.f32.mrf.mxu0
    %2093 = vmatprep.mubr.f32.mxu0 0.0
    %2094 = vmatmul.mubr.f32.gmra.mxu0 %v1465
    %v2095 = vpop.f32.mrf.mxu0
    %v2096 = vadd.f32 %v2017, %v2095
    %v2097 = vpop.f32.mrf.mxu0
    %2098 = vmatprep.mubr.f32.mxu0 0.0
    %2099 = vmatmul.mubr.f32.gmra.mxu0 %v1569
    %v2100 = vpop.f32.mrf.mxu0
    %v2101 = vadd.f32 %v2017, %v2100
    %v2102 = vpop.f32.mrf.mxu0
    %2103 = vmatprep.mubr.f32.mxu0 0.0
    %2104 = vmatmul.mubr.f32.gmra.mxu0 %v1673
    %v2105 = vpop.f32.mrf.mxu0
    %v2106 = vadd.f32 %v2017, %v2105
    %v2107 = vpop.f32.mrf.mxu0
    %2108 = vmatprep.mubr.f32.mxu0 0.0
    %2109 = vmatmul.mubr.f32.gmra.mxu0 %v1777
    %v2110 = vpop.f32.mrf.mxu0
    %v2111 = vadd.f32 %v2017, %v2110
    %v2112 = vpop.f32.mrf.mxu0
    %2113 = vmatprep.mubr.f32.mxu0 0.0
    %2114 = vmatmul.mubr.f32.gmra.mxu0 %v1881
    %v2115 = vpop.f32.mrf.mxu0
    %v2116 = vadd.f32 %v2017, %v2115
    %v2117 = vpop.f32.mrf.mxu0
    %2118 = vmatprep.mubr.f32.mxu0 0.0
    %2119 = vmatmul.mubr.f32.gmra.mxu0 %v1985
    %v2120 = vpop.f32.mrf.mxu0
    %v2121 = vadd.f32 %v2017, %v2120
    %v2122 = vpop.f32.mrf.mxu0
    %2123 = vdwg.mxu0
    %v2124 = vand.u32 2147483647, %v2086
    %vm2125 = vcmp.le.f32.partialorder %v2124, 0.7853982
    %vm2126 = vcmp.lt.s32.totalorder %v2086, 0
    %v2127 = vand.u32 %v2086, 2139095040
    %v2128 = vshrl.u32 %v2127, 23
    %v2129 = vsub.s32 %v2128, 127
    %v2130 = vand.u32 2147483647, %v2086
    %v2131 = vand.u32 %v2130, 8388607
    %v2132 = vor.u32 %v2131, 8388608
    %v2133 = vsub.s32 0, %v2132
    %v2134 = vadd.s32 %v2129, 1
    %vm2135 = vcmp.gt.s32.totalorder %v2134, 0
    %v2136 = vsel %vm2135, %v2134, 0
    %v2137 = vshrl.u32 %v2136, 5
    %v2138 = vand.u32 %v2136, 31
    %v2139 = vsub.s32 32, %v2138
    %v2140 = vshrl.u32 683565275, %v2139
    %v2141 = vshll.u32 683565275, %v2138
    %v2142 = vshrl.u32 2475754826, %v2139
    %v2143 = vor.u32 %v2141, %v2142
    %v2144 = vshll.u32 2475754826, %v2138
    %v2145 = vshrl.u32 2131351028, %v2139
    %v2146 = vor.u32 %v2144, %v2145
    %v2147 = vshll.u32 2131351028, %v2138
    %v2148 = vshrl.u32 2102212464, %v2139
    %v2149 = vor.u32 %v2147, %v2148
    %v2150 = vshll.u32 2102212464, %v2138
    %v2151 = vshrl.u32 920167782, %v2139
    %v2152 = vor.u32 %v2150, %v2151
    %v2153 = vshll.u32 920167782, %v2138
    %v2154 = vshrl.u32 1326507024, %v2139
    %v2155 = vor.u32 %v2153, %v2154
    %vm2156 = vcmp.lt.s32.totalorder %v2137, 1
    %vm2157 = vcmp.lt.s32.totalorder %v2137, 2
    %vm2158 = vcmp.lt.s32.totalorder %v2137, 3
    %vm2159 = vcmp.lt.s32.totalorder %v2137, 4
    %v2160 = vsel %vm2156, %v2140, %v2143
    %v2161 = vsel %vm2159, %v2149, 2102212464
    %v2162 = vsel %vm2158, %v2146, %v2161
    %v2163 = vsel %vm2157, %v2160, %v2162
    %v2164 = vsel %vm2156, %v2143, %v2146
    %v2165 = vsel %vm2159, %v2152, 920167782
    %v2166 = vsel %vm2158, %v2149, %v2165
    %v2167 = vsel %vm2157, %v2164, %v2166
    %v2168 = vsel %vm2156, %v2146, %v2149
    %v2169 = vsel %vm2159, %v2155, 1326507024
    %v2170 = vsel %vm2158, %v2152, %v2169
    %v2171 = vsel %vm2157, %v2168, %v2170
    %v2172 = vshll.u32 %v2132, 8
    %v2173 = vmul.u32.u64.compose %v2172, %v2171
    %v2174 = vextract.low.u32 %v2173
    %v2175 = vextract.high.u32 %v2173
    %v2176 = vmul.u32.u64.compose %v2172, %v2167
    %v2177 = vextract.low.u32 %v2176
    %v2178 = vextract.high.u32 %v2176
    %v2179 = vmul.u32 %v2172, %v2163
    %v2180 = vadd.s32 %v2175, %v2177
    %vm2181 = vc.u32 %v2175, %v2177
    %v2182 = vadd.s32 %v2178, 1
    %v2183 = vsel %vm2181, %v2182, %v2178
    %v2184 = vadd.s32 %v2179, %v2183
    %v2185 = vadd.s32 %v2184, 536870912
    %v2186 = vshrl.u32 %v2185, 30
    %v2187 = vshll.u32 %v2186, 30
    %v2188 = vsub.s32 %v2184, %v2187
    %vm2189 = vcmp.lt.s32.totalorder %v2188, 0
    %v2190 = vsub.s32 0, %v2188
    %v2191 = vsel %vm2189, %v2190, %v2188
    %v2192 = vclz %v2191
    %v2193 = vsub.s32 %v2192, 2
    %vm2194 = vcmp.gt.s32.totalorder 0, %v2193
    %v2195 = vsel %vm2194, 0, %v2193
    %v2196 = vsub.s32 32, %v2195
    %v2197 = vshll.u32 %v2188, %v2195
    %v2198 = vshrl.u32 %v2180, %v2196
    %v2199 = vor.u32 %v2197, %v2198
    %v2200 = vsub.s32 4294967266, %v2195
    %v2201 = vadd.s32 %v2200, 127
    %v2202 = vshll.u32 %v2201, 23
    %v2203 = vor.u32 4788187, %v2202
    %v2204 = vand.u32 2147483647, %v2203
    %v2206 = vcvt.s32.f32 %v2199
    %v2207 = vmul.f32 %v2206, %v2204
    %v2208 = vxor.u32 %v2207, 2147483648
    %v2209 = vsel %vm2126, %v2208, %v2207
    %v2210 = vsub.s32 4, %v2186
    %v2211 = vsel %vm2126, %v2210, %v2186
    %v2212 = vsel %vm2125, %v2086, %v2209
    %v2213 = vsel %vm2125, 0, %v2211
    %v2214 = vcosq.f32.pop %v2212
    %v2215 = vsinq.f32.pop %v2212
    %vm2216 = vweird.f32 %v2086
    %v2217 = vadd.s32 %v2213, 3
    %v2218 = vand.u32 %v2217, 3
    %vm2219 = vcmp.lt.s32.totalorder %v2218, 2
    %vm2220 = vcmp.eq.s32.totalorder %v2218, 0
    %v2221 = vxor.u32 %v2215, 2147483648
    %v2222 = vsel %vm2220, %v2214, %v2221
    %vm2223 = vcmp.eq.s32.totalorder %v2218, 2
    %v2224 = vxor.u32 %v2214, 2147483648
    %v2225 = vsel %vm2223, %v2224, %v2215
    %v2226 = vsel %vm2219, %v2222, %v2225
    %v2227 = vsel %vm2216, nan, %v2226
    %v2228 = vand.u32 2147483647, %v2091
    %vm2229 = vcmp.le.f32.partialorder %v2228, 0.7853982
    %vm2230 = vcmp.lt.s32.totalorder %v2091, 0
    %v2231 = vand.u32 %v2091, 2139095040
    %v2232 = vshrl.u32 %v2231, 23
    %v2233 = vsub.s32 %v2232, 127
    %v2234 = vand.u32 2147483647, %v2091
    %v2235 = vand.u32 %v2234, 8388607
    %v2236 = vor.u32 %v2235, 8388608
    %v2237 = vsub.s32 0, %v2236
    %v2238 = vadd.s32 %v2233, 1
    %vm2239 = vcmp.gt.s32.totalorder %v2238, 0
    %v2240 = vsel %vm2239, %v2238, 0
    %v2241 = vshrl.u32 %v2240, 5
    %v2242 = vand.u32 %v2240, 31
    %v2243 = vsub.s32 32, %v2242
    %v2244 = vshrl.u32 683565275, %v2243
    %v2245 = vshll.u32 683565275, %v2242
    %v2246 = vshrl.u32 2475754826, %v2243
    %v2247 = vor.u32 %v2245, %v2246
    %v2248 = vshll.u32 2475754826, %v2242
    %v2249 = vshrl.u32 2131351028, %v2243
    %v2250 = vor.u32 %v2248, %v2249
    %v2251 = vshll.u32 2131351028, %v2242
    %v2252 = vshrl.u32 2102212464, %v2243
    %v2253 = vor.u32 %v2251, %v2252
    %v2254 = vshll.u32 2102212464, %v2242
    %v2255 = vshrl.u32 920167782, %v2243
    %v2256 = vor.u32 %v2254, %v2255
    %v2257 = vshll.u32 920167782, %v2242
    %v2258 = vshrl.u32 1326507024, %v2243
    %v2259 = vor.u32 %v2257, %v2258
    %vm2260 = vcmp.lt.s32.totalorder %v2241, 1
    %vm2261 = vcmp.lt.s32.totalorder %v2241, 2
    %vm2262 = vcmp.lt.s32.totalorder %v2241, 3
    %vm2263 = vcmp.lt.s32.totalorder %v2241, 4
    %v2264 = vsel %vm2260, %v2244, %v2247
    %v2265 = vsel %vm2263, %v2253, 2102212464
    %v2266 = vsel %vm2262, %v2250, %v2265
    %v2267 = vsel %vm2261, %v2264, %v2266
    %v2268 = vsel %vm2260, %v2247, %v2250
    %v2269 = vsel %vm2263, %v2256, 920167782
    %v2270 = vsel %vm2262, %v2253, %v2269
    %v2271 = vsel %vm2261, %v2268, %v2270
    %v2272 = vsel %vm2260, %v2250, %v2253
    %v2273 = vsel %vm2263, %v2259, 1326507024
    %v2274 = vsel %vm2262, %v2256, %v2273
    %v2275 = vsel %vm2261, %v2272, %v2274
    %v2276 = vshll.u32 %v2236, 8
    %v2277 = vmul.u32.u64.compose %v2276, %v2275
    %v2278 = vextract.low.u32 %v2277
    %v2279 = vextract.high.u32 %v2277
    %v2280 = vmul.u32.u64.compose %v2276, %v2271
    %v2281 = vextract.low.u32 %v2280
    %v2282 = vextract.high.u32 %v2280
    %v2283 = vmul.u32 %v2276, %v2267
    %v2284 = vadd.s32 %v2279, %v2281
    %vm2285 = vc.u32 %v2279, %v2281
    %v2286 = vadd.s32 %v2282, 1
    %v2287 = vsel %vm2285, %v2286, %v2282
    %v2288 = vadd.s32 %v2283, %v2287
    %v2289 = vadd.s32 %v2288, 536870912
    %v2290 = vshrl.u32 %v2289, 30
    %v2291 = vshll.u32 %v2290, 30
    %v2292 = vsub.s32 %v2288, %v2291
    %vm2293 = vcmp.lt.s32.totalorder %v2292, 0
    %v2294 = vsub.s32 0, %v2292
    %v2295 = vsel %vm2293, %v2294, %v2292
    %v2296 = vclz %v2295
    %v2297 = vsub.s32 %v2296, 2
    %vm2298 = vcmp.gt.s32.totalorder 0, %v2297
    %v2299 = vsel %vm2298, 0, %v2297
    %v2300 = vsub.s32 32, %v2299
    %v2301 = vshll.u32 %v2292, %v2299
    %v2302 = vshrl.u32 %v2284, %v2300
    %v2303 = vor.u32 %v2301, %v2302
    %v2304 = vsub.s32 4294967266, %v2299
    %v2305 = vadd.s32 %v2304, 127
    %v2306 = vshll.u32 %v2305, 23
    %v2307 = vor.u32 4788187, %v2306
    %v2308 = vand.u32 2147483647, %v2307
    %v2310 = vcvt.s32.f32 %v2303
    %v2311 = vmul.f32 %v2310, %v2308
    %v2312 = vxor.u32 %v2311, 2147483648
    %v2313 = vsel %vm2230, %v2312, %v2311
    %v2314 = vsub.s32 4, %v2290
    %v2315 = vsel %vm2230, %v2314, %v2290
    %v2316 = vsel %vm2229, %v2091, %v2313
    %v2317 = vsel %vm2229, 0, %v2315
    %v2318 = vcosq.f32.pop %v2316
    %v2319 = vsinq.f32.pop %v2316
    %vm2320 = vweird.f32 %v2091
    %v2321 = vadd.s32 %v2317, 3
    %v2322 = vand.u32 %v2321, 3
    %vm2323 = vcmp.lt.s32.totalorder %v2322, 2
    %vm2324 = vcmp.eq.s32.totalorder %v2322, 0
    %v2325 = vxor.u32 %v2319, 2147483648
    %v2326 = vsel %vm2324, %v2318, %v2325
    %vm2327 = vcmp.eq.s32.totalorder %v2322, 2
    %v2328 = vxor.u32 %v2318, 2147483648
    %v2329 = vsel %vm2327, %v2328, %v2319
    %v2330 = vsel %vm2323, %v2326, %v2329
    %v2331 = vsel %vm2320, nan, %v2330
    %v2332 = vand.u32 2147483647, %v2096
    %vm2333 = vcmp.le.f32.partialorder %v2332, 0.7853982
    %vm2334 = vcmp.lt.s32.totalorder %v2096, 0
    %v2335 = vand.u32 %v2096, 2139095040
    %v2336 = vshrl.u32 %v2335, 23
    %v2337 = vsub.s32 %v2336, 127
    %v2338 = vand.u32 2147483647, %v2096
    %v2339 = vand.u32 %v2338, 8388607
    %v2340 = vor.u32 %v2339, 8388608
    %v2341 = vsub.s32 0, %v2340
    %v2342 = vadd.s32 %v2337, 1
    %vm2343 = vcmp.gt.s32.totalorder %v2342, 0
    %v2344 = vsel %vm2343, %v2342, 0
    %v2345 = vshrl.u32 %v2344, 5
    %v2346 = vand.u32 %v2344, 31
    %v2347 = vsub.s32 32, %v2346
    %v2348 = vshrl.u32 683565275, %v2347
    %v2349 = vshll.u32 683565275, %v2346
    %v2350 = vshrl.u32 2475754826, %v2347
    %v2351 = vor.u32 %v2349, %v2350
    %v2352 = vshll.u32 2475754826, %v2346
    %v2353 = vshrl.u32 2131351028, %v2347
    %v2354 = vor.u32 %v2352, %v2353
    %v2355 = vshll.u32 2131351028, %v2346
    %v2356 = vshrl.u32 2102212464, %v2347
    %v2357 = vor.u32 %v2355, %v2356
    %v2358 = vshll.u32 2102212464, %v2346
    %v2359 = vshrl.u32 920167782, %v2347
    %v2360 = vor.u32 %v2358, %v2359
    %v2361 = vshll.u32 920167782, %v2346
    %v2362 = vshrl.u32 1326507024, %v2347
    %v2363 = vor.u32 %v2361, %v2362
    %vm2364 = vcmp.lt.s32.totalorder %v2345, 1
    %vm2365 = vcmp.lt.s32.totalorder %v2345, 2
    %vm2366 = vcmp.lt.s32.totalorder %v2345, 3
    %vm2367 = vcmp.lt.s32.totalorder %v2345, 4
    %v2368 = vsel %vm2364, %v2348, %v2351
    %v2369 = vsel %vm2367, %v2357, 2102212464
    %v2370 = vsel %vm2366, %v2354, %v2369
    %v2371 = vsel %vm2365, %v2368, %v2370
    %v2372 = vsel %vm2364, %v2351, %v2354
    %v2373 = vsel %vm2367, %v2360, 920167782
    %v2374 = vsel %vm2366, %v2357, %v2373
    %v2375 = vsel %vm2365, %v2372, %v2374
    %v2376 = vsel %vm2364, %v2354, %v2357
    %v2377 = vsel %vm2367, %v2363, 1326507024
    %v2378 = vsel %vm2366, %v2360, %v2377
    %v2379 = vsel %vm2365, %v2376, %v2378
    %v2380 = vshll.u32 %v2340, 8
    %v2381 = vmul.u32.u64.compose %v2380, %v2379
    %v2382 = vextract.low.u32 %v2381
    %v2383 = vextract.high.u32 %v2381
    %v2384 = vmul.u32.u64.compose %v2380, %v2375
    %v2385 = vextract.low.u32 %v2384
    %v2386 = vextract.high.u32 %v2384
    %v2387 = vmul.u32 %v2380, %v2371
    %v2388 = vadd.s32 %v2383, %v2385
    %vm2389 = vc.u32 %v2383, %v2385
    %v2390 = vadd.s32 %v2386, 1
    %v2391 = vsel %vm2389, %v2390, %v2386
    %v2392 = vadd.s32 %v2387, %v2391
    %v2393 = vadd.s32 %v2392, 536870912
    %v2394 = vshrl.u32 %v2393, 30
    %v2395 = vshll.u32 %v2394, 30
    %v2396 = vsub.s32 %v2392, %v2395
    %vm2397 = vcmp.lt.s32.totalorder %v2396, 0
    %v2398 = vsub.s32 0, %v2396
    %v2399 = vsel %vm2397, %v2398, %v2396
    %v2400 = vclz %v2399
    %v2401 = vsub.s32 %v2400, 2
    %vm2402 = vcmp.gt.s32.totalorder 0, %v2401
    %v2403 = vsel %vm2402, 0, %v2401
    %v2404 = vsub.s32 32, %v2403
    %v2405 = vshll.u32 %v2396, %v2403
    %v2406 = vshrl.u32 %v2388, %v2404
    %v2407 = vor.u32 %v2405, %v2406
    %v2408 = vsub.s32 4294967266, %v2403
    %v2409 = vadd.s32 %v2408, 127
    %v2410 = vshll.u32 %v2409, 23
    %v2411 = vor.u32 4788187, %v2410
    %v2412 = vand.u32 2147483647, %v2411
    %v2414 = vcvt.s32.f32 %v2407
    %v2415 = vmul.f32 %v2414, %v2412
    %v2416 = vxor.u32 %v2415, 2147483648
    %v2417 = vsel %vm2334, %v2416, %v2415
    %v2418 = vsub.s32 4, %v2394
    %v2419 = vsel %vm2334, %v2418, %v2394
    %v2420 = vsel %vm2333, %v2096, %v2417
    %v2421 = vsel %vm2333, 0, %v2419
    %v2422 = vcosq.f32.pop %v2420
    %v2423 = vsinq.f32.pop %v2420
    %vm2424 = vweird.f32 %v2096
    %v2425 = vadd.s32 %v2421, 3
    %v2426 = vand.u32 %v2425, 3
    %vm2427 = vcmp.lt.s32.totalorder %v2426, 2
    %vm2428 = vcmp.eq.s32.totalorder %v2426, 0
    %v2429 = vxor.u32 %v2423, 2147483648
    %v2430 = vsel %vm2428, %v2422, %v2429
    %vm2431 = vcmp.eq.s32.totalorder %v2426, 2
    %v2432 = vxor.u32 %v2422, 2147483648
    %v2433 = vsel %vm2431, %v2432, %v2423
    %v2434 = vsel %vm2427, %v2430, %v2433
    %v2435 = vsel %vm2424, nan, %v2434
    %v2436 = vand.u32 2147483647, %v2101
    %vm2437 = vcmp.le.f32.partialorder %v2436, 0.7853982
    %vm2438 = vcmp.lt.s32.totalorder %v2101, 0
    %v2439 = vand.u32 %v2101, 2139095040
    %v2440 = vshrl.u32 %v2439, 23
    %v2441 = vsub.s32 %v2440, 127
    %v2442 = vand.u32 2147483647, %v2101
    %v2443 = vand.u32 %v2442, 8388607
    %v2444 = vor.u32 %v2443, 8388608
    %v2445 = vsub.s32 0, %v2444
    %v2446 = vadd.s32 %v2441, 1
    %vm2447 = vcmp.gt.s32.totalorder %v2446, 0
    %v2448 = vsel %vm2447, %v2446, 0
    %v2449 = vshrl.u32 %v2448, 5
    %v2450 = vand.u32 %v2448, 31
    %v2451 = vsub.s32 32, %v2450
    %v2452 = vshrl.u32 683565275, %v2451
    %v2453 = vshll.u32 683565275, %v2450
    %v2454 = vshrl.u32 2475754826, %v2451
    %v2455 = vor.u32 %v2453, %v2454
    %v2456 = vshll.u32 2475754826, %v2450
    %v2457 = vshrl.u32 2131351028, %v2451
    %v2458 = vor.u32 %v2456, %v2457
    %v2459 = vshll.u32 2131351028, %v2450
    %v2460 = vshrl.u32 2102212464, %v2451
    %v2461 = vor.u32 %v2459, %v2460
    %v2462 = vshll.u32 2102212464, %v2450
    %v2463 = vshrl.u32 920167782, %v2451
    %v2464 = vor.u32 %v2462, %v2463
    %v2465 = vshll.u32 920167782, %v2450
    %v2466 = vshrl.u32 1326507024, %v2451
    %v2467 = vor.u32 %v2465, %v2466
    %vm2468 = vcmp.lt.s32.totalorder %v2449, 1
    %vm2469 = vcmp.lt.s32.totalorder %v2449, 2
    %vm2470 = vcmp.lt.s32.totalorder %v2449, 3
    %vm2471 = vcmp.lt.s32.totalorder %v2449, 4
    %v2472 = vsel %vm2468, %v2452, %v2455
    %v2473 = vsel %vm2471, %v2461, 2102212464
    %v2474 = vsel %vm2470, %v2458, %v2473
    %v2475 = vsel %vm2469, %v2472, %v2474
    %v2476 = vsel %vm2468, %v2455, %v2458
    %v2477 = vsel %vm2471, %v2464, 920167782
    %v2478 = vsel %vm2470, %v2461, %v2477
    %v2479 = vsel %vm2469, %v2476, %v2478
    %v2480 = vsel %vm2468, %v2458, %v2461
    %v2481 = vsel %vm2471, %v2467, 1326507024
    %v2482 = vsel %vm2470, %v2464, %v2481
    %v2483 = vsel %vm2469, %v2480, %v2482
    %v2484 = vshll.u32 %v2444, 8
    %v2485 = vmul.u32.u64.compose %v2484, %v2483
    %v2486 = vextract.low.u32 %v2485
    %v2487 = vextract.high.u32 %v2485
    %v2488 = vmul.u32.u64.compose %v2484, %v2479
    %v2489 = vextract.low.u32 %v2488
    %v2490 = vextract.high.u32 %v2488
    %v2491 = vmul.u32 %v2484, %v2475
    %v2492 = vadd.s32 %v2487, %v2489
    %vm2493 = vc.u32 %v2487, %v2489
    %v2494 = vadd.s32 %v2490, 1
    %v2495 = vsel %vm2493, %v2494, %v2490
    %v2496 = vadd.s32 %v2491, %v2495
    %v2497 = vadd.s32 %v2496, 536870912
    %v2498 = vshrl.u32 %v2497, 30
    %v2499 = vshll.u32 %v2498, 30
    %v2500 = vsub.s32 %v2496, %v2499
    %vm2501 = vcmp.lt.s32.totalorder %v2500, 0
    %v2502 = vsub.s32 0, %v2500
    %v2503 = vsel %vm2501, %v2502, %v2500
    %v2504 = vclz %v2503
    %v2505 = vsub.s32 %v2504, 2
    %vm2506 = vcmp.gt.s32.totalorder 0, %v2505
    %v2507 = vsel %vm2506, 0, %v2505
    %v2508 = vsub.s32 32, %v2507
    %v2509 = vshll.u32 %v2500, %v2507
    %v2510 = vshrl.u32 %v2492, %v2508
    %v2511 = vor.u32 %v2509, %v2510
    %v2512 = vsub.s32 4294967266, %v2507
    %v2513 = vadd.s32 %v2512, 127
    %v2514 = vshll.u32 %v2513, 23
    %v2515 = vor.u32 4788187, %v2514
    %v2516 = vand.u32 2147483647, %v2515
    %v2518 = vcvt.s32.f32 %v2511
    %v2519 = vmul.f32 %v2518, %v2516
    %v2520 = vxor.u32 %v2519, 2147483648
    %v2521 = vsel %vm2438, %v2520, %v2519
    %v2522 = vsub.s32 4, %v2498
    %v2523 = vsel %vm2438, %v2522, %v2498
    %v2524 = vsel %vm2437, %v2101, %v2521
    %v2525 = vsel %vm2437, 0, %v2523
    %v2526 = vcosq.f32.pop %v2524
    %v2527 = vsinq.f32.pop %v2524
    %vm2528 = vweird.f32 %v2101
    %v2529 = vadd.s32 %v2525, 3
    %v2530 = vand.u32 %v2529, 3
    %vm2531 = vcmp.lt.s32.totalorder %v2530, 2
    %vm2532 = vcmp.eq.s32.totalorder %v2530, 0
    %v2533 = vxor.u32 %v2527, 2147483648
    %v2534 = vsel %vm2532, %v2526, %v2533
    %vm2535 = vcmp.eq.s32.totalorder %v2530, 2
    %v2536 = vxor.u32 %v2526, 2147483648
    %v2537 = vsel %vm2535, %v2536, %v2527
    %v2538 = vsel %vm2531, %v2534, %v2537
    %v2539 = vsel %vm2528, nan, %v2538
    %v2540 = vand.u32 2147483647, %v2106
    %vm2541 = vcmp.le.f32.partialorder %v2540, 0.7853982
    %vm2542 = vcmp.lt.s32.totalorder %v2106, 0
    %v2543 = vand.u32 %v2106, 2139095040
    %v2544 = vshrl.u32 %v2543, 23
    %v2545 = vsub.s32 %v2544, 127
    %v2546 = vand.u32 2147483647, %v2106
    %v2547 = vand.u32 %v2546, 8388607
    %v2548 = vor.u32 %v2547, 8388608
    %v2549 = vsub.s32 0, %v2548
    %v2550 = vadd.s32 %v2545, 1
    %vm2551 = vcmp.gt.s32.totalorder %v2550, 0
    %v2552 = vsel %vm2551, %v2550, 0
    %v2553 = vshrl.u32 %v2552, 5
    %v2554 = vand.u32 %v2552, 31
    %v2555 = vsub.s32 32, %v2554
    %v2556 = vshrl.u32 683565275, %v2555
    %v2557 = vshll.u32 683565275, %v2554
    %v2558 = vshrl.u32 2475754826, %v2555
    %v2559 = vor.u32 %v2557, %v2558
    %v2560 = vshll.u32 2475754826, %v2554
    %v2561 = vshrl.u32 2131351028, %v2555
    %v2562 = vor.u32 %v2560, %v2561
    %v2563 = vshll.u32 2131351028, %v2554
    %v2564 = vshrl.u32 2102212464, %v2555
    %v2565 = vor.u32 %v2563, %v2564
    %v2566 = vshll.u32 2102212464, %v2554
    %v2567 = vshrl.u32 920167782, %v2555
    %v2568 = vor.u32 %v2566, %v2567
    %v2569 = vshll.u32 920167782, %v2554
    %v2570 = vshrl.u32 1326507024, %v2555
    %v2571 = vor.u32 %v2569, %v2570
    %vm2572 = vcmp.lt.s32.totalorder %v2553, 1
    %vm2573 = vcmp.lt.s32.totalorder %v2553, 2
    %vm2574 = vcmp.lt.s32.totalorder %v2553, 3
    %vm2575 = vcmp.lt.s32.totalorder %v2553, 4
    %v2576 = vsel %vm2572, %v2556, %v2559
    %v2577 = vsel %vm2575, %v2565, 2102212464
    %v2578 = vsel %vm2574, %v2562, %v2577
    %v2579 = vsel %vm2573, %v2576, %v2578
    %v2580 = vsel %vm2572, %v2559, %v2562
    %v2581 = vsel %vm2575, %v2568, 920167782
    %v2582 = vsel %vm2574, %v2565, %v2581
    %v2583 = vsel %vm2573, %v2580, %v2582
    %v2584 = vsel %vm2572, %v2562, %v2565
    %v2585 = vsel %vm2575, %v2571, 1326507024
    %v2586 = vsel %vm2574, %v2568, %v2585
    %v2587 = vsel %vm2573, %v2584, %v2586
    %v2588 = vshll.u32 %v2548, 8
    %v2589 = vmul.u32.u64.compose %v2588, %v2587
    %v2590 = vextract.low.u32 %v2589
    %v2591 = vextract.high.u32 %v2589
    %v2592 = vmul.u32.u64.compose %v2588, %v2583
    %v2593 = vextract.low.u32 %v2592
    %v2594 = vextract.high.u32 %v2592
    %v2595 = vmul.u32 %v2588, %v2579
    %v2596 = vadd.s32 %v2591, %v2593
    %vm2597 = vc.u32 %v2591, %v2593
    %v2598 = vadd.s32 %v2594, 1
    %v2599 = vsel %vm2597, %v2598, %v2594
    %v2600 = vadd.s32 %v2595, %v2599
    %v2601 = vadd.s32 %v2600, 536870912
    %v2602 = vshrl.u32 %v2601, 30
    %v2603 = vshll.u32 %v2602, 30
    %v2604 = vsub.s32 %v2600, %v2603
    %vm2605 = vcmp.lt.s32.totalorder %v2604, 0
    %v2606 = vsub.s32 0, %v2604
    %v2607 = vsel %vm2605, %v2606, %v2604
    %v2608 = vclz %v2607
    %v2609 = vsub.s32 %v2608, 2
    %vm2610 = vcmp.gt.s32.totalorder 0, %v2609
    %v2611 = vsel %vm2610, 0, %v2609
    %v2612 = vsub.s32 32, %v2611
    %v2613 = vshll.u32 %v2604, %v2611
    %v2614 = vshrl.u32 %v2596, %v2612
    %v2615 = vor.u32 %v2613, %v2614
    %v2616 = vsub.s32 4294967266, %v2611
    %v2617 = vadd.s32 %v2616, 127
    %v2618 = vshll.u32 %v2617, 23
    %v2619 = vor.u32 4788187, %v2618
    %v2620 = vand.u32 2147483647, %v2619
    %v2622 = vcvt.s32.f32 %v2615
    %v2623 = vmul.f32 %v2622, %v2620
    %v2624 = vxor.u32 %v2623, 2147483648
    %v2625 = vsel %vm2542, %v2624, %v2623
    %v2626 = vsub.s32 4, %v2602
    %v2627 = vsel %vm2542, %v2626, %v2602
    %v2628 = vsel %vm2541, %v2106, %v2625
    %v2629 = vsel %vm2541, 0, %v2627
    %v2630 = vcosq.f32.pop %v2628
    %v2631 = vsinq.f32.pop %v2628
    %vm2632 = vweird.f32 %v2106
    %v2633 = vadd.s32 %v2629, 3
    %v2634 = vand.u32 %v2633, 3
    %vm2635 = vcmp.lt.s32.totalorder %v2634, 2
    %vm2636 = vcmp.eq.s32.totalorder %v2634, 0
    %v2637 = vxor.u32 %v2631, 2147483648
    %v2638 = vsel %vm2636, %v2630, %v2637
    %vm2639 = vcmp.eq.s32.totalorder %v2634, 2
    %v2640 = vxor.u32 %v2630, 2147483648
    %v2641 = vsel %vm2639, %v2640, %v2631
    %v2642 = vsel %vm2635, %v2638, %v2641
    %v2643 = vsel %vm2632, nan, %v2642
    %v2644 = vand.u32 2147483647, %v2111
    %vm2645 = vcmp.le.f32.partialorder %v2644, 0.7853982
    %vm2646 = vcmp.lt.s32.totalorder %v2111, 0
    %v2647 = vand.u32 %v2111, 2139095040
    %v2648 = vshrl.u32 %v2647, 23
    %v2649 = vsub.s32 %v2648, 127
    %v2650 = vand.u32 2147483647, %v2111
    %v2651 = vand.u32 %v2650, 8388607
    %v2652 = vor.u32 %v2651, 8388608
    %v2653 = vsub.s32 0, %v2652
    %v2654 = vadd.s32 %v2649, 1
    %vm2655 = vcmp.gt.s32.totalorder %v2654, 0
    %v2656 = vsel %vm2655, %v2654, 0
    %v2657 = vshrl.u32 %v2656, 5
    %v2658 = vand.u32 %v2656, 31
    %v2659 = vsub.s32 32, %v2658
    %v2660 = vshrl.u32 683565275, %v2659
    %v2661 = vshll.u32 683565275, %v2658
    %v2662 = vshrl.u32 2475754826, %v2659
    %v2663 = vor.u32 %v2661, %v2662
    %v2664 = vshll.u32 2475754826, %v2658
    %v2665 = vshrl.u32 2131351028, %v2659
    %v2666 = vor.u32 %v2664, %v2665
    %v2667 = vshll.u32 2131351028, %v2658
    %v2668 = vshrl.u32 2102212464, %v2659
    %v2669 = vor.u32 %v2667, %v2668
    %v2670 = vshll.u32 2102212464, %v2658
    %v2671 = vshrl.u32 920167782, %v2659
    %v2672 = vor.u32 %v2670, %v2671
    %v2673 = vshll.u32 920167782, %v2658
    %v2674 = vshrl.u32 1326507024, %v2659
    %v2675 = vor.u32 %v2673, %v2674
    %vm2676 = vcmp.lt.s32.totalorder %v2657, 1
    %vm2677 = vcmp.lt.s32.totalorder %v2657, 2
    %vm2678 = vcmp.lt.s32.totalorder %v2657, 3
    %vm2679 = vcmp.lt.s32.totalorder %v2657, 4
    %v2680 = vsel %vm2676, %v2660, %v2663
    %v2681 = vsel %vm2679, %v2669, 2102212464
    %v2682 = vsel %vm2678, %v2666, %v2681
    %v2683 = vsel %vm2677, %v2680, %v2682
    %v2684 = vsel %vm2676, %v2663, %v2666
    %v2685 = vsel %vm2679, %v2672, 920167782
    %v2686 = vsel %vm2678, %v2669, %v2685
    %v2687 = vsel %vm2677, %v2684, %v2686
    %v2688 = vsel %vm2676, %v2666, %v2669
    %v2689 = vsel %vm2679, %v2675, 1326507024
    %v2690 = vsel %vm2678, %v2672, %v2689
    %v2691 = vsel %vm2677, %v2688, %v2690
    %v2692 = vshll.u32 %v2652, 8
    %v2693 = vmul.u32.u64.compose %v2692, %v2691
    %v2694 = vextract.low.u32 %v2693
    %v2695 = vextract.high.u32 %v2693
    %v2696 = vmul.u32.u64.compose %v2692, %v2687
    %v2697 = vextract.low.u32 %v2696
    %v2698 = vextract.high.u32 %v2696
    %v2699 = vmul.u32 %v2692, %v2683
    %v2700 = vadd.s32 %v2695, %v2697
    %vm2701 = vc.u32 %v2695, %v2697
    %v2702 = vadd.s32 %v2698, 1
    %v2703 = vsel %vm2701, %v2702, %v2698
    %v2704 = vadd.s32 %v2699, %v2703
    %v2705 = vadd.s32 %v2704, 536870912
    %v2706 = vshrl.u32 %v2705, 30
    %v2707 = vshll.u32 %v2706, 30
    %v2708 = vsub.s32 %v2704, %v2707
    %vm2709 = vcmp.lt.s32.totalorder %v2708, 0
    %v2710 = vsub.s32 0, %v2708
    %v2711 = vsel %vm2709, %v2710, %v2708
    %v2712 = vclz %v2711
    %v2713 = vsub.s32 %v2712, 2
    %vm2714 = vcmp.gt.s32.totalorder 0, %v2713
    %v2715 = vsel %vm2714, 0, %v2713
    %v2716 = vsub.s32 32, %v2715
    %v2717 = vshll.u32 %v2708, %v2715
    %v2718 = vshrl.u32 %v2700, %v2716
    %v2719 = vor.u32 %v2717, %v2718
    %v2720 = vsub.s32 4294967266, %v2715
    %v2721 = vadd.s32 %v2720, 127
    %v2722 = vshll.u32 %v2721, 23
    %v2723 = vor.u32 4788187, %v2722
    %v2724 = vand.u32 2147483647, %v2723
    %v2726 = vcvt.s32.f32 %v2719
    %v2727 = vmul.f32 %v2726, %v2724
    %v2728 = vxor.u32 %v2727, 2147483648
    %v2729 = vsel %vm2646, %v2728, %v2727
    %v2730 = vsub.s32 4, %v2706
    %v2731 = vsel %vm2646, %v2730, %v2706
    %v2732 = vsel %vm2645, %v2111, %v2729
    %v2733 = vsel %vm2645, 0, %v2731
    %v2734 = vcosq.f32.pop %v2732
    %v2735 = vsinq.f32.pop %v2732
    %vm2736 = vweird.f32 %v2111
    %v2737 = vadd.s32 %v2733, 3
    %v2738 = vand.u32 %v2737, 3
    %vm2739 = vcmp.lt.s32.totalorder %v2738, 2
    %vm2740 = vcmp.eq.s32.totalorder %v2738, 0
    %v2741 = vxor.u32 %v2735, 2147483648
    %v2742 = vsel %vm2740, %v2734, %v2741
    %vm2743 = vcmp.eq.s32.totalorder %v2738, 2
    %v2744 = vxor.u32 %v2734, 2147483648
    %v2745 = vsel %vm2743, %v2744, %v2735
    %v2746 = vsel %vm2739, %v2742, %v2745
    %v2747 = vsel %vm2736, nan, %v2746
    %v2748 = vand.u32 2147483647, %v2116
    %vm2749 = vcmp.le.f32.partialorder %v2748, 0.7853982
    %vm2750 = vcmp.lt.s32.totalorder %v2116, 0
    %v2751 = vand.u32 %v2116, 2139095040
    %v2752 = vshrl.u32 %v2751, 23
    %v2753 = vsub.s32 %v2752, 127
    %v2754 = vand.u32 2147483647, %v2116
    %v2755 = vand.u32 %v2754, 8388607
    %v2756 = vor.u32 %v2755, 8388608
    %v2757 = vsub.s32 0, %v2756
    %v2758 = vadd.s32 %v2753, 1
    %vm2759 = vcmp.gt.s32.totalorder %v2758, 0
    %v2760 = vsel %vm2759, %v2758, 0
    %v2761 = vshrl.u32 %v2760, 5
    %v2762 = vand.u32 %v2760, 31
    %v2763 = vsub.s32 32, %v2762
    %v2764 = vshrl.u32 683565275, %v2763
    %v2765 = vshll.u32 683565275, %v2762
    %v2766 = vshrl.u32 2475754826, %v2763
    %v2767 = vor.u32 %v2765, %v2766
    %v2768 = vshll.u32 2475754826, %v2762
    %v2769 = vshrl.u32 2131351028, %v2763
    %v2770 = vor.u32 %v2768, %v2769
    %v2771 = vshll.u32 2131351028, %v2762
    %v2772 = vshrl.u32 2102212464, %v2763
    %v2773 = vor.u32 %v2771, %v2772
    %v2774 = vshll.u32 2102212464, %v2762
    %v2775 = vshrl.u32 920167782, %v2763
    %v2776 = vor.u32 %v2774, %v2775
    %v2777 = vshll.u32 920167782, %v2762
    %v2778 = vshrl.u32 1326507024, %v2763
    %v2779 = vor.u32 %v2777, %v2778
    %vm2780 = vcmp.lt.s32.totalorder %v2761, 1
    %vm2781 = vcmp.lt.s32.totalorder %v2761, 2
    %vm2782 = vcmp.lt.s32.totalorder %v2761, 3
    %vm2783 = vcmp.lt.s32.totalorder %v2761, 4
    %v2784 = vsel %vm2780, %v2764, %v2767
    %v2785 = vsel %vm2783, %v2773, 2102212464
    %v2786 = vsel %vm2782, %v2770, %v2785
    %v2787 = vsel %vm2781, %v2784, %v2786
    %v2788 = vsel %vm2780, %v2767, %v2770
    %v2789 = vsel %vm2783, %v2776, 920167782
    %v2790 = vsel %vm2782, %v2773, %v2789
    %v2791 = vsel %vm2781, %v2788, %v2790
    %v2792 = vsel %vm2780, %v2770, %v2773
    %v2793 = vsel %vm2783, %v2779, 1326507024
    %v2794 = vsel %vm2782, %v2776, %v2793
    %v2795 = vsel %vm2781, %v2792, %v2794
    %v2796 = vshll.u32 %v2756, 8
    %v2797 = vmul.u32.u64.compose %v2796, %v2795
    %v2798 = vextract.low.u32 %v2797
    %v2799 = vextract.high.u32 %v2797
    %v2800 = vmul.u32.u64.compose %v2796, %v2791
    %v2801 = vextract.low.u32 %v2800
    %v2802 = vextract.high.u32 %v2800
    %v2803 = vmul.u32 %v2796, %v2787
    %v2804 = vadd.s32 %v2799, %v2801
    %vm2805 = vc.u32 %v2799, %v2801
    %v2806 = vadd.s32 %v2802, 1
    %v2807 = vsel %vm2805, %v2806, %v2802
    %v2808 = vadd.s32 %v2803, %v2807
    %v2809 = vadd.s32 %v2808, 536870912
    %v2810 = vshrl.u32 %v2809, 30
    %v2811 = vshll.u32 %v2810, 30
    %v2812 = vsub.s32 %v2808, %v2811
    %vm2813 = vcmp.lt.s32.totalorder %v2812, 0
    %v2814 = vsub.s32 0, %v2812
    %v2815 = vsel %vm2813, %v2814, %v2812
    %v2816 = vclz %v2815
    %v2817 = vsub.s32 %v2816, 2
    %vm2818 = vcmp.gt.s32.totalorder 0, %v2817
    %v2819 = vsel %vm2818, 0, %v2817
    %v2820 = vsub.s32 32, %v2819
    %v2821 = vshll.u32 %v2812, %v2819
    %v2822 = vshrl.u32 %v2804, %v2820
    %v2823 = vor.u32 %v2821, %v2822
    %v2824 = vsub.s32 4294967266, %v2819
    %v2825 = vadd.s32 %v2824, 127
    %v2826 = vshll.u32 %v2825, 23
    %v2827 = vor.u32 4788187, %v2826
    %v2828 = vand.u32 2147483647, %v2827
    %v2830 = vcvt.s32.f32 %v2823
    %v2831 = vmul.f32 %v2830, %v2828
    %v2832 = vxor.u32 %v2831, 2147483648
    %v2833 = vsel %vm2750, %v2832, %v2831
    %v2834 = vsub.s32 4, %v2810
    %v2835 = vsel %vm2750, %v2834, %v2810
    %v2836 = vsel %vm2749, %v2116, %v2833
    %v2837 = vsel %vm2749, 0, %v2835
    %v2838 = vcosq.f32.pop %v2836
    %v2839 = vsinq.f32.pop %v2836
    %vm2840 = vweird.f32 %v2116
    %v2841 = vadd.s32 %v2837, 3
    %v2842 = vand.u32 %v2841, 3
    %vm2843 = vcmp.lt.s32.totalorder %v2842, 2
    %vm2844 = vcmp.eq.s32.totalorder %v2842, 0
    %v2845 = vxor.u32 %v2839, 2147483648
    %v2846 = vsel %vm2844, %v2838, %v2845
    %vm2847 = vcmp.eq.s32.totalorder %v2842, 2
    %v2848 = vxor.u32 %v2838, 2147483648
    %v2849 = vsel %vm2847, %v2848, %v2839
    %v2850 = vsel %vm2843, %v2846, %v2849
    %v2851 = vsel %vm2840, nan, %v2850
    %v2852 = vand.u32 2147483647, %v2121
    %vm2853 = vcmp.le.f32.partialorder %v2852, 0.7853982
    %vm2854 = vcmp.lt.s32.totalorder %v2121, 0
    %v2855 = vand.u32 %v2121, 2139095040
    %v2856 = vshrl.u32 %v2855, 23
    %v2857 = vsub.s32 %v2856, 127
    %v2858 = vand.u32 2147483647, %v2121
    %v2859 = vand.u32 %v2858, 8388607
    %v2860 = vor.u32 %v2859, 8388608
    %v2861 = vsub.s32 0, %v2860
    %v2862 = vadd.s32 %v2857, 1
    %vm2863 = vcmp.gt.s32.totalorder %v2862, 0
    %v2864 = vsel %vm2863, %v2862, 0
    %v2865 = vshrl.u32 %v2864, 5
    %v2866 = vand.u32 %v2864, 31
    %v2867 = vsub.s32 32, %v2866
    %v2868 = vshrl.u32 683565275, %v2867
    %v2869 = vshll.u32 683565275, %v2866
    %v2870 = vshrl.u32 2475754826, %v2867
    %v2871 = vor.u32 %v2869, %v2870
    %v2872 = vshll.u32 2475754826, %v2866
    %v2873 = vshrl.u32 2131351028, %v2867
    %v2874 = vor.u32 %v2872, %v2873
    %v2875 = vshll.u32 2131351028, %v2866
    %v2876 = vshrl.u32 2102212464, %v2867
    %v2877 = vor.u32 %v2875, %v2876
    %v2878 = vshll.u32 2102212464, %v2866
    %v2879 = vshrl.u32 920167782, %v2867
    %v2880 = vor.u32 %v2878, %v2879
    %v2881 = vshll.u32 920167782, %v2866
    %v2882 = vshrl.u32 1326507024, %v2867
    %v2883 = vor.u32 %v2881, %v2882
    %vm2884 = vcmp.lt.s32.totalorder %v2865, 1
    %vm2885 = vcmp.lt.s32.totalorder %v2865, 2
    %vm2886 = vcmp.lt.s32.totalorder %v2865, 3
    %vm2887 = vcmp.lt.s32.totalorder %v2865, 4
    %v2888 = vsel %vm2884, %v2868, %v2871
    %v2889 = vsel %vm2887, %v2877, 2102212464
    %v2890 = vsel %vm2886, %v2874, %v2889
    %v2891 = vsel %vm2885, %v2888, %v2890
    %v2892 = vsel %vm2884, %v2871, %v2874
    %v2893 = vsel %vm2887, %v2880, 920167782
    %v2894 = vsel %vm2886, %v2877, %v2893
    %v2895 = vsel %vm2885, %v2892, %v2894
    %v2896 = vsel %vm2884, %v2874, %v2877
    %v2897 = vsel %vm2887, %v2883, 1326507024
    %v2898 = vsel %vm2886, %v2880, %v2897
    %v2899 = vsel %vm2885, %v2896, %v2898
    %v2900 = vshll.u32 %v2860, 8
    %v2901 = vmul.u32.u64.compose %v2900, %v2899
    %v2902 = vextract.low.u32 %v2901
    %v2903 = vextract.high.u32 %v2901
    %v2904 = vmul.u32.u64.compose %v2900, %v2895
    %v2905 = vextract.low.u32 %v2904
    %v2906 = vextract.high.u32 %v2904
    %v2907 = vmul.u32 %v2900, %v2891
    %v2908 = vadd.s32 %v2903, %v2905
    %vm2909 = vc.u32 %v2903, %v2905
    %v2910 = vadd.s32 %v2906, 1
    %v2911 = vsel %vm2909, %v2910, %v2906
    %v2912 = vadd.s32 %v2907, %v2911
    %v2913 = vadd.s32 %v2912, 536870912
    %v2914 = vshrl.u32 %v2913, 30
    %v2915 = vshll.u32 %v2914, 30
    %v2916 = vsub.s32 %v2912, %v2915
    %vm2917 = vcmp.lt.s32.totalorder %v2916, 0
    %v2918 = vsub.s32 0, %v2916
    %v2919 = vsel %vm2917, %v2918, %v2916
    %v2920 = vclz %v2919
    %v2921 = vsub.s32 %v2920, 2
    %vm2922 = vcmp.gt.s32.totalorder 0, %v2921
    %v2923 = vsel %vm2922, 0, %v2921
    %v2924 = vsub.s32 32, %v2923
    %v2925 = vshll.u32 %v2916, %v2923
    %v2926 = vshrl.u32 %v2908, %v2924
    %v2927 = vor.u32 %v2925, %v2926
    %v2928 = vsub.s32 4294967266, %v2923
    %v2929 = vadd.s32 %v2928, 127
    %v2930 = vshll.u32 %v2929, 23
    %v2931 = vor.u32 4788187, %v2930
    %v2932 = vand.u32 2147483647, %v2931
    %v2934 = vcvt.s32.f32 %v2927
    %v2935 = vmul.f32 %v2934, %v2932
    %v2936 = vxor.u32 %v2935, 2147483648
    %v2937 = vsel %vm2854, %v2936, %v2935
    %v2938 = vsub.s32 4, %v2914
    %v2939 = vsel %vm2854, %v2938, %v2914
    %v2940 = vsel %vm2853, %v2121, %v2937
    %v2941 = vsel %vm2853, 0, %v2939
    %v2942 = vcosq.f32.pop %v2940
    %v2943 = vsinq.f32.pop %v2940
    %vm2944 = vweird.f32 %v2121
    %v2945 = vadd.s32 %v2941, 3
    %v2946 = vand.u32 %v2945, 3
    %vm2947 = vcmp.lt.s32.totalorder %v2946, 2
    %vm2948 = vcmp.eq.s32.totalorder %v2946, 0
    %v2949 = vxor.u32 %v2943, 2147483648
    %v2950 = vsel %vm2948, %v2942, %v2949
    %vm2951 = vcmp.eq.s32.totalorder %v2946, 2
    %v2952 = vxor.u32 %v2942, 2147483648
    %v2953 = vsel %vm2951, %v2952, %v2943
    %v2954 = vsel %vm2947, %v2950, %v2953
    %v2955 = vsel %vm2944, nan, %v2954
    %2956 = vst [vmem:[#allocation8] sm:$0xff] %v2227
    %2957 = vst [vmem:[#allocation8 + $0x8] sm:$0xff] %v2331
    %2958 = vst [vmem:[#allocation8 + $0x10] sm:$0xff] %v2435
    %2959 = vst [vmem:[#allocation8 + $0x18] sm:$0xff] %v2539
    %2960 = vst [vmem:[#allocation8 + $0x20] sm:$0xff] %v2643
    %2961 = vst [vmem:[#allocation8 + $0x28] sm:$0xff] %v2747
    %2962 = vst [vmem:[#allocation8 + $0x30] sm:$0xff] %v2851
    %2963 = vst [vmem:[#allocation8 + $0x38] sm:$0xff] %v2955
    %s2964 = scalar_lea.vmem [#allocation2], 256
    %v2965 = vld [vmem:[%s2964] sm:$0xff]
    %v2966 = vld [vmem:[%s2964 + $0x8] sm:$0xff]
    %v2967 = vld [vmem:[%s2964 + $0x10] sm:$0xff]
    %v2968 = vld [vmem:[%s2964 + $0x18] sm:$0xff]
    %v2969 = vld [vmem:[%s2964 + $0x20] sm:$0xff]
    %v2970 = vld [vmem:[%s2964 + $0x28] sm:$0xff]
    %v2971 = vld [vmem:[%s2964 + $0x30] sm:$0xff]
    %v2972 = vld [vmem:[%s2964 + $0x38] sm:$0xff]
    %v2973 = vld [vmem:[%s2964 + $0x40] sm:$0xff]
    %v2974 = vld [vmem:[%s2964 + $0x48] sm:$0xff]
    %v2975 = vld [vmem:[%s2964 + $0x50] sm:$0xff]
    %v2976 = vld [vmem:[%s2964 + $0x58] sm:$0xff]
    %v2977 = vld [vmem:[%s2964 + $0x60] sm:$0xff]
    %v2978 = vld [vmem:[%s2964 + $0x68] sm:$0xff]
    %v2979 = vld [vmem:[%s2964 + $0x70] sm:$0xff]
    %v2980 = vld [vmem:[%s2964 + $0x78] sm:$0xff]
    %s2981 = scalar_lea.vmem %s3, 3
    %v2982 = vld [vmem:[%s2981] sm:$0x1]
    %v2984 = vlaneseq
    %v2985 = vshrl.u32 %v2984, 7
    %v2986 = vsub.s32 0, %v2985
    %v2987 = vrot.slane %v2982, %v2986
    %2989 = vmatprep.subr.mxu0 0.0
    %2990 = vmatpush1.msra.mxu0 %v2980
    %2991 = vmatprep.subr.mxu0 0.0
    %2992 = vmatpush1.msra.mxu0 %v2979
    %2993 = vmatprep.subr.mxu0 0.0
    %2994 = vmatpush1.msra.mxu0 %v2978
    %2995 = vmatprep.subr.mxu0 0.0
    %2996 = vmatpush1.msra.mxu0 %v2977
    %2997 = vmatprep.subr.mxu0 0.0
    %2998 = vmatpush1.msra.mxu0 %v2976
    %2999 = vmatprep.subr.mxu0 0.0
    %3000 = vmatpush1.msra.mxu0 %v2975
    %3001 = vmatprep.subr.mxu0 0.0
    %3002 = vmatpush1.msra.mxu0 %v2974
    %3003 = vmatprep.subr.mxu0 0.0
    %3004 = vmatpush1.msra.mxu0 %v2973
    %3005 = vmatprep.subr.mxu0 0.0
    %3006 = vmatpush1.msra.mxu0 %v2972
    %3007 = vmatprep.subr.mxu0 0.0
    %3008 = vmatpush1.msra.mxu0 %v2971
    %3009 = vmatprep.subr.mxu0 0.0
    %3010 = vmatpush1.msra.mxu0 %v2970
    %3011 = vmatprep.subr.mxu0 0.0
    %3012 = vmatpush1.msra.mxu0 %v2969
    %3013 = vmatprep.subr.mxu0 0.0
    %3014 = vmatpush1.msra.mxu0 %v2968
    %3015 = vmatprep.subr.mxu0 0.0
    %3016 = vmatpush1.msra.mxu0 %v2967
    %3017 = vmatprep.subr.mxu0 0.0
    %3018 = vmatpush1.msra.mxu0 %v2966
    %3019 = vmatprep.subr.mxu0 0.0
    %3020 = vmatpush1.msra.mxu0 %v2965
    %3021 = vmatprep.subr.mxu0 0.0
    %3022 = vmatpush2.msra.mxu0 0.0
    %3023 = vmatprep.subr.mxu0 0.0
    %3024 = vmatpush2.msra.mxu0 0.0
    %3025 = vmatprep.subr.mxu0 0.0
    %3026 = vmatpush2.msra.mxu0 0.0
    %3027 = vmatprep.subr.mxu0 0.0
    %3028 = vmatpush2.msra.mxu0 0.0
    %3029 = vmatprep.subr.mxu0 0.0
    %3030 = vmatpush2.msra.mxu0 0.0
    %3031 = vmatprep.subr.mxu0 0.0
    %3032 = vmatpush2.msra.mxu0 0.0
    %3033 = vmatprep.subr.mxu0 0.0
    %3034 = vmatpush2.msra.mxu0 0.0
    %3035 = vmatprep.subr.mxu0 0.0
    %3036 = vmatpush2.msra.mxu0 0.0
    %3037 = vmatprep.subr.mxu0 0.0
    %3038 = vmatpush2.msra.mxu0 0.0
    %3039 = vmatprep.subr.mxu0 0.0
    %3040 = vmatpush2.msra.mxu0 0.0
    %3041 = vmatprep.subr.mxu0 0.0
    %3042 = vmatpush2.msra.mxu0 0.0
    %3043 = vmatprep.subr.mxu0 0.0
    %3044 = vmatpush2.msra.mxu0 0.0
    %3045 = vmatprep.subr.mxu0 0.0
    %3046 = vmatpush2.msra.mxu0 0.0
    %3047 = vmatprep.subr.mxu0 0.0
    %3048 = vmatpush2.msra.mxu0 0.0
    %3049 = vmatprep.subr.mxu0 0.0
    %3050 = vmatpush2.msra.mxu0 0.0
    %3051 = vmatprep.subr.mxu0 0.0
    %3052 = vmatpush2.msra.mxu0 0.0
    %3053 = vmatprep.mubr.f32.mxu0 0.0
    %3054 = vmatmul.mubr.f32.gmra.mxu0 %v2227
    %v3055 = vpop.f32.mrf.mxu0
    %v3056 = vadd.f32 %v2987, %v3055
    %v3057 = vpop.f32.mrf.mxu0
    %3058 = vmatprep.mubr.f32.mxu0 0.0
    %3059 = vmatmul.mubr.f32.gmra.mxu0 %v2331
    %v3060 = vpop.f32.mrf.mxu0
    %v3061 = vadd.f32 %v2987, %v3060
    %v3062 = vpop.f32.mrf.mxu0
    %3063 = vmatprep.mubr.f32.mxu0 0.0
    %3064 = vmatmul.mubr.f32.gmra.mxu0 %v2435
    %v3065 = vpop.f32.mrf.mxu0
    %v3066 = vadd.f32 %v2987, %v3065
    %v3067 = vpop.f32.mrf.mxu0
    %3068 = vmatprep.mubr.f32.mxu0 0.0
    %3069 = vmatmul.mubr.f32.gmra.mxu0 %v2539
    %v3070 = vpop.f32.mrf.mxu0
    %v3071 = vadd.f32 %v2987, %v3070
    %v3072 = vpop.f32.mrf.mxu0
    %3073 = vmatprep.mubr.f32.mxu0 0.0
    %3074 = vmatmul.mubr.f32.gmra.mxu0 %v2643
    %v3075 = vpop.f32.mrf.mxu0
    %v3076 = vadd.f32 %v2987, %v3075
    %v3077 = vpop.f32.mrf.mxu0
    %3078 = vmatprep.mubr.f32.mxu0 0.0
    %3079 = vmatmul.mubr.f32.gmra.mxu0 %v2747
    %v3080 = vpop.f32.mrf.mxu0
    %v3081 = vadd.f32 %v2987, %v3080
    %v3082 = vpop.f32.mrf.mxu0
    %3083 = vmatprep.mubr.f32.mxu0 0.0
    %3084 = vmatmul.mubr.f32.gmra.mxu0 %v2851
    %v3085 = vpop.f32.mrf.mxu0
    %v3086 = vadd.f32 %v2987, %v3085
    %v3087 = vpop.f32.mrf.mxu0
    %3088 = vmatprep.mubr.f32.mxu0 0.0
    %3089 = vmatmul.mubr.f32.gmra.mxu0 %v2955
    %v3090 = vpop.f32.mrf.mxu0
    %v3091 = vadd.f32 %v2987, %v3090
    %v3092 = vpop.f32.mrf.mxu0
    %3093 = vdwg.mxu0
    %v3094 = vand.u32 2147483647, %v3056
    %vm3095 = vcmp.le.f32.partialorder %v3094, 0.7853982
    %vm3096 = vcmp.lt.s32.totalorder %v3056, 0
    %v3097 = vand.u32 %v3056, 2139095040
    %v3098 = vshrl.u32 %v3097, 23
    %v3099 = vsub.s32 %v3098, 127
    %v3100 = vand.u32 2147483647, %v3056
    %v3101 = vand.u32 %v3100, 8388607
    %v3102 = vor.u32 %v3101, 8388608
    %v3103 = vsub.s32 0, %v3102
    %v3104 = vadd.s32 %v3099, 1
    %vm3105 = vcmp.gt.s32.totalorder %v3104, 0
    %v3106 = vsel %vm3105, %v3104, 0
    %v3107 = vshrl.u32 %v3106, 5
    %v3108 = vand.u32 %v3106, 31
    %v3109 = vsub.s32 32, %v3108
    %v3110 = vshrl.u32 683565275, %v3109
    %v3111 = vshll.u32 683565275, %v3108
    %v3112 = vshrl.u32 2475754826, %v3109
    %v3113 = vor.u32 %v3111, %v3112
    %v3114 = vshll.u32 2475754826, %v3108
    %v3115 = vshrl.u32 2131351028, %v3109
    %v3116 = vor.u32 %v3114, %v3115
    %v3117 = vshll.u32 2131351028, %v3108
    %v3118 = vshrl.u32 2102212464, %v3109
    %v3119 = vor.u32 %v3117, %v3118
    %v3120 = vshll.u32 2102212464, %v3108
    %v3121 = vshrl.u32 920167782, %v3109
    %v3122 = vor.u32 %v3120, %v3121
    %v3123 = vshll.u32 920167782, %v3108
    %v3124 = vshrl.u32 1326507024, %v3109
    %v3125 = vor.u32 %v3123, %v3124
    %vm3126 = vcmp.lt.s32.totalorder %v3107, 1
    %vm3127 = vcmp.lt.s32.totalorder %v3107, 2
    %vm3128 = vcmp.lt.s32.totalorder %v3107, 3
    %vm3129 = vcmp.lt.s32.totalorder %v3107, 4
    %v3130 = vsel %vm3126, %v3110, %v3113
    %v3131 = vsel %vm3129, %v3119, 2102212464
    %v3132 = vsel %vm3128, %v3116, %v3131
    %v3133 = vsel %vm3127, %v3130, %v3132
    %v3134 = vsel %vm3126, %v3113, %v3116
    %v3135 = vsel %vm3129, %v3122, 920167782
    %v3136 = vsel %vm3128, %v3119, %v3135
    %v3137 = vsel %vm3127, %v3134, %v3136
    %v3138 = vsel %vm3126, %v3116, %v3119
    %v3139 = vsel %vm3129, %v3125, 1326507024
    %v3140 = vsel %vm3128, %v3122, %v3139
    %v3141 = vsel %vm3127, %v3138, %v3140
    %v3142 = vshll.u32 %v3102, 8
    %v3143 = vmul.u32.u64.compose %v3142, %v3141
    %v3144 = vextract.low.u32 %v3143
    %v3145 = vextract.high.u32 %v3143
    %v3146 = vmul.u32.u64.compose %v3142, %v3137
    %v3147 = vextract.low.u32 %v3146
    %v3148 = vextract.high.u32 %v3146
    %v3149 = vmul.u32 %v3142, %v3133
    %v3150 = vadd.s32 %v3145, %v3147
    %vm3151 = vc.u32 %v3145, %v3147
    %v3152 = vadd.s32 %v3148, 1
    %v3153 = vsel %vm3151, %v3152, %v3148
    %v3154 = vadd.s32 %v3149, %v3153
    %v3155 = vadd.s32 %v3154, 536870912
    %v3156 = vshrl.u32 %v3155, 30
    %v3157 = vshll.u32 %v3156, 30
    %v3158 = vsub.s32 %v3154, %v3157
    %vm3159 = vcmp.lt.s32.totalorder %v3158, 0
    %v3160 = vsub.s32 0, %v3158
    %v3161 = vsel %vm3159, %v3160, %v3158
    %v3162 = vclz %v3161
    %v3163 = vsub.s32 %v3162, 2
    %vm3164 = vcmp.gt.s32.totalorder 0, %v3163
    %v3165 = vsel %vm3164, 0, %v3163
    %v3166 = vsub.s32 32, %v3165
    %v3167 = vshll.u32 %v3158, %v3165
    %v3168 = vshrl.u32 %v3150, %v3166
    %v3169 = vor.u32 %v3167, %v3168
    %v3170 = vsub.s32 4294967266, %v3165
    %v3171 = vadd.s32 %v3170, 127
    %v3172 = vshll.u32 %v3171, 23
    %v3173 = vor.u32 4788187, %v3172
    %v3174 = vand.u32 2147483647, %v3173
    %v3176 = vcvt.s32.f32 %v3169
    %v3177 = vmul.f32 %v3176, %v3174
    %v3178 = vxor.u32 %v3177, 2147483648
    %v3179 = vsel %vm3096, %v3178, %v3177
    %v3180 = vsub.s32 4, %v3156
    %v3181 = vsel %vm3096, %v3180, %v3156
    %v3182 = vsel %vm3095, %v3056, %v3179
    %v3183 = vsel %vm3095, 0, %v3181
    %v3184 = vcosq.f32.pop %v3182
    %v3185 = vsinq.f32.pop %v3182
    %vm3186 = vweird.f32 %v3056
    %v3187 = vadd.s32 %v3183, 3
    %v3188 = vand.u32 %v3187, 3
    %vm3189 = vcmp.lt.s32.totalorder %v3188, 2
    %vm3190 = vcmp.eq.s32.totalorder %v3188, 0
    %v3191 = vxor.u32 %v3185, 2147483648
    %v3192 = vsel %vm3190, %v3184, %v3191
    %vm3193 = vcmp.eq.s32.totalorder %v3188, 2
    %v3194 = vxor.u32 %v3184, 2147483648
    %v3195 = vsel %vm3193, %v3194, %v3185
    %v3196 = vsel %vm3189, %v3192, %v3195
    %v3197 = vsel %vm3186, nan, %v3196
    %v3198 = vand.u32 2147483647, %v3061
    %vm3199 = vcmp.le.f32.partialorder %v3198, 0.7853982
    %vm3200 = vcmp.lt.s32.totalorder %v3061, 0
    %v3201 = vand.u32 %v3061, 2139095040
    %v3202 = vshrl.u32 %v3201, 23
    %v3203 = vsub.s32 %v3202, 127
    %v3204 = vand.u32 2147483647, %v3061
    %v3205 = vand.u32 %v3204, 8388607
    %v3206 = vor.u32 %v3205, 8388608
    %v3207 = vsub.s32 0, %v3206
    %v3208 = vadd.s32 %v3203, 1
    %vm3209 = vcmp.gt.s32.totalorder %v3208, 0
    %v3210 = vsel %vm3209, %v3208, 0
    %v3211 = vshrl.u32 %v3210, 5
    %v3212 = vand.u32 %v3210, 31
    %v3213 = vsub.s32 32, %v3212
    %v3214 = vshrl.u32 683565275, %v3213
    %v3215 = vshll.u32 683565275, %v3212
    %v3216 = vshrl.u32 2475754826, %v3213
    %v3217 = vor.u32 %v3215, %v3216
    %v3218 = vshll.u32 2475754826, %v3212
    %v3219 = vshrl.u32 2131351028, %v3213
    %v3220 = vor.u32 %v3218, %v3219
    %v3221 = vshll.u32 2131351028, %v3212
    %v3222 = vshrl.u32 2102212464, %v3213
    %v3223 = vor.u32 %v3221, %v3222
    %v3224 = vshll.u32 2102212464, %v3212
    %v3225 = vshrl.u32 920167782, %v3213
    %v3226 = vor.u32 %v3224, %v3225
    %v3227 = vshll.u32 920167782, %v3212
    %v3228 = vshrl.u32 1326507024, %v3213
    %v3229 = vor.u32 %v3227, %v3228
    %vm3230 = vcmp.lt.s32.totalorder %v3211, 1
    %vm3231 = vcmp.lt.s32.totalorder %v3211, 2
    %vm3232 = vcmp.lt.s32.totalorder %v3211, 3
    %vm3233 = vcmp.lt.s32.totalorder %v3211, 4
    %v3234 = vsel %vm3230, %v3214, %v3217
    %v3235 = vsel %vm3233, %v3223, 2102212464
    %v3236 = vsel %vm3232, %v3220, %v3235
    %v3237 = vsel %vm3231, %v3234, %v3236
    %v3238 = vsel %vm3230, %v3217, %v3220
    %v3239 = vsel %vm3233, %v3226, 920167782
    %v3240 = vsel %vm3232, %v3223, %v3239
    %v3241 = vsel %vm3231, %v3238, %v3240
    %v3242 = vsel %vm3230, %v3220, %v3223
    %v3243 = vsel %vm3233, %v3229, 1326507024
    %v3244 = vsel %vm3232, %v3226, %v3243
    %v3245 = vsel %vm3231, %v3242, %v3244
    %v3246 = vshll.u32 %v3206, 8
    %v3247 = vmul.u32.u64.compose %v3246, %v3245
    %v3248 = vextract.low.u32 %v3247
    %v3249 = vextract.high.u32 %v3247
    %v3250 = vmul.u32.u64.compose %v3246, %v3241
    %v3251 = vextract.low.u32 %v3250
    %v3252 = vextract.high.u32 %v3250
    %v3253 = vmul.u32 %v3246, %v3237
    %v3254 = vadd.s32 %v3249, %v3251
    %vm3255 = vc.u32 %v3249, %v3251
    %v3256 = vadd.s32 %v3252, 1
    %v3257 = vsel %vm3255, %v3256, %v3252
    %v3258 = vadd.s32 %v3253, %v3257
    %v3259 = vadd.s32 %v3258, 536870912
    %v3260 = vshrl.u32 %v3259, 30
    %v3261 = vshll.u32 %v3260, 30
    %v3262 = vsub.s32 %v3258, %v3261
    %vm3263 = vcmp.lt.s32.totalorder %v3262, 0
    %v3264 = vsub.s32 0, %v3262
    %v3265 = vsel %vm3263, %v3264, %v3262
    %v3266 = vclz %v3265
    %v3267 = vsub.s32 %v3266, 2
    %vm3268 = vcmp.gt.s32.totalorder 0, %v3267
    %v3269 = vsel %vm3268, 0, %v3267
    %v3270 = vsub.s32 32, %v3269
    %v3271 = vshll.u32 %v3262, %v3269
    %v3272 = vshrl.u32 %v3254, %v3270
    %v3273 = vor.u32 %v3271, %v3272
    %v3274 = vsub.s32 4294967266, %v3269
    %v3275 = vadd.s32 %v3274, 127
    %v3276 = vshll.u32 %v3275, 23
    %v3277 = vor.u32 4788187, %v3276
    %v3278 = vand.u32 2147483647, %v3277
    %v3280 = vcvt.s32.f32 %v3273
    %v3281 = vmul.f32 %v3280, %v3278
    %v3282 = vxor.u32 %v3281, 2147483648
    %v3283 = vsel %vm3200, %v3282, %v3281
    %v3284 = vsub.s32 4, %v3260
    %v3285 = vsel %vm3200, %v3284, %v3260
    %v3286 = vsel %vm3199, %v3061, %v3283
    %v3287 = vsel %vm3199, 0, %v3285
    %v3288 = vcosq.f32.pop %v3286
    %v3289 = vsinq.f32.pop %v3286
    %vm3290 = vweird.f32 %v3061
    %v3291 = vadd.s32 %v3287, 3
    %v3292 = vand.u32 %v3291, 3
    %vm3293 = vcmp.lt.s32.totalorder %v3292, 2
    %vm3294 = vcmp.eq.s32.totalorder %v3292, 0
    %v3295 = vxor.u32 %v3289, 2147483648
    %v3296 = vsel %vm3294, %v3288, %v3295
    %vm3297 = vcmp.eq.s32.totalorder %v3292, 2
    %v3298 = vxor.u32 %v3288, 2147483648
    %v3299 = vsel %vm3297, %v3298, %v3289
    %v3300 = vsel %vm3293, %v3296, %v3299
    %v3301 = vsel %vm3290, nan, %v3300
    %v3302 = vand.u32 2147483647, %v3066
    %vm3303 = vcmp.le.f32.partialorder %v3302, 0.7853982
    %vm3304 = vcmp.lt.s32.totalorder %v3066, 0
    %v3305 = vand.u32 %v3066, 2139095040
    %v3306 = vshrl.u32 %v3305, 23
    %v3307 = vsub.s32 %v3306, 127
    %v3308 = vand.u32 2147483647, %v3066
    %v3309 = vand.u32 %v3308, 8388607
    %v3310 = vor.u32 %v3309, 8388608
    %v3311 = vsub.s32 0, %v3310
    %v3312 = vadd.s32 %v3307, 1
    %vm3313 = vcmp.gt.s32.totalorder %v3312, 0
    %v3314 = vsel %vm3313, %v3312, 0
    %v3315 = vshrl.u32 %v3314, 5
    %v3316 = vand.u32 %v3314, 31
    %v3317 = vsub.s32 32, %v3316
    %v3318 = vshrl.u32 683565275, %v3317
    %v3319 = vshll.u32 683565275, %v3316
    %v3320 = vshrl.u32 2475754826, %v3317
    %v3321 = vor.u32 %v3319, %v3320
    %v3322 = vshll.u32 2475754826, %v3316
    %v3323 = vshrl.u32 2131351028, %v3317
    %v3324 = vor.u32 %v3322, %v3323
    %v3325 = vshll.u32 2131351028, %v3316
    %v3326 = vshrl.u32 2102212464, %v3317
    %v3327 = vor.u32 %v3325, %v3326
    %v3328 = vshll.u32 2102212464, %v3316
    %v3329 = vshrl.u32 920167782, %v3317
    %v3330 = vor.u32 %v3328, %v3329
    %v3331 = vshll.u32 920167782, %v3316
    %v3332 = vshrl.u32 1326507024, %v3317
    %v3333 = vor.u32 %v3331, %v3332
    %vm3334 = vcmp.lt.s32.totalorder %v3315, 1
    %vm3335 = vcmp.lt.s32.totalorder %v3315, 2
    %vm3336 = vcmp.lt.s32.totalorder %v3315, 3
    %vm3337 = vcmp.lt.s32.totalorder %v3315, 4
    %v3338 = vsel %vm3334, %v3318, %v3321
    %v3339 = vsel %vm3337, %v3327, 2102212464
    %v3340 = vsel %vm3336, %v3324, %v3339
    %v3341 = vsel %vm3335, %v3338, %v3340
    %v3342 = vsel %vm3334, %v3321, %v3324
    %v3343 = vsel %vm3337, %v3330, 920167782
    %v3344 = vsel %vm3336, %v3327, %v3343
    %v3345 = vsel %vm3335, %v3342, %v3344
    %v3346 = vsel %vm3334, %v3324, %v3327
    %v3347 = vsel %vm3337, %v3333, 1326507024
    %v3348 = vsel %vm3336, %v3330, %v3347
    %v3349 = vsel %vm3335, %v3346, %v3348
    %v3350 = vshll.u32 %v3310, 8
    %v3351 = vmul.u32.u64.compose %v3350, %v3349
    %v3352 = vextract.low.u32 %v3351
    %v3353 = vextract.high.u32 %v3351
    %v3354 = vmul.u32.u64.compose %v3350, %v3345
    %v3355 = vextract.low.u32 %v3354
    %v3356 = vextract.high.u32 %v3354
    %v3357 = vmul.u32 %v3350, %v3341
    %v3358 = vadd.s32 %v3353, %v3355
    %vm3359 = vc.u32 %v3353, %v3355
    %v3360 = vadd.s32 %v3356, 1
    %v3361 = vsel %vm3359, %v3360, %v3356
    %v3362 = vadd.s32 %v3357, %v3361
    %v3363 = vadd.s32 %v3362, 536870912
    %v3364 = vshrl.u32 %v3363, 30
    %v3365 = vshll.u32 %v3364, 30
    %v3366 = vsub.s32 %v3362, %v3365
    %vm3367 = vcmp.lt.s32.totalorder %v3366, 0
    %v3368 = vsub.s32 0, %v3366
    %v3369 = vsel %vm3367, %v3368, %v3366
    %v3370 = vclz %v3369
    %v3371 = vsub.s32 %v3370, 2
    %vm3372 = vcmp.gt.s32.totalorder 0, %v3371
    %v3373 = vsel %vm3372, 0, %v3371
    %v3374 = vsub.s32 32, %v3373
    %v3375 = vshll.u32 %v3366, %v3373
    %v3376 = vshrl.u32 %v3358, %v3374
    %v3377 = vor.u32 %v3375, %v3376
    %v3378 = vsub.s32 4294967266, %v3373
    %v3379 = vadd.s32 %v3378, 127
    %v3380 = vshll.u32 %v3379, 23
    %v3381 = vor.u32 4788187, %v3380
    %v3382 = vand.u32 2147483647, %v3381
    %v3384 = vcvt.s32.f32 %v3377
    %v3385 = vmul.f32 %v3384, %v3382
    %v3386 = vxor.u32 %v3385, 2147483648
    %v3387 = vsel %vm3304, %v3386, %v3385
    %v3388 = vsub.s32 4, %v3364
    %v3389 = vsel %vm3304, %v3388, %v3364
    %v3390 = vsel %vm3303, %v3066, %v3387
    %v3391 = vsel %vm3303, 0, %v3389
    %v3392 = vcosq.f32.pop %v3390
    %v3393 = vsinq.f32.pop %v3390
    %vm3394 = vweird.f32 %v3066
    %v3395 = vadd.s32 %v3391, 3
    %v3396 = vand.u32 %v3395, 3
    %vm3397 = vcmp.lt.s32.totalorder %v3396, 2
    %vm3398 = vcmp.eq.s32.totalorder %v3396, 0
    %v3399 = vxor.u32 %v3393, 2147483648
    %v3400 = vsel %vm3398, %v3392, %v3399
    %vm3401 = vcmp.eq.s32.totalorder %v3396, 2
    %v3402 = vxor.u32 %v3392, 2147483648
    %v3403 = vsel %vm3401, %v3402, %v3393
    %v3404 = vsel %vm3397, %v3400, %v3403
    %v3405 = vsel %vm3394, nan, %v3404
    %v3406 = vand.u32 2147483647, %v3071
    %vm3407 = vcmp.le.f32.partialorder %v3406, 0.7853982
    %vm3408 = vcmp.lt.s32.totalorder %v3071, 0
    %v3409 = vand.u32 %v3071, 2139095040
    %v3410 = vshrl.u32 %v3409, 23
    %v3411 = vsub.s32 %v3410, 127
    %v3412 = vand.u32 2147483647, %v3071
    %v3413 = vand.u32 %v3412, 8388607
    %v3414 = vor.u32 %v3413, 8388608
    %v3415 = vsub.s32 0, %v3414
    %v3416 = vadd.s32 %v3411, 1
    %vm3417 = vcmp.gt.s32.totalorder %v3416, 0
    %v3418 = vsel %vm3417, %v3416, 0
    %v3419 = vshrl.u32 %v3418, 5
    %v3420 = vand.u32 %v3418, 31
    %v3421 = vsub.s32 32, %v3420
    %v3422 = vshrl.u32 683565275, %v3421
    %v3423 = vshll.u32 683565275, %v3420
    %v3424 = vshrl.u32 2475754826, %v3421
    %v3425 = vor.u32 %v3423, %v3424
    %v3426 = vshll.u32 2475754826, %v3420
    %v3427 = vshrl.u32 2131351028, %v3421
    %v3428 = vor.u32 %v3426, %v3427
    %v3429 = vshll.u32 2131351028, %v3420
    %v3430 = vshrl.u32 2102212464, %v3421
    %v3431 = vor.u32 %v3429, %v3430
    %v3432 = vshll.u32 2102212464, %v3420
    %v3433 = vshrl.u32 920167782, %v3421
    %v3434 = vor.u32 %v3432, %v3433
    %v3435 = vshll.u32 920167782, %v3420
    %v3436 = vshrl.u32 1326507024, %v3421
    %v3437 = vor.u32 %v3435, %v3436
    %vm3438 = vcmp.lt.s32.totalorder %v3419, 1
    %vm3439 = vcmp.lt.s32.totalorder %v3419, 2
    %vm3440 = vcmp.lt.s32.totalorder %v3419, 3
    %vm3441 = vcmp.lt.s32.totalorder %v3419, 4
    %v3442 = vsel %vm3438, %v3422, %v3425
    %v3443 = vsel %vm3441, %v3431, 2102212464
    %v3444 = vsel %vm3440, %v3428, %v3443
    %v3445 = vsel %vm3439, %v3442, %v3444
    %v3446 = vsel %vm3438, %v3425, %v3428
    %v3447 = vsel %vm3441, %v3434, 920167782
    %v3448 = vsel %vm3440, %v3431, %v3447
    %v3449 = vsel %vm3439, %v3446, %v3448
    %v3450 = vsel %vm3438, %v3428, %v3431
    %v3451 = vsel %vm3441, %v3437, 1326507024
    %v3452 = vsel %vm3440, %v3434, %v3451
    %v3453 = vsel %vm3439, %v3450, %v3452
    %v3454 = vshll.u32 %v3414, 8
    %v3455 = vmul.u32.u64.compose %v3454, %v3453
    %v3456 = vextract.low.u32 %v3455
    %v3457 = vextract.high.u32 %v3455
    %v3458 = vmul.u32.u64.compose %v3454, %v3449
    %v3459 = vextract.low.u32 %v3458
    %v3460 = vextract.high.u32 %v3458
    %v3461 = vmul.u32 %v3454, %v3445
    %v3462 = vadd.s32 %v3457, %v3459
    %vm3463 = vc.u32 %v3457, %v3459
    %v3464 = vadd.s32 %v3460, 1
    %v3465 = vsel %vm3463, %v3464, %v3460
    %v3466 = vadd.s32 %v3461, %v3465
    %v3467 = vadd.s32 %v3466, 536870912
    %v3468 = vshrl.u32 %v3467, 30
    %v3469 = vshll.u32 %v3468, 30
    %v3470 = vsub.s32 %v3466, %v3469
    %vm3471 = vcmp.lt.s32.totalorder %v3470, 0
    %v3472 = vsub.s32 0, %v3470
    %v3473 = vsel %vm3471, %v3472, %v3470
    %v3474 = vclz %v3473
    %v3475 = vsub.s32 %v3474, 2
    %vm3476 = vcmp.gt.s32.totalorder 0, %v3475
    %v3477 = vsel %vm3476, 0, %v3475
    %v3478 = vsub.s32 32, %v3477
    %v3479 = vshll.u32 %v3470, %v3477
    %v3480 = vshrl.u32 %v3462, %v3478
    %v3481 = vor.u32 %v3479, %v3480
    %v3482 = vsub.s32 4294967266, %v3477
    %v3483 = vadd.s32 %v3482, 127
    %v3484 = vshll.u32 %v3483, 23
    %v3485 = vor.u32 4788187, %v3484
    %v3486 = vand.u32 2147483647, %v3485
    %v3488 = vcvt.s32.f32 %v3481
    %v3489 = vmul.f32 %v3488, %v3486
    %v3490 = vxor.u32 %v3489, 2147483648
    %v3491 = vsel %vm3408, %v3490, %v3489
    %v3492 = vsub.s32 4, %v3468
    %v3493 = vsel %vm3408, %v3492, %v3468
    %v3494 = vsel %vm3407, %v3071, %v3491
    %v3495 = vsel %vm3407, 0, %v3493
    %v3496 = vcosq.f32.pop %v3494
    %v3497 = vsinq.f32.pop %v3494
    %vm3498 = vweird.f32 %v3071
    %v3499 = vadd.s32 %v3495, 3
    %v3500 = vand.u32 %v3499, 3
    %vm3501 = vcmp.lt.s32.totalorder %v3500, 2
    %vm3502 = vcmp.eq.s32.totalorder %v3500, 0
    %v3503 = vxor.u32 %v3497, 2147483648
    %v3504 = vsel %vm3502, %v3496, %v3503
    %vm3505 = vcmp.eq.s32.totalorder %v3500, 2
    %v3506 = vxor.u32 %v3496, 2147483648
    %v3507 = vsel %vm3505, %v3506, %v3497
    %v3508 = vsel %vm3501, %v3504, %v3507
    %v3509 = vsel %vm3498, nan, %v3508
    %v3510 = vand.u32 2147483647, %v3076
    %vm3511 = vcmp.le.f32.partialorder %v3510, 0.7853982
    %vm3512 = vcmp.lt.s32.totalorder %v3076, 0
    %v3513 = vand.u32 %v3076, 2139095040
    %v3514 = vshrl.u32 %v3513, 23
    %v3515 = vsub.s32 %v3514, 127
    %v3516 = vand.u32 2147483647, %v3076
    %v3517 = vand.u32 %v3516, 8388607
    %v3518 = vor.u32 %v3517, 8388608
    %v3519 = vsub.s32 0, %v3518
    %v3520 = vadd.s32 %v3515, 1
    %vm3521 = vcmp.gt.s32.totalorder %v3520, 0
    %v3522 = vsel %vm3521, %v3520, 0
    %v3523 = vshrl.u32 %v3522, 5
    %v3524 = vand.u32 %v3522, 31
    %v3525 = vsub.s32 32, %v3524
    %v3526 = vshrl.u32 683565275, %v3525
    %v3527 = vshll.u32 683565275, %v3524
    %v3528 = vshrl.u32 2475754826, %v3525
    %v3529 = vor.u32 %v3527, %v3528
    %v3530 = vshll.u32 2475754826, %v3524
    %v3531 = vshrl.u32 2131351028, %v3525
    %v3532 = vor.u32 %v3530, %v3531
    %v3533 = vshll.u32 2131351028, %v3524
    %v3534 = vshrl.u32 2102212464, %v3525
    %v3535 = vor.u32 %v3533, %v3534
    %v3536 = vshll.u32 2102212464, %v3524
    %v3537 = vshrl.u32 920167782, %v3525
    %v3538 = vor.u32 %v3536, %v3537
    %v3539 = vshll.u32 920167782, %v3524
    %v3540 = vshrl.u32 1326507024, %v3525
    %v3541 = vor.u32 %v3539, %v3540
    %vm3542 = vcmp.lt.s32.totalorder %v3523, 1
    %vm3543 = vcmp.lt.s32.totalorder %v3523, 2
    %vm3544 = vcmp.lt.s32.totalorder %v3523, 3
    %vm3545 = vcmp.lt.s32.totalorder %v3523, 4
    %v3546 = vsel %vm3542, %v3526, %v3529
    %v3547 = vsel %vm3545, %v3535, 2102212464
    %v3548 = vsel %vm3544, %v3532, %v3547
    %v3549 = vsel %vm3543, %v3546, %v3548
    %v3550 = vsel %vm3542, %v3529, %v3532
    %v3551 = vsel %vm3545, %v3538, 920167782
    %v3552 = vsel %vm3544, %v3535, %v3551
    %v3553 = vsel %vm3543, %v3550, %v3552
    %v3554 = vsel %vm3542, %v3532, %v3535
    %v3555 = vsel %vm3545, %v3541, 1326507024
    %v3556 = vsel %vm3544, %v3538, %v3555
    %v3557 = vsel %vm3543, %v3554, %v3556
    %v3558 = vshll.u32 %v3518, 8
    %v3559 = vmul.u32.u64.compose %v3558, %v3557
    %v3560 = vextract.low.u32 %v3559
    %v3561 = vextract.high.u32 %v3559
    %v3562 = vmul.u32.u64.compose %v3558, %v3553
    %v3563 = vextract.low.u32 %v3562
    %v3564 = vextract.high.u32 %v3562
    %v3565 = vmul.u32 %v3558, %v3549
    %v3566 = vadd.s32 %v3561, %v3563
    %vm3567 = vc.u32 %v3561, %v3563
    %v3568 = vadd.s32 %v3564, 1
    %v3569 = vsel %vm3567, %v3568, %v3564
    %v3570 = vadd.s32 %v3565, %v3569
    %v3571 = vadd.s32 %v3570, 536870912
    %v3572 = vshrl.u32 %v3571, 30
    %v3573 = vshll.u32 %v3572, 30
    %v3574 = vsub.s32 %v3570, %v3573
    %vm3575 = vcmp.lt.s32.totalorder %v3574, 0
    %v3576 = vsub.s32 0, %v3574
    %v3577 = vsel %vm3575, %v3576, %v3574
    %v3578 = vclz %v3577
    %v3579 = vsub.s32 %v3578, 2
    %vm3580 = vcmp.gt.s32.totalorder 0, %v3579
    %v3581 = vsel %vm3580, 0, %v3579
    %v3582 = vsub.s32 32, %v3581
    %v3583 = vshll.u32 %v3574, %v3581
    %v3584 = vshrl.u32 %v3566, %v3582
    %v3585 = vor.u32 %v3583, %v3584
    %v3586 = vsub.s32 4294967266, %v3581
    %v3587 = vadd.s32 %v3586, 127
    %v3588 = vshll.u32 %v3587, 23
    %v3589 = vor.u32 4788187, %v3588
    %v3590 = vand.u32 2147483647, %v3589
    %v3592 = vcvt.s32.f32 %v3585
    %v3593 = vmul.f32 %v3592, %v3590
    %v3594 = vxor.u32 %v3593, 2147483648
    %v3595 = vsel %vm3512, %v3594, %v3593
    %v3596 = vsub.s32 4, %v3572
    %v3597 = vsel %vm3512, %v3596, %v3572
    %v3598 = vsel %vm3511, %v3076, %v3595
    %v3599 = vsel %vm3511, 0, %v3597
    %v3600 = vcosq.f32.pop %v3598
    %v3601 = vsinq.f32.pop %v3598
    %vm3602 = vweird.f32 %v3076
    %v3603 = vadd.s32 %v3599, 3
    %v3604 = vand.u32 %v3603, 3
    %vm3605 = vcmp.lt.s32.totalorder %v3604, 2
    %vm3606 = vcmp.eq.s32.totalorder %v3604, 0
    %v3607 = vxor.u32 %v3601, 2147483648
    %v3608 = vsel %vm3606, %v3600, %v3607
    %vm3609 = vcmp.eq.s32.totalorder %v3604, 2
    %v3610 = vxor.u32 %v3600, 2147483648
    %v3611 = vsel %vm3609, %v3610, %v3601
    %v3612 = vsel %vm3605, %v3608, %v3611
    %v3613 = vsel %vm3602, nan, %v3612
    %v3614 = vand.u32 2147483647, %v3081
    %vm3615 = vcmp.le.f32.partialorder %v3614, 0.7853982
    %vm3616 = vcmp.lt.s32.totalorder %v3081, 0
    %v3617 = vand.u32 %v3081, 2139095040
    %v3618 = vshrl.u32 %v3617, 23
    %v3619 = vsub.s32 %v3618, 127
    %v3620 = vand.u32 2147483647, %v3081
    %v3621 = vand.u32 %v3620, 8388607
    %v3622 = vor.u32 %v3621, 8388608
    %v3623 = vsub.s32 0, %v3622
    %v3624 = vadd.s32 %v3619, 1
    %vm3625 = vcmp.gt.s32.totalorder %v3624, 0
    %v3626 = vsel %vm3625, %v3624, 0
    %v3627 = vshrl.u32 %v3626, 5
    %v3628 = vand.u32 %v3626, 31
    %v3629 = vsub.s32 32, %v3628
    %v3630 = vshrl.u32 683565275, %v3629
    %v3631 = vshll.u32 683565275, %v3628
    %v3632 = vshrl.u32 2475754826, %v3629
    %v3633 = vor.u32 %v3631, %v3632
    %v3634 = vshll.u32 2475754826, %v3628
    %v3635 = vshrl.u32 2131351028, %v3629
    %v3636 = vor.u32 %v3634, %v3635
    %v3637 = vshll.u32 2131351028, %v3628
    %v3638 = vshrl.u32 2102212464, %v3629
    %v3639 = vor.u32 %v3637, %v3638
    %v3640 = vshll.u32 2102212464, %v3628
    %v3641 = vshrl.u32 920167782, %v3629
    %v3642 = vor.u32 %v3640, %v3641
    %v3643 = vshll.u32 920167782, %v3628
    %v3644 = vshrl.u32 1326507024, %v3629
    %v3645 = vor.u32 %v3643, %v3644
    %vm3646 = vcmp.lt.s32.totalorder %v3627, 1
    %vm3647 = vcmp.lt.s32.totalorder %v3627, 2
    %vm3648 = vcmp.lt.s32.totalorder %v3627, 3
    %vm3649 = vcmp.lt.s32.totalorder %v3627, 4
    %v3650 = vsel %vm3646, %v3630, %v3633
    %v3651 = vsel %vm3649, %v3639, 2102212464
    %v3652 = vsel %vm3648, %v3636, %v3651
    %v3653 = vsel %vm3647, %v3650, %v3652
    %v3654 = vsel %vm3646, %v3633, %v3636
    %v3655 = vsel %vm3649, %v3642, 920167782
    %v3656 = vsel %vm3648, %v3639, %v3655
    %v3657 = vsel %vm3647, %v3654, %v3656
    %v3658 = vsel %vm3646, %v3636, %v3639
    %v3659 = vsel %vm3649, %v3645, 1326507024
    %v3660 = vsel %vm3648, %v3642, %v3659
    %v3661 = vsel %vm3647, %v3658, %v3660
    %v3662 = vshll.u32 %v3622, 8
    %v3663 = vmul.u32.u64.compose %v3662, %v3661
    %v3664 = vextract.low.u32 %v3663
    %v3665 = vextract.high.u32 %v3663
    %v3666 = vmul.u32.u64.compose %v3662, %v3657
    %v3667 = vextract.low.u32 %v3666
    %v3668 = vextract.high.u32 %v3666
    %v3669 = vmul.u32 %v3662, %v3653
    %v3670 = vadd.s32 %v3665, %v3667
    %vm3671 = vc.u32 %v3665, %v3667
    %v3672 = vadd.s32 %v3668, 1
    %v3673 = vsel %vm3671, %v3672, %v3668
    %v3674 = vadd.s32 %v3669, %v3673
    %v3675 = vadd.s32 %v3674, 536870912
    %v3676 = vshrl.u32 %v3675, 30
    %v3677 = vshll.u32 %v3676, 30
    %v3678 = vsub.s32 %v3674, %v3677
    %vm3679 = vcmp.lt.s32.totalorder %v3678, 0
    %v3680 = vsub.s32 0, %v3678
    %v3681 = vsel %vm3679, %v3680, %v3678
    %v3682 = vclz %v3681
    %v3683 = vsub.s32 %v3682, 2
    %vm3684 = vcmp.gt.s32.totalorder 0, %v3683
    %v3685 = vsel %vm3684, 0, %v3683
    %v3686 = vsub.s32 32, %v3685
    %v3687 = vshll.u32 %v3678, %v3685
    %v3688 = vshrl.u32 %v3670, %v3686
    %v3689 = vor.u32 %v3687, %v3688
    %v3690 = vsub.s32 4294967266, %v3685
    %v3691 = vadd.s32 %v3690, 127
    %v3692 = vshll.u32 %v3691, 23
    %v3693 = vor.u32 4788187, %v3692
    %v3694 = vand.u32 2147483647, %v3693
    %v3696 = vcvt.s32.f32 %v3689
    %v3697 = vmul.f32 %v3696, %v3694
    %v3698 = vxor.u32 %v3697, 2147483648
    %v3699 = vsel %vm3616, %v3698, %v3697
    %v3700 = vsub.s32 4, %v3676
    %v3701 = vsel %vm3616, %v3700, %v3676
    %v3702 = vsel %vm3615, %v3081, %v3699
    %v3703 = vsel %vm3615, 0, %v3701
    %v3704 = vcosq.f32.pop %v3702
    %v3705 = vsinq.f32.pop %v3702
    %vm3706 = vweird.f32 %v3081
    %v3707 = vadd.s32 %v3703, 3
    %v3708 = vand.u32 %v3707, 3
    %vm3709 = vcmp.lt.s32.totalorder %v3708, 2
    %vm3710 = vcmp.eq.s32.totalorder %v3708, 0
    %v3711 = vxor.u32 %v3705, 2147483648
    %v3712 = vsel %vm3710, %v3704, %v3711
    %vm3713 = vcmp.eq.s32.totalorder %v3708, 2
    %v3714 = vxor.u32 %v3704, 2147483648
    %v3715 = vsel %vm3713, %v3714, %v3705
    %v3716 = vsel %vm3709, %v3712, %v3715
    %v3717 = vsel %vm3706, nan, %v3716
    %v3718 = vand.u32 2147483647, %v3086
    %vm3719 = vcmp.le.f32.partialorder %v3718, 0.7853982
    %vm3720 = vcmp.lt.s32.totalorder %v3086, 0
    %v3721 = vand.u32 %v3086, 2139095040
    %v3722 = vshrl.u32 %v3721, 23
    %v3723 = vsub.s32 %v3722, 127
    %v3724 = vand.u32 2147483647, %v3086
    %v3725 = vand.u32 %v3724, 8388607
    %v3726 = vor.u32 %v3725, 8388608
    %v3727 = vsub.s32 0, %v3726
    %v3728 = vadd.s32 %v3723, 1
    %vm3729 = vcmp.gt.s32.totalorder %v3728, 0
    %v3730 = vsel %vm3729, %v3728, 0
    %v3731 = vshrl.u32 %v3730, 5
    %v3732 = vand.u32 %v3730, 31
    %v3733 = vsub.s32 32, %v3732
    %v3734 = vshrl.u32 683565275, %v3733
    %v3735 = vshll.u32 683565275, %v3732
    %v3736 = vshrl.u32 2475754826, %v3733
    %v3737 = vor.u32 %v3735, %v3736
    %v3738 = vshll.u32 2475754826, %v3732
    %v3739 = vshrl.u32 2131351028, %v3733
    %v3740 = vor.u32 %v3738, %v3739
    %v3741 = vshll.u32 2131351028, %v3732
    %v3742 = vshrl.u32 2102212464, %v3733
    %v3743 = vor.u32 %v3741, %v3742
    %v3744 = vshll.u32 2102212464, %v3732
    %v3745 = vshrl.u32 920167782, %v3733
    %v3746 = vor.u32 %v3744, %v3745
    %v3747 = vshll.u32 920167782, %v3732
    %v3748 = vshrl.u32 1326507024, %v3733
    %v3749 = vor.u32 %v3747, %v3748
    %vm3750 = vcmp.lt.s32.totalorder %v3731, 1
    %vm3751 = vcmp.lt.s32.totalorder %v3731, 2
    %vm3752 = vcmp.lt.s32.totalorder %v3731, 3
    %vm3753 = vcmp.lt.s32.totalorder %v3731, 4
    %v3754 = vsel %vm3750, %v3734, %v3737
    %v3755 = vsel %vm3753, %v3743, 2102212464
    %v3756 = vsel %vm3752, %v3740, %v3755
    %v3757 = vsel %vm3751, %v3754, %v3756
    %v3758 = vsel %vm3750, %v3737, %v3740
    %v3759 = vsel %vm3753, %v3746, 920167782
    %v3760 = vsel %vm3752, %v3743, %v3759
    %v3761 = vsel %vm3751, %v3758, %v3760
    %v3762 = vsel %vm3750, %v3740, %v3743
    %v3763 = vsel %vm3753, %v3749, 1326507024
    %v3764 = vsel %vm3752, %v3746, %v3763
    %v3765 = vsel %vm3751, %v3762, %v3764
    %v3766 = vshll.u32 %v3726, 8
    %v3767 = vmul.u32.u64.compose %v3766, %v3765
    %v3768 = vextract.low.u32 %v3767
    %v3769 = vextract.high.u32 %v3767
    %v3770 = vmul.u32.u64.compose %v3766, %v3761
    %v3771 = vextract.low.u32 %v3770
    %v3772 = vextract.high.u32 %v3770
    %v3773 = vmul.u32 %v3766, %v3757
    %v3774 = vadd.s32 %v3769, %v3771
    %vm3775 = vc.u32 %v3769, %v3771
    %v3776 = vadd.s32 %v3772, 1
    %v3777 = vsel %vm3775, %v3776, %v3772
    %v3778 = vadd.s32 %v3773, %v3777
    %v3779 = vadd.s32 %v3778, 536870912
    %v3780 = vshrl.u32 %v3779, 30
    %v3781 = vshll.u32 %v3780, 30
    %v3782 = vsub.s32 %v3778, %v3781
    %vm3783 = vcmp.lt.s32.totalorder %v3782, 0
    %v3784 = vsub.s32 0, %v3782
    %v3785 = vsel %vm3783, %v3784, %v3782
    %v3786 = vclz %v3785
    %v3787 = vsub.s32 %v3786, 2
    %vm3788 = vcmp.gt.s32.totalorder 0, %v3787
    %v3789 = vsel %vm3788, 0, %v3787
    %v3790 = vsub.s32 32, %v3789
    %v3791 = vshll.u32 %v3782, %v3789
    %v3792 = vshrl.u32 %v3774, %v3790
    %v3793 = vor.u32 %v3791, %v3792
    %v3794 = vsub.s32 4294967266, %v3789
    %v3795 = vadd.s32 %v3794, 127
    %v3796 = vshll.u32 %v3795, 23
    %v3797 = vor.u32 4788187, %v3796
    %v3798 = vand.u32 2147483647, %v3797
    %v3800 = vcvt.s32.f32 %v3793
    %v3801 = vmul.f32 %v3800, %v3798
    %v3802 = vxor.u32 %v3801, 2147483648
    %v3803 = vsel %vm3720, %v3802, %v3801
    %v3804 = vsub.s32 4, %v3780
    %v3805 = vsel %vm3720, %v3804, %v3780
    %v3806 = vsel %vm3719, %v3086, %v3803
    %v3807 = vsel %vm3719, 0, %v3805
    %v3808 = vcosq.f32.pop %v3806
    %v3809 = vsinq.f32.pop %v3806
    %vm3810 = vweird.f32 %v3086
    %v3811 = vadd.s32 %v3807, 3
    %v3812 = vand.u32 %v3811, 3
    %vm3813 = vcmp.lt.s32.totalorder %v3812, 2
    %vm3814 = vcmp.eq.s32.totalorder %v3812, 0
    %v3815 = vxor.u32 %v3809, 2147483648
    %v3816 = vsel %vm3814, %v3808, %v3815
    %vm3817 = vcmp.eq.s32.totalorder %v3812, 2
    %v3818 = vxor.u32 %v3808, 2147483648
    %v3819 = vsel %vm3817, %v3818, %v3809
    %v3820 = vsel %vm3813, %v3816, %v3819
    %v3821 = vsel %vm3810, nan, %v3820
    %v3822 = vand.u32 2147483647, %v3091
    %vm3823 = vcmp.le.f32.partialorder %v3822, 0.7853982
    %vm3824 = vcmp.lt.s32.totalorder %v3091, 0
    %v3825 = vand.u32 %v3091, 2139095040
    %v3826 = vshrl.u32 %v3825, 23
    %v3827 = vsub.s32 %v3826, 127
    %v3828 = vand.u32 2147483647, %v3091
    %v3829 = vand.u32 %v3828, 8388607
    %v3830 = vor.u32 %v3829, 8388608
    %v3831 = vsub.s32 0, %v3830
    %v3832 = vadd.s32 %v3827, 1
    %vm3833 = vcmp.gt.s32.totalorder %v3832, 0
    %v3834 = vsel %vm3833, %v3832, 0
    %v3835 = vshrl.u32 %v3834, 5
    %v3836 = vand.u32 %v3834, 31
    %v3837 = vsub.s32 32, %v3836
    %v3838 = vshrl.u32 683565275, %v3837
    %v3839 = vshll.u32 683565275, %v3836
    %v3840 = vshrl.u32 2475754826, %v3837
    %v3841 = vor.u32 %v3839, %v3840
    %v3842 = vshll.u32 2475754826, %v3836
    %v3843 = vshrl.u32 2131351028, %v3837
    %v3844 = vor.u32 %v3842, %v3843
    %v3845 = vshll.u32 2131351028, %v3836
    %v3846 = vshrl.u32 2102212464, %v3837
    %v3847 = vor.u32 %v3845, %v3846
    %v3848 = vshll.u32 2102212464, %v3836
    %v3849 = vshrl.u32 920167782, %v3837
    %v3850 = vor.u32 %v3848, %v3849
    %v3851 = vshll.u32 920167782, %v3836
    %v3852 = vshrl.u32 1326507024, %v3837
    %v3853 = vor.u32 %v3851, %v3852
    %vm3854 = vcmp.lt.s32.totalorder %v3835, 1
    %vm3855 = vcmp.lt.s32.totalorder %v3835, 2
    %vm3856 = vcmp.lt.s32.totalorder %v3835, 3
    %vm3857 = vcmp.lt.s32.totalorder %v3835, 4
    %v3858 = vsel %vm3854, %v3838, %v3841
    %v3859 = vsel %vm3857, %v3847, 2102212464
    %v3860 = vsel %vm3856, %v3844, %v3859
    %v3861 = vsel %vm3855, %v3858, %v3860
    %v3862 = vsel %vm3854, %v3841, %v3844
    %v3863 = vsel %vm3857, %v3850, 920167782
    %v3864 = vsel %vm3856, %v3847, %v3863
    %v3865 = vsel %vm3855, %v3862, %v3864
    %v3866 = vsel %vm3854, %v3844, %v3847
    %v3867 = vsel %vm3857, %v3853, 1326507024
    %v3868 = vsel %vm3856, %v3850, %v3867
    %v3869 = vsel %vm3855, %v3866, %v3868
    %v3870 = vshll.u32 %v3830, 8
    %v3871 = vmul.u32.u64.compose %v3870, %v3869
    %v3872 = vextract.low.u32 %v3871
    %v3873 = vextract.high.u32 %v3871
    %v3874 = vmul.u32.u64.compose %v3870, %v3865
    %v3875 = vextract.low.u32 %v3874
    %v3876 = vextract.high.u32 %v3874
    %v3877 = vmul.u32 %v3870, %v3861
    %v3878 = vadd.s32 %v3873, %v3875
    %vm3879 = vc.u32 %v3873, %v3875
    %v3880 = vadd.s32 %v3876, 1
    %v3881 = vsel %vm3879, %v3880, %v3876
    %v3882 = vadd.s32 %v3877, %v3881
    %v3883 = vadd.s32 %v3882, 536870912
    %v3884 = vshrl.u32 %v3883, 30
    %v3885 = vshll.u32 %v3884, 30
    %v3886 = vsub.s32 %v3882, %v3885
    %vm3887 = vcmp.lt.s32.totalorder %v3886, 0
    %v3888 = vsub.s32 0, %v3886
    %v3889 = vsel %vm3887, %v3888, %v3886
    %v3890 = vclz %v3889
    %v3891 = vsub.s32 %v3890, 2
    %vm3892 = vcmp.gt.s32.totalorder 0, %v3891
    %v3893 = vsel %vm3892, 0, %v3891
    %v3894 = vsub.s32 32, %v3893
    %v3895 = vshll.u32 %v3886, %v3893
    %v3896 = vshrl.u32 %v3878, %v3894
    %v3897 = vor.u32 %v3895, %v3896
    %v3898 = vsub.s32 4294967266, %v3893
    %v3899 = vadd.s32 %v3898, 127
    %v3900 = vshll.u32 %v3899, 23
    %v3901 = vor.u32 4788187, %v3900
    %v3902 = vand.u32 2147483647, %v3901
    %v3904 = vcvt.s32.f32 %v3897
    %v3905 = vmul.f32 %v3904, %v3902
    %v3906 = vxor.u32 %v3905, 2147483648
    %v3907 = vsel %vm3824, %v3906, %v3905
    %v3908 = vsub.s32 4, %v3884
    %v3909 = vsel %vm3824, %v3908, %v3884
    %v3910 = vsel %vm3823, %v3091, %v3907
    %v3911 = vsel %vm3823, 0, %v3909
    %v3912 = vcosq.f32.pop %v3910
    %v3913 = vsinq.f32.pop %v3910
    %vm3914 = vweird.f32 %v3091
    %v3915 = vadd.s32 %v3911, 3
    %v3916 = vand.u32 %v3915, 3
    %vm3917 = vcmp.lt.s32.totalorder %v3916, 2
    %vm3918 = vcmp.eq.s32.totalorder %v3916, 0
    %v3919 = vxor.u32 %v3913, 2147483648
    %v3920 = vsel %vm3918, %v3912, %v3919
    %vm3921 = vcmp.eq.s32.totalorder %v3916, 2
    %v3922 = vxor.u32 %v3912, 2147483648
    %v3923 = vsel %vm3921, %v3922, %v3913
    %v3924 = vsel %vm3917, %v3920, %v3923
    %v3925 = vsel %vm3914, nan, %v3924
    %s3926 = scalar_lea.vmem [#allocation2], 384
    %v3927 = vld [vmem:[%s3926] sm:$0xff]
    %v3928 = vld [vmem:[%s3926 + $0x8] sm:$0xff]
    %v3929 = vld [vmem:[%s3926 + $0x10] sm:$0xff]
    %v3930 = vld [vmem:[%s3926 + $0x18] sm:$0xff]
    %v3931 = vld [vmem:[%s3926 + $0x20] sm:$0xff]
    %v3932 = vld [vmem:[%s3926 + $0x28] sm:$0xff]
    %v3933 = vld [vmem:[%s3926 + $0x30] sm:$0xff]
    %v3934 = vld [vmem:[%s3926 + $0x38] sm:$0xff]
    %v3935 = vld [vmem:[%s3926 + $0x40] sm:$0xff]
    %v3936 = vld [vmem:[%s3926 + $0x48] sm:$0xff]
    %v3937 = vld [vmem:[%s3926 + $0x50] sm:$0xff]
    %v3938 = vld [vmem:[%s3926 + $0x58] sm:$0xff]
    %v3939 = vld [vmem:[%s3926 + $0x60] sm:$0xff]
    %v3940 = vld [vmem:[%s3926 + $0x68] sm:$0xff]
    %v3941 = vld [vmem:[%s3926 + $0x70] sm:$0xff]
    %v3942 = vld [vmem:[%s3926 + $0x78] sm:$0xff]
    %s3943 = scalar_lea.vmem %s3, 4
    %v3944 = vld [vmem:[%s3943] sm:$0x1]
    %v3946 = vlaneseq
    %v3947 = vshrl.u32 %v3946, 7
    %v3948 = vsub.s32 0, %v3947
    %v3949 = vrot.slane %v3944, %v3948
    %3951 = vmatprep.subr.mxu0 0.0
    %3952 = vmatpush1.msra.mxu0 %v3942
    %3953 = vmatprep.subr.mxu0 0.0
    %3954 = vmatpush1.msra.mxu0 %v3941
    %3955 = vmatprep.subr.mxu0 0.0
    %3956 = vmatpush1.msra.mxu0 %v3940
    %3957 = vmatprep.subr.mxu0 0.0
    %3958 = vmatpush1.msra.mxu0 %v3939
    %3959 = vmatprep.subr.mxu0 0.0
    %3960 = vmatpush1.msra.mxu0 %v3938
    %3961 = vmatprep.subr.mxu0 0.0
    %3962 = vmatpush1.msra.mxu0 %v3937
    %3963 = vmatprep.subr.mxu0 0.0
    %3964 = vmatpush1.msra.mxu0 %v3936
    %3965 = vmatprep.subr.mxu0 0.0
    %3966 = vmatpush1.msra.mxu0 %v3935
    %3967 = vmatprep.subr.mxu0 0.0
    %3968 = vmatpush1.msra.mxu0 %v3934
    %3969 = vmatprep.subr.mxu0 0.0
    %3970 = vmatpush1.msra.mxu0 %v3933
    %3971 = vmatprep.subr.mxu0 0.0
    %3972 = vmatpush1.msra.mxu0 %v3932
    %3973 = vmatprep.subr.mxu0 0.0
    %3974 = vmatpush1.msra.mxu0 %v3931
    %3975 = vmatprep.subr.mxu0 0.0
    %3976 = vmatpush1.msra.mxu0 %v3930
    %3977 = vmatprep.subr.mxu0 0.0
    %3978 = vmatpush1.msra.mxu0 %v3929
    %3979 = vmatprep.subr.mxu0 0.0
    %3980 = vmatpush1.msra.mxu0 %v3928
    %3981 = vmatprep.subr.mxu0 0.0
    %3982 = vmatpush1.msra.mxu0 %v3927
    %3983 = vmatprep.subr.mxu0 0.0
    %3984 = vmatpush2.msra.mxu0 0.0
    %3985 = vmatprep.subr.mxu0 0.0
    %3986 = vmatpush2.msra.mxu0 0.0
    %3987 = vmatprep.subr.mxu0 0.0
    %3988 = vmatpush2.msra.mxu0 0.0
    %3989 = vmatprep.subr.mxu0 0.0
    %3990 = vmatpush2.msra.mxu0 0.0
    %3991 = vmatprep.subr.mxu0 0.0
    %3992 = vmatpush2.msra.mxu0 0.0
    %3993 = vmatprep.subr.mxu0 0.0
    %3994 = vmatpush2.msra.mxu0 0.0
    %3995 = vmatprep.subr.mxu0 0.0
    %3996 = vmatpush2.msra.mxu0 0.0
    %3997 = vmatprep.subr.mxu0 0.0
    %3998 = vmatpush2.msra.mxu0 0.0
    %3999 = vmatprep.subr.mxu0 0.0
    %4000 = vmatpush2.msra.mxu0 0.0
    %4001 = vmatprep.subr.mxu0 0.0
    %4002 = vmatpush2.msra.mxu0 0.0
    %4003 = vmatprep.subr.mxu0 0.0
    %4004 = vmatpush2.msra.mxu0 0.0
    %4005 = vmatprep.subr.mxu0 0.0
    %4006 = vmatpush2.msra.mxu0 0.0
    %4007 = vmatprep.subr.mxu0 0.0
    %4008 = vmatpush2.msra.mxu0 0.0
    %4009 = vmatprep.subr.mxu0 0.0
    %4010 = vmatpush2.msra.mxu0 0.0
    %4011 = vmatprep.subr.mxu0 0.0
    %4012 = vmatpush2.msra.mxu0 0.0
    %4013 = vmatprep.subr.mxu0 0.0
    %4014 = vmatpush2.msra.mxu0 0.0
    %4015 = vmatprep.mubr.f32.mxu0 0.0
    %4016 = vmatmul.mubr.f32.gmra.mxu0 %v3197
    %v4017 = vpop.f32.mrf.mxu0
    %v4018 = vadd.f32 %v3949, %v4017
    %v4019 = vpop.f32.mrf.mxu0
    %4020 = vmatprep.mubr.f32.mxu0 0.0
    %4021 = vmatmul.mubr.f32.gmra.mxu0 %v3301
    %v4022 = vpop.f32.mrf.mxu0
    %v4023 = vadd.f32 %v3949, %v4022
    %v4024 = vpop.f32.mrf.mxu0
    %4025 = vmatprep.mubr.f32.mxu0 0.0
    %4026 = vmatmul.mubr.f32.gmra.mxu0 %v3405
    %v4027 = vpop.f32.mrf.mxu0
    %v4028 = vadd.f32 %v3949, %v4027
    %v4029 = vpop.f32.mrf.mxu0
    %4030 = vmatprep.mubr.f32.mxu0 0.0
    %4031 = vmatmul.mubr.f32.gmra.mxu0 %v3509
    %v4032 = vpop.f32.mrf.mxu0
    %v4033 = vadd.f32 %v3949, %v4032
    %v4034 = vpop.f32.mrf.mxu0
    %4035 = vmatprep.mubr.f32.mxu0 0.0
    %4036 = vmatmul.mubr.f32.gmra.mxu0 %v3613
    %v4037 = vpop.f32.mrf.mxu0
    %v4038 = vadd.f32 %v3949, %v4037
    %v4039 = vpop.f32.mrf.mxu0
    %4040 = vmatprep.mubr.f32.mxu0 0.0
    %4041 = vmatmul.mubr.f32.gmra.mxu0 %v3717
    %v4042 = vpop.f32.mrf.mxu0
    %v4043 = vadd.f32 %v3949, %v4042
    %v4044 = vpop.f32.mrf.mxu0
    %4045 = vmatprep.mubr.f32.mxu0 0.0
    %4046 = vmatmul.mubr.f32.gmra.mxu0 %v3821
    %v4047 = vpop.f32.mrf.mxu0
    %v4048 = vadd.f32 %v3949, %v4047
    %v4049 = vpop.f32.mrf.mxu0
    %4050 = vmatprep.mubr.f32.mxu0 0.0
    %4051 = vmatmul.mubr.f32.gmra.mxu0 %v3925
    %v4052 = vpop.f32.mrf.mxu0
    %v4053 = vadd.f32 %v3949, %v4052
    %v4054 = vpop.f32.mrf.mxu0
    %4055 = vdwg.mxu0
    %v4056 = vand.u32 2147483647, %v4018
    %vm4057 = vcmp.le.f32.partialorder %v4056, 0.7853982
    %vm4058 = vcmp.lt.s32.totalorder %v4018, 0
    %v4059 = vand.u32 %v4018, 2139095040
    %v4060 = vshrl.u32 %v4059, 23
    %v4061 = vsub.s32 %v4060, 127
    %v4062 = vand.u32 2147483647, %v4018
    %v4063 = vand.u32 %v4062, 8388607
    %v4064 = vor.u32 %v4063, 8388608
    %v4065 = vsub.s32 0, %v4064
    %v4066 = vadd.s32 %v4061, 1
    %vm4067 = vcmp.gt.s32.totalorder %v4066, 0
    %v4068 = vsel %vm4067, %v4066, 0
    %v4069 = vshrl.u32 %v4068, 5
    %v4070 = vand.u32 %v4068, 31
    %v4071 = vsub.s32 32, %v4070
    %v4072 = vshrl.u32 683565275, %v4071
    %v4073 = vshll.u32 683565275, %v4070
    %v4074 = vshrl.u32 2475754826, %v4071
    %v4075 = vor.u32 %v4073, %v4074
    %v4076 = vshll.u32 2475754826, %v4070
    %v4077 = vshrl.u32 2131351028, %v4071
    %v4078 = vor.u32 %v4076, %v4077
    %v4079 = vshll.u32 2131351028, %v4070
    %v4080 = vshrl.u32 2102212464, %v4071
    %v4081 = vor.u32 %v4079, %v4080
    %v4082 = vshll.u32 2102212464, %v4070
    %v4083 = vshrl.u32 920167782, %v4071
    %v4084 = vor.u32 %v4082, %v4083
    %v4085 = vshll.u32 920167782, %v4070
    %v4086 = vshrl.u32 1326507024, %v4071
    %v4087 = vor.u32 %v4085, %v4086
    %vm4088 = vcmp.lt.s32.totalorder %v4069, 1
    %vm4089 = vcmp.lt.s32.totalorder %v4069, 2
    %vm4090 = vcmp.lt.s32.totalorder %v4069, 3
    %vm4091 = vcmp.lt.s32.totalorder %v4069, 4
    %v4092 = vsel %vm4088, %v4072, %v4075
    %v4093 = vsel %vm4091, %v4081, 2102212464
    %v4094 = vsel %vm4090, %v4078, %v4093
    %v4095 = vsel %vm4089, %v4092, %v4094
    %v4096 = vsel %vm4088, %v4075, %v4078
    %v4097 = vsel %vm4091, %v4084, 920167782
    %v4098 = vsel %vm4090, %v4081, %v4097
    %v4099 = vsel %vm4089, %v4096, %v4098
    %v4100 = vsel %vm4088, %v4078, %v4081
    %v4101 = vsel %vm4091, %v4087, 1326507024
    %v4102 = vsel %vm4090, %v4084, %v4101
    %v4103 = vsel %vm4089, %v4100, %v4102
    %v4104 = vshll.u32 %v4064, 8
    %v4105 = vmul.u32.u64.compose %v4104, %v4103
    %v4106 = vextract.low.u32 %v4105
    %v4107 = vextract.high.u32 %v4105
    %v4108 = vmul.u32.u64.compose %v4104, %v4099
    %v4109 = vextract.low.u32 %v4108
    %v4110 = vextract.high.u32 %v4108
    %v4111 = vmul.u32 %v4104, %v4095
    %v4112 = vadd.s32 %v4107, %v4109
    %vm4113 = vc.u32 %v4107, %v4109
    %v4114 = vadd.s32 %v4110, 1
    %v4115 = vsel %vm4113, %v4114, %v4110
    %v4116 = vadd.s32 %v4111, %v4115
    %v4117 = vadd.s32 %v4116, 536870912
    %v4118 = vshrl.u32 %v4117, 30
    %v4119 = vshll.u32 %v4118, 30
    %v4120 = vsub.s32 %v4116, %v4119
    %vm4121 = vcmp.lt.s32.totalorder %v4120, 0
    %v4122 = vsub.s32 0, %v4120
    %v4123 = vsel %vm4121, %v4122, %v4120
    %v4124 = vclz %v4123
    %v4125 = vsub.s32 %v4124, 2
    %vm4126 = vcmp.gt.s32.totalorder 0, %v4125
    %v4127 = vsel %vm4126, 0, %v4125
    %v4128 = vsub.s32 32, %v4127
    %v4129 = vshll.u32 %v4120, %v4127
    %v4130 = vshrl.u32 %v4112, %v4128
    %v4131 = vor.u32 %v4129, %v4130
    %v4132 = vsub.s32 4294967266, %v4127
    %v4133 = vadd.s32 %v4132, 127
    %v4134 = vshll.u32 %v4133, 23
    %v4135 = vor.u32 4788187, %v4134
    %v4136 = vand.u32 2147483647, %v4135
    %v4138 = vcvt.s32.f32 %v4131
    %v4139 = vmul.f32 %v4138, %v4136
    %v4140 = vxor.u32 %v4139, 2147483648
    %v4141 = vsel %vm4058, %v4140, %v4139
    %v4142 = vsub.s32 4, %v4118
    %v4143 = vsel %vm4058, %v4142, %v4118
    %v4144 = vsel %vm4057, %v4018, %v4141
    %v4145 = vsel %vm4057, 0, %v4143
    %v4146 = vcosq.f32.pop %v4144
    %v4147 = vsinq.f32.pop %v4144
    %vm4148 = vweird.f32 %v4018
    %v4149 = vadd.s32 %v4145, 3
    %v4150 = vand.u32 %v4149, 3
    %vm4151 = vcmp.lt.s32.totalorder %v4150, 2
    %vm4152 = vcmp.eq.s32.totalorder %v4150, 0
    %v4153 = vxor.u32 %v4147, 2147483648
    %v4154 = vsel %vm4152, %v4146, %v4153
    %vm4155 = vcmp.eq.s32.totalorder %v4150, 2
    %v4156 = vxor.u32 %v4146, 2147483648
    %v4157 = vsel %vm4155, %v4156, %v4147
    %v4158 = vsel %vm4151, %v4154, %v4157
    %v4159 = vsel %vm4148, nan, %v4158
    %v4160 = vand.u32 2147483647, %v4023
    %vm4161 = vcmp.le.f32.partialorder %v4160, 0.7853982
    %vm4162 = vcmp.lt.s32.totalorder %v4023, 0
    %v4163 = vand.u32 %v4023, 2139095040
    %v4164 = vshrl.u32 %v4163, 23
    %v4165 = vsub.s32 %v4164, 127
    %v4166 = vand.u32 2147483647, %v4023
    %v4167 = vand.u32 %v4166, 8388607
    %v4168 = vor.u32 %v4167, 8388608
    %v4169 = vsub.s32 0, %v4168
    %v4170 = vadd.s32 %v4165, 1
    %vm4171 = vcmp.gt.s32.totalorder %v4170, 0
    %v4172 = vsel %vm4171, %v4170, 0
    %v4173 = vshrl.u32 %v4172, 5
    %v4174 = vand.u32 %v4172, 31
    %v4175 = vsub.s32 32, %v4174
    %v4176 = vshrl.u32 683565275, %v4175
    %v4177 = vshll.u32 683565275, %v4174
    %v4178 = vshrl.u32 2475754826, %v4175
    %v4179 = vor.u32 %v4177, %v4178
    %v4180 = vshll.u32 2475754826, %v4174
    %v4181 = vshrl.u32 2131351028, %v4175
    %v4182 = vor.u32 %v4180, %v4181
    %v4183 = vshll.u32 2131351028, %v4174
    %v4184 = vshrl.u32 2102212464, %v4175
    %v4185 = vor.u32 %v4183, %v4184
    %v4186 = vshll.u32 2102212464, %v4174
    %v4187 = vshrl.u32 920167782, %v4175
    %v4188 = vor.u32 %v4186, %v4187
    %v4189 = vshll.u32 920167782, %v4174
    %v4190 = vshrl.u32 1326507024, %v4175
    %v4191 = vor.u32 %v4189, %v4190
    %vm4192 = vcmp.lt.s32.totalorder %v4173, 1
    %vm4193 = vcmp.lt.s32.totalorder %v4173, 2
    %vm4194 = vcmp.lt.s32.totalorder %v4173, 3
    %vm4195 = vcmp.lt.s32.totalorder %v4173, 4
    %v4196 = vsel %vm4192, %v4176, %v4179
    %v4197 = vsel %vm4195, %v4185, 2102212464
    %v4198 = vsel %vm4194, %v4182, %v4197
    %v4199 = vsel %vm4193, %v4196, %v4198
    %v4200 = vsel %vm4192, %v4179, %v4182
    %v4201 = vsel %vm4195, %v4188, 920167782
    %v4202 = vsel %vm4194, %v4185, %v4201
    %v4203 = vsel %vm4193, %v4200, %v4202
    %v4204 = vsel %vm4192, %v4182, %v4185
    %v4205 = vsel %vm4195, %v4191, 1326507024
    %v4206 = vsel %vm4194, %v4188, %v4205
    %v4207 = vsel %vm4193, %v4204, %v4206
    %v4208 = vshll.u32 %v4168, 8
    %v4209 = vmul.u32.u64.compose %v4208, %v4207
    %v4210 = vextract.low.u32 %v4209
    %v4211 = vextract.high.u32 %v4209
    %v4212 = vmul.u32.u64.compose %v4208, %v4203
    %v4213 = vextract.low.u32 %v4212
    %v4214 = vextract.high.u32 %v4212
    %v4215 = vmul.u32 %v4208, %v4199
    %v4216 = vadd.s32 %v4211, %v4213
    %vm4217 = vc.u32 %v4211, %v4213
    %v4218 = vadd.s32 %v4214, 1
    %v4219 = vsel %vm4217, %v4218, %v4214
    %v4220 = vadd.s32 %v4215, %v4219
    %v4221 = vadd.s32 %v4220, 536870912
    %v4222 = vshrl.u32 %v4221, 30
    %v4223 = vshll.u32 %v4222, 30
    %v4224 = vsub.s32 %v4220, %v4223
    %vm4225 = vcmp.lt.s32.totalorder %v4224, 0
    %v4226 = vsub.s32 0, %v4224
    %v4227 = vsel %vm4225, %v4226, %v4224
    %v4228 = vclz %v4227
    %v4229 = vsub.s32 %v4228, 2
    %vm4230 = vcmp.gt.s32.totalorder 0, %v4229
    %v4231 = vsel %vm4230, 0, %v4229
    %v4232 = vsub.s32 32, %v4231
    %v4233 = vshll.u32 %v4224, %v4231
    %v4234 = vshrl.u32 %v4216, %v4232
    %v4235 = vor.u32 %v4233, %v4234
    %v4236 = vsub.s32 4294967266, %v4231
    %v4237 = vadd.s32 %v4236, 127
    %v4238 = vshll.u32 %v4237, 23
    %v4239 = vor.u32 4788187, %v4238
    %v4240 = vand.u32 2147483647, %v4239
    %v4242 = vcvt.s32.f32 %v4235
    %v4243 = vmul.f32 %v4242, %v4240
    %v4244 = vxor.u32 %v4243, 2147483648
    %v4245 = vsel %vm4162, %v4244, %v4243
    %v4246 = vsub.s32 4, %v4222
    %v4247 = vsel %vm4162, %v4246, %v4222
    %v4248 = vsel %vm4161, %v4023, %v4245
    %v4249 = vsel %vm4161, 0, %v4247
    %v4250 = vcosq.f32.pop %v4248
    %v4251 = vsinq.f32.pop %v4248
    %vm4252 = vweird.f32 %v4023
    %v4253 = vadd.s32 %v4249, 3
    %v4254 = vand.u32 %v4253, 3
    %vm4255 = vcmp.lt.s32.totalorder %v4254, 2
    %vm4256 = vcmp.eq.s32.totalorder %v4254, 0
    %v4257 = vxor.u32 %v4251, 2147483648
    %v4258 = vsel %vm4256, %v4250, %v4257
    %vm4259 = vcmp.eq.s32.totalorder %v4254, 2
    %v4260 = vxor.u32 %v4250, 2147483648
    %v4261 = vsel %vm4259, %v4260, %v4251
    %v4262 = vsel %vm4255, %v4258, %v4261
    %v4263 = vsel %vm4252, nan, %v4262
    %v4264 = vand.u32 2147483647, %v4028
    %vm4265 = vcmp.le.f32.partialorder %v4264, 0.7853982
    %vm4266 = vcmp.lt.s32.totalorder %v4028, 0
    %v4267 = vand.u32 %v4028, 2139095040
    %v4268 = vshrl.u32 %v4267, 23
    %v4269 = vsub.s32 %v4268, 127
    %v4270 = vand.u32 2147483647, %v4028
    %v4271 = vand.u32 %v4270, 8388607
    %v4272 = vor.u32 %v4271, 8388608
    %v4273 = vsub.s32 0, %v4272
    %v4274 = vadd.s32 %v4269, 1
    %vm4275 = vcmp.gt.s32.totalorder %v4274, 0
    %v4276 = vsel %vm4275, %v4274, 0
    %v4277 = vshrl.u32 %v4276, 5
    %v4278 = vand.u32 %v4276, 31
    %v4279 = vsub.s32 32, %v4278
    %v4280 = vshrl.u32 683565275, %v4279
    %v4281 = vshll.u32 683565275, %v4278
    %v4282 = vshrl.u32 2475754826, %v4279
    %v4283 = vor.u32 %v4281, %v4282
    %v4284 = vshll.u32 2475754826, %v4278
    %v4285 = vshrl.u32 2131351028, %v4279
    %v4286 = vor.u32 %v4284, %v4285
    %v4287 = vshll.u32 2131351028, %v4278
    %v4288 = vshrl.u32 2102212464, %v4279
    %v4289 = vor.u32 %v4287, %v4288
    %v4290 = vshll.u32 2102212464, %v4278
    %v4291 = vshrl.u32 920167782, %v4279
    %v4292 = vor.u32 %v4290, %v4291
    %v4293 = vshll.u32 920167782, %v4278
    %v4294 = vshrl.u32 1326507024, %v4279
    %v4295 = vor.u32 %v4293, %v4294
    %vm4296 = vcmp.lt.s32.totalorder %v4277, 1
    %vm4297 = vcmp.lt.s32.totalorder %v4277, 2
    %vm4298 = vcmp.lt.s32.totalorder %v4277, 3
    %vm4299 = vcmp.lt.s32.totalorder %v4277, 4
    %v4300 = vsel %vm4296, %v4280, %v4283
    %v4301 = vsel %vm4299, %v4289, 2102212464
    %v4302 = vsel %vm4298, %v4286, %v4301
    %v4303 = vsel %vm4297, %v4300, %v4302
    %v4304 = vsel %vm4296, %v4283, %v4286
    %v4305 = vsel %vm4299, %v4292, 920167782
    %v4306 = vsel %vm4298, %v4289, %v4305
    %v4307 = vsel %vm4297, %v4304, %v4306
    %v4308 = vsel %vm4296, %v4286, %v4289
    %v4309 = vsel %vm4299, %v4295, 1326507024
    %v4310 = vsel %vm4298, %v4292, %v4309
    %v4311 = vsel %vm4297, %v4308, %v4310
    %v4312 = vshll.u32 %v4272, 8
    %v4313 = vmul.u32.u64.compose %v4312, %v4311
    %v4314 = vextract.low.u32 %v4313
    %v4315 = vextract.high.u32 %v4313
    %v4316 = vmul.u32.u64.compose %v4312, %v4307
    %v4317 = vextract.low.u32 %v4316
    %v4318 = vextract.high.u32 %v4316
    %v4319 = vmul.u32 %v4312, %v4303
    %v4320 = vadd.s32 %v4315, %v4317
    %vm4321 = vc.u32 %v4315, %v4317
    %v4322 = vadd.s32 %v4318, 1
    %v4323 = vsel %vm4321, %v4322, %v4318
    %v4324 = vadd.s32 %v4319, %v4323
    %v4325 = vadd.s32 %v4324, 536870912
    %v4326 = vshrl.u32 %v4325, 30
    %v4327 = vshll.u32 %v4326, 30
    %v4328 = vsub.s32 %v4324, %v4327
    %vm4329 = vcmp.lt.s32.totalorder %v4328, 0
    %v4330 = vsub.s32 0, %v4328
    %v4331 = vsel %vm4329, %v4330, %v4328
    %v4332 = vclz %v4331
    %v4333 = vsub.s32 %v4332, 2
    %vm4334 = vcmp.gt.s32.totalorder 0, %v4333
    %v4335 = vsel %vm4334, 0, %v4333
    %v4336 = vsub.s32 32, %v4335
    %v4337 = vshll.u32 %v4328, %v4335
    %v4338 = vshrl.u32 %v4320, %v4336
    %v4339 = vor.u32 %v4337, %v4338
    %v4340 = vsub.s32 4294967266, %v4335
    %v4341 = vadd.s32 %v4340, 127
    %v4342 = vshll.u32 %v4341, 23
    %v4343 = vor.u32 4788187, %v4342
    %v4344 = vand.u32 2147483647, %v4343
    %v4346 = vcvt.s32.f32 %v4339
    %v4347 = vmul.f32 %v4346, %v4344
    %v4348 = vxor.u32 %v4347, 2147483648
    %v4349 = vsel %vm4266, %v4348, %v4347
    %v4350 = vsub.s32 4, %v4326
    %v4351 = vsel %vm4266, %v4350, %v4326
    %v4352 = vsel %vm4265, %v4028, %v4349
    %v4353 = vsel %vm4265, 0, %v4351
    %v4354 = vcosq.f32.pop %v4352
    %v4355 = vsinq.f32.pop %v4352
    %vm4356 = vweird.f32 %v4028
    %v4357 = vadd.s32 %v4353, 3
    %v4358 = vand.u32 %v4357, 3
    %vm4359 = vcmp.lt.s32.totalorder %v4358, 2
    %vm4360 = vcmp.eq.s32.totalorder %v4358, 0
    %v4361 = vxor.u32 %v4355, 2147483648
    %v4362 = vsel %vm4360, %v4354, %v4361
    %vm4363 = vcmp.eq.s32.totalorder %v4358, 2
    %v4364 = vxor.u32 %v4354, 2147483648
    %v4365 = vsel %vm4363, %v4364, %v4355
    %v4366 = vsel %vm4359, %v4362, %v4365
    %v4367 = vsel %vm4356, nan, %v4366
    %v4368 = vand.u32 2147483647, %v4033
    %vm4369 = vcmp.le.f32.partialorder %v4368, 0.7853982
    %vm4370 = vcmp.lt.s32.totalorder %v4033, 0
    %v4371 = vand.u32 %v4033, 2139095040
    %v4372 = vshrl.u32 %v4371, 23
    %v4373 = vsub.s32 %v4372, 127
    %v4374 = vand.u32 2147483647, %v4033
    %v4375 = vand.u32 %v4374, 8388607
    %v4376 = vor.u32 %v4375, 8388608
    %v4377 = vsub.s32 0, %v4376
    %v4378 = vadd.s32 %v4373, 1
    %vm4379 = vcmp.gt.s32.totalorder %v4378, 0
    %v4380 = vsel %vm4379, %v4378, 0
    %v4381 = vshrl.u32 %v4380, 5
    %v4382 = vand.u32 %v4380, 31
    %v4383 = vsub.s32 32, %v4382
    %v4384 = vshrl.u32 683565275, %v4383
    %v4385 = vshll.u32 683565275, %v4382
    %v4386 = vshrl.u32 2475754826, %v4383
    %v4387 = vor.u32 %v4385, %v4386
    %v4388 = vshll.u32 2475754826, %v4382
    %v4389 = vshrl.u32 2131351028, %v4383
    %v4390 = vor.u32 %v4388, %v4389
    %v4391 = vshll.u32 2131351028, %v4382
    %v4392 = vshrl.u32 2102212464, %v4383
    %v4393 = vor.u32 %v4391, %v4392
    %v4394 = vshll.u32 2102212464, %v4382
    %v4395 = vshrl.u32 920167782, %v4383
    %v4396 = vor.u32 %v4394, %v4395
    %v4397 = vshll.u32 920167782, %v4382
    %v4398 = vshrl.u32 1326507024, %v4383
    %v4399 = vor.u32 %v4397, %v4398
    %vm4400 = vcmp.lt.s32.totalorder %v4381, 1
    %vm4401 = vcmp.lt.s32.totalorder %v4381, 2
    %vm4402 = vcmp.lt.s32.totalorder %v4381, 3
    %vm4403 = vcmp.lt.s32.totalorder %v4381, 4
    %v4404 = vsel %vm4400, %v4384, %v4387
    %v4405 = vsel %vm4403, %v4393, 2102212464
    %v4406 = vsel %vm4402, %v4390, %v4405
    %v4407 = vsel %vm4401, %v4404, %v4406
    %v4408 = vsel %vm4400, %v4387, %v4390
    %v4409 = vsel %vm4403, %v4396, 920167782
    %v4410 = vsel %vm4402, %v4393, %v4409
    %v4411 = vsel %vm4401, %v4408, %v4410
    %v4412 = vsel %vm4400, %v4390, %v4393
    %v4413 = vsel %vm4403, %v4399, 1326507024
    %v4414 = vsel %vm4402, %v4396, %v4413
    %v4415 = vsel %vm4401, %v4412, %v4414
    %v4416 = vshll.u32 %v4376, 8
    %v4417 = vmul.u32.u64.compose %v4416, %v4415
    %v4418 = vextract.low.u32 %v4417
    %v4419 = vextract.high.u32 %v4417
    %v4420 = vmul.u32.u64.compose %v4416, %v4411
    %v4421 = vextract.low.u32 %v4420
    %v4422 = vextract.high.u32 %v4420
    %v4423 = vmul.u32 %v4416, %v4407
    %v4424 = vadd.s32 %v4419, %v4421
    %vm4425 = vc.u32 %v4419, %v4421
    %v4426 = vadd.s32 %v4422, 1
    %v4427 = vsel %vm4425, %v4426, %v4422
    %v4428 = vadd.s32 %v4423, %v4427
    %v4429 = vadd.s32 %v4428, 536870912
    %v4430 = vshrl.u32 %v4429, 30
    %v4431 = vshll.u32 %v4430, 30
    %v4432 = vsub.s32 %v4428, %v4431
    %vm4433 = vcmp.lt.s32.totalorder %v4432, 0
    %v4434 = vsub.s32 0, %v4432
    %v4435 = vsel %vm4433, %v4434, %v4432
    %v4436 = vclz %v4435
    %v4437 = vsub.s32 %v4436, 2
    %vm4438 = vcmp.gt.s32.totalorder 0, %v4437
    %v4439 = vsel %vm4438, 0, %v4437
    %v4440 = vsub.s32 32, %v4439
    %v4441 = vshll.u32 %v4432, %v4439
    %v4442 = vshrl.u32 %v4424, %v4440
    %v4443 = vor.u32 %v4441, %v4442
    %v4444 = vsub.s32 4294967266, %v4439
    %v4445 = vadd.s32 %v4444, 127
    %v4446 = vshll.u32 %v4445, 23
    %v4447 = vor.u32 4788187, %v4446
    %v4448 = vand.u32 2147483647, %v4447
    %v4450 = vcvt.s32.f32 %v4443
    %v4451 = vmul.f32 %v4450, %v4448
    %v4452 = vxor.u32 %v4451, 2147483648
    %v4453 = vsel %vm4370, %v4452, %v4451
    %v4454 = vsub.s32 4, %v4430
    %v4455 = vsel %vm4370, %v4454, %v4430
    %v4456 = vsel %vm4369, %v4033, %v4453
    %v4457 = vsel %vm4369, 0, %v4455
    %v4458 = vcosq.f32.pop %v4456
    %v4459 = vsinq.f32.pop %v4456
    %vm4460 = vweird.f32 %v4033
    %v4461 = vadd.s32 %v4457, 3
    %v4462 = vand.u32 %v4461, 3
    %vm4463 = vcmp.lt.s32.totalorder %v4462, 2
    %vm4464 = vcmp.eq.s32.totalorder %v4462, 0
    %v4465 = vxor.u32 %v4459, 2147483648
    %v4466 = vsel %vm4464, %v4458, %v4465
    %vm4467 = vcmp.eq.s32.totalorder %v4462, 2
    %v4468 = vxor.u32 %v4458, 2147483648
    %v4469 = vsel %vm4467, %v4468, %v4459
    %v4470 = vsel %vm4463, %v4466, %v4469
    %v4471 = vsel %vm4460, nan, %v4470
    %v4472 = vand.u32 2147483647, %v4038
    %vm4473 = vcmp.le.f32.partialorder %v4472, 0.7853982
    %vm4474 = vcmp.lt.s32.totalorder %v4038, 0
    %v4475 = vand.u32 %v4038, 2139095040
    %v4476 = vshrl.u32 %v4475, 23
    %v4477 = vsub.s32 %v4476, 127
    %v4478 = vand.u32 2147483647, %v4038
    %v4479 = vand.u32 %v4478, 8388607
    %v4480 = vor.u32 %v4479, 8388608
    %v4481 = vsub.s32 0, %v4480
    %v4482 = vadd.s32 %v4477, 1
    %vm4483 = vcmp.gt.s32.totalorder %v4482, 0
    %v4484 = vsel %vm4483, %v4482, 0
    %v4485 = vshrl.u32 %v4484, 5
    %v4486 = vand.u32 %v4484, 31
    %v4487 = vsub.s32 32, %v4486
    %v4488 = vshrl.u32 683565275, %v4487
    %v4489 = vshll.u32 683565275, %v4486
    %v4490 = vshrl.u32 2475754826, %v4487
    %v4491 = vor.u32 %v4489, %v4490
    %v4492 = vshll.u32 2475754826, %v4486
    %v4493 = vshrl.u32 2131351028, %v4487
    %v4494 = vor.u32 %v4492, %v4493
    %v4495 = vshll.u32 2131351028, %v4486
    %v4496 = vshrl.u32 2102212464, %v4487
    %v4497 = vor.u32 %v4495, %v4496
    %v4498 = vshll.u32 2102212464, %v4486
    %v4499 = vshrl.u32 920167782, %v4487
    %v4500 = vor.u32 %v4498, %v4499
    %v4501 = vshll.u32 920167782, %v4486
    %v4502 = vshrl.u32 1326507024, %v4487
    %v4503 = vor.u32 %v4501, %v4502
    %vm4504 = vcmp.lt.s32.totalorder %v4485, 1
    %vm4505 = vcmp.lt.s32.totalorder %v4485, 2
    %vm4506 = vcmp.lt.s32.totalorder %v4485, 3
    %vm4507 = vcmp.lt.s32.totalorder %v4485, 4
    %v4508 = vsel %vm4504, %v4488, %v4491
    %v4509 = vsel %vm4507, %v4497, 2102212464
    %v4510 = vsel %vm4506, %v4494, %v4509
    %v4511 = vsel %vm4505, %v4508, %v4510
    %v4512 = vsel %vm4504, %v4491, %v4494
    %v4513 = vsel %vm4507, %v4500, 920167782
    %v4514 = vsel %vm4506, %v4497, %v4513
    %v4515 = vsel %vm4505, %v4512, %v4514
    %v4516 = vsel %vm4504, %v4494, %v4497
    %v4517 = vsel %vm4507, %v4503, 1326507024
    %v4518 = vsel %vm4506, %v4500, %v4517
    %v4519 = vsel %vm4505, %v4516, %v4518
    %v4520 = vshll.u32 %v4480, 8
    %v4521 = vmul.u32.u64.compose %v4520, %v4519
    %v4522 = vextract.low.u32 %v4521
    %v4523 = vextract.high.u32 %v4521
    %v4524 = vmul.u32.u64.compose %v4520, %v4515
    %v4525 = vextract.low.u32 %v4524
    %v4526 = vextract.high.u32 %v4524
    %v4527 = vmul.u32 %v4520, %v4511
    %v4528 = vadd.s32 %v4523, %v4525
    %vm4529 = vc.u32 %v4523, %v4525
    %v4530 = vadd.s32 %v4526, 1
    %v4531 = vsel %vm4529, %v4530, %v4526
    %v4532 = vadd.s32 %v4527, %v4531
    %v4533 = vadd.s32 %v4532, 536870912
    %v4534 = vshrl.u32 %v4533, 30
    %v4535 = vshll.u32 %v4534, 30
    %v4536 = vsub.s32 %v4532, %v4535
    %vm4537 = vcmp.lt.s32.totalorder %v4536, 0
    %v4538 = vsub.s32 0, %v4536
    %v4539 = vsel %vm4537, %v4538, %v4536
    %v4540 = vclz %v4539
    %v4541 = vsub.s32 %v4540, 2
    %vm4542 = vcmp.gt.s32.totalorder 0, %v4541
    %v4543 = vsel %vm4542, 0, %v4541
    %v4544 = vsub.s32 32, %v4543
    %v4545 = vshll.u32 %v4536, %v4543
    %v4546 = vshrl.u32 %v4528, %v4544
    %v4547 = vor.u32 %v4545, %v4546
    %v4548 = vsub.s32 4294967266, %v4543
    %v4549 = vadd.s32 %v4548, 127
    %v4550 = vshll.u32 %v4549, 23
    %v4551 = vor.u32 4788187, %v4550
    %v4552 = vand.u32 2147483647, %v4551
    %v4554 = vcvt.s32.f32 %v4547
    %v4555 = vmul.f32 %v4554, %v4552
    %v4556 = vxor.u32 %v4555, 2147483648
    %v4557 = vsel %vm4474, %v4556, %v4555
    %v4558 = vsub.s32 4, %v4534
    %v4559 = vsel %vm4474, %v4558, %v4534
    %v4560 = vsel %vm4473, %v4038, %v4557
    %v4561 = vsel %vm4473, 0, %v4559
    %v4562 = vcosq.f32.pop %v4560
    %v4563 = vsinq.f32.pop %v4560
    %vm4564 = vweird.f32 %v4038
    %v4565 = vadd.s32 %v4561, 3
    %v4566 = vand.u32 %v4565, 3
    %vm4567 = vcmp.lt.s32.totalorder %v4566, 2
    %vm4568 = vcmp.eq.s32.totalorder %v4566, 0
    %v4569 = vxor.u32 %v4563, 2147483648
    %v4570 = vsel %vm4568, %v4562, %v4569
    %vm4571 = vcmp.eq.s32.totalorder %v4566, 2
    %v4572 = vxor.u32 %v4562, 2147483648
    %v4573 = vsel %vm4571, %v4572, %v4563
    %v4574 = vsel %vm4567, %v4570, %v4573
    %v4575 = vsel %vm4564, nan, %v4574
    %v4576 = vand.u32 2147483647, %v4043
    %vm4577 = vcmp.le.f32.partialorder %v4576, 0.7853982
    %vm4578 = vcmp.lt.s32.totalorder %v4043, 0
    %v4579 = vand.u32 %v4043, 2139095040
    %v4580 = vshrl.u32 %v4579, 23
    %v4581 = vsub.s32 %v4580, 127
    %v4582 = vand.u32 2147483647, %v4043
    %v4583 = vand.u32 %v4582, 8388607
    %v4584 = vor.u32 %v4583, 8388608
    %v4585 = vsub.s32 0, %v4584
    %v4586 = vadd.s32 %v4581, 1
    %vm4587 = vcmp.gt.s32.totalorder %v4586, 0
    %v4588 = vsel %vm4587, %v4586, 0
    %v4589 = vshrl.u32 %v4588, 5
    %v4590 = vand.u32 %v4588, 31
    %v4591 = vsub.s32 32, %v4590
    %v4592 = vshrl.u32 683565275, %v4591
    %v4593 = vshll.u32 683565275, %v4590
    %v4594 = vshrl.u32 2475754826, %v4591
    %v4595 = vor.u32 %v4593, %v4594
    %v4596 = vshll.u32 2475754826, %v4590
    %v4597 = vshrl.u32 2131351028, %v4591
    %v4598 = vor.u32 %v4596, %v4597
    %v4599 = vshll.u32 2131351028, %v4590
    %v4600 = vshrl.u32 2102212464, %v4591
    %v4601 = vor.u32 %v4599, %v4600
    %v4602 = vshll.u32 2102212464, %v4590
    %v4603 = vshrl.u32 920167782, %v4591
    %v4604 = vor.u32 %v4602, %v4603
    %v4605 = vshll.u32 920167782, %v4590
    %v4606 = vshrl.u32 1326507024, %v4591
    %v4607 = vor.u32 %v4605, %v4606
    %vm4608 = vcmp.lt.s32.totalorder %v4589, 1
    %vm4609 = vcmp.lt.s32.totalorder %v4589, 2
    %vm4610 = vcmp.lt.s32.totalorder %v4589, 3
    %vm4611 = vcmp.lt.s32.totalorder %v4589, 4
    %v4612 = vsel %vm4608, %v4592, %v4595
    %v4613 = vsel %vm4611, %v4601, 2102212464
    %v4614 = vsel %vm4610, %v4598, %v4613
    %v4615 = vsel %vm4609, %v4612, %v4614
    %v4616 = vsel %vm4608, %v4595, %v4598
    %v4617 = vsel %vm4611, %v4604, 920167782
    %v4618 = vsel %vm4610, %v4601, %v4617
    %v4619 = vsel %vm4609, %v4616, %v4618
    %v4620 = vsel %vm4608, %v4598, %v4601
    %v4621 = vsel %vm4611, %v4607, 1326507024
    %v4622 = vsel %vm4610, %v4604, %v4621
    %v4623 = vsel %vm4609, %v4620, %v4622
    %v4624 = vshll.u32 %v4584, 8
    %v4625 = vmul.u32.u64.compose %v4624, %v4623
    %v4626 = vextract.low.u32 %v4625
    %v4627 = vextract.high.u32 %v4625
    %v4628 = vmul.u32.u64.compose %v4624, %v4619
    %v4629 = vextract.low.u32 %v4628
    %v4630 = vextract.high.u32 %v4628
    %v4631 = vmul.u32 %v4624, %v4615
    %v4632 = vadd.s32 %v4627, %v4629
    %vm4633 = vc.u32 %v4627, %v4629
    %v4634 = vadd.s32 %v4630, 1
    %v4635 = vsel %vm4633, %v4634, %v4630
    %v4636 = vadd.s32 %v4631, %v4635
    %v4637 = vadd.s32 %v4636, 536870912
    %v4638 = vshrl.u32 %v4637, 30
    %v4639 = vshll.u32 %v4638, 30
    %v4640 = vsub.s32 %v4636, %v4639
    %vm4641 = vcmp.lt.s32.totalorder %v4640, 0
    %v4642 = vsub.s32 0, %v4640
    %v4643 = vsel %vm4641, %v4642, %v4640
    %v4644 = vclz %v4643
    %v4645 = vsub.s32 %v4644, 2
    %vm4646 = vcmp.gt.s32.totalorder 0, %v4645
    %v4647 = vsel %vm4646, 0, %v4645
    %v4648 = vsub.s32 32, %v4647
    %v4649 = vshll.u32 %v4640, %v4647
    %v4650 = vshrl.u32 %v4632, %v4648
    %v4651 = vor.u32 %v4649, %v4650
    %v4652 = vsub.s32 4294967266, %v4647
    %v4653 = vadd.s32 %v4652, 127
    %v4654 = vshll.u32 %v4653, 23
    %v4655 = vor.u32 4788187, %v4654
    %v4656 = vand.u32 2147483647, %v4655
    %v4658 = vcvt.s32.f32 %v4651
    %v4659 = vmul.f32 %v4658, %v4656
    %v4660 = vxor.u32 %v4659, 2147483648
    %v4661 = vsel %vm4578, %v4660, %v4659
    %v4662 = vsub.s32 4, %v4638
    %v4663 = vsel %vm4578, %v4662, %v4638
    %v4664 = vsel %vm4577, %v4043, %v4661
    %v4665 = vsel %vm4577, 0, %v4663
    %v4666 = vcosq.f32.pop %v4664
    %v4667 = vsinq.f32.pop %v4664
    %vm4668 = vweird.f32 %v4043
    %v4669 = vadd.s32 %v4665, 3
    %v4670 = vand.u32 %v4669, 3
    %vm4671 = vcmp.lt.s32.totalorder %v4670, 2
    %vm4672 = vcmp.eq.s32.totalorder %v4670, 0
    %v4673 = vxor.u32 %v4667, 2147483648
    %v4674 = vsel %vm4672, %v4666, %v4673
    %vm4675 = vcmp.eq.s32.totalorder %v4670, 2
    %v4676 = vxor.u32 %v4666, 2147483648
    %v4677 = vsel %vm4675, %v4676, %v4667
    %v4678 = vsel %vm4671, %v4674, %v4677
    %v4679 = vsel %vm4668, nan, %v4678
    %v4680 = vand.u32 2147483647, %v4048
    %vm4681 = vcmp.le.f32.partialorder %v4680, 0.7853982
    %vm4682 = vcmp.lt.s32.totalorder %v4048, 0
    %v4683 = vand.u32 %v4048, 2139095040
    %v4684 = vshrl.u32 %v4683, 23
    %v4685 = vsub.s32 %v4684, 127
    %v4686 = vand.u32 2147483647, %v4048
    %v4687 = vand.u32 %v4686, 8388607
    %v4688 = vor.u32 %v4687, 8388608
    %v4689 = vsub.s32 0, %v4688
    %v4690 = vadd.s32 %v4685, 1
    %vm4691 = vcmp.gt.s32.totalorder %v4690, 0
    %v4692 = vsel %vm4691, %v4690, 0
    %v4693 = vshrl.u32 %v4692, 5
    %v4694 = vand.u32 %v4692, 31
    %v4695 = vsub.s32 32, %v4694
    %v4696 = vshrl.u32 683565275, %v4695
    %v4697 = vshll.u32 683565275, %v4694
    %v4698 = vshrl.u32 2475754826, %v4695
    %v4699 = vor.u32 %v4697, %v4698
    %v4700 = vshll.u32 2475754826, %v4694
    %v4701 = vshrl.u32 2131351028, %v4695
    %v4702 = vor.u32 %v4700, %v4701
    %v4703 = vshll.u32 2131351028, %v4694
    %v4704 = vshrl.u32 2102212464, %v4695
    %v4705 = vor.u32 %v4703, %v4704
    %v4706 = vshll.u32 2102212464, %v4694
    %v4707 = vshrl.u32 920167782, %v4695
    %v4708 = vor.u32 %v4706, %v4707
    %v4709 = vshll.u32 920167782, %v4694
    %v4710 = vshrl.u32 1326507024, %v4695
    %v4711 = vor.u32 %v4709, %v4710
    %vm4712 = vcmp.lt.s32.totalorder %v4693, 1
    %vm4713 = vcmp.lt.s32.totalorder %v4693, 2
    %vm4714 = vcmp.lt.s32.totalorder %v4693, 3
    %vm4715 = vcmp.lt.s32.totalorder %v4693, 4
    %v4716 = vsel %vm4712, %v4696, %v4699
    %v4717 = vsel %vm4715, %v4705, 2102212464
    %v4718 = vsel %vm4714, %v4702, %v4717
    %v4719 = vsel %vm4713, %v4716, %v4718
    %v4720 = vsel %vm4712, %v4699, %v4702
    %v4721 = vsel %vm4715, %v4708, 920167782
    %v4722 = vsel %vm4714, %v4705, %v4721
    %v4723 = vsel %vm4713, %v4720, %v4722
    %v4724 = vsel %vm4712, %v4702, %v4705
    %v4725 = vsel %vm4715, %v4711, 1326507024
    %v4726 = vsel %vm4714, %v4708, %v4725
    %v4727 = vsel %vm4713, %v4724, %v4726
    %v4728 = vshll.u32 %v4688, 8
    %v4729 = vmul.u32.u64.compose %v4728, %v4727
    %v4730 = vextract.low.u32 %v4729
    %v4731 = vextract.high.u32 %v4729
    %v4732 = vmul.u32.u64.compose %v4728, %v4723
    %v4733 = vextract.low.u32 %v4732
    %v4734 = vextract.high.u32 %v4732
    %v4735 = vmul.u32 %v4728, %v4719
    %v4736 = vadd.s32 %v4731, %v4733
    %vm4737 = vc.u32 %v4731, %v4733
    %v4738 = vadd.s32 %v4734, 1
    %v4739 = vsel %vm4737, %v4738, %v4734
    %v4740 = vadd.s32 %v4735, %v4739
    %v4741 = vadd.s32 %v4740, 536870912
    %v4742 = vshrl.u32 %v4741, 30
    %v4743 = vshll.u32 %v4742, 30
    %v4744 = vsub.s32 %v4740, %v4743
    %vm4745 = vcmp.lt.s32.totalorder %v4744, 0
    %v4746 = vsub.s32 0, %v4744
    %v4747 = vsel %vm4745, %v4746, %v4744
    %v4748 = vclz %v4747
    %v4749 = vsub.s32 %v4748, 2
    %vm4750 = vcmp.gt.s32.totalorder 0, %v4749
    %v4751 = vsel %vm4750, 0, %v4749
    %v4752 = vsub.s32 32, %v4751
    %v4753 = vshll.u32 %v4744, %v4751
    %v4754 = vshrl.u32 %v4736, %v4752
    %v4755 = vor.u32 %v4753, %v4754
    %v4756 = vsub.s32 4294967266, %v4751
    %v4757 = vadd.s32 %v4756, 127
    %v4758 = vshll.u32 %v4757, 23
    %v4759 = vor.u32 4788187, %v4758
    %v4760 = vand.u32 2147483647, %v4759
    %v4762 = vcvt.s32.f32 %v4755
    %v4763 = vmul.f32 %v4762, %v4760
    %v4764 = vxor.u32 %v4763, 2147483648
    %v4765 = vsel %vm4682, %v4764, %v4763
    %v4766 = vsub.s32 4, %v4742
    %v4767 = vsel %vm4682, %v4766, %v4742
    %v4768 = vsel %vm4681, %v4048, %v4765
    %v4769 = vsel %vm4681, 0, %v4767
    %v4770 = vcosq.f32.pop %v4768
    %v4771 = vsinq.f32.pop %v4768
    %vm4772 = vweird.f32 %v4048
    %v4773 = vadd.s32 %v4769, 3
    %v4774 = vand.u32 %v4773, 3
    %vm4775 = vcmp.lt.s32.totalorder %v4774, 2
    %vm4776 = vcmp.eq.s32.totalorder %v4774, 0
    %v4777 = vxor.u32 %v4771, 2147483648
    %v4778 = vsel %vm4776, %v4770, %v4777
    %vm4779 = vcmp.eq.s32.totalorder %v4774, 2
    %v4780 = vxor.u32 %v4770, 2147483648
    %v4781 = vsel %vm4779, %v4780, %v4771
    %v4782 = vsel %vm4775, %v4778, %v4781
    %v4783 = vsel %vm4772, nan, %v4782
    %v4784 = vand.u32 2147483647, %v4053
    %vm4785 = vcmp.le.f32.partialorder %v4784, 0.7853982
    %vm4786 = vcmp.lt.s32.totalorder %v4053, 0
    %v4787 = vand.u32 %v4053, 2139095040
    %v4788 = vshrl.u32 %v4787, 23
    %v4789 = vsub.s32 %v4788, 127
    %v4790 = vand.u32 2147483647, %v4053
    %v4791 = vand.u32 %v4790, 8388607
    %v4792 = vor.u32 %v4791, 8388608
    %v4793 = vsub.s32 0, %v4792
    %v4794 = vadd.s32 %v4789, 1
    %vm4795 = vcmp.gt.s32.totalorder %v4794, 0
    %v4796 = vsel %vm4795, %v4794, 0
    %v4797 = vshrl.u32 %v4796, 5
    %v4798 = vand.u32 %v4796, 31
    %v4799 = vsub.s32 32, %v4798
    %v4800 = vshrl.u32 683565275, %v4799
    %v4801 = vshll.u32 683565275, %v4798
    %v4802 = vshrl.u32 2475754826, %v4799
    %v4803 = vor.u32 %v4801, %v4802
    %v4804 = vshll.u32 2475754826, %v4798
    %v4805 = vshrl.u32 2131351028, %v4799
    %v4806 = vor.u32 %v4804, %v4805
    %v4807 = vshll.u32 2131351028, %v4798
    %v4808 = vshrl.u32 2102212464, %v4799
    %v4809 = vor.u32 %v4807, %v4808
    %v4810 = vshll.u32 2102212464, %v4798
    %v4811 = vshrl.u32 920167782, %v4799
    %v4812 = vor.u32 %v4810, %v4811
    %v4813 = vshll.u32 920167782, %v4798
    %v4814 = vshrl.u32 1326507024, %v4799
    %v4815 = vor.u32 %v4813, %v4814
    %vm4816 = vcmp.lt.s32.totalorder %v4797, 1
    %vm4817 = vcmp.lt.s32.totalorder %v4797, 2
    %vm4818 = vcmp.lt.s32.totalorder %v4797, 3
    %vm4819 = vcmp.lt.s32.totalorder %v4797, 4
    %v4820 = vsel %vm4816, %v4800, %v4803
    %v4821 = vsel %vm4819, %v4809, 2102212464
    %v4822 = vsel %vm4818, %v4806, %v4821
    %v4823 = vsel %vm4817, %v4820, %v4822
    %v4824 = vsel %vm4816, %v4803, %v4806
    %v4825 = vsel %vm4819, %v4812, 920167782
    %v4826 = vsel %vm4818, %v4809, %v4825
    %v4827 = vsel %vm4817, %v4824, %v4826
    %v4828 = vsel %vm4816, %v4806, %v4809
    %v4829 = vsel %vm4819, %v4815, 1326507024
    %v4830 = vsel %vm4818, %v4812, %v4829
    %v4831 = vsel %vm4817, %v4828, %v4830
    %v4832 = vshll.u32 %v4792, 8
    %v4833 = vmul.u32.u64.compose %v4832, %v4831
    %v4834 = vextract.low.u32 %v4833
    %v4835 = vextract.high.u32 %v4833
    %v4836 = vmul.u32.u64.compose %v4832, %v4827
    %v4837 = vextract.low.u32 %v4836
    %v4838 = vextract.high.u32 %v4836
    %v4839 = vmul.u32 %v4832, %v4823
    %v4840 = vadd.s32 %v4835, %v4837
    %vm4841 = vc.u32 %v4835, %v4837
    %v4842 = vadd.s32 %v4838, 1
    %v4843 = vsel %vm4841, %v4842, %v4838
    %v4844 = vadd.s32 %v4839, %v4843
    %v4845 = vadd.s32 %v4844, 536870912
    %v4846 = vshrl.u32 %v4845, 30
    %v4847 = vshll.u32 %v4846, 30
    %v4848 = vsub.s32 %v4844, %v4847
    %vm4849 = vcmp.lt.s32.totalorder %v4848, 0
    %v4850 = vsub.s32 0, %v4848
    %v4851 = vsel %vm4849, %v4850, %v4848
    %v4852 = vclz %v4851
    %v4853 = vsub.s32 %v4852, 2
    %vm4854 = vcmp.gt.s32.totalorder 0, %v4853
    %v4855 = vsel %vm4854, 0, %v4853
    %v4856 = vsub.s32 32, %v4855
    %v4857 = vshll.u32 %v4848, %v4855
    %v4858 = vshrl.u32 %v4840, %v4856
    %v4859 = vor.u32 %v4857, %v4858
    %v4860 = vsub.s32 4294967266, %v4855
    %v4861 = vadd.s32 %v4860, 127
    %v4862 = vshll.u32 %v4861, 23
    %v4863 = vor.u32 4788187, %v4862
    %v4864 = vand.u32 2147483647, %v4863
    %v4866 = vcvt.s32.f32 %v4859
    %v4867 = vmul.f32 %v4866, %v4864
    %v4868 = vxor.u32 %v4867, 2147483648
    %v4869 = vsel %vm4786, %v4868, %v4867
    %v4870 = vsub.s32 4, %v4846
    %v4871 = vsel %vm4786, %v4870, %v4846
    %v4872 = vsel %vm4785, %v4053, %v4869
    %v4873 = vsel %vm4785, 0, %v4871
    %v4874 = vcosq.f32.pop %v4872
    %v4875 = vsinq.f32.pop %v4872
    %vm4876 = vweird.f32 %v4053
    %v4877 = vadd.s32 %v4873, 3
    %v4878 = vand.u32 %v4877, 3
    %vm4879 = vcmp.lt.s32.totalorder %v4878, 2
    %vm4880 = vcmp.eq.s32.totalorder %v4878, 0
    %v4881 = vxor.u32 %v4875, 2147483648
    %v4882 = vsel %vm4880, %v4874, %v4881
    %vm4883 = vcmp.eq.s32.totalorder %v4878, 2
    %v4884 = vxor.u32 %v4874, 2147483648
    %v4885 = vsel %vm4883, %v4884, %v4875
    %v4886 = vsel %vm4879, %v4882, %v4885
    %v4887 = vsel %vm4876, nan, %v4886
    %s4888 = scalar_lea.vmem [#allocation2], 512
    %v4889 = vld [vmem:[%s4888] sm:$0xff]
    %v4890 = vld [vmem:[%s4888 + $0x8] sm:$0xff]
    %v4891 = vld [vmem:[%s4888 + $0x10] sm:$0xff]
    %v4892 = vld [vmem:[%s4888 + $0x18] sm:$0xff]
    %v4893 = vld [vmem:[%s4888 + $0x20] sm:$0xff]
    %v4894 = vld [vmem:[%s4888 + $0x28] sm:$0xff]
    %v4895 = vld [vmem:[%s4888 + $0x30] sm:$0xff]
    %v4896 = vld [vmem:[%s4888 + $0x38] sm:$0xff]
    %v4897 = vld [vmem:[%s4888 + $0x40] sm:$0xff]
    %v4898 = vld [vmem:[%s4888 + $0x48] sm:$0xff]
    %v4899 = vld [vmem:[%s4888 + $0x50] sm:$0xff]
    %v4900 = vld [vmem:[%s4888 + $0x58] sm:$0xff]
    %v4901 = vld [vmem:[%s4888 + $0x60] sm:$0xff]
    %v4902 = vld [vmem:[%s4888 + $0x68] sm:$0xff]
    %v4903 = vld [vmem:[%s4888 + $0x70] sm:$0xff]
    %v4904 = vld [vmem:[%s4888 + $0x78] sm:$0xff]
    %s4905 = scalar_lea.vmem %s3, 5
    %v4906 = vld [vmem:[%s4905] sm:$0x1]
    %v4908 = vlaneseq
    %v4909 = vshrl.u32 %v4908, 7
    %v4910 = vsub.s32 0, %v4909
    %v4911 = vrot.slane %v4906, %v4910
    %4913 = vmatprep.subr.mxu0 0.0
    %4914 = vmatpush1.msra.mxu0 %v4904
    %4915 = vmatprep.subr.mxu0 0.0
    %4916 = vmatpush1.msra.mxu0 %v4903
    %4917 = vmatprep.subr.mxu0 0.0
    %4918 = vmatpush1.msra.mxu0 %v4902
    %4919 = vmatprep.subr.mxu0 0.0
    %4920 = vmatpush1.msra.mxu0 %v4901
    %4921 = vmatprep.subr.mxu0 0.0
    %4922 = vmatpush1.msra.mxu0 %v4900
    %4923 = vmatprep.subr.mxu0 0.0
    %4924 = vmatpush1.msra.mxu0 %v4899
    %4925 = vmatprep.subr.mxu0 0.0
    %4926 = vmatpush1.msra.mxu0 %v4898
    %4927 = vmatprep.subr.mxu0 0.0
    %4928 = vmatpush1.msra.mxu0 %v4897
    %4929 = vmatprep.subr.mxu0 0.0
    %4930 = vmatpush1.msra.mxu0 %v4896
    %4931 = vmatprep.subr.mxu0 0.0
    %4932 = vmatpush1.msra.mxu0 %v4895
    %4933 = vmatprep.subr.mxu0 0.0
    %4934 = vmatpush1.msra.mxu0 %v4894
    %4935 = vmatprep.subr.mxu0 0.0
    %4936 = vmatpush1.msra.mxu0 %v4893
    %4937 = vmatprep.subr.mxu0 0.0
    %4938 = vmatpush1.msra.mxu0 %v4892
    %4939 = vmatprep.subr.mxu0 0.0
    %4940 = vmatpush1.msra.mxu0 %v4891
    %4941 = vmatprep.subr.mxu0 0.0
    %4942 = vmatpush1.msra.mxu0 %v4890
    %4943 = vmatprep.subr.mxu0 0.0
    %4944 = vmatpush1.msra.mxu0 %v4889
    %4945 = vmatprep.subr.mxu0 0.0
    %4946 = vmatpush2.msra.mxu0 0.0
    %4947 = vmatprep.subr.mxu0 0.0
    %4948 = vmatpush2.msra.mxu0 0.0
    %4949 = vmatprep.subr.mxu0 0.0
    %4950 = vmatpush2.msra.mxu0 0.0
    %4951 = vmatprep.subr.mxu0 0.0
    %4952 = vmatpush2.msra.mxu0 0.0
    %4953 = vmatprep.subr.mxu0 0.0
    %4954 = vmatpush2.msra.mxu0 0.0
    %4955 = vmatprep.subr.mxu0 0.0
    %4956 = vmatpush2.msra.mxu0 0.0
    %4957 = vmatprep.subr.mxu0 0.0
    %4958 = vmatpush2.msra.mxu0 0.0
    %4959 = vmatprep.subr.mxu0 0.0
    %4960 = vmatpush2.msra.mxu0 0.0
    %4961 = vmatprep.subr.mxu0 0.0
    %4962 = vmatpush2.msra.mxu0 0.0
    %4963 = vmatprep.subr.mxu0 0.0
    %4964 = vmatpush2.msra.mxu0 0.0
    %4965 = vmatprep.subr.mxu0 0.0
    %4966 = vmatpush2.msra.mxu0 0.0
    %4967 = vmatprep.subr.mxu0 0.0
    %4968 = vmatpush2.msra.mxu0 0.0
    %4969 = vmatprep.subr.mxu0 0.0
    %4970 = vmatpush2.msra.mxu0 0.0
    %4971 = vmatprep.subr.mxu0 0.0
    %4972 = vmatpush2.msra.mxu0 0.0
    %4973 = vmatprep.subr.mxu0 0.0
    %4974 = vmatpush2.msra.mxu0 0.0
    %4975 = vmatprep.subr.mxu0 0.0
    %4976 = vmatpush2.msra.mxu0 0.0
    %4977 = vmatprep.mubr.f32.mxu0 0.0
    %4978 = vmatmul.mubr.f32.gmra.mxu0 %v4159
    %v4979 = vpop.f32.mrf.mxu0
    %v4980 = vadd.f32 %v4911, %v4979
    %v4981 = vpop.f32.mrf.mxu0
    %4982 = vmatprep.mubr.f32.mxu0 0.0
    %4983 = vmatmul.mubr.f32.gmra.mxu0 %v4263
    %v4984 = vpop.f32.mrf.mxu0
    %v4985 = vadd.f32 %v4911, %v4984
    %v4986 = vpop.f32.mrf.mxu0
    %4987 = vmatprep.mubr.f32.mxu0 0.0
    %4988 = vmatmul.mubr.f32.gmra.mxu0 %v4367
    %v4989 = vpop.f32.mrf.mxu0
    %v4990 = vadd.f32 %v4911, %v4989
    %v4991 = vpop.f32.mrf.mxu0
    %4992 = vmatprep.mubr.f32.mxu0 0.0
    %4993 = vmatmul.mubr.f32.gmra.mxu0 %v4471
    %v4994 = vpop.f32.mrf.mxu0
    %v4995 = vadd.f32 %v4911, %v4994
    %v4996 = vpop.f32.mrf.mxu0
    %4997 = vmatprep.mubr.f32.mxu0 0.0
    %4998 = vmatmul.mubr.f32.gmra.mxu0 %v4575
    %v4999 = vpop.f32.mrf.mxu0
    %v5000 = vadd.f32 %v4911, %v4999
    %v5001 = vpop.f32.mrf.mxu0
    %5002 = vmatprep.mubr.f32.mxu0 0.0
    %5003 = vmatmul.mubr.f32.gmra.mxu0 %v4679
    %v5004 = vpop.f32.mrf.mxu0
    %v5005 = vadd.f32 %v4911, %v5004
    %v5006 = vpop.f32.mrf.mxu0
    %5007 = vmatprep.mubr.f32.mxu0 0.0
    %5008 = vmatmul.mubr.f32.gmra.mxu0 %v4783
    %v5009 = vpop.f32.mrf.mxu0
    %v5010 = vadd.f32 %v4911, %v5009
    %v5011 = vpop.f32.mrf.mxu0
    %5012 = vmatprep.mubr.f32.mxu0 0.0
    %5013 = vmatmul.mubr.f32.gmra.mxu0 %v4887
    %v5014 = vpop.f32.mrf.mxu0
    %v5015 = vadd.f32 %v4911, %v5014
    %v5016 = vpop.f32.mrf.mxu0
    %5017 = vdwg.mxu0
    %5018 = vst [vmem:[#allocation9] sm:$0xff] %v4980
    %5019 = vst [vmem:[#allocation9 + $0x8] sm:$0xff] %v4985
    %5020 = vst [vmem:[#allocation9 + $0x10] sm:$0xff] %v4990
    %5021 = vst [vmem:[#allocation9 + $0x18] sm:$0xff] %v4995
    %5022 = vst [vmem:[#allocation9 + $0x20] sm:$0xff] %v5000
    %5023 = vst [vmem:[#allocation9 + $0x28] sm:$0xff] %v5005
    %5024 = vst [vmem:[#allocation9 + $0x30] sm:$0xff] %v5010
    %5025 = vst [vmem:[#allocation9 + $0x38] sm:$0xff] %v5015
    // Predicated region
    $region22: #{tpu_custom_call.1} parent=1 // pred_check
      _
    $region23: #{tpu_custom_call.1} parent=1 // pred_check_branch
      %5027 = sbr.rel (0) target = $region25
    $region24: #{tpu_custom_call.1} parent=1 // pred_region
      %s5029 = ssub.s32 1024, 1024
      %5030 = vsyncadd [#allocation4], %s5029
      %s5031 = sshll.u32 [#allocation5], 4
      %s5032 = int_to_ptr.vmem [resolvable:$true] %s5031
      %5037 = dma.vmem_to_hbm [thread:$0]  %s5032, 1024, %s4, [#allocation4], 128, 128, 8
    $region25: #{tpu_custom_call.1} parent=1 // pred_fallthru
      _
    // Predicated region
    $region26: #{tpu_custom_call.1} parent=1 // pred_check
      _
    $region27: #{tpu_custom_call.1} parent=1 // pred_check_branch
      %5039 = sbr.rel (0) target = $region29
    $region28: #{tpu_custom_call.1} parent=1 // pred_region
      %s5041 = ssub.s32 1024, 1024
      %5042 = vsyncadd [#allocation7], %s5041
      %s5043 = sshll.u32 [#allocation6], 4
      %s5044 = int_to_ptr.vmem [resolvable:$true] %s5043
      %5049 = dma.vmem_to_hbm [thread:$0]  %s5044, 1024, %s5, [#allocation7], 128, 128, 8
    $region29: #{tpu_custom_call.1} parent=1 // pred_fallthru
      _
    // Predicated region
    $region30: #{tpu_custom_call.1} parent=1 // pred_check
      _
    $region31: #{tpu_custom_call.1} parent=1 // pred_check_branch
      %5051 = sbr.rel (0) target = $region33
    $region32: #{tpu_custom_call.1} parent=1 // pred_region
      %s5053 = ssub.s32 1024, 1024
      %5054 = vsyncadd [#allocation7], %s5053
      %s5055 = sshll.u32 [#allocation8], 4
      %s5056 = int_to_ptr.vmem [resolvable:$true] %s5055
      %5061 = dma.vmem_to_hbm [thread:$0]  %s5056, 1024, %s6, [#allocation7], 128, 128, 8
    $region33: #{tpu_custom_call.1} parent=1 // pred_fallthru
      _
    // Predicated region
    $region34: #{tpu_custom_call.1} parent=1 // pred_check
      _
    $region35: #{tpu_custom_call.1} parent=1 // pred_check_branch
      %5063 = sbr.rel (0) target = $region37
    $region36: #{tpu_custom_call.1} parent=1 // pred_region
      %s5065 = ssub.s32 1024, 1024
      %5066 = vsyncadd [#allocation10], %s5065
      %s5067 = sshll.u32 [#allocation9], 4
      %s5068 = int_to_ptr.vmem [resolvable:$true] %s5067
      %5073 = dma.vmem_to_hbm [thread:$0]  %s5068, 1024, %s7, [#allocation10], 128, 128, 8
    $region37: #{tpu_custom_call.1} parent=1 // pred_fallthru
      _
    // Predicated region
    $region38: #{tpu_custom_call.1} parent=1 // pred_check
      _
    $region39: #{tpu_custom_call.1} parent=1 // pred_check_branch
      %5075 = sbr.rel (0) target = $region41
    $region40: #{tpu_custom_call.1} parent=1 // pred_region
      %5076 = dma.done [#allocation4], 1024
    $region41: #{tpu_custom_call.1} parent=1 // pred_fallthru
      _
    // Predicated region
    $region42: #{tpu_custom_call.1} parent=1 // pred_check
      _
    $region43: #{tpu_custom_call.1} parent=1 // pred_check_branch
      %5078 = sbr.rel (0) target = $region45
    $region44: #{tpu_custom_call.1} parent=1 // pred_region
      %5079 = dma.done [#allocation7], 1024
    $region45: #{tpu_custom_call.1} parent=1 // pred_fallthru
      _
    // Predicated region
    $region46: #{tpu_custom_call.1} parent=1 // pred_check
      _
    $region47: #{tpu_custom_call.1} parent=1 // pred_check_branch
      %5081 = sbr.rel (0) target = $region49
    $region48: #{tpu_custom_call.1} parent=1 // pred_region
      %5082 = dma.done [#allocation7], 1024
    $region49: #{tpu_custom_call.1} parent=1 // pred_fallthru
      _
    // Predicated region
    $region50: #{tpu_custom_call.1} parent=1 // pred_check
      _
    $region51: #{tpu_custom_call.1} parent=1 // pred_check_branch
      %5084 = sbr.rel (0) target = $region53
    $region52: #{tpu_custom_call.1} parent=1 // pred_region
      %5085 = dma.done [#allocation10], 1024
    $region53: #{tpu_custom_call.1} parent=1 // pred_fallthru
      _
    %5086 = vsyncpa [#allocation3], 1
    %5087 = vsyncpa [#allocation4], 1
    %5088 = vsyncpa [#allocation7], 1
    %5089 = vsyncpa [#allocation10], 1

// kernel: tpu_custom_call.1
$region0: #{tpu_custom_call.1}
  #allocation0 [shape = 'u32[]', space=smem, size = 0x4, offset = 0x4, fixed_abs, tag = 'smem constant byte address 0x4 - core index']
  #allocation1 [shape = 'u32[144,128]{1,0:T(1,128)}', space=vmem, size = 0x12000, scoped, tag = 'internal scratch']
  %s0 = inlined_call_operand.vmem [shape: f32[64,16], index: 0, kind: input, shape index: {}]
  %s1 = inlined_call_operand.vmem [shape: f32[16,128], index: 1, kind: input, shape index: {}]
  %s2 = inlined_call_operand.hbm [shape: f32[5,128,128], index: 2, kind: input, shape index: {}]
  %s3 = inlined_call_operand.vmem [shape: f32[6,1,128], index: 3, kind: input, shape index: {}]
  %s4 = inlined_call_operand.hbm [shape: f32[64,128], index: 4, kind: output, shape index: {0}]
  %s5 = inlined_call_operand.hbm [shape: f32[64,128], index: 5, kind: output, shape index: {1}]
  %s6 = inlined_call_operand.hbm [shape: f32[64,128], index: 6, kind: output, shape index: {2}]
  %s7 = inlined_call_operand.hbm [shape: f32[64,128], index: 7, kind: output, shape index: {3}]
  %8 = xla_tuple %s4, %s5, %s6, %s7
  %s9 = sld [smem:[#allocation0]]
  $region54: #{tpu_custom_call.1} parent=0
    _
  %s11 = ssub.s32 1, %s9
  %s12 = scalar_select 0, %s11, %s9
  $region1: #{tpu_custom_call.1} parent=0
    #allocation2 [shape = 'u8[327680]{0}', space=vmem, size = 0x50000, scoped, tag = 'input window, operand 2, single buffered']
    #allocation3 [shape = 's32[1]{0}', space=sflag, size = 0x4, scoped, tag = 'scoped memory for tpu_custom_call.1']
    #allocation4 [shape = 's32[1]{0}', space=sflag, size = 0x4, scoped, tag = 'scoped memory for tpu_custom_call.1']
    #allocation5 [shape = 'u8[32768]{0}', space=vmem, size = 0x8000, scoped, tag = 'output window, operand 0, single buffered']
    #allocation6 [shape = 'u8[32768]{0}', space=vmem, size = 0x8000, scoped, tag = 'output window, operand 1, single buffered']
    #allocation7 [shape = 's32[1]{0}', space=sflag, size = 0x4, scoped, tag = 'scoped memory for tpu_custom_call.1']
    #allocation8 [shape = 'u8[32768]{0}', space=vmem, size = 0x8000, scoped, tag = 'output window, operand 2, single buffered']
    #allocation9 [shape = 'u8[32768]{0}', space=vmem, size = 0x8000, scoped, tag = 'output window, operand 3, single buffered']
    #allocation10 [shape = 's32[1]{0}', space=sflag, size = 0x4, scoped, tag = 'scoped memory for tpu_custom_call.1']
    %13 = vsyncpa [#allocation3], 0
    %14 = vsyncpa [#allocation4], 0
    %15 = vsyncpa [#allocation7], 0
    %16 = vsyncpa [#allocation10], 0
    // Predicated region
    $region2: #{tpu_custom_call.1} parent=1 // pred_check
      _
    $region3: #{tpu_custom_call.1} parent=1 // pred_check_branch
      %18 = sbr.rel (0) target = $region5
    $region4: #{tpu_custom_call.1} parent=1 // pred_region
      _
    $region5: #{tpu_custom_call.1} parent=1 // pred_fallthru
      _
    // Predicated region
    $region6: #{tpu_custom_call.1} parent=1 // pred_check
      _
    $region7: #{tpu_custom_call.1} parent=1 // pred_check_branch
      %20 = sbr.rel (0) target = $region9
    $region8: #{tpu_custom_call.1} parent=1 // pred_region
      _
    $region9: #{tpu_custom_call.1} parent=1 // pred_fallthru
      _
    // Predicated region
    $region10: #{tpu_custom_call.1} parent=1 // pred_check
      _
    $region11: #{tpu_custom_call.1} parent=1 // pred_check_branch
      %22 = sbr.rel (0) target = $region13
    $region12: #{tpu_custom_call.1} parent=1 // pred_region
      %s24 = ssub.s32 10240, 10240
      %25 = vsyncadd [#allocation3], %s24
      %s26 = sshll.u32 [#allocation2], 4
      %s27 = int_to_ptr.vmem [resolvable:$true] %s26
      %32 = dma.hbm_to_vmem [thread:$0]  %s2, 10240, %s27, [#allocation3], 128, 128, 8
    $region13: #{tpu_custom_call.1} parent=1 // pred_fallthru
      _
    // Predicated region
    $region14: #{tpu_custom_call.1} parent=1 // pred_check
      _
    $region15: #{tpu_custom_call.1} parent=1 // pred_check_branch
      %34 = sbr.rel (0) target = $region17
    $region16: #{tpu_custom_call.1} parent=1 // pred_region
      _
    $region17: #{tpu_custom_call.1} parent=1 // pred_fallthru
      _
    // Predicated region
    $region18: #{tpu_custom_call.1} parent=1 // pred_check
      _
    $region19: #{tpu_custom_call.1} parent=1 // pred_check_branch
      %36 = sbr.rel (0) target = $region21
    $region20: #{tpu_custom_call.1} parent=1 // pred_region
      %37 = dma.done [#allocation3], 10240
    $region21: #{tpu_custom_call.1} parent=1 // pred_fallthru
      _
    %v38 = vld [vmem:[%s0] sm:$0xff]
    %v39 = vld [vmem:[%s0 + $0x8] sm:$0xff]
    %v40 = vld [vmem:[%s0 + $0x10] sm:$0xff]
    %v41 = vld [vmem:[%s0 + $0x18] sm:$0xff]
    %v42 = vld [vmem:[%s0 + $0x20] sm:$0xff]
    %v43 = vld [vmem:[%s0 + $0x28] sm:$0xff]
    %v44 = vld [vmem:[%s0 + $0x30] sm:$0xff]
    %v45 = vld [vmem:[%s0 + $0x38] sm:$0xff]
    %v46 = vld [vmem:[%s1] sm:$0xff]
    %v47 = vld [vmem:[%s1 + $0x8] sm:$0xff]
    %v48 = vld [vmem:[%s3] sm:$0x1]
    %v50 = vlaneseq
    %v51 = vshrl.u32 %v50, 7
    %v52 = vsub.s32 0, %v51
    %v53 = vrot.slane %v48, %v52
    %vm55 = vcmask 130048
    %v57 = vsel %vm55, %v38, 0
    %v60 = vsel %vm55, %v39, 0
    %v63 = vsel %vm55, %v40, 0
    %v66 = vsel %vm55, %v41, 0
    %v69 = vsel %vm55, %v42, 0
    %v72 = vsel %vm55, %v43, 0
    %v75 = vsel %vm55, %v44, 0
    %v78 = vsel %vm55, %v45, 0
    %80 = vmatprep.subr.mxu0 0.0
    %81 = vmatpush1.msra.mxu0 0.0
    %82 = vmatprep.subr.mxu0 0.0
    %83 = vmatpush1.msra.mxu0 0.0
    %84 = vmatprep.subr.mxu0 0.0
    %85 = vmatpush1.msra.mxu0 0.0
    %86 = vmatprep.subr.mxu0 0.0
    %87 = vmatpush1.msra.mxu0 0.0
    %88 = vmatprep.subr.mxu0 0.0
    %89 = vmatpush1.msra.mxu0 0.0
    %90 = vmatprep.subr.mxu0 0.0
    %91 = vmatpush1.msra.mxu0 0.0
    %92 = vmatprep.subr.mxu0 0.0
    %93 = vmatpush1.msra.mxu0 0.0
    %94 = vmatprep.subr.mxu0 0.0
    %95 = vmatpush1.msra.mxu0 0.0
    %96 = vmatprep.subr.mxu0 0.0
    %97 = vmatpush1.msra.mxu0 0.0
    %98 = vmatprep.subr.mxu0 0.0
    %99 = vmatpush1.msra.mxu0 0.0
    %100 = vmatprep.subr.mxu0 0.0
    %101 = vmatpush1.msra.mxu0 0.0
    %102 = vmatprep.subr.mxu0 0.0
    %103 = vmatpush1.msra.mxu0 0.0
    %104 = vmatprep.subr.mxu0 0.0
    %105 = vmatpush1.msra.mxu0 0.0
    %106 = vmatprep.subr.mxu0 0.0
    %107 = vmatpush1.msra.mxu0 0.0
    %108 = vmatprep.subr.mxu0 0.0
    %109 = vmatpush1.msra.mxu0 %v47
    %110 = vmatprep.subr.mxu0 0.0
    %111 = vmatpush1.msra.mxu0 %v46
    %112 = vmatprep.subr.mxu0 0.0
    %113 = vmatpush2.msra.mxu0 0.0
    %114 = vmatprep.subr.mxu0 0.0
    %115 = vmatpush2.msra.mxu0 0.0
    %116 = vmatprep.subr.mxu0 0.0
    %117 = vmatpush2.msra.mxu0 0.0
    %118 = vmatprep.subr.mxu0 0.0
    %119 = vmatpush2.msra.mxu0 0.0
    %120 = vmatprep.subr.mxu0 0.0
    %121 = vmatpush2.msra.mxu0 0.0
    %122 = vmatprep.subr.mxu0 0.0
    %123 = vmatpush2.msra.mxu0 0.0
    %124 = vmatprep.subr.mxu0 0.0
    %125 = vmatpush2.msra.mxu0 0.0
    %126 = vmatprep.subr.mxu0 0.0
    %127 = vmatpush2.msra.mxu0 0.0
    %128 = vmatprep.subr.mxu0 0.0
    %129 = vmatpush2.msra.mxu0 0.0
    %130 = vmatprep.subr.mxu0 0.0
    %131 = vmatpush2.msra.mxu0 0.0
    %132 = vmatprep.subr.mxu0 0.0
    %133 = vmatpush2.msra.mxu0 0.0
    %134 = vmatprep.subr.mxu0 0.0
    %135 = vmatpush2.msra.mxu0 0.0
    %136 = vmatprep.subr.mxu0 0.0
    %137 = vmatpush2.msra.mxu0 0.0
    %138 = vmatprep.subr.mxu0 0.0
    %139 = vmatpush2.msra.mxu0 0.0
    %140 = vmatprep.subr.mxu0 0.0
    %141 = vmatpush2.msra.mxu0 0.0
    %142 = vmatprep.subr.mxu0 0.0
    %143 = vmatpush2.msra.mxu0 0.0
    %144 = vmatprep.mubr.f32.mxu0 0.0
    %145 = vmatmul.mubr.f32.gmra.mxu0 %v57
    %v146 = vpop.f32.mrf.mxu0
    %v147 = vadd.f32 %v53, %v146
    %v148 = vpop.f32.mrf.mxu0
    %149 = vmatprep.mubr.f32.mxu0 0.0
    %150 = vmatmul.mubr.f32.gmra.mxu0 %v60
    %v151 = vpop.f32.mrf.mxu0
    %v152 = vadd.f32 %v53, %v151
    %v153 = vpop.f32.mrf.mxu0
    %154 = vmatprep.mubr.f32.mxu0 0.0
    %155 = vmatmul.mubr.f32.gmra.mxu0 %v63
    %v156 = vpop.f32.mrf.mxu0
    %v157 = vadd.f32 %v53, %v156
    %v158 = vpop.f32.mrf.mxu0
    %159 = vmatprep.mubr.f32.mxu0 0.0
    %160 = vmatmul.mubr.f32.gmra.mxu0 %v66
    %v161 = vpop.f32.mrf.mxu0
    %v162 = vadd.f32 %v53, %v161
    %v163 = vpop.f32.mrf.mxu0
    %164 = vmatprep.mubr.f32.mxu0 0.0
    %165 = vmatmul.mubr.f32.gmra.mxu0 %v69
    %v166 = vpop.f32.mrf.mxu0
    %v167 = vadd.f32 %v53, %v166
    %v168 = vpop.f32.mrf.mxu0
    %169 = vmatprep.mubr.f32.mxu0 0.0
    %170 = vmatmul.mubr.f32.gmra.mxu0 %v72
    %v171 = vpop.f32.mrf.mxu0
    %v172 = vadd.f32 %v53, %v171
    %v173 = vpop.f32.mrf.mxu0
    %174 = vmatprep.mubr.f32.mxu0 0.0
    %175 = vmatmul.mubr.f32.gmra.mxu0 %v75
    %v176 = vpop.f32.mrf.mxu0
    %v177 = vadd.f32 %v53, %v176
    %v178 = vpop.f32.mrf.mxu0
    %179 = vmatprep.mubr.f32.mxu0 0.0
    %180 = vmatmul.mubr.f32.gmra.mxu0 %v78
    %v181 = vpop.f32.mrf.mxu0
    %v182 = vadd.f32 %v53, %v181
    %v183 = vpop.f32.mrf.mxu0
    %184 = vdwg.mxu0
    %v185 = vand.u32 2147483647, %v147
    %vm186 = vcmp.le.f32.partialorder %v185, 0.7853982
    %vm187 = vcmp.lt.s32.totalorder %v147, 0
    %v188 = vand.u32 %v147, 2139095040
    %v189 = vshrl.u32 %v188, 23
    %v190 = vsub.s32 %v189, 127
    %v191 = vand.u32 2147483647, %v147
    %v192 = vand.u32 %v191, 8388607
    %v193 = vor.u32 %v192, 8388608
    %v194 = vsub.s32 0, %v193
    %v195 = vadd.s32 %v190, 1
    %vm196 = vcmp.gt.s32.totalorder %v195, 0
    %v197 = vsel %vm196, %v195, 0
    %v198 = vshrl.u32 %v197, 5
    %v199 = vand.u32 %v197, 31
    %v200 = vsub.s32 32, %v199
    %v201 = vshrl.u32 683565275, %v200
    %v202 = vshll.u32 683565275, %v199
    %v203 = vshrl.u32 2475754826, %v200
    %v204 = vor.u32 %v202, %v203
    %v205 = vshll.u32 2475754826, %v199
    %v206 = vshrl.u32 2131351028, %v200
    %v207 = vor.u32 %v205, %v206
    %v208 = vshll.u32 2131351028, %v199
    %v209 = vshrl.u32 2102212464, %v200
    %v210 = vor.u32 %v208, %v209
    %v211 = vshll.u32 2102212464, %v199
    %v212 = vshrl.u32 920167782, %v200
    %v213 = vor.u32 %v211, %v212
    %v214 = vshll.u32 920167782, %v199
    %v215 = vshrl.u32 1326507024, %v200
    %v216 = vor.u32 %v214, %v215
    %vm217 = vcmp.lt.s32.totalorder %v198, 1
    %vm218 = vcmp.lt.s32.totalorder %v198, 2
    %vm219 = vcmp.lt.s32.totalorder %v198, 3
    %vm220 = vcmp.lt.s32.totalorder %v198, 4
    %v221 = vsel %vm217, %v201, %v204
    %v222 = vsel %vm220, %v210, 2102212464
    %v223 = vsel %vm219, %v207, %v222
    %v224 = vsel %vm218, %v221, %v223
    %v225 = vsel %vm217, %v204, %v207
    %v226 = vsel %vm220, %v213, 920167782
    %v227 = vsel %vm219, %v210, %v226
    %v228 = vsel %vm218, %v225, %v227
    %v229 = vsel %vm217, %v207, %v210
    %v230 = vsel %vm220, %v216, 1326507024
    %v231 = vsel %vm219, %v213, %v230
    %v232 = vsel %vm218, %v229, %v231
    %v233 = vshll.u32 %v193, 8
    %v234 = vmul.u32.u64.compose %v233, %v232
    %v235 = vextract.low.u32 %v234
    %v236 = vextract.high.u32 %v234
    %v237 = vmul.u32.u64.compose %v233, %v228
    %v238 = vextract.low.u32 %v237
    %v239 = vextract.high.u32 %v237
    %v240 = vmul.u32 %v233, %v224
    %v241 = vadd.s32 %v236, %v238
    %vm242 = vc.u32 %v236, %v238
    %v243 = vadd.s32 %v239, 1
    %v244 = vsel %vm242, %v243, %v239
    %v245 = vadd.s32 %v240, %v244
    %v246 = vadd.s32 %v245, 536870912
    %v247 = vshrl.u32 %v246, 30
    %v248 = vshll.u32 %v247, 30
    %v249 = vsub.s32 %v245, %v248
    %vm250 = vcmp.lt.s32.totalorder %v249, 0
    %v251 = vsub.s32 0, %v249
    %v252 = vsel %vm250, %v251, %v249
    %v253 = vclz %v252
    %v254 = vsub.s32 %v253, 2
    %vm255 = vcmp.gt.s32.totalorder 0, %v254
    %v256 = vsel %vm255, 0, %v254
    %v257 = vsub.s32 32, %v256
    %v258 = vshll.u32 %v249, %v256
    %v259 = vshrl.u32 %v241, %v257
    %v260 = vor.u32 %v258, %v259
    %v261 = vsub.s32 4294967266, %v256
    %v262 = vadd.s32 %v261, 127
    %v263 = vshll.u32 %v262, 23
    %v264 = vor.u32 4788187, %v263
    %v265 = vand.u32 2147483647, %v264
    %v267 = vcvt.s32.f32 %v260
    %v268 = vmul.f32 %v267, %v265
    %v269 = vxor.u32 %v268, 2147483648
    %v270 = vsel %vm187, %v269, %v268
    %v271 = vsub.s32 4, %v247
    %v272 = vsel %vm187, %v271, %v247
    %v273 = vsel %vm186, %v147, %v270
    %v274 = vsel %vm186, 0, %v272
    %v275 = vcosq.f32.pop %v273
    %v276 = vsinq.f32.pop %v273
    %vm277 = vweird.f32 %v147
    %v278 = vadd.s32 %v274, 3
    %v279 = vand.u32 %v278, 3
    %vm280 = vcmp.lt.s32.totalorder %v279, 2
    %vm281 = vcmp.eq.s32.totalorder %v279, 0
    %v282 = vxor.u32 %v276, 2147483648
    %v283 = vsel %vm281, %v275, %v282
    %vm284 = vcmp.eq.s32.totalorder %v279, 2
    %v285 = vxor.u32 %v275, 2147483648
    %v286 = vsel %vm284, %v285, %v276
    %v287 = vsel %vm280, %v283, %v286
    %v288 = vsel %vm277, nan, %v287
    %v289 = vand.u32 2147483647, %v152
    %vm290 = vcmp.le.f32.partialorder %v289, 0.7853982
    %vm291 = vcmp.lt.s32.totalorder %v152, 0
    %v292 = vand.u32 %v152, 2139095040
    %v293 = vshrl.u32 %v292, 23
    %v294 = vsub.s32 %v293, 127
    %v295 = vand.u32 2147483647, %v152
    %v296 = vand.u32 %v295, 8388607
    %v297 = vor.u32 %v296, 8388608
    %v298 = vsub.s32 0, %v297
    %v299 = vadd.s32 %v294, 1
    %vm300 = vcmp.gt.s32.totalorder %v299, 0
    %v301 = vsel %vm300, %v299, 0
    %v302 = vshrl.u32 %v301, 5
    %v303 = vand.u32 %v301, 31
    %v304 = vsub.s32 32, %v303
    %v305 = vshrl.u32 683565275, %v304
    %v306 = vshll.u32 683565275, %v303
    %v307 = vshrl.u32 2475754826, %v304
    %v308 = vor.u32 %v306, %v307
    %v309 = vshll.u32 2475754826, %v303
    %v310 = vshrl.u32 2131351028, %v304
    %v311 = vor.u32 %v309, %v310
    %v312 = vshll.u32 2131351028, %v303
    %v313 = vshrl.u32 2102212464, %v304
    %v314 = vor.u32 %v312, %v313
    %v315 = vshll.u32 2102212464, %v303
    %v316 = vshrl.u32 920167782, %v304
    %v317 = vor.u32 %v315, %v316
    %v318 = vshll.u32 920167782, %v303
    %v319 = vshrl.u32 1326507024, %v304
    %v320 = vor.u32 %v318, %v319
    %vm321 = vcmp.lt.s32.totalorder %v302, 1
    %vm322 = vcmp.lt.s32.totalorder %v302, 2
    %vm323 = vcmp.lt.s32.totalorder %v302, 3
    %vm324 = vcmp.lt.s32.totalorder %v302, 4
    %v325 = vsel %vm321, %v305, %v308
    %v326 = vsel %vm324, %v314, 2102212464
    %v327 = vsel %vm323, %v311, %v326
    %v328 = vsel %vm322, %v325, %v327
    %v329 = vsel %vm321, %v308, %v311
    %v330 = vsel %vm324, %v317, 920167782
    %v331 = vsel %vm323, %v314, %v330
    %v332 = vsel %vm322, %v329, %v331
    %v333 = vsel %vm321, %v311, %v314
    %v334 = vsel %vm324, %v320, 1326507024
    %v335 = vsel %vm323, %v317, %v334
    %v336 = vsel %vm322, %v333, %v335
    %v337 = vshll.u32 %v297, 8
    %v338 = vmul.u32.u64.compose %v337, %v336
    %v339 = vextract.low.u32 %v338
    %v340 = vextract.high.u32 %v338
    %v341 = vmul.u32.u64.compose %v337, %v332
    %v342 = vextract.low.u32 %v341
    %v343 = vextract.high.u32 %v341
    %v344 = vmul.u32 %v337, %v328
    %v345 = vadd.s32 %v340, %v342
    %vm346 = vc.u32 %v340, %v342
    %v347 = vadd.s32 %v343, 1
    %v348 = vsel %vm346, %v347, %v343
    %v349 = vadd.s32 %v344, %v348
    %v350 = vadd.s32 %v349, 536870912
    %v351 = vshrl.u32 %v350, 30
    %v352 = vshll.u32 %v351, 30
    %v353 = vsub.s32 %v349, %v352
    %vm354 = vcmp.lt.s32.totalorder %v353, 0
    %v355 = vsub.s32 0, %v353
    %v356 = vsel %vm354, %v355, %v353
    %v357 = vclz %v356
    %v358 = vsub.s32 %v357, 2
    %vm359 = vcmp.gt.s32.totalorder 0, %v358
    %v360 = vsel %vm359, 0, %v358
    %v361 = vsub.s32 32, %v360
    %v362 = vshll.u32 %v353, %v360
    %v363 = vshrl.u32 %v345, %v361
    %v364 = vor.u32 %v362, %v363
    %v365 = vsub.s32 4294967266, %v360
    %v366 = vadd.s32 %v365, 127
    %v367 = vshll.u32 %v366, 23
    %v368 = vor.u32 4788187, %v367
    %v369 = vand.u32 2147483647, %v368
    %v371 = vcvt.s32.f32 %v364
    %v372 = vmul.f32 %v371, %v369
    %v373 = vxor.u32 %v372, 2147483648
    %v374 = vsel %vm291, %v373, %v372
    %v375 = vsub.s32 4, %v351
    %v376 = vsel %vm291, %v375, %v351
    %v377 = vsel %vm290, %v152, %v374
    %v378 = vsel %vm290, 0, %v376
    %v379 = vcosq.f32.pop %v377
    %v380 = vsinq.f32.pop %v377
    %vm381 = vweird.f32 %v152
    %v382 = vadd.s32 %v378, 3
    %v383 = vand.u32 %v382, 3
    %vm384 = vcmp.lt.s32.totalorder %v383, 2
    %vm385 = vcmp.eq.s32.totalorder %v383, 0
    %v386 = vxor.u32 %v380, 2147483648
    %v387 = vsel %vm385, %v379, %v386
    %vm388 = vcmp.eq.s32.totalorder %v383, 2
    %v389 = vxor.u32 %v379, 2147483648
    %v390 = vsel %vm388, %v389, %v380
    %v391 = vsel %vm384, %v387, %v390
    %v392 = vsel %vm381, nan, %v391
    %v393 = vand.u32 2147483647, %v157
    %vm394 = vcmp.le.f32.partialorder %v393, 0.7853982
    %vm395 = vcmp.lt.s32.totalorder %v157, 0
    %v396 = vand.u32 %v157, 2139095040
    %v397 = vshrl.u32 %v396, 23
    %v398 = vsub.s32 %v397, 127
    %v399 = vand.u32 2147483647, %v157
    %v400 = vand.u32 %v399, 8388607
    %v401 = vor.u32 %v400, 8388608
    %v402 = vsub.s32 0, %v401
    %v403 = vadd.s32 %v398, 1
    %vm404 = vcmp.gt.s32.totalorder %v403, 0
    %v405 = vsel %vm404, %v403, 0
    %v406 = vshrl.u32 %v405, 5
    %v407 = vand.u32 %v405, 31
    %v408 = vsub.s32 32, %v407
    %v409 = vshrl.u32 683565275, %v408
    %v410 = vshll.u32 683565275, %v407
    %v411 = vshrl.u32 2475754826, %v408
    %v412 = vor.u32 %v410, %v411
    %v413 = vshll.u32 2475754826, %v407
    %v414 = vshrl.u32 2131351028, %v408
    %v415 = vor.u32 %v413, %v414
    %v416 = vshll.u32 2131351028, %v407
    %v417 = vshrl.u32 2102212464, %v408
    %v418 = vor.u32 %v416, %v417
    %v419 = vshll.u32 2102212464, %v407
    %v420 = vshrl.u32 920167782, %v408
    %v421 = vor.u32 %v419, %v420
    %v422 = vshll.u32 920167782, %v407
    %v423 = vshrl.u32 1326507024, %v408
    %v424 = vor.u32 %v422, %v423
    %vm425 = vcmp.lt.s32.totalorder %v406, 1
    %vm426 = vcmp.lt.s32.totalorder %v406, 2
    %vm427 = vcmp.lt.s32.totalorder %v406, 3
    %vm428 = vcmp.lt.s32.totalorder %v406, 4
    %v429 = vsel %vm425, %v409, %v412
    %v430 = vsel %vm428, %v418, 2102212464
    %v431 = vsel %vm427, %v415, %v430
    %v432 = vsel %vm426, %v429, %v431
    %v433 = vsel %vm425, %v412, %v415
    %v434 = vsel %vm428, %v421, 920167782
    %v435 = vsel %vm427, %v418, %v434
    %v436 = vsel %vm426, %v433, %v435
    %v437 = vsel %vm425, %v415, %v418
    %v438 = vsel %vm428, %v424, 1326507024
    %v439 = vsel %vm427, %v421, %v438
    %v440 = vsel %vm426, %v437, %v439
    %v441 = vshll.u32 %v401, 8
    %v442 = vmul.u32.u64.compose %v441, %v440
    %v443 = vextract.low.u32 %v442
    %v444 = vextract.high.u32 %v442
    %v445 = vmul.u32.u64.compose %v441, %v436
    %v446 = vextract.low.u32 %v445
    %v447 = vextract.high.u32 %v445
    %v448 = vmul.u32 %v441, %v432
    %v449 = vadd.s32 %v444, %v446
    %vm450 = vc.u32 %v444, %v446
    %v451 = vadd.s32 %v447, 1
    %v452 = vsel %vm450, %v451, %v447
    %v453 = vadd.s32 %v448, %v452
    %v454 = vadd.s32 %v453, 536870912
    %v455 = vshrl.u32 %v454, 30
    %v456 = vshll.u32 %v455, 30
    %v457 = vsub.s32 %v453, %v456
    %vm458 = vcmp.lt.s32.totalorder %v457, 0
    %v459 = vsub.s32 0, %v457
    %v460 = vsel %vm458, %v459, %v457
    %v461 = vclz %v460
    %v462 = vsub.s32 %v461, 2
    %vm463 = vcmp.gt.s32.totalorder 0, %v462
    %v464 = vsel %vm463, 0, %v462
    %v465 = vsub.s32 32, %v464
    %v466 = vshll.u32 %v457, %v464
    %v467 = vshrl.u32 %v449, %v465
    %v468 = vor.u32 %v466, %v467
    %v469 = vsub.s32 4294967266, %v464
    %v470 = vadd.s32 %v469, 127
    %v471 = vshll.u32 %v470, 23
    %v472 = vor.u32 4788187, %v471
    %v473 = vand.u32 2147483647, %v472
    %v475 = vcvt.s32.f32 %v468
    %v476 = vmul.f32 %v475, %v473
    %v477 = vxor.u32 %v476, 2147483648
    %v478 = vsel %vm395, %v477, %v476
    %v479 = vsub.s32 4, %v455
    %v480 = vsel %vm395, %v479, %v455
    %v481 = vsel %vm394, %v157, %v478
    %v482 = vsel %vm394, 0, %v480
    %v483 = vcosq.f32.pop %v481
    %v484 = vsinq.f32.pop %v481
    %vm485 = vweird.f32 %v157
    %v486 = vadd.s32 %v482, 3
    %v487 = vand.u32 %v486, 3
    %vm488 = vcmp.lt.s32.totalorder %v487, 2
    %vm489 = vcmp.eq.s32.totalorder %v487, 0
    %v490 = vxor.u32 %v484, 2147483648
    %v491 = vsel %vm489, %v483, %v490
    %vm492 = vcmp.eq.s32.totalorder %v487, 2
    %v493 = vxor.u32 %v483, 2147483648
    %v494 = vsel %vm492, %v493, %v484
    %v495 = vsel %vm488, %v491, %v494
    %v496 = vsel %vm485, nan, %v495
    %v497 = vand.u32 2147483647, %v162
    %vm498 = vcmp.le.f32.partialorder %v497, 0.7853982
    %vm499 = vcmp.lt.s32.totalorder %v162, 0
    %v500 = vand.u32 %v162, 2139095040
    %v501 = vshrl.u32 %v500, 23
    %v502 = vsub.s32 %v501, 127
    %v503 = vand.u32 2147483647, %v162
    %v504 = vand.u32 %v503, 8388607
    %v505 = vor.u32 %v504, 8388608
    %v506 = vsub.s32 0, %v505
    %v507 = vadd.s32 %v502, 1
    %vm508 = vcmp.gt.s32.totalorder %v507, 0
    %v509 = vsel %vm508, %v507, 0
    %v510 = vshrl.u32 %v509, 5
    %v511 = vand.u32 %v509, 31
    %v512 = vsub.s32 32, %v511
    %v513 = vshrl.u32 683565275, %v512
    %v514 = vshll.u32 683565275, %v511
    %v515 = vshrl.u32 2475754826, %v512
    %v516 = vor.u32 %v514, %v515
    %v517 = vshll.u32 2475754826, %v511
    %v518 = vshrl.u32 2131351028, %v512
    %v519 = vor.u32 %v517, %v518
    %v520 = vshll.u32 2131351028, %v511
    %v521 = vshrl.u32 2102212464, %v512
    %v522 = vor.u32 %v520, %v521
    %v523 = vshll.u32 2102212464, %v511
    %v524 = vshrl.u32 920167782, %v512
    %v525 = vor.u32 %v523, %v524
    %v526 = vshll.u32 920167782, %v511
    %v527 = vshrl.u32 1326507024, %v512
    %v528 = vor.u32 %v526, %v527
    %vm529 = vcmp.lt.s32.totalorder %v510, 1
    %vm530 = vcmp.lt.s32.totalorder %v510, 2
    %vm531 = vcmp.lt.s32.totalorder %v510, 3
    %vm532 = vcmp.lt.s32.totalorder %v510, 4
    %v533 = vsel %vm529, %v513, %v516
    %v534 = vsel %vm532, %v522, 2102212464
    %v535 = vsel %vm531, %v519, %v534
    %v536 = vsel %vm530, %v533, %v535
    %v537 = vsel %vm529, %v516, %v519
    %v538 = vsel %vm532, %v525, 920167782
    %v539 = vsel %vm531, %v522, %v538
    %v540 = vsel %vm530, %v537, %v539
    %v541 = vsel %vm529, %v519, %v522
    %v542 = vsel %vm532, %v528, 1326507024
    %v543 = vsel %vm531, %v525, %v542
    %v544 = vsel %vm530, %v541, %v543
    %v545 = vshll.u32 %v505, 8
    %v546 = vmul.u32.u64.compose %v545, %v544
    %v547 = vextract.low.u32 %v546
    %v548 = vextract.high.u32 %v546
    %v549 = vmul.u32.u64.compose %v545, %v540
    %v550 = vextract.low.u32 %v549
    %v551 = vextract.high.u32 %v549
    %v552 = vmul.u32 %v545, %v536
    %v553 = vadd.s32 %v548, %v550
    %vm554 = vc.u32 %v548, %v550
    %v555 = vadd.s32 %v551, 1
    %v556 = vsel %vm554, %v555, %v551
    %v557 = vadd.s32 %v552, %v556
    %v558 = vadd.s32 %v557, 536870912
    %v559 = vshrl.u32 %v558, 30
    %v560 = vshll.u32 %v559, 30
    %v561 = vsub.s32 %v557, %v560
    %vm562 = vcmp.lt.s32.totalorder %v561, 0
    %v563 = vsub.s32 0, %v561
    %v564 = vsel %vm562, %v563, %v561
    %v565 = vclz %v564
    %v566 = vsub.s32 %v565, 2
    %vm567 = vcmp.gt.s32.totalorder 0, %v566
    %v568 = vsel %vm567, 0, %v566
    %v569 = vsub.s32 32, %v568
    %v570 = vshll.u32 %v561, %v568
    %v571 = vshrl.u32 %v553, %v569
    %v572 = vor.u32 %v570, %v571
    %v573 = vsub.s32 4294967266, %v568
    %v574 = vadd.s32 %v573, 127
    %v575 = vshll.u32 %v574, 23
    %v576 = vor.u32 4788187, %v575
    %v577 = vand.u32 2147483647, %v576
    %v579 = vcvt.s32.f32 %v572
    %v580 = vmul.f32 %v579, %v577
    %v581 = vxor.u32 %v580, 2147483648
    %v582 = vsel %vm499, %v581, %v580
    %v583 = vsub.s32 4, %v559
    %v584 = vsel %vm499, %v583, %v559
    %v585 = vsel %vm498, %v162, %v582
    %v586 = vsel %vm498, 0, %v584
    %v587 = vcosq.f32.pop %v585
    %v588 = vsinq.f32.pop %v585
    %vm589 = vweird.f32 %v162
    %v590 = vadd.s32 %v586, 3
    %v591 = vand.u32 %v590, 3
    %vm592 = vcmp.lt.s32.totalorder %v591, 2
    %vm593 = vcmp.eq.s32.totalorder %v591, 0
    %v594 = vxor.u32 %v588, 2147483648
    %v595 = vsel %vm593, %v587, %v594
    %vm596 = vcmp.eq.s32.totalorder %v591, 2
    %v597 = vxor.u32 %v587, 2147483648
    %v598 = vsel %vm596, %v597, %v588
    %v599 = vsel %vm592, %v595, %v598
    %v600 = vsel %vm589, nan, %v599
    %v601 = vand.u32 2147483647, %v167
    %vm602 = vcmp.le.f32.partialorder %v601, 0.7853982
    %vm603 = vcmp.lt.s32.totalorder %v167, 0
    %v604 = vand.u32 %v167, 2139095040
    %v605 = vshrl.u32 %v604, 23
    %v606 = vsub.s32 %v605, 127
    %v607 = vand.u32 2147483647, %v167
    %v608 = vand.u32 %v607, 8388607
    %v609 = vor.u32 %v608, 8388608
    %v610 = vsub.s32 0, %v609
    %v611 = vadd.s32 %v606, 1
    %vm612 = vcmp.gt.s32.totalorder %v611, 0
    %v613 = vsel %vm612, %v611, 0
    %v614 = vshrl.u32 %v613, 5
    %v615 = vand.u32 %v613, 31
    %v616 = vsub.s32 32, %v615
    %v617 = vshrl.u32 683565275, %v616
    %v618 = vshll.u32 683565275, %v615
    %v619 = vshrl.u32 2475754826, %v616
    %v620 = vor.u32 %v618, %v619
    %v621 = vshll.u32 2475754826, %v615
    %v622 = vshrl.u32 2131351028, %v616
    %v623 = vor.u32 %v621, %v622
    %v624 = vshll.u32 2131351028, %v615
    %v625 = vshrl.u32 2102212464, %v616
    %v626 = vor.u32 %v624, %v625
    %v627 = vshll.u32 2102212464, %v615
    %v628 = vshrl.u32 920167782, %v616
    %v629 = vor.u32 %v627, %v628
    %v630 = vshll.u32 920167782, %v615
    %v631 = vshrl.u32 1326507024, %v616
    %v632 = vor.u32 %v630, %v631
    %vm633 = vcmp.lt.s32.totalorder %v614, 1
    %vm634 = vcmp.lt.s32.totalorder %v614, 2
    %vm635 = vcmp.lt.s32.totalorder %v614, 3
    %vm636 = vcmp.lt.s32.totalorder %v614, 4
    %v637 = vsel %vm633, %v617, %v620
    %v638 = vsel %vm636, %v626, 2102212464
    %v639 = vsel %vm635, %v623, %v638
    %v640 = vsel %vm634, %v637, %v639
    %v641 = vsel %vm633, %v620, %v623
    %v642 = vsel %vm636, %v629, 920167782
    %v643 = vsel %vm635, %v626, %v642
    %v644 = vsel %vm634, %v641, %v643
    %v645 = vsel %vm633, %v623, %v626
    %v646 = vsel %vm636, %v632, 1326507024
    %v647 = vsel %vm635, %v629, %v646
    %v648 = vsel %vm634, %v645, %v647
    %v649 = vshll.u32 %v609, 8
    %v650 = vmul.u32.u64.compose %v649, %v648
    %v651 = vextract.low.u32 %v650
    %v652 = vextract.high.u32 %v650
    %v653 = vmul.u32.u64.compose %v649, %v644
    %v654 = vextract.low.u32 %v653
    %v655 = vextract.high.u32 %v653
    %v656 = vmul.u32 %v649, %v640
    %v657 = vadd.s32 %v652, %v654
    %vm658 = vc.u32 %v652, %v654
    %v659 = vadd.s32 %v655, 1
    %v660 = vsel %vm658, %v659, %v655
    %v661 = vadd.s32 %v656, %v660
    %v662 = vadd.s32 %v661, 536870912
    %v663 = vshrl.u32 %v662, 30
    %v664 = vshll.u32 %v663, 30
    %v665 = vsub.s32 %v661, %v664
    %vm666 = vcmp.lt.s32.totalorder %v665, 0
    %v667 = vsub.s32 0, %v665
    %v668 = vsel %vm666, %v667, %v665
    %v669 = vclz %v668
    %v670 = vsub.s32 %v669, 2
    %vm671 = vcmp.gt.s32.totalorder 0, %v670
    %v672 = vsel %vm671, 0, %v670
    %v673 = vsub.s32 32, %v672
    %v674 = vshll.u32 %v665, %v672
    %v675 = vshrl.u32 %v657, %v673
    %v676 = vor.u32 %v674, %v675
    %v677 = vsub.s32 4294967266, %v672
    %v678 = vadd.s32 %v677, 127
    %v679 = vshll.u32 %v678, 23
    %v680 = vor.u32 4788187, %v679
    %v681 = vand.u32 2147483647, %v680
    %v683 = vcvt.s32.f32 %v676
    %v684 = vmul.f32 %v683, %v681
    %v685 = vxor.u32 %v684, 2147483648
    %v686 = vsel %vm603, %v685, %v684
    %v687 = vsub.s32 4, %v663
    %v688 = vsel %vm603, %v687, %v663
    %v689 = vsel %vm602, %v167, %v686
    %v690 = vsel %vm602, 0, %v688
    %v691 = vcosq.f32.pop %v689
    %v692 = vsinq.f32.pop %v689
    %vm693 = vweird.f32 %v167
    %v694 = vadd.s32 %v690, 3
    %v695 = vand.u32 %v694, 3
    %vm696 = vcmp.lt.s32.totalorder %v695, 2
    %vm697 = vcmp.eq.s32.totalorder %v695, 0
    %v698 = vxor.u32 %v692, 2147483648
    %v699 = vsel %vm697, %v691, %v698
    %vm700 = vcmp.eq.s32.totalorder %v695, 2
    %v701 = vxor.u32 %v691, 2147483648
    %v702 = vsel %vm700, %v701, %v692
    %v703 = vsel %vm696, %v699, %v702
    %v704 = vsel %vm693, nan, %v703
    %v705 = vand.u32 2147483647, %v172
    %vm706 = vcmp.le.f32.partialorder %v705, 0.7853982
    %vm707 = vcmp.lt.s32.totalorder %v172, 0
    %v708 = vand.u32 %v172, 2139095040
    %v709 = vshrl.u32 %v708, 23
    %v710 = vsub.s32 %v709, 127
    %v711 = vand.u32 2147483647, %v172
    %v712 = vand.u32 %v711, 8388607
    %v713 = vor.u32 %v712, 8388608
    %v714 = vsub.s32 0, %v713
    %v715 = vadd.s32 %v710, 1
    %vm716 = vcmp.gt.s32.totalorder %v715, 0
    %v717 = vsel %vm716, %v715, 0
    %v718 = vshrl.u32 %v717, 5
    %v719 = vand.u32 %v717, 31
    %v720 = vsub.s32 32, %v719
    %v721 = vshrl.u32 683565275, %v720
    %v722 = vshll.u32 683565275, %v719
    %v723 = vshrl.u32 2475754826, %v720
    %v724 = vor.u32 %v722, %v723
    %v725 = vshll.u32 2475754826, %v719
    %v726 = vshrl.u32 2131351028, %v720
    %v727 = vor.u32 %v725, %v726
    %v728 = vshll.u32 2131351028, %v719
    %v729 = vshrl.u32 2102212464, %v720
    %v730 = vor.u32 %v728, %v729
    %v731 = vshll.u32 2102212464, %v719
    %v732 = vshrl.u32 920167782, %v720
    %v733 = vor.u32 %v731, %v732
    %v734 = vshll.u32 920167782, %v719
    %v735 = vshrl.u32 1326507024, %v720
    %v736 = vor.u32 %v734, %v735
    %vm737 = vcmp.lt.s32.totalorder %v718, 1
    %vm738 = vcmp.lt.s32.totalorder %v718, 2
    %vm739 = vcmp.lt.s32.totalorder %v718, 3
    %vm740 = vcmp.lt.s32.totalorder %v718, 4
    %v741 = vsel %vm737, %v721, %v724
    %v742 = vsel %vm740, %v730, 2102212464
    %v743 = vsel %vm739, %v727, %v742
    %v744 = vsel %vm738, %v741, %v743
    %v745 = vsel %vm737, %v724, %v727
    %v746 = vsel %vm740, %v733, 920167782
    %v747 = vsel %vm739, %v730, %v746
    %v748 = vsel %vm738, %v745, %v747
    %v749 = vsel %vm737, %v727, %v730
    %v750 = vsel %vm740, %v736, 1326507024
    %v751 = vsel %vm739, %v733, %v750
    %v752 = vsel %vm738, %v749, %v751
    %v753 = vshll.u32 %v713, 8
    %v754 = vmul.u32.u64.compose %v753, %v752
    %v755 = vextract.low.u32 %v754
    %v756 = vextract.high.u32 %v754
    %v757 = vmul.u32.u64.compose %v753, %v748
    %v758 = vextract.low.u32 %v757
    %v759 = vextract.high.u32 %v757
    %v760 = vmul.u32 %v753, %v744
    %v761 = vadd.s32 %v756, %v758
    %vm762 = vc.u32 %v756, %v758
    %v763 = vadd.s32 %v759, 1
    %v764 = vsel %vm762, %v763, %v759
    %v765 = vadd.s32 %v760, %v764
    %v766 = vadd.s32 %v765, 536870912
    %v767 = vshrl.u32 %v766, 30
    %v768 = vshll.u32 %v767, 30
    %v769 = vsub.s32 %v765, %v768
    %vm770 = vcmp.lt.s32.totalorder %v769, 0
    %v771 = vsub.s32 0, %v769
    %v772 = vsel %vm770, %v771, %v769
    %v773 = vclz %v772
    %v774 = vsub.s32 %v773, 2
    %vm775 = vcmp.gt.s32.totalorder 0, %v774
    %v776 = vsel %vm775, 0, %v774
    %v777 = vsub.s32 32, %v776
    %v778 = vshll.u32 %v769, %v776
    %v779 = vshrl.u32 %v761, %v777
    %v780 = vor.u32 %v778, %v779
    %v781 = vsub.s32 4294967266, %v776
    %v782 = vadd.s32 %v781, 127
    %v783 = vshll.u32 %v782, 23
    %v784 = vor.u32 4788187, %v783
    %v785 = vand.u32 2147483647, %v784
    %v787 = vcvt.s32.f32 %v780
    %v788 = vmul.f32 %v787, %v785
    %v789 = vxor.u32 %v788, 2147483648
    %v790 = vsel %vm707, %v789, %v788
    %v791 = vsub.s32 4, %v767
    %v792 = vsel %vm707, %v791, %v767
    %v793 = vsel %vm706, %v172, %v790
    %v794 = vsel %vm706, 0, %v792
    %v795 = vcosq.f32.pop %v793
    %v796 = vsinq.f32.pop %v793
    %vm797 = vweird.f32 %v172
    %v798 = vadd.s32 %v794, 3
    %v799 = vand.u32 %v798, 3
    %vm800 = vcmp.lt.s32.totalorder %v799, 2
    %vm801 = vcmp.eq.s32.totalorder %v799, 0
    %v802 = vxor.u32 %v796, 2147483648
    %v803 = vsel %vm801, %v795, %v802
    %vm804 = vcmp.eq.s32.totalorder %v799, 2
    %v805 = vxor.u32 %v795, 2147483648
    %v806 = vsel %vm804, %v805, %v796
    %v807 = vsel %vm800, %v803, %v806
    %v808 = vsel %vm797, nan, %v807
    %v809 = vand.u32 2147483647, %v177
    %vm810 = vcmp.le.f32.partialorder %v809, 0.7853982
    %vm811 = vcmp.lt.s32.totalorder %v177, 0
    %v812 = vand.u32 %v177, 2139095040
    %v813 = vshrl.u32 %v812, 23
    %v814 = vsub.s32 %v813, 127
    %v815 = vand.u32 2147483647, %v177
    %v816 = vand.u32 %v815, 8388607
    %v817 = vor.u32 %v816, 8388608
    %v818 = vsub.s32 0, %v817
    %v819 = vadd.s32 %v814, 1
    %vm820 = vcmp.gt.s32.totalorder %v819, 0
    %v821 = vsel %vm820, %v819, 0
    %v822 = vshrl.u32 %v821, 5
    %v823 = vand.u32 %v821, 31
    %v824 = vsub.s32 32, %v823
    %v825 = vshrl.u32 683565275, %v824
    %v826 = vshll.u32 683565275, %v823
    %v827 = vshrl.u32 2475754826, %v824
    %v828 = vor.u32 %v826, %v827
    %v829 = vshll.u32 2475754826, %v823
    %v830 = vshrl.u32 2131351028, %v824
    %v831 = vor.u32 %v829, %v830
    %v832 = vshll.u32 2131351028, %v823
    %v833 = vshrl.u32 2102212464, %v824
    %v834 = vor.u32 %v832, %v833
    %v835 = vshll.u32 2102212464, %v823
    %v836 = vshrl.u32 920167782, %v824
    %v837 = vor.u32 %v835, %v836
    %v838 = vshll.u32 920167782, %v823
    %v839 = vshrl.u32 1326507024, %v824
    %v840 = vor.u32 %v838, %v839
    %vm841 = vcmp.lt.s32.totalorder %v822, 1
    %vm842 = vcmp.lt.s32.totalorder %v822, 2
    %vm843 = vcmp.lt.s32.totalorder %v822, 3
    %vm844 = vcmp.lt.s32.totalorder %v822, 4
    %v845 = vsel %vm841, %v825, %v828
    %v846 = vsel %vm844, %v834, 2102212464
    %v847 = vsel %vm843, %v831, %v846
    %v848 = vsel %vm842, %v845, %v847
    %v849 = vsel %vm841, %v828, %v831
    %v850 = vsel %vm844, %v837, 920167782
    %v851 = vsel %vm843, %v834, %v850
    %v852 = vsel %vm842, %v849, %v851
    %v853 = vsel %vm841, %v831, %v834
    %v854 = vsel %vm844, %v840, 1326507024
    %v855 = vsel %vm843, %v837, %v854
    %v856 = vsel %vm842, %v853, %v855
    %v857 = vshll.u32 %v817, 8
    %v858 = vmul.u32.u64.compose %v857, %v856
    %v859 = vextract.low.u32 %v858
    %v860 = vextract.high.u32 %v858
    %v861 = vmul.u32.u64.compose %v857, %v852
    %v862 = vextract.low.u32 %v861
    %v863 = vextract.high.u32 %v861
    %v864 = vmul.u32 %v857, %v848
    %v865 = vadd.s32 %v860, %v862
    %vm866 = vc.u32 %v860, %v862
    %v867 = vadd.s32 %v863, 1
    %v868 = vsel %vm866, %v867, %v863
    %v869 = vadd.s32 %v864, %v868
    %v870 = vadd.s32 %v869, 536870912
    %v871 = vshrl.u32 %v870, 30
    %v872 = vshll.u32 %v871, 30
    %v873 = vsub.s32 %v869, %v872
    %vm874 = vcmp.lt.s32.totalorder %v873, 0
    %v875 = vsub.s32 0, %v873
    %v876 = vsel %vm874, %v875, %v873
    %v877 = vclz %v876
    %v878 = vsub.s32 %v877, 2
    %vm879 = vcmp.gt.s32.totalorder 0, %v878
    %v880 = vsel %vm879, 0, %v878
    %v881 = vsub.s32 32, %v880
    %v882 = vshll.u32 %v873, %v880
    %v883 = vshrl.u32 %v865, %v881
    %v884 = vor.u32 %v882, %v883
    %v885 = vsub.s32 4294967266, %v880
    %v886 = vadd.s32 %v885, 127
    %v887 = vshll.u32 %v886, 23
    %v888 = vor.u32 4788187, %v887
    %v889 = vand.u32 2147483647, %v888
    %v891 = vcvt.s32.f32 %v884
    %v892 = vmul.f32 %v891, %v889
    %v893 = vxor.u32 %v892, 2147483648
    %v894 = vsel %vm811, %v893, %v892
    %v895 = vsub.s32 4, %v871
    %v896 = vsel %vm811, %v895, %v871
    %v897 = vsel %vm810, %v177, %v894
    %v898 = vsel %vm810, 0, %v896
    %v899 = vcosq.f32.pop %v897
    %v900 = vsinq.f32.pop %v897
    %vm901 = vweird.f32 %v177
    %v902 = vadd.s32 %v898, 3
    %v903 = vand.u32 %v902, 3
    %vm904 = vcmp.lt.s32.totalorder %v903, 2
    %vm905 = vcmp.eq.s32.totalorder %v903, 0
    %v906 = vxor.u32 %v900, 2147483648
    %v907 = vsel %vm905, %v899, %v906
    %vm908 = vcmp.eq.s32.totalorder %v903, 2
    %v909 = vxor.u32 %v899, 2147483648
    %v910 = vsel %vm908, %v909, %v900
    %v911 = vsel %vm904, %v907, %v910
    %v912 = vsel %vm901, nan, %v911
    %v913 = vand.u32 2147483647, %v182
    %vm914 = vcmp.le.f32.partialorder %v913, 0.7853982
    %vm915 = vcmp.lt.s32.totalorder %v182, 0
    %v916 = vand.u32 %v182, 2139095040
    %v917 = vshrl.u32 %v916, 23
    %v918 = vsub.s32 %v917, 127
    %v919 = vand.u32 2147483647, %v182
    %v920 = vand.u32 %v919, 8388607
    %v921 = vor.u32 %v920, 8388608
    %v922 = vsub.s32 0, %v921
    %v923 = vadd.s32 %v918, 1
    %vm924 = vcmp.gt.s32.totalorder %v923, 0
    %v925 = vsel %vm924, %v923, 0
    %v926 = vshrl.u32 %v925, 5
    %v927 = vand.u32 %v925, 31
    %v928 = vsub.s32 32, %v927
    %v929 = vshrl.u32 683565275, %v928
    %v930 = vshll.u32 683565275, %v927
    %v931 = vshrl.u32 2475754826, %v928
    %v932 = vor.u32 %v930, %v931
    %v933 = vshll.u32 2475754826, %v927
    %v934 = vshrl.u32 2131351028, %v928
    %v935 = vor.u32 %v933, %v934
    %v936 = vshll.u32 2131351028, %v927
    %v937 = vshrl.u32 2102212464, %v928
    %v938 = vor.u32 %v936, %v937
    %v939 = vshll.u32 2102212464, %v927
    %v940 = vshrl.u32 920167782, %v928
    %v941 = vor.u32 %v939, %v940
    %v942 = vshll.u32 920167782, %v927
    %v943 = vshrl.u32 1326507024, %v928
    %v944 = vor.u32 %v942, %v943
    %vm945 = vcmp.lt.s32.totalorder %v926, 1
    %vm946 = vcmp.lt.s32.totalorder %v926, 2
    %vm947 = vcmp.lt.s32.totalorder %v926, 3
    %vm948 = vcmp.lt.s32.totalorder %v926, 4
    %v949 = vsel %vm945, %v929, %v932
    %v950 = vsel %vm948, %v938, 2102212464
    %v951 = vsel %vm947, %v935, %v950
    %v952 = vsel %vm946, %v949, %v951
    %v953 = vsel %vm945, %v932, %v935
    %v954 = vsel %vm948, %v941, 920167782
    %v955 = vsel %vm947, %v938, %v954
    %v956 = vsel %vm946, %v953, %v955
    %v957 = vsel %vm945, %v935, %v938
    %v958 = vsel %vm948, %v944, 1326507024
    %v959 = vsel %vm947, %v941, %v958
    %v960 = vsel %vm946, %v957, %v959
    %v961 = vshll.u32 %v921, 8
    %v962 = vmul.u32.u64.compose %v961, %v960
    %v963 = vextract.low.u32 %v962
    %v964 = vextract.high.u32 %v962
    %v965 = vmul.u32.u64.compose %v961, %v956
    %v966 = vextract.low.u32 %v965
    %v967 = vextract.high.u32 %v965
    %v968 = vmul.u32 %v961, %v952
    %v969 = vadd.s32 %v964, %v966
    %vm970 = vc.u32 %v964, %v966
    %v971 = vadd.s32 %v967, 1
    %v972 = vsel %vm970, %v971, %v967
    %v973 = vadd.s32 %v968, %v972
    %v974 = vadd.s32 %v973, 536870912
    %v975 = vshrl.u32 %v974, 30
    %v976 = vshll.u32 %v975, 30
    %v977 = vsub.s32 %v973, %v976
    %vm978 = vcmp.lt.s32.totalorder %v977, 0
    %v979 = vsub.s32 0, %v977
    %v980 = vsel %vm978, %v979, %v977
    %v981 = vclz %v980
    %v982 = vsub.s32 %v981, 2
    %vm983 = vcmp.gt.s32.totalorder 0, %v982
    %v984 = vsel %vm983, 0, %v982
    %v985 = vsub.s32 32, %v984
    %v986 = vshll.u32 %v977, %v984
    %v987 = vshrl.u32 %v969, %v985
    %v988 = vor.u32 %v986, %v987
    %v989 = vsub.s32 4294967266, %v984
    %v990 = vadd.s32 %v989, 127
    %v991 = vshll.u32 %v990, 23
    %v992 = vor.u32 4788187, %v991
    %v993 = vand.u32 2147483647, %v992
    %v995 = vcvt.s32.f32 %v988
    %v996 = vmul.f32 %v995, %v993
    %v997 = vxor.u32 %v996, 2147483648
    %v998 = vsel %vm915, %v997, %v996
    %v999 = vsub.s32 4, %v975
    %v1000 = vsel %vm915, %v999, %v975
    %v1001 = vsel %vm914, %v182, %v998
    %v1002 = vsel %vm914, 0, %v1000
    %v1003 = vcosq.f32.pop %v1001
    %v1004 = vsinq.f32.pop %v1001
    %vm1005 = vweird.f32 %v182
    %v1006 = vadd.s32 %v1002, 3
    %v1007 = vand.u32 %v1006, 3
    %vm1008 = vcmp.lt.s32.totalorder %v1007, 2
    %vm1009 = vcmp.eq.s32.totalorder %v1007, 0
    %v1010 = vxor.u32 %v1004, 2147483648
    %v1011 = vsel %vm1009, %v1003, %v1010
    %vm1012 = vcmp.eq.s32.totalorder %v1007, 2
    %v1013 = vxor.u32 %v1003, 2147483648
    %v1014 = vsel %vm1012, %v1013, %v1004
    %v1015 = vsel %vm1008, %v1011, %v1014
    %v1016 = vsel %vm1005, nan, %v1015
    %1017 = vst [vmem:[#allocation5] sm:$0xff] %v288
    %1018 = vst [vmem:[#allocation5 + $0x8] sm:$0xff] %v392
    %1019 = vst [vmem:[#allocation5 + $0x10] sm:$0xff] %v496
    %1020 = vst [vmem:[#allocation5 + $0x18] sm:$0xff] %v600
    %1021 = vst [vmem:[#allocation5 + $0x20] sm:$0xff] %v704
    %1022 = vst [vmem:[#allocation5 + $0x28] sm:$0xff] %v808
    %1023 = vst [vmem:[#allocation5 + $0x30] sm:$0xff] %v912
    %1024 = vst [vmem:[#allocation5 + $0x38] sm:$0xff] %v1016
    %v1025 = vld [vmem:[#allocation2] sm:$0xff]
    %v1026 = vld [vmem:[#allocation2 + $0x8] sm:$0xff]
    %v1027 = vld [vmem:[#allocation2 + $0x10] sm:$0xff]
    %v1028 = vld [vmem:[#allocation2 + $0x18] sm:$0xff]
    %v1029 = vld [vmem:[#allocation2 + $0x20] sm:$0xff]
    %v1030 = vld [vmem:[#allocation2 + $0x28] sm:$0xff]
    %v1031 = vld [vmem:[#allocation2 + $0x30] sm:$0xff]
    %v1032 = vld [vmem:[#allocation2 + $0x38] sm:$0xff]
    %v1033 = vld [vmem:[#allocation2 + $0x40] sm:$0xff]
    %v1034 = vld [vmem:[#allocation2 + $0x48] sm:$0xff]
    %v1035 = vld [vmem:[#allocation2 + $0x50] sm:$0xff]
    %v1036 = vld [vmem:[#allocation2 + $0x58] sm:$0xff]
    %v1037 = vld [vmem:[#allocation2 + $0x60] sm:$0xff]
    %v1038 = vld [vmem:[#allocation2 + $0x68] sm:$0xff]
    %v1039 = vld [vmem:[#allocation2 + $0x70] sm:$0xff]
    %v1040 = vld [vmem:[#allocation2 + $0x78] sm:$0xff]
    %s1041 = scalar_lea.vmem %s3, 1
    %v1042 = vld [vmem:[%s1041] sm:$0x1]
    %v1044 = vlaneseq
    %v1045 = vshrl.u32 %v1044, 7
    %v1046 = vsub.s32 0, %v1045
    %v1047 = vrot.slane %v1042, %v1046
    %1049 = vmatprep.subr.mxu0 0.0
    %1050 = vmatpush1.msra.mxu0 %v1040
    %1051 = vmatprep.subr.mxu0 0.0
    %1052 = vmatpush1.msra.mxu0 %v1039
    %1053 = vmatprep.subr.mxu0 0.0
    %1054 = vmatpush1.msra.mxu0 %v1038
    %1055 = vmatprep.subr.mxu0 0.0
    %1056 = vmatpush1.msra.mxu0 %v1037
    %1057 = vmatprep.subr.mxu0 0.0
    %1058 = vmatpush1.msra.mxu0 %v1036
    %1059 = vmatprep.subr.mxu0 0.0
    %1060 = vmatpush1.msra.mxu0 %v1035
    %1061 = vmatprep.subr.mxu0 0.0
    %1062 = vmatpush1.msra.mxu0 %v1034
    %1063 = vmatprep.subr.mxu0 0.0
    %1064 = vmatpush1.msra.mxu0 %v1033
    %1065 = vmatprep.subr.mxu0 0.0
    %1066 = vmatpush1.msra.mxu0 %v1032
    %1067 = vmatprep.subr.mxu0 0.0
    %1068 = vmatpush1.msra.mxu0 %v1031
    %1069 = vmatprep.subr.mxu0 0.0
    %1070 = vmatpush1.msra.mxu0 %v1030
    %1071 = vmatprep.subr.mxu0 0.0
    %1072 = vmatpush1.msra.mxu0 %v1029
    %1073 = vmatprep.subr.mxu0 0.0
    %1074 = vmatpush1.msra.mxu0 %v1028
    %1075 = vmatprep.subr.mxu0 0.0
    %1076 = vmatpush1.msra.mxu0 %v1027
    %1077 = vmatprep.subr.mxu0 0.0
    %1078 = vmatpush1.msra.mxu0 %v1026
    %1079 = vmatprep.subr.mxu0 0.0
    %1080 = vmatpush1.msra.mxu0 %v1025
    %1081 = vmatprep.subr.mxu0 0.0
    %1082 = vmatpush2.msra.mxu0 0.0
    %1083 = vmatprep.subr.mxu0 0.0
    %1084 = vmatpush2.msra.mxu0 0.0
    %1085 = vmatprep.subr.mxu0 0.0
    %1086 = vmatpush2.msra.mxu0 0.0
    %1087 = vmatprep.subr.mxu0 0.0
    %1088 = vmatpush2.msra.mxu0 0.0
    %1089 = vmatprep.subr.mxu0 0.0
    %1090 = vmatpush2.msra.mxu0 0.0
    %1091 = vmatprep.subr.mxu0 0.0
    %1092 = vmatpush2.msra.mxu0 0.0
    %1093 = vmatprep.subr.mxu0 0.0
    %1094 = vmatpush2.msra.mxu0 0.0
    %1095 = vmatprep.subr.mxu0 0.0
    %1096 = vmatpush2.msra.mxu0 0.0
    %1097 = vmatprep.subr.mxu0 0.0
    %1098 = vmatpush2.msra.mxu0 0.0
    %1099 = vmatprep.subr.mxu0 0.0
    %1100 = vmatpush2.msra.mxu0 0.0
    %1101 = vmatprep.subr.mxu0 0.0
    %1102 = vmatpush2.msra.mxu0 0.0
    %1103 = vmatprep.subr.mxu0 0.0
    %1104 = vmatpush2.msra.mxu0 0.0
    %1105 = vmatprep.subr.mxu0 0.0
    %1106 = vmatpush2.msra.mxu0 0.0
    %1107 = vmatprep.subr.mxu0 0.0
    %1108 = vmatpush2.msra.mxu0 0.0
    %1109 = vmatprep.subr.mxu0 0.0
    %1110 = vmatpush2.msra.mxu0 0.0
    %1111 = vmatprep.subr.mxu0 0.0
    %1112 = vmatpush2.msra.mxu0 0.0
    %1113 = vmatprep.mubr.f32.mxu0 0.0
    %1114 = vmatmul.mubr.f32.gmra.mxu0 %v288
    %v1115 = vpop.f32.mrf.mxu0
    %v1116 = vadd.f32 %v1047, %v1115
    %v1117 = vpop.f32.mrf.mxu0
    %1118 = vmatprep.mubr.f32.mxu0 0.0
    %1119 = vmatmul.mubr.f32.gmra.mxu0 %v392
    %v1120 = vpop.f32.mrf.mxu0
    %v1121 = vadd.f32 %v1047, %v1120
    %v1122 = vpop.f32.mrf.mxu0
    %1123 = vmatprep.mubr.f32.mxu0 0.0
    %1124 = vmatmul.mubr.f32.gmra.mxu0 %v496
    %v1125 = vpop.f32.mrf.mxu0
    %v1126 = vadd.f32 %v1047, %v1125
    %v1127 = vpop.f32.mrf.mxu0
    %1128 = vmatprep.mubr.f32.mxu0 0.0
    %1129 = vmatmul.mubr.f32.gmra.mxu0 %v600
    %v1130 = vpop.f32.mrf.mxu0
    %v1131 = vadd.f32 %v1047, %v1130
    %v1132 = vpop.f32.mrf.mxu0
    %1133 = vmatprep.mubr.f32.mxu0 0.0
    %1134 = vmatmul.mubr.f32.gmra.mxu0 %v704
    %v1135 = vpop.f32.mrf.mxu0
    %v1136 = vadd.f32 %v1047, %v1135
    %v1137 = vpop.f32.mrf.mxu0
    %1138 = vmatprep.mubr.f32.mxu0 0.0
    %1139 = vmatmul.mubr.f32.gmra.mxu0 %v808
    %v1140 = vpop.f32.mrf.mxu0
    %v1141 = vadd.f32 %v1047, %v1140
    %v1142 = vpop.f32.mrf.mxu0
    %1143 = vmatprep.mubr.f32.mxu0 0.0
    %1144 = vmatmul.mubr.f32.gmra.mxu0 %v912
    %v1145 = vpop.f32.mrf.mxu0
    %v1146 = vadd.f32 %v1047, %v1145
    %v1147 = vpop.f32.mrf.mxu0
    %1148 = vmatprep.mubr.f32.mxu0 0.0
    %1149 = vmatmul.mubr.f32.gmra.mxu0 %v1016
    %v1150 = vpop.f32.mrf.mxu0
    %v1151 = vadd.f32 %v1047, %v1150
    %v1152 = vpop.f32.mrf.mxu0
    %1153 = vdwg.mxu0
    %v1154 = vand.u32 2147483647, %v1116
    %vm1155 = vcmp.le.f32.partialorder %v1154, 0.7853982
    %vm1156 = vcmp.lt.s32.totalorder %v1116, 0
    %v1157 = vand.u32 %v1116, 2139095040
    %v1158 = vshrl.u32 %v1157, 23
    %v1159 = vsub.s32 %v1158, 127
    %v1160 = vand.u32 2147483647, %v1116
    %v1161 = vand.u32 %v1160, 8388607
    %v1162 = vor.u32 %v1161, 8388608
    %v1163 = vsub.s32 0, %v1162
    %v1164 = vadd.s32 %v1159, 1
    %vm1165 = vcmp.gt.s32.totalorder %v1164, 0
    %v1166 = vsel %vm1165, %v1164, 0
    %v1167 = vshrl.u32 %v1166, 5
    %v1168 = vand.u32 %v1166, 31
    %v1169 = vsub.s32 32, %v1168
    %v1170 = vshrl.u32 683565275, %v1169
    %v1171 = vshll.u32 683565275, %v1168
    %v1172 = vshrl.u32 2475754826, %v1169
    %v1173 = vor.u32 %v1171, %v1172
    %v1174 = vshll.u32 2475754826, %v1168
    %v1175 = vshrl.u32 2131351028, %v1169
    %v1176 = vor.u32 %v1174, %v1175
    %v1177 = vshll.u32 2131351028, %v1168
    %v1178 = vshrl.u32 2102212464, %v1169
    %v1179 = vor.u32 %v1177, %v1178
    %v1180 = vshll.u32 2102212464, %v1168
    %v1181 = vshrl.u32 920167782, %v1169
    %v1182 = vor.u32 %v1180, %v1181
    %v1183 = vshll.u32 920167782, %v1168
    %v1184 = vshrl.u32 1326507024, %v1169
    %v1185 = vor.u32 %v1183, %v1184
    %vm1186 = vcmp.lt.s32.totalorder %v1167, 1
    %vm1187 = vcmp.lt.s32.totalorder %v1167, 2
    %vm1188 = vcmp.lt.s32.totalorder %v1167, 3
    %vm1189 = vcmp.lt.s32.totalorder %v1167, 4
    %v1190 = vsel %vm1186, %v1170, %v1173
    %v1191 = vsel %vm1189, %v1179, 2102212464
    %v1192 = vsel %vm1188, %v1176, %v1191
    %v1193 = vsel %vm1187, %v1190, %v1192
    %v1194 = vsel %vm1186, %v1173, %v1176
    %v1195 = vsel %vm1189, %v1182, 920167782
    %v1196 = vsel %vm1188, %v1179, %v1195
    %v1197 = vsel %vm1187, %v1194, %v1196
    %v1198 = vsel %vm1186, %v1176, %v1179
    %v1199 = vsel %vm1189, %v1185, 1326507024
    %v1200 = vsel %vm1188, %v1182, %v1199
    %v1201 = vsel %vm1187, %v1198, %v1200
    %v1202 = vshll.u32 %v1162, 8
    %v1203 = vmul.u32.u64.compose %v1202, %v1201
    %v1204 = vextract.low.u32 %v1203
    %v1205 = vextract.high.u32 %v1203
    %v1206 = vmul.u32.u64.compose %v1202, %v1197
    %v1207 = vextract.low.u32 %v1206
    %v1208 = vextract.high.u32 %v1206
    %v1209 = vmul.u32 %v1202, %v1193
    %v1210 = vadd.s32 %v1205, %v1207
    %vm1211 = vc.u32 %v1205, %v1207
    %v1212 = vadd.s32 %v1208, 1
    %v1213 = vsel %vm1211, %v1212, %v1208
    %v1214 = vadd.s32 %v1209, %v1213
    %v1215 = vadd.s32 %v1214, 536870912
    %v1216 = vshrl.u32 %v1215, 30
    %v1217 = vshll.u32 %v1216, 30
    %v1218 = vsub.s32 %v1214, %v1217
    %vm1219 = vcmp.lt.s32.totalorder %v1218, 0
    %v1220 = vsub.s32 0, %v1218
    %v1221 = vsel %vm1219, %v1220, %v1218
    %v1222 = vclz %v1221
    %v1223 = vsub.s32 %v1222, 2
    %vm1224 = vcmp.gt.s32.totalorder 0, %v1223
    %v1225 = vsel %vm1224, 0, %v1223
    %v1226 = vsub.s32 32, %v1225
    %v1227 = vshll.u32 %v1218, %v1225
    %v1228 = vshrl.u32 %v1210, %v1226
    %v1229 = vor.u32 %v1227, %v1228
    %v1230 = vsub.s32 4294967266, %v1225
    %v1231 = vadd.s32 %v1230, 127
    %v1232 = vshll.u32 %v1231, 23
    %v1233 = vor.u32 4788187, %v1232
    %v1234 = vand.u32 2147483647, %v1233
    %v1236 = vcvt.s32.f32 %v1229
    %v1237 = vmul.f32 %v1236, %v1234
    %v1238 = vxor.u32 %v1237, 2147483648
    %v1239 = vsel %vm1156, %v1238, %v1237
    %v1240 = vsub.s32 4, %v1216
    %v1241 = vsel %vm1156, %v1240, %v1216
    %v1242 = vsel %vm1155, %v1116, %v1239
    %v1243 = vsel %vm1155, 0, %v1241
    %v1244 = vcosq.f32.pop %v1242
    %v1245 = vsinq.f32.pop %v1242
    %vm1246 = vweird.f32 %v1116
    %v1247 = vadd.s32 %v1243, 3
    %v1248 = vand.u32 %v1247, 3
    %vm1249 = vcmp.lt.s32.totalorder %v1248, 2
    %vm1250 = vcmp.eq.s32.totalorder %v1248, 0
    %v1251 = vxor.u32 %v1245, 2147483648
    %v1252 = vsel %vm1250, %v1244, %v1251
    %vm1253 = vcmp.eq.s32.totalorder %v1248, 2
    %v1254 = vxor.u32 %v1244, 2147483648
    %v1255 = vsel %vm1253, %v1254, %v1245
    %v1256 = vsel %vm1249, %v1252, %v1255
    %v1257 = vsel %vm1246, nan, %v1256
    %v1258 = vand.u32 2147483647, %v1121
    %vm1259 = vcmp.le.f32.partialorder %v1258, 0.7853982
    %vm1260 = vcmp.lt.s32.totalorder %v1121, 0
    %v1261 = vand.u32 %v1121, 2139095040
    %v1262 = vshrl.u32 %v1261, 23
    %v1263 = vsub.s32 %v1262, 127
    %v1264 = vand.u32 2147483647, %v1121
    %v1265 = vand.u32 %v1264, 8388607
    %v1266 = vor.u32 %v1265, 8388608
    %v1267 = vsub.s32 0, %v1266
    %v1268 = vadd.s32 %v1263, 1
    %vm1269 = vcmp.gt.s32.totalorder %v1268, 0
    %v1270 = vsel %vm1269, %v1268, 0
    %v1271 = vshrl.u32 %v1270, 5
    %v1272 = vand.u32 %v1270, 31
    %v1273 = vsub.s32 32, %v1272
    %v1274 = vshrl.u32 683565275, %v1273
    %v1275 = vshll.u32 683565275, %v1272
    %v1276 = vshrl.u32 2475754826, %v1273
    %v1277 = vor.u32 %v1275, %v1276
    %v1278 = vshll.u32 2475754826, %v1272
    %v1279 = vshrl.u32 2131351028, %v1273
    %v1280 = vor.u32 %v1278, %v1279
    %v1281 = vshll.u32 2131351028, %v1272
    %v1282 = vshrl.u32 2102212464, %v1273
    %v1283 = vor.u32 %v1281, %v1282
    %v1284 = vshll.u32 2102212464, %v1272
    %v1285 = vshrl.u32 920167782, %v1273
    %v1286 = vor.u32 %v1284, %v1285
    %v1287 = vshll.u32 920167782, %v1272
    %v1288 = vshrl.u32 1326507024, %v1273
    %v1289 = vor.u32 %v1287, %v1288
    %vm1290 = vcmp.lt.s32.totalorder %v1271, 1
    %vm1291 = vcmp.lt.s32.totalorder %v1271, 2
    %vm1292 = vcmp.lt.s32.totalorder %v1271, 3
    %vm1293 = vcmp.lt.s32.totalorder %v1271, 4
    %v1294 = vsel %vm1290, %v1274, %v1277
    %v1295 = vsel %vm1293, %v1283, 2102212464
    %v1296 = vsel %vm1292, %v1280, %v1295
    %v1297 = vsel %vm1291, %v1294, %v1296
    %v1298 = vsel %vm1290, %v1277, %v1280
    %v1299 = vsel %vm1293, %v1286, 920167782
    %v1300 = vsel %vm1292, %v1283, %v1299
    %v1301 = vsel %vm1291, %v1298, %v1300
    %v1302 = vsel %vm1290, %v1280, %v1283
    %v1303 = vsel %vm1293, %v1289, 1326507024
    %v1304 = vsel %vm1292, %v1286, %v1303
    %v1305 = vsel %vm1291, %v1302, %v1304
    %v1306 = vshll.u32 %v1266, 8
    %v1307 = vmul.u32.u64.compose %v1306, %v1305
    %v1308 = vextract.low.u32 %v1307
    %v1309 = vextract.high.u32 %v1307
    %v1310 = vmul.u32.u64.compose %v1306, %v1301
    %v1311 = vextract.low.u32 %v1310
    %v1312 = vextract.high.u32 %v1310
    %v1313 = vmul.u32 %v1306, %v1297
    %v1314 = vadd.s32 %v1309, %v1311
    %vm1315 = vc.u32 %v1309, %v1311
    %v1316 = vadd.s32 %v1312, 1
    %v1317 = vsel %vm1315, %v1316, %v1312
    %v1318 = vadd.s32 %v1313, %v1317
    %v1319 = vadd.s32 %v1318, 536870912
    %v1320 = vshrl.u32 %v1319, 30
    %v1321 = vshll.u32 %v1320, 30
    %v1322 = vsub.s32 %v1318, %v1321
    %vm1323 = vcmp.lt.s32.totalorder %v1322, 0
    %v1324 = vsub.s32 0, %v1322
    %v1325 = vsel %vm1323, %v1324, %v1322
    %v1326 = vclz %v1325
    %v1327 = vsub.s32 %v1326, 2
    %vm1328 = vcmp.gt.s32.totalorder 0, %v1327
    %v1329 = vsel %vm1328, 0, %v1327
    %v1330 = vsub.s32 32, %v1329
    %v1331 = vshll.u32 %v1322, %v1329
    %v1332 = vshrl.u32 %v1314, %v1330
    %v1333 = vor.u32 %v1331, %v1332
    %v1334 = vsub.s32 4294967266, %v1329
    %v1335 = vadd.s32 %v1334, 127
    %v1336 = vshll.u32 %v1335, 23
    %v1337 = vor.u32 4788187, %v1336
    %v1338 = vand.u32 2147483647, %v1337
    %v1340 = vcvt.s32.f32 %v1333
    %v1341 = vmul.f32 %v1340, %v1338
    %v1342 = vxor.u32 %v1341, 2147483648
    %v1343 = vsel %vm1260, %v1342, %v1341
    %v1344 = vsub.s32 4, %v1320
    %v1345 = vsel %vm1260, %v1344, %v1320
    %v1346 = vsel %vm1259, %v1121, %v1343
    %v1347 = vsel %vm1259, 0, %v1345
    %v1348 = vcosq.f32.pop %v1346
    %v1349 = vsinq.f32.pop %v1346
    %vm1350 = vweird.f32 %v1121
    %v1351 = vadd.s32 %v1347, 3
    %v1352 = vand.u32 %v1351, 3
    %vm1353 = vcmp.lt.s32.totalorder %v1352, 2
    %vm1354 = vcmp.eq.s32.totalorder %v1352, 0
    %v1355 = vxor.u32 %v1349, 2147483648
    %v1356 = vsel %vm1354, %v1348, %v1355
    %vm1357 = vcmp.eq.s32.totalorder %v1352, 2
    %v1358 = vxor.u32 %v1348, 2147483648
    %v1359 = vsel %vm1357, %v1358, %v1349
    %v1360 = vsel %vm1353, %v1356, %v1359
    %v1361 = vsel %vm1350, nan, %v1360
    %v1362 = vand.u32 2147483647, %v1126
    %vm1363 = vcmp.le.f32.partialorder %v1362, 0.7853982
    %vm1364 = vcmp.lt.s32.totalorder %v1126, 0
    %v1365 = vand.u32 %v1126, 2139095040
    %v1366 = vshrl.u32 %v1365, 23
    %v1367 = vsub.s32 %v1366, 127
    %v1368 = vand.u32 2147483647, %v1126
    %v1369 = vand.u32 %v1368, 8388607
    %v1370 = vor.u32 %v1369, 8388608
    %v1371 = vsub.s32 0, %v1370
    %v1372 = vadd.s32 %v1367, 1
    %vm1373 = vcmp.gt.s32.totalorder %v1372, 0
    %v1374 = vsel %vm1373, %v1372, 0
    %v1375 = vshrl.u32 %v1374, 5
    %v1376 = vand.u32 %v1374, 31
    %v1377 = vsub.s32 32, %v1376
    %v1378 = vshrl.u32 683565275, %v1377
    %v1379 = vshll.u32 683565275, %v1376
    %v1380 = vshrl.u32 2475754826, %v1377
    %v1381 = vor.u32 %v1379, %v1380
    %v1382 = vshll.u32 2475754826, %v1376
    %v1383 = vshrl.u32 2131351028, %v1377
    %v1384 = vor.u32 %v1382, %v1383
    %v1385 = vshll.u32 2131351028, %v1376
    %v1386 = vshrl.u32 2102212464, %v1377
    %v1387 = vor.u32 %v1385, %v1386
    %v1388 = vshll.u32 2102212464, %v1376
    %v1389 = vshrl.u32 920167782, %v1377
    %v1390 = vor.u32 %v1388, %v1389
    %v1391 = vshll.u32 920167782, %v1376
    %v1392 = vshrl.u32 1326507024, %v1377
    %v1393 = vor.u32 %v1391, %v1392
    %vm1394 = vcmp.lt.s32.totalorder %v1375, 1
    %vm1395 = vcmp.lt.s32.totalorder %v1375, 2
    %vm1396 = vcmp.lt.s32.totalorder %v1375, 3
    %vm1397 = vcmp.lt.s32.totalorder %v1375, 4
    %v1398 = vsel %vm1394, %v1378, %v1381
    %v1399 = vsel %vm1397, %v1387, 2102212464
    %v1400 = vsel %vm1396, %v1384, %v1399
    %v1401 = vsel %vm1395, %v1398, %v1400
    %v1402 = vsel %vm1394, %v1381, %v1384
    %v1403 = vsel %vm1397, %v1390, 920167782
    %v1404 = vsel %vm1396, %v1387, %v1403
    %v1405 = vsel %vm1395, %v1402, %v1404
    %v1406 = vsel %vm1394, %v1384, %v1387
    %v1407 = vsel %vm1397, %v1393, 1326507024
    %v1408 = vsel %vm1396, %v1390, %v1407
    %v1409 = vsel %vm1395, %v1406, %v1408
    %v1410 = vshll.u32 %v1370, 8
    %v1411 = vmul.u32.u64.compose %v1410, %v1409
    %v1412 = vextract.low.u32 %v1411
    %v1413 = vextract.high.u32 %v1411
    %v1414 = vmul.u32.u64.compose %v1410, %v1405
    %v1415 = vextract.low.u32 %v1414
    %v1416 = vextract.high.u32 %v1414
    %v1417 = vmul.u32 %v1410, %v1401
    %v1418 = vadd.s32 %v1413, %v1415
    %vm1419 = vc.u32 %v1413, %v1415
    %v1420 = vadd.s32 %v1416, 1
    %v1421 = vsel %vm1419, %v1420, %v1416
    %v1422 = vadd.s32 %v1417, %v1421
    %v1423 = vadd.s32 %v1422, 536870912
    %v1424 = vshrl.u32 %v1423, 30
    %v1425 = vshll.u32 %v1424, 30
    %v1426 = vsub.s32 %v1422, %v1425
    %vm1427 = vcmp.lt.s32.totalorder %v1426, 0
    %v1428 = vsub.s32 0, %v1426
    %v1429 = vsel %vm1427, %v1428, %v1426
    %v1430 = vclz %v1429
    %v1431 = vsub.s32 %v1430, 2
    %vm1432 = vcmp.gt.s32.totalorder 0, %v1431
    %v1433 = vsel %vm1432, 0, %v1431
    %v1434 = vsub.s32 32, %v1433
    %v1435 = vshll.u32 %v1426, %v1433
    %v1436 = vshrl.u32 %v1418, %v1434
    %v1437 = vor.u32 %v1435, %v1436
    %v1438 = vsub.s32 4294967266, %v1433
    %v1439 = vadd.s32 %v1438, 127
    %v1440 = vshll.u32 %v1439, 23
    %v1441 = vor.u32 4788187, %v1440
    %v1442 = vand.u32 2147483647, %v1441
    %v1444 = vcvt.s32.f32 %v1437
    %v1445 = vmul.f32 %v1444, %v1442
    %v1446 = vxor.u32 %v1445, 2147483648
    %v1447 = vsel %vm1364, %v1446, %v1445
    %v1448 = vsub.s32 4, %v1424
    %v1449 = vsel %vm1364, %v1448, %v1424
    %v1450 = vsel %vm1363, %v1126, %v1447
    %v1451 = vsel %vm1363, 0, %v1449
    %v1452 = vcosq.f32.pop %v1450
    %v1453 = vsinq.f32.pop %v1450
    %vm1454 = vweird.f32 %v1126
    %v1455 = vadd.s32 %v1451, 3
    %v1456 = vand.u32 %v1455, 3
    %vm1457 = vcmp.lt.s32.totalorder %v1456, 2
    %vm1458 = vcmp.eq.s32.totalorder %v1456, 0
    %v1459 = vxor.u32 %v1453, 2147483648
    %v1460 = vsel %vm1458, %v1452, %v1459
    %vm1461 = vcmp.eq.s32.totalorder %v1456, 2
    %v1462 = vxor.u32 %v1452, 2147483648
    %v1463 = vsel %vm1461, %v1462, %v1453
    %v1464 = vsel %vm1457, %v1460, %v1463
    %v1465 = vsel %vm1454, nan, %v1464
    %v1466 = vand.u32 2147483647, %v1131
    %vm1467 = vcmp.le.f32.partialorder %v1466, 0.7853982
    %vm1468 = vcmp.lt.s32.totalorder %v1131, 0
    %v1469 = vand.u32 %v1131, 2139095040
    %v1470 = vshrl.u32 %v1469, 23
    %v1471 = vsub.s32 %v1470, 127
    %v1472 = vand.u32 2147483647, %v1131
    %v1473 = vand.u32 %v1472, 8388607
    %v1474 = vor.u32 %v1473, 8388608
    %v1475 = vsub.s32 0, %v1474
    %v1476 = vadd.s32 %v1471, 1
    %vm1477 = vcmp.gt.s32.totalorder %v1476, 0
    %v1478 = vsel %vm1477, %v1476, 0
    %v1479 = vshrl.u32 %v1478, 5
    %v1480 = vand.u32 %v1478, 31
    %v1481 = vsub.s32 32, %v1480
    %v1482 = vshrl.u32 683565275, %v1481
    %v1483 = vshll.u32 683565275, %v1480
    %v1484 = vshrl.u32 2475754826, %v1481
    %v1485 = vor.u32 %v1483, %v1484
    %v1486 = vshll.u32 2475754826, %v1480
    %v1487 = vshrl.u32 2131351028, %v1481
    %v1488 = vor.u32 %v1486, %v1487
    %v1489 = vshll.u32 2131351028, %v1480
    %v1490 = vshrl.u32 2102212464, %v1481
    %v1491 = vor.u32 %v1489, %v1490
    %v1492 = vshll.u32 2102212464, %v1480
    %v1493 = vshrl.u32 920167782, %v1481
    %v1494 = vor.u32 %v1492, %v1493
    %v1495 = vshll.u32 920167782, %v1480
    %v1496 = vshrl.u32 1326507024, %v1481
    %v1497 = vor.u32 %v1495, %v1496
    %vm1498 = vcmp.lt.s32.totalorder %v1479, 1
    %vm1499 = vcmp.lt.s32.totalorder %v1479, 2
    %vm1500 = vcmp.lt.s32.totalorder %v1479, 3
    %vm1501 = vcmp.lt.s32.totalorder %v1479, 4
    %v1502 = vsel %vm1498, %v1482, %v1485
    %v1503 = vsel %vm1501, %v1491, 2102212464
    %v1504 = vsel %vm1500, %v1488, %v1503
    %v1505 = vsel %vm1499, %v1502, %v1504
    %v1506 = vsel %vm1498, %v1485, %v1488
    %v1507 = vsel %vm1501, %v1494, 920167782
    %v1508 = vsel %vm1500, %v1491, %v1507
    %v1509 = vsel %vm1499, %v1506, %v1508
    %v1510 = vsel %vm1498, %v1488, %v1491
    %v1511 = vsel %vm1501, %v1497, 1326507024
    %v1512 = vsel %vm1500, %v1494, %v1511
    %v1513 = vsel %vm1499, %v1510, %v1512
    %v1514 = vshll.u32 %v1474, 8
    %v1515 = vmul.u32.u64.compose %v1514, %v1513
    %v1516 = vextract.low.u32 %v1515
    %v1517 = vextract.high.u32 %v1515
    %v1518 = vmul.u32.u64.compose %v1514, %v1509
    %v1519 = vextract.low.u32 %v1518
    %v1520 = vextract.high.u32 %v1518
    %v1521 = vmul.u32 %v1514, %v1505
    %v1522 = vadd.s32 %v1517, %v1519
    %vm1523 = vc.u32 %v1517, %v1519
    %v1524 = vadd.s32 %v1520, 1
    %v1525 = vsel %vm1523, %v1524, %v1520
    %v1526 = vadd.s32 %v1521, %v1525
    %v1527 = vadd.s32 %v1526, 536870912
    %v1528 = vshrl.u32 %v1527, 30
    %v1529 = vshll.u32 %v1528, 30
    %v1530 = vsub.s32 %v1526, %v1529
    %vm1531 = vcmp.lt.s32.totalorder %v1530, 0
    %v1532 = vsub.s32 0, %v1530
    %v1533 = vsel %vm1531, %v1532, %v1530
    %v1534 = vclz %v1533
    %v1535 = vsub.s32 %v1534, 2
    %vm1536 = vcmp.gt.s32.totalorder 0, %v1535
    %v1537 = vsel %vm1536, 0, %v1535
    %v1538 = vsub.s32 32, %v1537
    %v1539 = vshll.u32 %v1530, %v1537
    %v1540 = vshrl.u32 %v1522, %v1538
    %v1541 = vor.u32 %v1539, %v1540
    %v1542 = vsub.s32 4294967266, %v1537
    %v1543 = vadd.s32 %v1542, 127
    %v1544 = vshll.u32 %v1543, 23
    %v1545 = vor.u32 4788187, %v1544
    %v1546 = vand.u32 2147483647, %v1545
    %v1548 = vcvt.s32.f32 %v1541
    %v1549 = vmul.f32 %v1548, %v1546
    %v1550 = vxor.u32 %v1549, 2147483648
    %v1551 = vsel %vm1468, %v1550, %v1549
    %v1552 = vsub.s32 4, %v1528
    %v1553 = vsel %vm1468, %v1552, %v1528
    %v1554 = vsel %vm1467, %v1131, %v1551
    %v1555 = vsel %vm1467, 0, %v1553
    %v1556 = vcosq.f32.pop %v1554
    %v1557 = vsinq.f32.pop %v1554
    %vm1558 = vweird.f32 %v1131
    %v1559 = vadd.s32 %v1555, 3
    %v1560 = vand.u32 %v1559, 3
    %vm1561 = vcmp.lt.s32.totalorder %v1560, 2
    %vm1562 = vcmp.eq.s32.totalorder %v1560, 0
    %v1563 = vxor.u32 %v1557, 2147483648
    %v1564 = vsel %vm1562, %v1556, %v1563
    %vm1565 = vcmp.eq.s32.totalorder %v1560, 2
    %v1566 = vxor.u32 %v1556, 2147483648
    %v1567 = vsel %vm1565, %v1566, %v1557
    %v1568 = vsel %vm1561, %v1564, %v1567
    %v1569 = vsel %vm1558, nan, %v1568
    %v1570 = vand.u32 2147483647, %v1136
    %vm1571 = vcmp.le.f32.partialorder %v1570, 0.7853982
    %vm1572 = vcmp.lt.s32.totalorder %v1136, 0
    %v1573 = vand.u32 %v1136, 2139095040
    %v1574 = vshrl.u32 %v1573, 23
    %v1575 = vsub.s32 %v1574, 127
    %v1576 = vand.u32 2147483647, %v1136
    %v1577 = vand.u32 %v1576, 8388607
    %v1578 = vor.u32 %v1577, 8388608
    %v1579 = vsub.s32 0, %v1578
    %v1580 = vadd.s32 %v1575, 1
    %vm1581 = vcmp.gt.s32.totalorder %v1580, 0
    %v1582 = vsel %vm1581, %v1580, 0
    %v1583 = vshrl.u32 %v1582, 5
    %v1584 = vand.u32 %v1582, 31
    %v1585 = vsub.s32 32, %v1584
    %v1586 = vshrl.u32 683565275, %v1585
    %v1587 = vshll.u32 683565275, %v1584
    %v1588 = vshrl.u32 2475754826, %v1585
    %v1589 = vor.u32 %v1587, %v1588
    %v1590 = vshll.u32 2475754826, %v1584
    %v1591 = vshrl.u32 2131351028, %v1585
    %v1592 = vor.u32 %v1590, %v1591
    %v1593 = vshll.u32 2131351028, %v1584
    %v1594 = vshrl.u32 2102212464, %v1585
    %v1595 = vor.u32 %v1593, %v1594
    %v1596 = vshll.u32 2102212464, %v1584
    %v1597 = vshrl.u32 920167782, %v1585
    %v1598 = vor.u32 %v1596, %v1597
    %v1599 = vshll.u32 920167782, %v1584
    %v1600 = vshrl.u32 1326507024, %v1585
    %v1601 = vor.u32 %v1599, %v1600
    %vm1602 = vcmp.lt.s32.totalorder %v1583, 1
    %vm1603 = vcmp.lt.s32.totalorder %v1583, 2
    %vm1604 = vcmp.lt.s32.totalorder %v1583, 3
    %vm1605 = vcmp.lt.s32.totalorder %v1583, 4
    %v1606 = vsel %vm1602, %v1586, %v1589
    %v1607 = vsel %vm1605, %v1595, 2102212464
    %v1608 = vsel %vm1604, %v1592, %v1607
    %v1609 = vsel %vm1603, %v1606, %v1608
    %v1610 = vsel %vm1602, %v1589, %v1592
    %v1611 = vsel %vm1605, %v1598, 920167782
    %v1612 = vsel %vm1604, %v1595, %v1611
    %v1613 = vsel %vm1603, %v1610, %v1612
    %v1614 = vsel %vm1602, %v1592, %v1595
    %v1615 = vsel %vm1605, %v1601, 1326507024
    %v1616 = vsel %vm1604, %v1598, %v1615
    %v1617 = vsel %vm1603, %v1614, %v1616
    %v1618 = vshll.u32 %v1578, 8
    %v1619 = vmul.u32.u64.compose %v1618, %v1617
    %v1620 = vextract.low.u32 %v1619
    %v1621 = vextract.high.u32 %v1619
    %v1622 = vmul.u32.u64.compose %v1618, %v1613
    %v1623 = vextract.low.u32 %v1622
    %v1624 = vextract.high.u32 %v1622
    %v1625 = vmul.u32 %v1618, %v1609
    %v1626 = vadd.s32 %v1621, %v1623
    %vm1627 = vc.u32 %v1621, %v1623
    %v1628 = vadd.s32 %v1624, 1
    %v1629 = vsel %vm1627, %v1628, %v1624
    %v1630 = vadd.s32 %v1625, %v1629
    %v1631 = vadd.s32 %v1630, 536870912
    %v1632 = vshrl.u32 %v1631, 30
    %v1633 = vshll.u32 %v1632, 30
    %v1634 = vsub.s32 %v1630, %v1633
    %vm1635 = vcmp.lt.s32.totalorder %v1634, 0
    %v1636 = vsub.s32 0, %v1634
    %v1637 = vsel %vm1635, %v1636, %v1634
    %v1638 = vclz %v1637
    %v1639 = vsub.s32 %v1638, 2
    %vm1640 = vcmp.gt.s32.totalorder 0, %v1639
    %v1641 = vsel %vm1640, 0, %v1639
    %v1642 = vsub.s32 32, %v1641
    %v1643 = vshll.u32 %v1634, %v1641
    %v1644 = vshrl.u32 %v1626, %v1642
    %v1645 = vor.u32 %v1643, %v1644
    %v1646 = vsub.s32 4294967266, %v1641
    %v1647 = vadd.s32 %v1646, 127
    %v1648 = vshll.u32 %v1647, 23
    %v1649 = vor.u32 4788187, %v1648
    %v1650 = vand.u32 2147483647, %v1649
    %v1652 = vcvt.s32.f32 %v1645
    %v1653 = vmul.f32 %v1652, %v1650
    %v1654 = vxor.u32 %v1653, 2147483648
    %v1655 = vsel %vm1572, %v1654, %v1653
    %v1656 = vsub.s32 4, %v1632
    %v1657 = vsel %vm1572, %v1656, %v1632
    %v1658 = vsel %vm1571, %v1136, %v1655
    %v1659 = vsel %vm1571, 0, %v1657
    %v1660 = vcosq.f32.pop %v1658
    %v1661 = vsinq.f32.pop %v1658
    %vm1662 = vweird.f32 %v1136
    %v1663 = vadd.s32 %v1659, 3
    %v1664 = vand.u32 %v1663, 3
    %vm1665 = vcmp.lt.s32.totalorder %v1664, 2
    %vm1666 = vcmp.eq.s32.totalorder %v1664, 0
    %v1667 = vxor.u32 %v1661, 2147483648
    %v1668 = vsel %vm1666, %v1660, %v1667
    %vm1669 = vcmp.eq.s32.totalorder %v1664, 2
    %v1670 = vxor.u32 %v1660, 2147483648
    %v1671 = vsel %vm1669, %v1670, %v1661
    %v1672 = vsel %vm1665, %v1668, %v1671
    %v1673 = vsel %vm1662, nan, %v1672
    %v1674 = vand.u32 2147483647, %v1141
    %vm1675 = vcmp.le.f32.partialorder %v1674, 0.7853982
    %vm1676 = vcmp.lt.s32.totalorder %v1141, 0
    %v1677 = vand.u32 %v1141, 2139095040
    %v1678 = vshrl.u32 %v1677, 23
    %v1679 = vsub.s32 %v1678, 127
    %v1680 = vand.u32 2147483647, %v1141
    %v1681 = vand.u32 %v1680, 8388607
    %v1682 = vor.u32 %v1681, 8388608
    %v1683 = vsub.s32 0, %v1682
    %v1684 = vadd.s32 %v1679, 1
    %vm1685 = vcmp.gt.s32.totalorder %v1684, 0
    %v1686 = vsel %vm1685, %v1684, 0
    %v1687 = vshrl.u32 %v1686, 5
    %v1688 = vand.u32 %v1686, 31
    %v1689 = vsub.s32 32, %v1688
    %v1690 = vshrl.u32 683565275, %v1689
    %v1691 = vshll.u32 683565275, %v1688
    %v1692 = vshrl.u32 2475754826, %v1689
    %v1693 = vor.u32 %v1691, %v1692
    %v1694 = vshll.u32 2475754826, %v1688
    %v1695 = vshrl.u32 2131351028, %v1689
    %v1696 = vor.u32 %v1694, %v1695
    %v1697 = vshll.u32 2131351028, %v1688
    %v1698 = vshrl.u32 2102212464, %v1689
    %v1699 = vor.u32 %v1697, %v1698
    %v1700 = vshll.u32 2102212464, %v1688
    %v1701 = vshrl.u32 920167782, %v1689
    %v1702 = vor.u32 %v1700, %v1701
    %v1703 = vshll.u32 920167782, %v1688
    %v1704 = vshrl.u32 1326507024, %v1689
    %v1705 = vor.u32 %v1703, %v1704
    %vm1706 = vcmp.lt.s32.totalorder %v1687, 1
    %vm1707 = vcmp.lt.s32.totalorder %v1687, 2
    %vm1708 = vcmp.lt.s32.totalorder %v1687, 3
    %vm1709 = vcmp.lt.s32.totalorder %v1687, 4
    %v1710 = vsel %vm1706, %v1690, %v1693
    %v1711 = vsel %vm1709, %v1699, 2102212464
    %v1712 = vsel %vm1708, %v1696, %v1711
    %v1713 = vsel %vm1707, %v1710, %v1712
    %v1714 = vsel %vm1706, %v1693, %v1696
    %v1715 = vsel %vm1709, %v1702, 920167782
    %v1716 = vsel %vm1708, %v1699, %v1715
    %v1717 = vsel %vm1707, %v1714, %v1716
    %v1718 = vsel %vm1706, %v1696, %v1699
    %v1719 = vsel %vm1709, %v1705, 1326507024
    %v1720 = vsel %vm1708, %v1702, %v1719
    %v1721 = vsel %vm1707, %v1718, %v1720
    %v1722 = vshll.u32 %v1682, 8
    %v1723 = vmul.u32.u64.compose %v1722, %v1721
    %v1724 = vextract.low.u32 %v1723
    %v1725 = vextract.high.u32 %v1723
    %v1726 = vmul.u32.u64.compose %v1722, %v1717
    %v1727 = vextract.low.u32 %v1726
    %v1728 = vextract.high.u32 %v1726
    %v1729 = vmul.u32 %v1722, %v1713
    %v1730 = vadd.s32 %v1725, %v1727
    %vm1731 = vc.u32 %v1725, %v1727
    %v1732 = vadd.s32 %v1728, 1
    %v1733 = vsel %vm1731, %v1732, %v1728
    %v1734 = vadd.s32 %v1729, %v1733
    %v1735 = vadd.s32 %v1734, 536870912
    %v1736 = vshrl.u32 %v1735, 30
    %v1737 = vshll.u32 %v1736, 30
    %v1738 = vsub.s32 %v1734, %v1737
    %vm1739 = vcmp.lt.s32.totalorder %v1738, 0
    %v1740 = vsub.s32 0, %v1738
    %v1741 = vsel %vm1739, %v1740, %v1738
    %v1742 = vclz %v1741
    %v1743 = vsub.s32 %v1742, 2
    %vm1744 = vcmp.gt.s32.totalorder 0, %v1743
    %v1745 = vsel %vm1744, 0, %v1743
    %v1746 = vsub.s32 32, %v1745
    %v1747 = vshll.u32 %v1738, %v1745
    %v1748 = vshrl.u32 %v1730, %v1746
    %v1749 = vor.u32 %v1747, %v1748
    %v1750 = vsub.s32 4294967266, %v1745
    %v1751 = vadd.s32 %v1750, 127
    %v1752 = vshll.u32 %v1751, 23
    %v1753 = vor.u32 4788187, %v1752
    %v1754 = vand.u32 2147483647, %v1753
    %v1756 = vcvt.s32.f32 %v1749
    %v1757 = vmul.f32 %v1756, %v1754
    %v1758 = vxor.u32 %v1757, 2147483648
    %v1759 = vsel %vm1676, %v1758, %v1757
    %v1760 = vsub.s32 4, %v1736
    %v1761 = vsel %vm1676, %v1760, %v1736
    %v1762 = vsel %vm1675, %v1141, %v1759
    %v1763 = vsel %vm1675, 0, %v1761
    %v1764 = vcosq.f32.pop %v1762
    %v1765 = vsinq.f32.pop %v1762
    %vm1766 = vweird.f32 %v1141
    %v1767 = vadd.s32 %v1763, 3
    %v1768 = vand.u32 %v1767, 3
    %vm1769 = vcmp.lt.s32.totalorder %v1768, 2
    %vm1770 = vcmp.eq.s32.totalorder %v1768, 0
    %v1771 = vxor.u32 %v1765, 2147483648
    %v1772 = vsel %vm1770, %v1764, %v1771
    %vm1773 = vcmp.eq.s32.totalorder %v1768, 2
    %v1774 = vxor.u32 %v1764, 2147483648
    %v1775 = vsel %vm1773, %v1774, %v1765
    %v1776 = vsel %vm1769, %v1772, %v1775
    %v1777 = vsel %vm1766, nan, %v1776
    %v1778 = vand.u32 2147483647, %v1146
    %vm1779 = vcmp.le.f32.partialorder %v1778, 0.7853982
    %vm1780 = vcmp.lt.s32.totalorder %v1146, 0
    %v1781 = vand.u32 %v1146, 2139095040
    %v1782 = vshrl.u32 %v1781, 23
    %v1783 = vsub.s32 %v1782, 127
    %v1784 = vand.u32 2147483647, %v1146
    %v1785 = vand.u32 %v1784, 8388607
    %v1786 = vor.u32 %v1785, 8388608
    %v1787 = vsub.s32 0, %v1786
    %v1788 = vadd.s32 %v1783, 1
    %vm1789 = vcmp.gt.s32.totalorder %v1788, 0
    %v1790 = vsel %vm1789, %v1788, 0
    %v1791 = vshrl.u32 %v1790, 5
    %v1792 = vand.u32 %v1790, 31
    %v1793 = vsub.s32 32, %v1792
    %v1794 = vshrl.u32 683565275, %v1793
    %v1795 = vshll.u32 683565275, %v1792
    %v1796 = vshrl.u32 2475754826, %v1793
    %v1797 = vor.u32 %v1795, %v1796
    %v1798 = vshll.u32 2475754826, %v1792
    %v1799 = vshrl.u32 2131351028, %v1793
    %v1800 = vor.u32 %v1798, %v1799
    %v1801 = vshll.u32 2131351028, %v1792
    %v1802 = vshrl.u32 2102212464, %v1793
    %v1803 = vor.u32 %v1801, %v1802
    %v1804 = vshll.u32 2102212464, %v1792
    %v1805 = vshrl.u32 920167782, %v1793
    %v1806 = vor.u32 %v1804, %v1805
    %v1807 = vshll.u32 920167782, %v1792
    %v1808 = vshrl.u32 1326507024, %v1793
    %v1809 = vor.u32 %v1807, %v1808
    %vm1810 = vcmp.lt.s32.totalorder %v1791, 1
    %vm1811 = vcmp.lt.s32.totalorder %v1791, 2
    %vm1812 = vcmp.lt.s32.totalorder %v1791, 3
    %vm1813 = vcmp.lt.s32.totalorder %v1791, 4
    %v1814 = vsel %vm1810, %v1794, %v1797
    %v1815 = vsel %vm1813, %v1803, 2102212464
    %v1816 = vsel %vm1812, %v1800, %v1815
    %v1817 = vsel %vm1811, %v1814, %v1816
    %v1818 = vsel %vm1810, %v1797, %v1800
    %v1819 = vsel %vm1813, %v1806, 920167782
    %v1820 = vsel %vm1812, %v1803, %v1819
    %v1821 = vsel %vm1811, %v1818, %v1820
    %v1822 = vsel %vm1810, %v1800, %v1803
    %v1823 = vsel %vm1813, %v1809, 1326507024
    %v1824 = vsel %vm1812, %v1806, %v1823
    %v1825 = vsel %vm1811, %v1822, %v1824
    %v1826 = vshll.u32 %v1786, 8
    %v1827 = vmul.u32.u64.compose %v1826, %v1825
    %v1828 = vextract.low.u32 %v1827
    %v1829 = vextract.high.u32 %v1827
    %v1830 = vmul.u32.u64.compose %v1826, %v1821
    %v1831 = vextract.low.u32 %v1830
    %v1832 = vextract.high.u32 %v1830
    %v1833 = vmul.u32 %v1826, %v1817
    %v1834 = vadd.s32 %v1829, %v1831
    %vm1835 = vc.u32 %v1829, %v1831
    %v1836 = vadd.s32 %v1832, 1
    %v1837 = vsel %vm1835, %v1836, %v1832
    %v1838 = vadd.s32 %v1833, %v1837
    %v1839 = vadd.s32 %v1838, 536870912
    %v1840 = vshrl.u32 %v1839, 30
    %v1841 = vshll.u32 %v1840, 30
    %v1842 = vsub.s32 %v1838, %v1841
    %vm1843 = vcmp.lt.s32.totalorder %v1842, 0
    %v1844 = vsub.s32 0, %v1842
    %v1845 = vsel %vm1843, %v1844, %v1842
    %v1846 = vclz %v1845
    %v1847 = vsub.s32 %v1846, 2
    %vm1848 = vcmp.gt.s32.totalorder 0, %v1847
    %v1849 = vsel %vm1848, 0, %v1847
    %v1850 = vsub.s32 32, %v1849
    %v1851 = vshll.u32 %v1842, %v1849
    %v1852 = vshrl.u32 %v1834, %v1850
    %v1853 = vor.u32 %v1851, %v1852
    %v1854 = vsub.s32 4294967266, %v1849
    %v1855 = vadd.s32 %v1854, 127
    %v1856 = vshll.u32 %v1855, 23
    %v1857 = vor.u32 4788187, %v1856
    %v1858 = vand.u32 2147483647, %v1857
    %v1860 = vcvt.s32.f32 %v1853
    %v1861 = vmul.f32 %v1860, %v1858
    %v1862 = vxor.u32 %v1861, 2147483648
    %v1863 = vsel %vm1780, %v1862, %v1861
    %v1864 = vsub.s32 4, %v1840
    %v1865 = vsel %vm1780, %v1864, %v1840
    %v1866 = vsel %vm1779, %v1146, %v1863
    %v1867 = vsel %vm1779, 0, %v1865
    %v1868 = vcosq.f32.pop %v1866
    %v1869 = vsinq.f32.pop %v1866
    %vm1870 = vweird.f32 %v1146
    %v1871 = vadd.s32 %v1867, 3
    %v1872 = vand.u32 %v1871, 3
    %vm1873 = vcmp.lt.s32.totalorder %v1872, 2
    %vm1874 = vcmp.eq.s32.totalorder %v1872, 0
    %v1875 = vxor.u32 %v1869, 2147483648
    %v1876 = vsel %vm1874, %v1868, %v1875
    %vm1877 = vcmp.eq.s32.totalorder %v1872, 2
    %v1878 = vxor.u32 %v1868, 2147483648
    %v1879 = vsel %vm1877, %v1878, %v1869
    %v1880 = vsel %vm1873, %v1876, %v1879
    %v1881 = vsel %vm1870, nan, %v1880
    %v1882 = vand.u32 2147483647, %v1151
    %vm1883 = vcmp.le.f32.partialorder %v1882, 0.7853982
    %vm1884 = vcmp.lt.s32.totalorder %v1151, 0
    %v1885 = vand.u32 %v1151, 2139095040
    %v1886 = vshrl.u32 %v1885, 23
    %v1887 = vsub.s32 %v1886, 127
    %v1888 = vand.u32 2147483647, %v1151
    %v1889 = vand.u32 %v1888, 8388607
    %v1890 = vor.u32 %v1889, 8388608
    %v1891 = vsub.s32 0, %v1890
    %v1892 = vadd.s32 %v1887, 1
    %vm1893 = vcmp.gt.s32.totalorder %v1892, 0
    %v1894 = vsel %vm1893, %v1892, 0
    %v1895 = vshrl.u32 %v1894, 5
    %v1896 = vand.u32 %v1894, 31
    %v1897 = vsub.s32 32, %v1896
    %v1898 = vshrl.u32 683565275, %v1897
    %v1899 = vshll.u32 683565275, %v1896
    %v1900 = vshrl.u32 2475754826, %v1897
    %v1901 = vor.u32 %v1899, %v1900
    %v1902 = vshll.u32 2475754826, %v1896
    %v1903 = vshrl.u32 2131351028, %v1897
    %v1904 = vor.u32 %v1902, %v1903
    %v1905 = vshll.u32 2131351028, %v1896
    %v1906 = vshrl.u32 2102212464, %v1897
    %v1907 = vor.u32 %v1905, %v1906
    %v1908 = vshll.u32 2102212464, %v1896
    %v1909 = vshrl.u32 920167782, %v1897
    %v1910 = vor.u32 %v1908, %v1909
    %v1911 = vshll.u32 920167782, %v1896
    %v1912 = vshrl.u32 1326507024, %v1897
    %v1913 = vor.u32 %v1911, %v1912
    %vm1914 = vcmp.lt.s32.totalorder %v1895, 1
    %vm1915 = vcmp.lt.s32.totalorder %v1895, 2
    %vm1916 = vcmp.lt.s32.totalorder %v1895, 3
    %vm1917 = vcmp.lt.s32.totalorder %v1895, 4
    %v1918 = vsel %vm1914, %v1898, %v1901
    %v1919 = vsel %vm1917, %v1907, 2102212464
    %v1920 = vsel %vm1916, %v1904, %v1919
    %v1921 = vsel %vm1915, %v1918, %v1920
    %v1922 = vsel %vm1914, %v1901, %v1904
    %v1923 = vsel %vm1917, %v1910, 920167782
    %v1924 = vsel %vm1916, %v1907, %v1923
    %v1925 = vsel %vm1915, %v1922, %v1924
    %v1926 = vsel %vm1914, %v1904, %v1907
    %v1927 = vsel %vm1917, %v1913, 1326507024
    %v1928 = vsel %vm1916, %v1910, %v1927
    %v1929 = vsel %vm1915, %v1926, %v1928
    %v1930 = vshll.u32 %v1890, 8
    %v1931 = vmul.u32.u64.compose %v1930, %v1929
    %v1932 = vextract.low.u32 %v1931
    %v1933 = vextract.high.u32 %v1931
    %v1934 = vmul.u32.u64.compose %v1930, %v1925
    %v1935 = vextract.low.u32 %v1934
    %v1936 = vextract.high.u32 %v1934
    %v1937 = vmul.u32 %v1930, %v1921
    %v1938 = vadd.s32 %v1933, %v1935
    %vm1939 = vc.u32 %v1933, %v1935
    %v1940 = vadd.s32 %v1936, 1
    %v1941 = vsel %vm1939, %v1940, %v1936
    %v1942 = vadd.s32 %v1937, %v1941
    %v1943 = vadd.s32 %v1942, 536870912
    %v1944 = vshrl.u32 %v1943, 30
    %v1945 = vshll.u32 %v1944, 30
    %v1946 = vsub.s32 %v1942, %v1945
    %vm1947 = vcmp.lt.s32.totalorder %v1946, 0
    %v1948 = vsub.s32 0, %v1946
    %v1949 = vsel %vm1947, %v1948, %v1946
    %v1950 = vclz %v1949
    %v1951 = vsub.s32 %v1950, 2
    %vm1952 = vcmp.gt.s32.totalorder 0, %v1951
    %v1953 = vsel %vm1952, 0, %v1951
    %v1954 = vsub.s32 32, %v1953
    %v1955 = vshll.u32 %v1946, %v1953
    %v1956 = vshrl.u32 %v1938, %v1954
    %v1957 = vor.u32 %v1955, %v1956
    %v1958 = vsub.s32 4294967266, %v1953
    %v1959 = vadd.s32 %v1958, 127
    %v1960 = vshll.u32 %v1959, 23
    %v1961 = vor.u32 4788187, %v1960
    %v1962 = vand.u32 2147483647, %v1961
    %v1964 = vcvt.s32.f32 %v1957
    %v1965 = vmul.f32 %v1964, %v1962
    %v1966 = vxor.u32 %v1965, 2147483648
    %v1967 = vsel %vm1884, %v1966, %v1965
    %v1968 = vsub.s32 4, %v1944
    %v1969 = vsel %vm1884, %v1968, %v1944
    %v1970 = vsel %vm1883, %v1151, %v1967
    %v1971 = vsel %vm1883, 0, %v1969
    %v1972 = vcosq.f32.pop %v1970
    %v1973 = vsinq.f32.pop %v1970
    %vm1974 = vweird.f32 %v1151
    %v1975 = vadd.s32 %v1971, 3
    %v1976 = vand.u32 %v1975, 3
    %vm1977 = vcmp.lt.s32.totalorder %v1976, 2
    %vm1978 = vcmp.eq.s32.totalorder %v1976, 0
    %v1979 = vxor.u32 %v1973, 2147483648
    %v1980 = vsel %vm1978, %v1972, %v1979
    %vm1981 = vcmp.eq.s32.totalorder %v1976, 2
    %v1982 = vxor.u32 %v1972, 2147483648
    %v1983 = vsel %vm1981, %v1982, %v1973
    %v1984 = vsel %vm1977, %v1980, %v1983
    %v1985 = vsel %vm1974, nan, %v1984
    %1986 = vst [vmem:[#allocation6] sm:$0xff] %v1257
    %1987 = vst [vmem:[#allocation6 + $0x8] sm:$0xff] %v1361
    %1988 = vst [vmem:[#allocation6 + $0x10] sm:$0xff] %v1465
    %1989 = vst [vmem:[#allocation6 + $0x18] sm:$0xff] %v1569
    %1990 = vst [vmem:[#allocation6 + $0x20] sm:$0xff] %v1673
    %1991 = vst [vmem:[#allocation6 + $0x28] sm:$0xff] %v1777
    %1992 = vst [vmem:[#allocation6 + $0x30] sm:$0xff] %v1881
    %1993 = vst [vmem:[#allocation6 + $0x38] sm:$0xff] %v1985
    %s1994 = scalar_lea.vmem [#allocation2], 128
    %v1995 = vld [vmem:[%s1994] sm:$0xff]
    %v1996 = vld [vmem:[%s1994 + $0x8] sm:$0xff]
    %v1997 = vld [vmem:[%s1994 + $0x10] sm:$0xff]
    %v1998 = vld [vmem:[%s1994 + $0x18] sm:$0xff]
    %v1999 = vld [vmem:[%s1994 + $0x20] sm:$0xff]
    %v2000 = vld [vmem:[%s1994 + $0x28] sm:$0xff]
    %v2001 = vld [vmem:[%s1994 + $0x30] sm:$0xff]
    %v2002 = vld [vmem:[%s1994 + $0x38] sm:$0xff]
    %v2003 = vld [vmem:[%s1994 + $0x40] sm:$0xff]
    %v2004 = vld [vmem:[%s1994 + $0x48] sm:$0xff]
    %v2005 = vld [vmem:[%s1994 + $0x50] sm:$0xff]
    %v2006 = vld [vmem:[%s1994 + $0x58] sm:$0xff]
    %v2007 = vld [vmem:[%s1994 + $0x60] sm:$0xff]
    %v2008 = vld [vmem:[%s1994 + $0x68] sm:$0xff]
    %v2009 = vld [vmem:[%s1994 + $0x70] sm:$0xff]
    %v2010 = vld [vmem:[%s1994 + $0x78] sm:$0xff]
    %s2011 = scalar_lea.vmem %s3, 2
    %v2012 = vld [vmem:[%s2011] sm:$0x1]
    %v2014 = vlaneseq
    %v2015 = vshrl.u32 %v2014, 7
    %v2016 = vsub.s32 0, %v2015
    %v2017 = vrot.slane %v2012, %v2016
    %2019 = vmatprep.subr.mxu0 0.0
    %2020 = vmatpush1.msra.mxu0 %v2010
    %2021 = vmatprep.subr.mxu0 0.0
    %2022 = vmatpush1.msra.mxu0 %v2009
    %2023 = vmatprep.subr.mxu0 0.0
    %2024 = vmatpush1.msra.mxu0 %v2008
    %2025 = vmatprep.subr.mxu0 0.0
    %2026 = vmatpush1.msra.mxu0 %v2007
    %2027 = vmatprep.subr.mxu0 0.0
    %2028 = vmatpush1.msra.mxu0 %v2006
    %2029 = vmatprep.subr.mxu0 0.0
    %2030 = vmatpush1.msra.mxu0 %v2005
    %2031 = vmatprep.subr.mxu0 0.0
    %2032 = vmatpush1.msra.mxu0 %v2004
    %2033 = vmatprep.subr.mxu0 0.0
    %2034 = vmatpush1.msra.mxu0 %v2003
    %2035 = vmatprep.subr.mxu0 0.0
    %2036 = vmatpush1.msra.mxu0 %v2002
    %2037 = vmatprep.subr.mxu0 0.0
    %2038 = vmatpush1.msra.mxu0 %v2001
    %2039 = vmatprep.subr.mxu0 0.0
    %2040 = vmatpush1.msra.mxu0 %v2000
    %2041 = vmatprep.subr.mxu0 0.0
    %2042 = vmatpush1.msra.mxu0 %v1999
    %2043 = vmatprep.subr.mxu0 0.0
    %2044 = vmatpush1.msra.mxu0 %v1998
    %2045 = vmatprep.subr.mxu0 0.0
    %2046 = vmatpush1.msra.mxu0 %v1997
    %2047 = vmatprep.subr.mxu0 0.0
    %2048 = vmatpush1.msra.mxu0 %v1996
    %2049 = vmatprep.subr.mxu0 0.0
    %2050 = vmatpush1.msra.mxu0 %v1995
    %2051 = vmatprep.subr.mxu0 0.0
    %2052 = vmatpush2.msra.mxu0 0.0
    %2053 = vmatprep.subr.mxu0 0.0
    %2054 = vmatpush2.msra.mxu0 0.0
    %2055 = vmatprep.subr.mxu0 0.0
    %2056 = vmatpush2.msra.mxu0 0.0
    %2057 = vmatprep.subr.mxu0 0.0
    %2058 = vmatpush2.msra.mxu0 0.0
    %2059 = vmatprep.subr.mxu0 0.0
    %2060 = vmatpush2.msra.mxu0 0.0
    %2061 = vmatprep.subr.mxu0 0.0
    %2062 = vmatpush2.msra.mxu0 0.0
    %2063 = vmatprep.subr.mxu0 0.0
    %2064 = vmatpush2.msra.mxu0 0.0
    %2065 = vmatprep.subr.mxu0 0.0
    %2066 = vmatpush2.msra.mxu0 0.0
    %2067 = vmatprep.subr.mxu0 0.0
    %2068 = vmatpush2.msra.mxu0 0.0
    %2069 = vmatprep.subr.mxu0 0.0
    %2070 = vmatpush2.msra.mxu0 0.0
    %2071 = vmatprep.subr.mxu0 0.0
    %2072 = vmatpush2.msra.mxu0 0.0
    %2073 = vmatprep.subr.mxu0 0.0
    %2074 = vmatpush2.msra.mxu0 0.0
    %2075 = vmatprep.subr.mxu0 0.0
    %2076 = vmatpush2.msra.mxu0 0.0
    %2077 = vmatprep.subr.mxu0 0.0
    %2078 = vmatpush2.msra.mxu0 0.0
    %2079 = vmatprep.subr.mxu0 0.0
    %2080 = vmatpush2.msra.mxu0 0.0
    %2081 = vmatprep.subr.mxu0 0.0
    %2082 = vmatpush2.msra.mxu0 0.0
    %2083 = vmatprep.mubr.f32.mxu0 0.0
    %2084 = vmatmul.mubr.f32.gmra.mxu0 %v1257
    %v2085 = vpop.f32.mrf.mxu0
    %v2086 = vadd.f32 %v2017, %v2085
    %v2087 = vpop.f32.mrf.mxu0
    %2088 = vmatprep.mubr.f32.mxu0 0.0
    %2089 = vmatmul.mubr.f32.gmra.mxu0 %v1361
    %v2090 = vpop.f32.mrf.mxu0
    %v2091 = vadd.f32 %v2017, %v2090
    %v2092 = vpop.f32.mrf.mxu0
    %2093 = vmatprep.mubr.f32.mxu0 0.0
    %2094 = vmatmul.mubr.f32.gmra.mxu0 %v1465
    %v2095 = vpop.f32.mrf.mxu0
    %v2096 = vadd.f32 %v2017, %v2095
    %v2097 = vpop.f32.mrf.mxu0
    %2098 = vmatprep.mubr.f32.mxu0 0.0
    %2099 = vmatmul.mubr.f32.gmra.mxu0 %v1569
    %v2100 = vpop.f32.mrf.mxu0
    %v2101 = vadd.f32 %v2017, %v2100
    %v2102 = vpop.f32.mrf.mxu0
    %2103 = vmatprep.mubr.f32.mxu0 0.0
    %2104 = vmatmul.mubr.f32.gmra.mxu0 %v1673
    %v2105 = vpop.f32.mrf.mxu0
    %v2106 = vadd.f32 %v2017, %v2105
    %v2107 = vpop.f32.mrf.mxu0
    %2108 = vmatprep.mubr.f32.mxu0 0.0
    %2109 = vmatmul.mubr.f32.gmra.mxu0 %v1777
    %v2110 = vpop.f32.mrf.mxu0
    %v2111 = vadd.f32 %v2017, %v2110
    %v2112 = vpop.f32.mrf.mxu0
    %2113 = vmatprep.mubr.f32.mxu0 0.0
    %2114 = vmatmul.mubr.f32.gmra.mxu0 %v1881
    %v2115 = vpop.f32.mrf.mxu0
    %v2116 = vadd.f32 %v2017, %v2115
    %v2117 = vpop.f32.mrf.mxu0
    %2118 = vmatprep.mubr.f32.mxu0 0.0
    %2119 = vmatmul.mubr.f32.gmra.mxu0 %v1985
    %v2120 = vpop.f32.mrf.mxu0
    %v2121 = vadd.f32 %v2017, %v2120
    %v2122 = vpop.f32.mrf.mxu0
    %2123 = vdwg.mxu0
    %v2124 = vand.u32 2147483647, %v2086
    %vm2125 = vcmp.le.f32.partialorder %v2124, 0.7853982
    %vm2126 = vcmp.lt.s32.totalorder %v2086, 0
    %v2127 = vand.u32 %v2086, 2139095040
    %v2128 = vshrl.u32 %v2127, 23
    %v2129 = vsub.s32 %v2128, 127
    %v2130 = vand.u32 2147483647, %v2086
    %v2131 = vand.u32 %v2130, 8388607
    %v2132 = vor.u32 %v2131, 8388608
    %v2133 = vsub.s32 0, %v2132
    %v2134 = vadd.s32 %v2129, 1
    %vm2135 = vcmp.gt.s32.totalorder %v2134, 0
    %v2136 = vsel %vm2135, %v2134, 0
    %v2137 = vshrl.u32 %v2136, 5
    %v2138 = vand.u32 %v2136, 31
    %v2139 = vsub.s32 32, %v2138
    %v2140 = vshrl.u32 683565275, %v2139
    %v2141 = vshll.u32 683565275, %v2138
    %v2142 = vshrl.u32 2475754826, %v2139
    %v2143 = vor.u32 %v2141, %v2142
    %v2144 = vshll.u32 2475754826, %v2138
    %v2145 = vshrl.u32 2131351028, %v2139
    %v2146 = vor.u32 %v2144, %v2145
    %v2147 = vshll.u32 2131351028, %v2138
    %v2148 = vshrl.u32 2102212464, %v2139
    %v2149 = vor.u32 %v2147, %v2148
    %v2150 = vshll.u32 2102212464, %v2138
    %v2151 = vshrl.u32 920167782, %v2139
    %v2152 = vor.u32 %v2150, %v2151
    %v2153 = vshll.u32 920167782, %v2138
    %v2154 = vshrl.u32 1326507024, %v2139
    %v2155 = vor.u32 %v2153, %v2154
    %vm2156 = vcmp.lt.s32.totalorder %v2137, 1
    %vm2157 = vcmp.lt.s32.totalorder %v2137, 2
    %vm2158 = vcmp.lt.s32.totalorder %v2137, 3
    %vm2159 = vcmp.lt.s32.totalorder %v2137, 4
    %v2160 = vsel %vm2156, %v2140, %v2143
    %v2161 = vsel %vm2159, %v2149, 2102212464
    %v2162 = vsel %vm2158, %v2146, %v2161
    %v2163 = vsel %vm2157, %v2160, %v2162
    %v2164 = vsel %vm2156, %v2143, %v2146
    %v2165 = vsel %vm2159, %v2152, 920167782
    %v2166 = vsel %vm2158, %v2149, %v2165
    %v2167 = vsel %vm2157, %v2164, %v2166
    %v2168 = vsel %vm2156, %v2146, %v2149
    %v2169 = vsel %vm2159, %v2155, 1326507024
    %v2170 = vsel %vm2158, %v2152, %v2169
    %v2171 = vsel %vm2157, %v2168, %v2170
    %v2172 = vshll.u32 %v2132, 8
    %v2173 = vmul.u32.u64.compose %v2172, %v2171
    %v2174 = vextract.low.u32 %v2173
    %v2175 = vextract.high.u32 %v2173
    %v2176 = vmul.u32.u64.compose %v2172, %v2167
    %v2177 = vextract.low.u32 %v2176
    %v2178 = vextract.high.u32 %v2176
    %v2179 = vmul.u32 %v2172, %v2163
    %v2180 = vadd.s32 %v2175, %v2177
    %vm2181 = vc.u32 %v2175, %v2177
    %v2182 = vadd.s32 %v2178, 1
    %v2183 = vsel %vm2181, %v2182, %v2178
    %v2184 = vadd.s32 %v2179, %v2183
    %v2185 = vadd.s32 %v2184, 536870912
    %v2186 = vshrl.u32 %v2185, 30
    %v2187 = vshll.u32 %v2186, 30
    %v2188 = vsub.s32 %v2184, %v2187
    %vm2189 = vcmp.lt.s32.totalorder %v2188, 0
    %v2190 = vsub.s32 0, %v2188
    %v2191 = vsel %vm2189, %v2190, %v2188
    %v2192 = vclz %v2191
    %v2193 = vsub.s32 %v2192, 2
    %vm2194 = vcmp.gt.s32.totalorder 0, %v2193
    %v2195 = vsel %vm2194, 0, %v2193
    %v2196 = vsub.s32 32, %v2195
    %v2197 = vshll.u32 %v2188, %v2195
    %v2198 = vshrl.u32 %v2180, %v2196
    %v2199 = vor.u32 %v2197, %v2198
    %v2200 = vsub.s32 4294967266, %v2195
    %v2201 = vadd.s32 %v2200, 127
    %v2202 = vshll.u32 %v2201, 23
    %v2203 = vor.u32 4788187, %v2202
    %v2204 = vand.u32 2147483647, %v2203
    %v2206 = vcvt.s32.f32 %v2199
    %v2207 = vmul.f32 %v2206, %v2204
    %v2208 = vxor.u32 %v2207, 2147483648
    %v2209 = vsel %vm2126, %v2208, %v2207
    %v2210 = vsub.s32 4, %v2186
    %v2211 = vsel %vm2126, %v2210, %v2186
    %v2212 = vsel %vm2125, %v2086, %v2209
    %v2213 = vsel %vm2125, 0, %v2211
    %v2214 = vcosq.f32.pop %v2212
    %v2215 = vsinq.f32.pop %v2212
    %vm2216 = vweird.f32 %v2086
    %v2217 = vadd.s32 %v2213, 3
    %v2218 = vand.u32 %v2217, 3
    %vm2219 = vcmp.lt.s32.totalorder %v2218, 2
    %vm2220 = vcmp.eq.s32.totalorder %v2218, 0
    %v2221 = vxor.u32 %v2215, 2147483648
    %v2222 = vsel %vm2220, %v2214, %v2221
    %vm2223 = vcmp.eq.s32.totalorder %v2218, 2
    %v2224 = vxor.u32 %v2214, 2147483648
    %v2225 = vsel %vm2223, %v2224, %v2215
    %v2226 = vsel %vm2219, %v2222, %v2225
    %v2227 = vsel %vm2216, nan, %v2226
    %v2228 = vand.u32 2147483647, %v2091
    %vm2229 = vcmp.le.f32.partialorder %v2228, 0.7853982
    %vm2230 = vcmp.lt.s32.totalorder %v2091, 0
    %v2231 = vand.u32 %v2091, 2139095040
    %v2232 = vshrl.u32 %v2231, 23
    %v2233 = vsub.s32 %v2232, 127
    %v2234 = vand.u32 2147483647, %v2091
    %v2235 = vand.u32 %v2234, 8388607
    %v2236 = vor.u32 %v2235, 8388608
    %v2237 = vsub.s32 0, %v2236
    %v2238 = vadd.s32 %v2233, 1
    %vm2239 = vcmp.gt.s32.totalorder %v2238, 0
    %v2240 = vsel %vm2239, %v2238, 0
    %v2241 = vshrl.u32 %v2240, 5
    %v2242 = vand.u32 %v2240, 31
    %v2243 = vsub.s32 32, %v2242
    %v2244 = vshrl.u32 683565275, %v2243
    %v2245 = vshll.u32 683565275, %v2242
    %v2246 = vshrl.u32 2475754826, %v2243
    %v2247 = vor.u32 %v2245, %v2246
    %v2248 = vshll.u32 2475754826, %v2242
    %v2249 = vshrl.u32 2131351028, %v2243
    %v2250 = vor.u32 %v2248, %v2249
    %v2251 = vshll.u32 2131351028, %v2242
    %v2252 = vshrl.u32 2102212464, %v2243
    %v2253 = vor.u32 %v2251, %v2252
    %v2254 = vshll.u32 2102212464, %v2242
    %v2255 = vshrl.u32 920167782, %v2243
    %v2256 = vor.u32 %v2254, %v2255
    %v2257 = vshll.u32 920167782, %v2242
    %v2258 = vshrl.u32 1326507024, %v2243
    %v2259 = vor.u32 %v2257, %v2258
    %vm2260 = vcmp.lt.s32.totalorder %v2241, 1
    %vm2261 = vcmp.lt.s32.totalorder %v2241, 2
    %vm2262 = vcmp.lt.s32.totalorder %v2241, 3
    %vm2263 = vcmp.lt.s32.totalorder %v2241, 4
    %v2264 = vsel %vm2260, %v2244, %v2247
    %v2265 = vsel %vm2263, %v2253, 2102212464
    %v2266 = vsel %vm2262, %v2250, %v2265
    %v2267 = vsel %vm2261, %v2264, %v2266
    %v2268 = vsel %vm2260, %v2247, %v2250
    %v2269 = vsel %vm2263, %v2256, 920167782
    %v2270 = vsel %vm2262, %v2253, %v2269
    %v2271 = vsel %vm2261, %v2268, %v2270
    %v2272 = vsel %vm2260, %v2250, %v2253
    %v2273 = vsel %vm2263, %v2259, 1326507024
    %v2274 = vsel %vm2262, %v2256, %v2273
    %v2275 = vsel %vm2261, %v2272, %v2274
    %v2276 = vshll.u32 %v2236, 8
    %v2277 = vmul.u32.u64.compose %v2276, %v2275
    %v2278 = vextract.low.u32 %v2277
    %v2279 = vextract.high.u32 %v2277
    %v2280 = vmul.u32.u64.compose %v2276, %v2271
    %v2281 = vextract.low.u32 %v2280
    %v2282 = vextract.high.u32 %v2280
    %v2283 = vmul.u32 %v2276, %v2267
    %v2284 = vadd.s32 %v2279, %v2281
    %vm2285 = vc.u32 %v2279, %v2281
    %v2286 = vadd.s32 %v2282, 1
    %v2287 = vsel %vm2285, %v2286, %v2282
    %v2288 = vadd.s32 %v2283, %v2287
    %v2289 = vadd.s32 %v2288, 536870912
    %v2290 = vshrl.u32 %v2289, 30
    %v2291 = vshll.u32 %v2290, 30
    %v2292 = vsub.s32 %v2288, %v2291
    %vm2293 = vcmp.lt.s32.totalorder %v2292, 0
    %v2294 = vsub.s32 0, %v2292
    %v2295 = vsel %vm2293, %v2294, %v2292
    %v2296 = vclz %v2295
    %v2297 = vsub.s32 %v2296, 2
    %vm2298 = vcmp.gt.s32.totalorder 0, %v2297
    %v2299 = vsel %vm2298, 0, %v2297
    %v2300 = vsub.s32 32, %v2299
    %v2301 = vshll.u32 %v2292, %v2299
    %v2302 = vshrl.u32 %v2284, %v2300
    %v2303 = vor.u32 %v2301, %v2302
    %v2304 = vsub.s32 4294967266, %v2299
    %v2305 = vadd.s32 %v2304, 127
    %v2306 = vshll.u32 %v2305, 23
    %v2307 = vor.u32 4788187, %v2306
    %v2308 = vand.u32 2147483647, %v2307
    %v2310 = vcvt.s32.f32 %v2303
    %v2311 = vmul.f32 %v2310, %v2308
    %v2312 = vxor.u32 %v2311, 2147483648
    %v2313 = vsel %vm2230, %v2312, %v2311
    %v2314 = vsub.s32 4, %v2290
    %v2315 = vsel %vm2230, %v2314, %v2290
    %v2316 = vsel %vm2229, %v2091, %v2313
    %v2317 = vsel %vm2229, 0, %v2315
    %v2318 = vcosq.f32.pop %v2316
    %v2319 = vsinq.f32.pop %v2316
    %vm2320 = vweird.f32 %v2091
    %v2321 = vadd.s32 %v2317, 3
    %v2322 = vand.u32 %v2321, 3
    %vm2323 = vcmp.lt.s32.totalorder %v2322, 2
    %vm2324 = vcmp.eq.s32.totalorder %v2322, 0
    %v2325 = vxor.u32 %v2319, 2147483648
    %v2326 = vsel %vm2324, %v2318, %v2325
    %vm2327 = vcmp.eq.s32.totalorder %v2322, 2
    %v2328 = vxor.u32 %v2318, 2147483648
    %v2329 = vsel %vm2327, %v2328, %v2319
    %v2330 = vsel %vm2323, %v2326, %v2329
    %v2331 = vsel %vm2320, nan, %v2330
    %v2332 = vand.u32 2147483647, %v2096
    %vm2333 = vcmp.le.f32.partialorder %v2332, 0.7853982
    %vm2334 = vcmp.lt.s32.totalorder %v2096, 0
    %v2335 = vand.u32 %v2096, 2139095040
    %v2336 = vshrl.u32 %v2335, 23
    %v2337 = vsub.s32 %v2336, 127
    %v2338 = vand.u32 2147483647, %v2096
    %v2339 = vand.u32 %v2338, 8388607
    %v2340 = vor.u32 %v2339, 8388608
    %v2341 = vsub.s32 0, %v2340
    %v2342 = vadd.s32 %v2337, 1
    %vm2343 = vcmp.gt.s32.totalorder %v2342, 0
    %v2344 = vsel %vm2343, %v2342, 0
    %v2345 = vshrl.u32 %v2344, 5
    %v2346 = vand.u32 %v2344, 31
    %v2347 = vsub.s32 32, %v2346
    %v2348 = vshrl.u32 683565275, %v2347
    %v2349 = vshll.u32 683565275, %v2346
    %v2350 = vshrl.u32 2475754826, %v2347
    %v2351 = vor.u32 %v2349, %v2350
    %v2352 = vshll.u32 2475754826, %v2346
    %v2353 = vshrl.u32 2131351028, %v2347
    %v2354 = vor.u32 %v2352, %v2353
    %v2355 = vshll.u32 2131351028, %v2346
    %v2356 = vshrl.u32 2102212464, %v2347
    %v2357 = vor.u32 %v2355, %v2356
    %v2358 = vshll.u32 2102212464, %v2346
    %v2359 = vshrl.u32 920167782, %v2347
    %v2360 = vor.u32 %v2358, %v2359
    %v2361 = vshll.u32 920167782, %v2346
    %v2362 = vshrl.u32 1326507024, %v2347
    %v2363 = vor.u32 %v2361, %v2362
    %vm2364 = vcmp.lt.s32.totalorder %v2345, 1
    %vm2365 = vcmp.lt.s32.totalorder %v2345, 2
    %vm2366 = vcmp.lt.s32.totalorder %v2345, 3
    %vm2367 = vcmp.lt.s32.totalorder %v2345, 4
    %v2368 = vsel %vm2364, %v2348, %v2351
    %v2369 = vsel %vm2367, %v2357, 2102212464
    %v2370 = vsel %vm2366, %v2354, %v2369
    %v2371 = vsel %vm2365, %v2368, %v2370
    %v2372 = vsel %vm2364, %v2351, %v2354
    %v2373 = vsel %vm2367, %v2360, 920167782
    %v2374 = vsel %vm2366, %v2357, %v2373
    %v2375 = vsel %vm2365, %v2372, %v2374
    %v2376 = vsel %vm2364, %v2354, %v2357
    %v2377 = vsel %vm2367, %v2363, 1326507024
    %v2378 = vsel %vm2366, %v2360, %v2377
    %v2379 = vsel %vm2365, %v2376, %v2378
    %v2380 = vshll.u32 %v2340, 8
    %v2381 = vmul.u32.u64.compose %v2380, %v2379
    %v2382 = vextract.low.u32 %v2381
    %v2383 = vextract.high.u32 %v2381
    %v2384 = vmul.u32.u64.compose %v2380, %v2375
    %v2385 = vextract.low.u32 %v2384
    %v2386 = vextract.high.u32 %v2384
    %v2387 = vmul.u32 %v2380, %v2371
    %v2388 = vadd.s32 %v2383, %v2385
    %vm2389 = vc.u32 %v2383, %v2385
    %v2390 = vadd.s32 %v2386, 1
    %v2391 = vsel %vm2389, %v2390, %v2386
    %v2392 = vadd.s32 %v2387, %v2391
    %v2393 = vadd.s32 %v2392, 536870912
    %v2394 = vshrl.u32 %v2393, 30
    %v2395 = vshll.u32 %v2394, 30
    %v2396 = vsub.s32 %v2392, %v2395
    %vm2397 = vcmp.lt.s32.totalorder %v2396, 0
    %v2398 = vsub.s32 0, %v2396
    %v2399 = vsel %vm2397, %v2398, %v2396
    %v2400 = vclz %v2399
    %v2401 = vsub.s32 %v2400, 2
    %vm2402 = vcmp.gt.s32.totalorder 0, %v2401
    %v2403 = vsel %vm2402, 0, %v2401
    %v2404 = vsub.s32 32, %v2403
    %v2405 = vshll.u32 %v2396, %v2403
    %v2406 = vshrl.u32 %v2388, %v2404
    %v2407 = vor.u32 %v2405, %v2406
    %v2408 = vsub.s32 4294967266, %v2403
    %v2409 = vadd.s32 %v2408, 127
    %v2410 = vshll.u32 %v2409, 23
    %v2411 = vor.u32 4788187, %v2410
    %v2412 = vand.u32 2147483647, %v2411
    %v2414 = vcvt.s32.f32 %v2407
    %v2415 = vmul.f32 %v2414, %v2412
    %v2416 = vxor.u32 %v2415, 2147483648
    %v2417 = vsel %vm2334, %v2416, %v2415
    %v2418 = vsub.s32 4, %v2394
    %v2419 = vsel %vm2334, %v2418, %v2394
    %v2420 = vsel %vm2333, %v2096, %v2417
    %v2421 = vsel %vm2333, 0, %v2419
    %v2422 = vcosq.f32.pop %v2420
    %v2423 = vsinq.f32.pop %v2420
    %vm2424 = vweird.f32 %v2096
    %v2425 = vadd.s32 %v2421, 3
    %v2426 = vand.u32 %v2425, 3
    %vm2427 = vcmp.lt.s32.totalorder %v2426, 2
    %vm2428 = vcmp.eq.s32.totalorder %v2426, 0
    %v2429 = vxor.u32 %v2423, 2147483648
    %v2430 = vsel %vm2428, %v2422, %v2429
    %vm2431 = vcmp.eq.s32.totalorder %v2426, 2
    %v2432 = vxor.u32 %v2422, 2147483648
    %v2433 = vsel %vm2431, %v2432, %v2423
    %v2434 = vsel %vm2427, %v2430, %v2433
    %v2435 = vsel %vm2424, nan, %v2434
    %v2436 = vand.u32 2147483647, %v2101
    %vm2437 = vcmp.le.f32.partialorder %v2436, 0.7853982
    %vm2438 = vcmp.lt.s32.totalorder %v2101, 0
    %v2439 = vand.u32 %v2101, 2139095040
    %v2440 = vshrl.u32 %v2439, 23
    %v2441 = vsub.s32 %v2440, 127
    %v2442 = vand.u32 2147483647, %v2101
    %v2443 = vand.u32 %v2442, 8388607
    %v2444 = vor.u32 %v2443, 8388608
    %v2445 = vsub.s32 0, %v2444
    %v2446 = vadd.s32 %v2441, 1
    %vm2447 = vcmp.gt.s32.totalorder %v2446, 0
    %v2448 = vsel %vm2447, %v2446, 0
    %v2449 = vshrl.u32 %v2448, 5
    %v2450 = vand.u32 %v2448, 31
    %v2451 = vsub.s32 32, %v2450
    %v2452 = vshrl.u32 683565275, %v2451
    %v2453 = vshll.u32 683565275, %v2450
    %v2454 = vshrl.u32 2475754826, %v2451
    %v2455 = vor.u32 %v2453, %v2454
    %v2456 = vshll.u32 2475754826, %v2450
    %v2457 = vshrl.u32 2131351028, %v2451
    %v2458 = vor.u32 %v2456, %v2457
    %v2459 = vshll.u32 2131351028, %v2450
    %v2460 = vshrl.u32 2102212464, %v2451
    %v2461 = vor.u32 %v2459, %v2460
    %v2462 = vshll.u32 2102212464, %v2450
    %v2463 = vshrl.u32 920167782, %v2451
    %v2464 = vor.u32 %v2462, %v2463
    %v2465 = vshll.u32 920167782, %v2450
    %v2466 = vshrl.u32 1326507024, %v2451
    %v2467 = vor.u32 %v2465, %v2466
    %vm2468 = vcmp.lt.s32.totalorder %v2449, 1
    %vm2469 = vcmp.lt.s32.totalorder %v2449, 2
    %vm2470 = vcmp.lt.s32.totalorder %v2449, 3
    %vm2471 = vcmp.lt.s32.totalorder %v2449, 4
    %v2472 = vsel %vm2468, %v2452, %v2455
    %v2473 = vsel %vm2471, %v2461, 2102212464
    %v2474 = vsel %vm2470, %v2458, %v2473
    %v2475 = vsel %vm2469, %v2472, %v2474
    %v2476 = vsel %vm2468, %v2455, %v2458
    %v2477 = vsel %vm2471, %v2464, 920167782
    %v2478 = vsel %vm2470, %v2461, %v2477
    %v2479 = vsel %vm2469, %v2476, %v2478
    %v2480 = vsel %vm2468, %v2458, %v2461
    %v2481 = vsel %vm2471, %v2467, 1326507024
    %v2482 = vsel %vm2470, %v2464, %v2481
    %v2483 = vsel %vm2469, %v2480, %v2482
    %v2484 = vshll.u32 %v2444, 8
    %v2485 = vmul.u32.u64.compose %v2484, %v2483
    %v2486 = vextract.low.u32 %v2485
    %v2487 = vextract.high.u32 %v2485
    %v2488 = vmul.u32.u64.compose %v2484, %v2479
    %v2489 = vextract.low.u32 %v2488
    %v2490 = vextract.high.u32 %v2488
    %v2491 = vmul.u32 %v2484, %v2475
    %v2492 = vadd.s32 %v2487, %v2489
    %vm2493 = vc.u32 %v2487, %v2489
    %v2494 = vadd.s32 %v2490, 1
    %v2495 = vsel %vm2493, %v2494, %v2490
    %v2496 = vadd.s32 %v2491, %v2495
    %v2497 = vadd.s32 %v2496, 536870912
    %v2498 = vshrl.u32 %v2497, 30
    %v2499 = vshll.u32 %v2498, 30
    %v2500 = vsub.s32 %v2496, %v2499
    %vm2501 = vcmp.lt.s32.totalorder %v2500, 0
    %v2502 = vsub.s32 0, %v2500
    %v2503 = vsel %vm2501, %v2502, %v2500
    %v2504 = vclz %v2503
    %v2505 = vsub.s32 %v2504, 2
    %vm2506 = vcmp.gt.s32.totalorder 0, %v2505
    %v2507 = vsel %vm2506, 0, %v2505
    %v2508 = vsub.s32 32, %v2507
    %v2509 = vshll.u32 %v2500, %v2507
    %v2510 = vshrl.u32 %v2492, %v2508
    %v2511 = vor.u32 %v2509, %v2510
    %v2512 = vsub.s32 4294967266, %v2507
    %v2513 = vadd.s32 %v2512, 127
    %v2514 = vshll.u32 %v2513, 23
    %v2515 = vor.u32 4788187, %v2514
    %v2516 = vand.u32 2147483647, %v2515
    %v2518 = vcvt.s32.f32 %v2511
    %v2519 = vmul.f32 %v2518, %v2516
    %v2520 = vxor.u32 %v2519, 2147483648
    %v2521 = vsel %vm2438, %v2520, %v2519
    %v2522 = vsub.s32 4, %v2498
    %v2523 = vsel %vm2438, %v2522, %v2498
    %v2524 = vsel %vm2437, %v2101, %v2521
    %v2525 = vsel %vm2437, 0, %v2523
    %v2526 = vcosq.f32.pop %v2524
    %v2527 = vsinq.f32.pop %v2524
    %vm2528 = vweird.f32 %v2101
    %v2529 = vadd.s32 %v2525, 3
    %v2530 = vand.u32 %v2529, 3
    %vm2531 = vcmp.lt.s32.totalorder %v2530, 2
    %vm2532 = vcmp.eq.s32.totalorder %v2530, 0
    %v2533 = vxor.u32 %v2527, 2147483648
    %v2534 = vsel %vm2532, %v2526, %v2533
    %vm2535 = vcmp.eq.s32.totalorder %v2530, 2
    %v2536 = vxor.u32 %v2526, 2147483648
    %v2537 = vsel %vm2535, %v2536, %v2527
    %v2538 = vsel %vm2531, %v2534, %v2537
    %v2539 = vsel %vm2528, nan, %v2538
    %v2540 = vand.u32 2147483647, %v2106
    %vm2541 = vcmp.le.f32.partialorder %v2540, 0.7853982
    %vm2542 = vcmp.lt.s32.totalorder %v2106, 0
    %v2543 = vand.u32 %v2106, 2139095040
    %v2544 = vshrl.u32 %v2543, 23
    %v2545 = vsub.s32 %v2544, 127
    %v2546 = vand.u32 2147483647, %v2106
    %v2547 = vand.u32 %v2546, 8388607
    %v2548 = vor.u32 %v2547, 8388608
    %v2549 = vsub.s32 0, %v2548
    %v2550 = vadd.s32 %v2545, 1
    %vm2551 = vcmp.gt.s32.totalorder %v2550, 0
    %v2552 = vsel %vm2551, %v2550, 0
    %v2553 = vshrl.u32 %v2552, 5
    %v2554 = vand.u32 %v2552, 31
    %v2555 = vsub.s32 32, %v2554
    %v2556 = vshrl.u32 683565275, %v2555
    %v2557 = vshll.u32 683565275, %v2554
    %v2558 = vshrl.u32 2475754826, %v2555
    %v2559 = vor.u32 %v2557, %v2558
    %v2560 = vshll.u32 2475754826, %v2554
    %v2561 = vshrl.u32 2131351028, %v2555
    %v2562 = vor.u32 %v2560, %v2561
    %v2563 = vshll.u32 2131351028, %v2554
    %v2564 = vshrl.u32 2102212464, %v2555
    %v2565 = vor.u32 %v2563, %v2564
    %v2566 = vshll.u32 2102212464, %v2554
    %v2567 = vshrl.u32 920167782, %v2555
    %v2568 = vor.u32 %v2566, %v2567
    %v2569 = vshll.u32 920167782, %v2554
    %v2570 = vshrl.u32 1326507024, %v2555
    %v2571 = vor.u32 %v2569, %v2570
    %vm2572 = vcmp.lt.s32.totalorder %v2553, 1
    %vm2573 = vcmp.lt.s32.totalorder %v2553, 2
    %vm2574 = vcmp.lt.s32.totalorder %v2553, 3
    %vm2575 = vcmp.lt.s32.totalorder %v2553, 4
    %v2576 = vsel %vm2572, %v2556, %v2559
    %v2577 = vsel %vm2575, %v2565, 2102212464
    %v2578 = vsel %vm2574, %v2562, %v2577
    %v2579 = vsel %vm2573, %v2576, %v2578
    %v2580 = vsel %vm2572, %v2559, %v2562
    %v2581 = vsel %vm2575, %v2568, 920167782
    %v2582 = vsel %vm2574, %v2565, %v2581
    %v2583 = vsel %vm2573, %v2580, %v2582
    %v2584 = vsel %vm2572, %v2562, %v2565
    %v2585 = vsel %vm2575, %v2571, 1326507024
    %v2586 = vsel %vm2574, %v2568, %v2585
    %v2587 = vsel %vm2573, %v2584, %v2586
    %v2588 = vshll.u32 %v2548, 8
    %v2589 = vmul.u32.u64.compose %v2588, %v2587
    %v2590 = vextract.low.u32 %v2589
    %v2591 = vextract.high.u32 %v2589
    %v2592 = vmul.u32.u64.compose %v2588, %v2583
    %v2593 = vextract.low.u32 %v2592
    %v2594 = vextract.high.u32 %v2592
    %v2595 = vmul.u32 %v2588, %v2579
    %v2596 = vadd.s32 %v2591, %v2593
    %vm2597 = vc.u32 %v2591, %v2593
    %v2598 = vadd.s32 %v2594, 1
    %v2599 = vsel %vm2597, %v2598, %v2594
    %v2600 = vadd.s32 %v2595, %v2599
    %v2601 = vadd.s32 %v2600, 536870912
    %v2602 = vshrl.u32 %v2601, 30
    %v2603 = vshll.u32 %v2602, 30
    %v2604 = vsub.s32 %v2600, %v2603
    %vm2605 = vcmp.lt.s32.totalorder %v2604, 0
    %v2606 = vsub.s32 0, %v2604
    %v2607 = vsel %vm2605, %v2606, %v2604
    %v2608 = vclz %v2607
    %v2609 = vsub.s32 %v2608, 2
    %vm2610 = vcmp.gt.s32.totalorder 0, %v2609
    %v2611 = vsel %vm2610, 0, %v2609
    %v2612 = vsub.s32 32, %v2611
    %v2613 = vshll.u32 %v2604, %v2611
    %v2614 = vshrl.u32 %v2596, %v2612
    %v2615 = vor.u32 %v2613, %v2614
    %v2616 = vsub.s32 4294967266, %v2611
    %v2617 = vadd.s32 %v2616, 127
    %v2618 = vshll.u32 %v2617, 23
    %v2619 = vor.u32 4788187, %v2618
    %v2620 = vand.u32 2147483647, %v2619
    %v2622 = vcvt.s32.f32 %v2615
    %v2623 = vmul.f32 %v2622, %v2620
    %v2624 = vxor.u32 %v2623, 2147483648
    %v2625 = vsel %vm2542, %v2624, %v2623
    %v2626 = vsub.s32 4, %v2602
    %v2627 = vsel %vm2542, %v2626, %v2602
    %v2628 = vsel %vm2541, %v2106, %v2625
    %v2629 = vsel %vm2541, 0, %v2627
    %v2630 = vcosq.f32.pop %v2628
    %v2631 = vsinq.f32.pop %v2628
    %vm2632 = vweird.f32 %v2106
    %v2633 = vadd.s32 %v2629, 3
    %v2634 = vand.u32 %v2633, 3
    %vm2635 = vcmp.lt.s32.totalorder %v2634, 2
    %vm2636 = vcmp.eq.s32.totalorder %v2634, 0
    %v2637 = vxor.u32 %v2631, 2147483648
    %v2638 = vsel %vm2636, %v2630, %v2637
    %vm2639 = vcmp.eq.s32.totalorder %v2634, 2
    %v2640 = vxor.u32 %v2630, 2147483648
    %v2641 = vsel %vm2639, %v2640, %v2631
    %v2642 = vsel %vm2635, %v2638, %v2641
    %v2643 = vsel %vm2632, nan, %v2642
    %v2644 = vand.u32 2147483647, %v2111
    %vm2645 = vcmp.le.f32.partialorder %v2644, 0.7853982
    %vm2646 = vcmp.lt.s32.totalorder %v2111, 0
    %v2647 = vand.u32 %v2111, 2139095040
    %v2648 = vshrl.u32 %v2647, 23
    %v2649 = vsub.s32 %v2648, 127
    %v2650 = vand.u32 2147483647, %v2111
    %v2651 = vand.u32 %v2650, 8388607
    %v2652 = vor.u32 %v2651, 8388608
    %v2653 = vsub.s32 0, %v2652
    %v2654 = vadd.s32 %v2649, 1
    %vm2655 = vcmp.gt.s32.totalorder %v2654, 0
    %v2656 = vsel %vm2655, %v2654, 0
    %v2657 = vshrl.u32 %v2656, 5
    %v2658 = vand.u32 %v2656, 31
    %v2659 = vsub.s32 32, %v2658
    %v2660 = vshrl.u32 683565275, %v2659
    %v2661 = vshll.u32 683565275, %v2658
    %v2662 = vshrl.u32 2475754826, %v2659
    %v2663 = vor.u32 %v2661, %v2662
    %v2664 = vshll.u32 2475754826, %v2658
    %v2665 = vshrl.u32 2131351028, %v2659
    %v2666 = vor.u32 %v2664, %v2665
    %v2667 = vshll.u32 2131351028, %v2658
    %v2668 = vshrl.u32 2102212464, %v2659
    %v2669 = vor.u32 %v2667, %v2668
    %v2670 = vshll.u32 2102212464, %v2658
    %v2671 = vshrl.u32 920167782, %v2659
    %v2672 = vor.u32 %v2670, %v2671
    %v2673 = vshll.u32 920167782, %v2658
    %v2674 = vshrl.u32 1326507024, %v2659
    %v2675 = vor.u32 %v2673, %v2674
    %vm2676 = vcmp.lt.s32.totalorder %v2657, 1
    %vm2677 = vcmp.lt.s32.totalorder %v2657, 2
    %vm2678 = vcmp.lt.s32.totalorder %v2657, 3
    %vm2679 = vcmp.lt.s32.totalorder %v2657, 4
    %v2680 = vsel %vm2676, %v2660, %v2663
    %v2681 = vsel %vm2679, %v2669, 2102212464
    %v2682 = vsel %vm2678, %v2666, %v2681
    %v2683 = vsel %vm2677, %v2680, %v2682
    %v2684 = vsel %vm2676, %v2663, %v2666
    %v2685 = vsel %vm2679, %v2672, 920167782
    %v2686 = vsel %vm2678, %v2669, %v2685
    %v2687 = vsel %vm2677, %v2684, %v2686
    %v2688 = vsel %vm2676, %v2666, %v2669
    %v2689 = vsel %vm2679, %v2675, 1326507024
    %v2690 = vsel %vm2678, %v2672, %v2689
    %v2691 = vsel %vm2677, %v2688, %v2690
    %v2692 = vshll.u32 %v2652, 8
    %v2693 = vmul.u32.u64.compose %v2692, %v2691
    %v2694 = vextract.low.u32 %v2693
    %v2695 = vextract.high.u32 %v2693
    %v2696 = vmul.u32.u64.compose %v2692, %v2687
    %v2697 = vextract.low.u32 %v2696
    %v2698 = vextract.high.u32 %v2696
    %v2699 = vmul.u32 %v2692, %v2683
    %v2700 = vadd.s32 %v2695, %v2697
    %vm2701 = vc.u32 %v2695, %v2697
    %v2702 = vadd.s32 %v2698, 1
    %v2703 = vsel %vm2701, %v2702, %v2698
    %v2704 = vadd.s32 %v2699, %v2703
    %v2705 = vadd.s32 %v2704, 536870912
    %v2706 = vshrl.u32 %v2705, 30
    %v2707 = vshll.u32 %v2706, 30
    %v2708 = vsub.s32 %v2704, %v2707
    %vm2709 = vcmp.lt.s32.totalorder %v2708, 0
    %v2710 = vsub.s32 0, %v2708
    %v2711 = vsel %vm2709, %v2710, %v2708
    %v2712 = vclz %v2711
    %v2713 = vsub.s32 %v2712, 2
    %vm2714 = vcmp.gt.s32.totalorder 0, %v2713
    %v2715 = vsel %vm2714, 0, %v2713
    %v2716 = vsub.s32 32, %v2715
    %v2717 = vshll.u32 %v2708, %v2715
    %v2718 = vshrl.u32 %v2700, %v2716
    %v2719 = vor.u32 %v2717, %v2718
    %v2720 = vsub.s32 4294967266, %v2715
    %v2721 = vadd.s32 %v2720, 127
    %v2722 = vshll.u32 %v2721, 23
    %v2723 = vor.u32 4788187, %v2722
    %v2724 = vand.u32 2147483647, %v2723
    %v2726 = vcvt.s32.f32 %v2719
    %v2727 = vmul.f32 %v2726, %v2724
    %v2728 = vxor.u32 %v2727, 2147483648
    %v2729 = vsel %vm2646, %v2728, %v2727
    %v2730 = vsub.s32 4, %v2706
    %v2731 = vsel %vm2646, %v2730, %v2706
    %v2732 = vsel %vm2645, %v2111, %v2729
    %v2733 = vsel %vm2645, 0, %v2731
    %v2734 = vcosq.f32.pop %v2732
    %v2735 = vsinq.f32.pop %v2732
    %vm2736 = vweird.f32 %v2111
    %v2737 = vadd.s32 %v2733, 3
    %v2738 = vand.u32 %v2737, 3
    %vm2739 = vcmp.lt.s32.totalorder %v2738, 2
    %vm2740 = vcmp.eq.s32.totalorder %v2738, 0
    %v2741 = vxor.u32 %v2735, 2147483648
    %v2742 = vsel %vm2740, %v2734, %v2741
    %vm2743 = vcmp.eq.s32.totalorder %v2738, 2
    %v2744 = vxor.u32 %v2734, 2147483648
    %v2745 = vsel %vm2743, %v2744, %v2735
    %v2746 = vsel %vm2739, %v2742, %v2745
    %v2747 = vsel %vm2736, nan, %v2746
    %v2748 = vand.u32 2147483647, %v2116
    %vm2749 = vcmp.le.f32.partialorder %v2748, 0.7853982
    %vm2750 = vcmp.lt.s32.totalorder %v2116, 0
    %v2751 = vand.u32 %v2116, 2139095040
    %v2752 = vshrl.u32 %v2751, 23
    %v2753 = vsub.s32 %v2752, 127
    %v2754 = vand.u32 2147483647, %v2116
    %v2755 = vand.u32 %v2754, 8388607
    %v2756 = vor.u32 %v2755, 8388608
    %v2757 = vsub.s32 0, %v2756
    %v2758 = vadd.s32 %v2753, 1
    %vm2759 = vcmp.gt.s32.totalorder %v2758, 0
    %v2760 = vsel %vm2759, %v2758, 0
    %v2761 = vshrl.u32 %v2760, 5
    %v2762 = vand.u32 %v2760, 31
    %v2763 = vsub.s32 32, %v2762
    %v2764 = vshrl.u32 683565275, %v2763
    %v2765 = vshll.u32 683565275, %v2762
    %v2766 = vshrl.u32 2475754826, %v2763
    %v2767 = vor.u32 %v2765, %v2766
    %v2768 = vshll.u32 2475754826, %v2762
    %v2769 = vshrl.u32 2131351028, %v2763
    %v2770 = vor.u32 %v2768, %v2769
    %v2771 = vshll.u32 2131351028, %v2762
    %v2772 = vshrl.u32 2102212464, %v2763
    %v2773 = vor.u32 %v2771, %v2772
    %v2774 = vshll.u32 2102212464, %v2762
    %v2775 = vshrl.u32 920167782, %v2763
    %v2776 = vor.u32 %v2774, %v2775
    %v2777 = vshll.u32 920167782, %v2762
    %v2778 = vshrl.u32 1326507024, %v2763
    %v2779 = vor.u32 %v2777, %v2778
    %vm2780 = vcmp.lt.s32.totalorder %v2761, 1
    %vm2781 = vcmp.lt.s32.totalorder %v2761, 2
    %vm2782 = vcmp.lt.s32.totalorder %v2761, 3
    %vm2783 = vcmp.lt.s32.totalorder %v2761, 4
    %v2784 = vsel %vm2780, %v2764, %v2767
    %v2785 = vsel %vm2783, %v2773, 2102212464
    %v2786 = vsel %vm2782, %v2770, %v2785
    %v2787 = vsel %vm2781, %v2784, %v2786
    %v2788 = vsel %vm2780, %v2767, %v2770
    %v2789 = vsel %vm2783, %v2776, 920167782
    %v2790 = vsel %vm2782, %v2773, %v2789
    %v2791 = vsel %vm2781, %v2788, %v2790
    %v2792 = vsel %vm2780, %v2770, %v2773
    %v2793 = vsel %vm2783, %v2779, 1326507024
    %v2794 = vsel %vm2782, %v2776, %v2793
    %v2795 = vsel %vm2781, %v2792, %v2794
    %v2796 = vshll.u32 %v2756, 8
    %v2797 = vmul.u32.u64.compose %v2796, %v2795
    %v2798 = vextract.low.u32 %v2797
    %v2799 = vextract.high.u32 %v2797
    %v2800 = vmul.u32.u64.compose %v2796, %v2791
    %v2801 = vextract.low.u32 %v2800
    %v2802 = vextract.high.u32 %v2800
    %v2803 = vmul.u32 %v2796, %v2787
    %v2804 = vadd.s32 %v2799, %v2801
    %vm2805 = vc.u32 %v2799, %v2801
    %v2806 = vadd.s32 %v2802, 1
    %v2807 = vsel %vm2805, %v2806, %v2802
    %v2808 = vadd.s32 %v2803, %v2807
    %v2809 = vadd.s32 %v2808, 536870912
    %v2810 = vshrl.u32 %v2809, 30
    %v2811 = vshll.u32 %v2810, 30
    %v2812 = vsub.s32 %v2808, %v2811
    %vm2813 = vcmp.lt.s32.totalorder %v2812, 0
    %v2814 = vsub.s32 0, %v2812
    %v2815 = vsel %vm2813, %v2814, %v2812
    %v2816 = vclz %v2815
    %v2817 = vsub.s32 %v2816, 2
    %vm2818 = vcmp.gt.s32.totalorder 0, %v2817
    %v2819 = vsel %vm2818, 0, %v2817
    %v2820 = vsub.s32 32, %v2819
    %v2821 = vshll.u32 %v2812, %v2819
    %v2822 = vshrl.u32 %v2804, %v2820
    %v2823 = vor.u32 %v2821, %v2822
    %v2824 = vsub.s32 4294967266, %v2819
    %v2825 = vadd.s32 %v2824, 127
    %v2826 = vshll.u32 %v2825, 23
    %v2827 = vor.u32 4788187, %v2826
    %v2828 = vand.u32 2147483647, %v2827
    %v2830 = vcvt.s32.f32 %v2823
    %v2831 = vmul.f32 %v2830, %v2828
    %v2832 = vxor.u32 %v2831, 2147483648
    %v2833 = vsel %vm2750, %v2832, %v2831
    %v2834 = vsub.s32 4, %v2810
    %v2835 = vsel %vm2750, %v2834, %v2810
    %v2836 = vsel %vm2749, %v2116, %v2833
    %v2837 = vsel %vm2749, 0, %v2835
    %v2838 = vcosq.f32.pop %v2836
    %v2839 = vsinq.f32.pop %v2836
    %vm2840 = vweird.f32 %v2116
    %v2841 = vadd.s32 %v2837, 3
    %v2842 = vand.u32 %v2841, 3
    %vm2843 = vcmp.lt.s32.totalorder %v2842, 2
    %vm2844 = vcmp.eq.s32.totalorder %v2842, 0
    %v2845 = vxor.u32 %v2839, 2147483648
    %v2846 = vsel %vm2844, %v2838, %v2845
    %vm2847 = vcmp.eq.s32.totalorder %v2842, 2
    %v2848 = vxor.u32 %v2838, 2147483648
    %v2849 = vsel %vm2847, %v2848, %v2839
    %v2850 = vsel %vm2843, %v2846, %v2849
    %v2851 = vsel %vm2840, nan, %v2850
    %v2852 = vand.u32 2147483647, %v2121
    %vm2853 = vcmp.le.f32.partialorder %v2852, 0.7853982
    %vm2854 = vcmp.lt.s32.totalorder %v2121, 0
    %v2855 = vand.u32 %v2121, 2139095040
    %v2856 = vshrl.u32 %v2855, 23
    %v2857 = vsub.s32 %v2856, 127
    %v2858 = vand.u32 2147483647, %v2121
    %v2859 = vand.u32 %v2858, 8388607
    %v2860 = vor.u32 %v2859, 8388608
    %v2861 = vsub.s32 0, %v2860
    %v2862 = vadd.s32 %v2857, 1
    %vm2863 = vcmp.gt.s32.totalorder %v2862, 0
    %v2864 = vsel %vm2863, %v2862, 0
    %v2865 = vshrl.u32 %v2864, 5
    %v2866 = vand.u32 %v2864, 31
    %v2867 = vsub.s32 32, %v2866
    %v2868 = vshrl.u32 683565275, %v2867
    %v2869 = vshll.u32 683565275, %v2866
    %v2870 = vshrl.u32 2475754826, %v2867
    %v2871 = vor.u32 %v2869, %v2870
    %v2872 = vshll.u32 2475754826, %v2866
    %v2873 = vshrl.u32 2131351028, %v2867
    %v2874 = vor.u32 %v2872, %v2873
    %v2875 = vshll.u32 2131351028, %v2866
    %v2876 = vshrl.u32 2102212464, %v2867
    %v2877 = vor.u32 %v2875, %v2876
    %v2878 = vshll.u32 2102212464, %v2866
    %v2879 = vshrl.u32 920167782, %v2867
    %v2880 = vor.u32 %v2878, %v2879
    %v2881 = vshll.u32 920167782, %v2866
    %v2882 = vshrl.u32 1326507024, %v2867
    %v2883 = vor.u32 %v2881, %v2882
    %vm2884 = vcmp.lt.s32.totalorder %v2865, 1
    %vm2885 = vcmp.lt.s32.totalorder %v2865, 2
    %vm2886 = vcmp.lt.s32.totalorder %v2865, 3
    %vm2887 = vcmp.lt.s32.totalorder %v2865, 4
    %v2888 = vsel %vm2884, %v2868, %v2871
    %v2889 = vsel %vm2887, %v2877, 2102212464
    %v2890 = vsel %vm2886, %v2874, %v2889
    %v2891 = vsel %vm2885, %v2888, %v2890
    %v2892 = vsel %vm2884, %v2871, %v2874
    %v2893 = vsel %vm2887, %v2880, 920167782
    %v2894 = vsel %vm2886, %v2877, %v2893
    %v2895 = vsel %vm2885, %v2892, %v2894
    %v2896 = vsel %vm2884, %v2874, %v2877
    %v2897 = vsel %vm2887, %v2883, 1326507024
    %v2898 = vsel %vm2886, %v2880, %v2897
    %v2899 = vsel %vm2885, %v2896, %v2898
    %v2900 = vshll.u32 %v2860, 8
    %v2901 = vmul.u32.u64.compose %v2900, %v2899
    %v2902 = vextract.low.u32 %v2901
    %v2903 = vextract.high.u32 %v2901
    %v2904 = vmul.u32.u64.compose %v2900, %v2895
    %v2905 = vextract.low.u32 %v2904
    %v2906 = vextract.high.u32 %v2904
    %v2907 = vmul.u32 %v2900, %v2891
    %v2908 = vadd.s32 %v2903, %v2905
    %vm2909 = vc.u32 %v2903, %v2905
    %v2910 = vadd.s32 %v2906, 1
    %v2911 = vsel %vm2909, %v2910, %v2906
    %v2912 = vadd.s32 %v2907, %v2911
    %v2913 = vadd.s32 %v2912, 536870912
    %v2914 = vshrl.u32 %v2913, 30
    %v2915 = vshll.u32 %v2914, 30
    %v2916 = vsub.s32 %v2912, %v2915
    %vm2917 = vcmp.lt.s32.totalorder %v2916, 0
    %v2918 = vsub.s32 0, %v2916
    %v2919 = vsel %vm2917, %v2918, %v2916
    %v2920 = vclz %v2919
    %v2921 = vsub.s32 %v2920, 2
    %vm2922 = vcmp.gt.s32.totalorder 0, %v2921
    %v2923 = vsel %vm2922, 0, %v2921
    %v2924 = vsub.s32 32, %v2923
    %v2925 = vshll.u32 %v2916, %v2923
    %v2926 = vshrl.u32 %v2908, %v2924
    %v2927 = vor.u32 %v2925, %v2926
    %v2928 = vsub.s32 4294967266, %v2923
    %v2929 = vadd.s32 %v2928, 127
    %v2930 = vshll.u32 %v2929, 23
    %v2931 = vor.u32 4788187, %v2930
    %v2932 = vand.u32 2147483647, %v2931
    %v2934 = vcvt.s32.f32 %v2927
    %v2935 = vmul.f32 %v2934, %v2932
    %v2936 = vxor.u32 %v2935, 2147483648
    %v2937 = vsel %vm2854, %v2936, %v2935
    %v2938 = vsub.s32 4, %v2914
    %v2939 = vsel %vm2854, %v2938, %v2914
    %v2940 = vsel %vm2853, %v2121, %v2937
    %v2941 = vsel %vm2853, 0, %v2939
    %v2942 = vcosq.f32.pop %v2940
    %v2943 = vsinq.f32.pop %v2940
    %vm2944 = vweird.f32 %v2121
    %v2945 = vadd.s32 %v2941, 3
    %v2946 = vand.u32 %v2945, 3
    %vm2947 = vcmp.lt.s32.totalorder %v2946, 2
    %vm2948 = vcmp.eq.s32.totalorder %v2946, 0
    %v2949 = vxor.u32 %v2943, 2147483648
    %v2950 = vsel %vm2948, %v2942, %v2949
    %vm2951 = vcmp.eq.s32.totalorder %v2946, 2
    %v2952 = vxor.u32 %v2942, 2147483648
    %v2953 = vsel %vm2951, %v2952, %v2943
    %v2954 = vsel %vm2947, %v2950, %v2953
    %v2955 = vsel %vm2944, nan, %v2954
    %2956 = vst [vmem:[#allocation8] sm:$0xff] %v2227
    %2957 = vst [vmem:[#allocation8 + $0x8] sm:$0xff] %v2331
    %2958 = vst [vmem:[#allocation8 + $0x10] sm:$0xff] %v2435
    %2959 = vst [vmem:[#allocation8 + $0x18] sm:$0xff] %v2539
    %2960 = vst [vmem:[#allocation8 + $0x20] sm:$0xff] %v2643
    %2961 = vst [vmem:[#allocation8 + $0x28] sm:$0xff] %v2747
    %2962 = vst [vmem:[#allocation8 + $0x30] sm:$0xff] %v2851
    %2963 = vst [vmem:[#allocation8 + $0x38] sm:$0xff] %v2955
    %s2964 = scalar_lea.vmem [#allocation2], 256
    %v2965 = vld [vmem:[%s2964] sm:$0xff]
    %v2966 = vld [vmem:[%s2964 + $0x8] sm:$0xff]
    %v2967 = vld [vmem:[%s2964 + $0x10] sm:$0xff]
    %v2968 = vld [vmem:[%s2964 + $0x18] sm:$0xff]
    %v2969 = vld [vmem:[%s2964 + $0x20] sm:$0xff]
    %v2970 = vld [vmem:[%s2964 + $0x28] sm:$0xff]
    %v2971 = vld [vmem:[%s2964 + $0x30] sm:$0xff]
    %v2972 = vld [vmem:[%s2964 + $0x38] sm:$0xff]
    %v2973 = vld [vmem:[%s2964 + $0x40] sm:$0xff]
    %v2974 = vld [vmem:[%s2964 + $0x48] sm:$0xff]
    %v2975 = vld [vmem:[%s2964 + $0x50] sm:$0xff]
    %v2976 = vld [vmem:[%s2964 + $0x58] sm:$0xff]
    %v2977 = vld [vmem:[%s2964 + $0x60] sm:$0xff]
    %v2978 = vld [vmem:[%s2964 + $0x68] sm:$0xff]
    %v2979 = vld [vmem:[%s2964 + $0x70] sm:$0xff]
    %v2980 = vld [vmem:[%s2964 + $0x78] sm:$0xff]
    %s2981 = scalar_lea.vmem %s3, 3
    %v2982 = vld [vmem:[%s2981] sm:$0x1]
    %v2984 = vlaneseq
    %v2985 = vshrl.u32 %v2984, 7
    %v2986 = vsub.s32 0, %v2985
    %v2987 = vrot.slane %v2982, %v2986
    %2989 = vmatprep.subr.mxu0 0.0
    %2990 = vmatpush1.msra.mxu0 %v2980
    %2991 = vmatprep.subr.mxu0 0.0
    %2992 = vmatpush1.msra.mxu0 %v2979
    %2993 = vmatprep.subr.mxu0 0.0
    %2994 = vmatpush1.msra.mxu0 %v2978
    %2995 = vmatprep.subr.mxu0 0.0
    %2996 = vmatpush1.msra.mxu0 %v2977
    %2997 = vmatprep.subr.mxu0 0.0
    %2998 = vmatpush1.msra.mxu0 %v2976
    %2999 = vmatprep.subr.mxu0 0.0
    %3000 = vmatpush1.msra.mxu0 %v2975
    %3001 = vmatprep.subr.mxu0 0.0
    %3002 = vmatpush1.msra.mxu0 %v2974
    %3003 = vmatprep.subr.mxu0 0.0
    %3004 = vmatpush1.msra.mxu0 %v2973
    %3005 = vmatprep.subr.mxu0 0.0
    %3006 = vmatpush1.msra.mxu0 %v2972
    %3007 = vmatprep.subr.mxu0 0.0
    %3008 = vmatpush1.msra.mxu0 %v2971
    %3009 = vmatprep.subr.mxu0 0.0
    %3010 = vmatpush1.msra.mxu0 %v2970
    %3011 = vmatprep.subr.mxu0 0.0
    %3012 = vmatpush1.msra.mxu0 %v2969
    %3013 = vmatprep.subr.mxu0 0.0
    %3014 = vmatpush1.msra.mxu0 %v2968
    %3015 = vmatprep.subr.mxu0 0.0
    %3016 = vmatpush1.msra.mxu0 %v2967
    %3017 = vmatprep.subr.mxu0 0.0
    %3018 = vmatpush1.msra.mxu0 %v2966
    %3019 = vmatprep.subr.mxu0 0.0
    %3020 = vmatpush1.msra.mxu0 %v2965
    %3021 = vmatprep.subr.mxu0 0.0
    %3022 = vmatpush2.msra.mxu0 0.0
    %3023 = vmatprep.subr.mxu0 0.0
    %3024 = vmatpush2.msra.mxu0 0.0
    %3025 = vmatprep.subr.mxu0 0.0
    %3026 = vmatpush2.msra.mxu0 0.0
    %3027 = vmatprep.subr.mxu0 0.0
    %3028 = vmatpush2.msra.mxu0 0.0
    %3029 = vmatprep.subr.mxu0 0.0
    %3030 = vmatpush2.msra.mxu0 0.0
    %3031 = vmatprep.subr.mxu0 0.0
    %3032 = vmatpush2.msra.mxu0 0.0
    %3033 = vmatprep.subr.mxu0 0.0
    %3034 = vmatpush2.msra.mxu0 0.0
    %3035 = vmatprep.subr.mxu0 0.0
    %3036 = vmatpush2.msra.mxu0 0.0
    %3037 = vmatprep.subr.mxu0 0.0
    %3038 = vmatpush2.msra.mxu0 0.0
    %3039 = vmatprep.subr.mxu0 0.0
    %3040 = vmatpush2.msra.mxu0 0.0
    %3041 = vmatprep.subr.mxu0 0.0
    %3042 = vmatpush2.msra.mxu0 0.0
    %3043 = vmatprep.subr.mxu0 0.0
    %3044 = vmatpush2.msra.mxu0 0.0
    %3045 = vmatprep.subr.mxu0 0.0
    %3046 = vmatpush2.msra.mxu0 0.0
    %3047 = vmatprep.subr.mxu0 0.0
    %3048 = vmatpush2.msra.mxu0 0.0
    %3049 = vmatprep.subr.mxu0 0.0
    %3050 = vmatpush2.msra.mxu0 0.0
    %3051 = vmatprep.subr.mxu0 0.0
    %3052 = vmatpush2.msra.mxu0 0.0
    %3053 = vmatprep.mubr.f32.mxu0 0.0
    %3054 = vmatmul.mubr.f32.gmra.mxu0 %v2227
    %v3055 = vpop.f32.mrf.mxu0
    %v3056 = vadd.f32 %v2987, %v3055
    %v3057 = vpop.f32.mrf.mxu0
    %3058 = vmatprep.mubr.f32.mxu0 0.0
    %3059 = vmatmul.mubr.f32.gmra.mxu0 %v2331
    %v3060 = vpop.f32.mrf.mxu0
    %v3061 = vadd.f32 %v2987, %v3060
    %v3062 = vpop.f32.mrf.mxu0
    %3063 = vmatprep.mubr.f32.mxu0 0.0
    %3064 = vmatmul.mubr.f32.gmra.mxu0 %v2435
    %v3065 = vpop.f32.mrf.mxu0
    %v3066 = vadd.f32 %v2987, %v3065
    %v3067 = vpop.f32.mrf.mxu0
    %3068 = vmatprep.mubr.f32.mxu0 0.0
    %3069 = vmatmul.mubr.f32.gmra.mxu0 %v2539
    %v3070 = vpop.f32.mrf.mxu0
    %v3071 = vadd.f32 %v2987, %v3070
    %v3072 = vpop.f32.mrf.mxu0
    %3073 = vmatprep.mubr.f32.mxu0 0.0
    %3074 = vmatmul.mubr.f32.gmra.mxu0 %v2643
    %v3075 = vpop.f32.mrf.mxu0
    %v3076 = vadd.f32 %v2987, %v3075
    %v3077 = vpop.f32.mrf.mxu0
    %3078 = vmatprep.mubr.f32.mxu0 0.0
    %3079 = vmatmul.mubr.f32.gmra.mxu0 %v2747
    %v3080 = vpop.f32.mrf.mxu0
    %v3081 = vadd.f32 %v2987, %v3080
    %v3082 = vpop.f32.mrf.mxu0
    %3083 = vmatprep.mubr.f32.mxu0 0.0
    %3084 = vmatmul.mubr.f32.gmra.mxu0 %v2851
    %v3085 = vpop.f32.mrf.mxu0
    %v3086 = vadd.f32 %v2987, %v3085
    %v3087 = vpop.f32.mrf.mxu0
    %3088 = vmatprep.mubr.f32.mxu0 0.0
    %3089 = vmatmul.mubr.f32.gmra.mxu0 %v2955
    %v3090 = vpop.f32.mrf.mxu0
    %v3091 = vadd.f32 %v2987, %v3090
    %v3092 = vpop.f32.mrf.mxu0
    %3093 = vdwg.mxu0
    %v3094 = vand.u32 2147483647, %v3056
    %vm3095 = vcmp.le.f32.partialorder %v3094, 0.7853982
    %vm3096 = vcmp.lt.s32.totalorder %v3056, 0
    %v3097 = vand.u32 %v3056, 2139095040
    %v3098 = vshrl.u32 %v3097, 23
    %v3099 = vsub.s32 %v3098, 127
    %v3100 = vand.u32 2147483647, %v3056
    %v3101 = vand.u32 %v3100, 8388607
    %v3102 = vor.u32 %v3101, 8388608
    %v3103 = vsub.s32 0, %v3102
    %v3104 = vadd.s32 %v3099, 1
    %vm3105 = vcmp.gt.s32.totalorder %v3104, 0
    %v3106 = vsel %vm3105, %v3104, 0
    %v3107 = vshrl.u32 %v3106, 5
    %v3108 = vand.u32 %v3106, 31
    %v3109 = vsub.s32 32, %v3108
    %v3110 = vshrl.u32 683565275, %v3109
    %v3111 = vshll.u32 683565275, %v3108
    %v3112 = vshrl.u32 2475754826, %v3109
    %v3113 = vor.u32 %v3111, %v3112
    %v3114 = vshll.u32 2475754826, %v3108
    %v3115 = vshrl.u32 2131351028, %v3109
    %v3116 = vor.u32 %v3114, %v3115
    %v3117 = vshll.u32 2131351028, %v3108
    %v3118 = vshrl.u32 2102212464, %v3109
    %v3119 = vor.u32 %v3117, %v3118
    %v3120 = vshll.u32 2102212464, %v3108
    %v3121 = vshrl.u32 920167782, %v3109
    %v3122 = vor.u32 %v3120, %v3121
    %v3123 = vshll.u32 920167782, %v3108
    %v3124 = vshrl.u32 1326507024, %v3109
    %v3125 = vor.u32 %v3123, %v3124
    %vm3126 = vcmp.lt.s32.totalorder %v3107, 1
    %vm3127 = vcmp.lt.s32.totalorder %v3107, 2
    %vm3128 = vcmp.lt.s32.totalorder %v3107, 3
    %vm3129 = vcmp.lt.s32.totalorder %v3107, 4
    %v3130 = vsel %vm3126, %v3110, %v3113
    %v3131 = vsel %vm3129, %v3119, 2102212464
    %v3132 = vsel %vm3128, %v3116, %v3131
    %v3133 = vsel %vm3127, %v3130, %v3132
    %v3134 = vsel %vm3126, %v3113, %v3116
    %v3135 = vsel %vm3129, %v3122, 920167782
    %v3136 = vsel %vm3128, %v3119, %v3135
    %v3137 = vsel %vm3127, %v3134, %v3136
    %v3138 = vsel %vm3126, %v3116, %v3119
    %v3139 = vsel %vm3129, %v3125, 1326507024
    %v3140 = vsel %vm3128, %v3122, %v3139
    %v3141 = vsel %vm3127, %v3138, %v3140
    %v3142 = vshll.u32 %v3102, 8
    %v3143 = vmul.u32.u64.compose %v3142, %v3141
    %v3144 = vextract.low.u32 %v3143
    %v3145 = vextract.high.u32 %v3143
    %v3146 = vmul.u32.u64.compose %v3142, %v3137
    %v3147 = vextract.low.u32 %v3146
    %v3148 = vextract.high.u32 %v3146
    %v3149 = vmul.u32 %v3142, %v3133
    %v3150 = vadd.s32 %v3145, %v3147
    %vm3151 = vc.u32 %v3145, %v3147
    %v3152 = vadd.s32 %v3148, 1
    %v3153 = vsel %vm3151, %v3152, %v3148
    %v3154 = vadd.s32 %v3149, %v3153
    %v3155 = vadd.s32 %v3154, 536870912
    %v3156 = vshrl.u32 %v3155, 30
    %v3157 = vshll.u32 %v3156, 30
    %v3158 = vsub.s32 %v3154, %v3157
    %vm3159 = vcmp.lt.s32.totalorder %v3158, 0
    %v3160 = vsub.s32 0, %v3158
    %v3161 = vsel %vm3159, %v3160, %v3158
    %v3162 = vclz %v3161
    %v3163 = vsub.s32 %v3162, 2
    %vm3164 = vcmp.gt.s32.totalorder 0, %v3163
    %v3165 = vsel %vm3164, 0, %v3163
    %v3166 = vsub.s32 32, %v3165
    %v3167 = vshll.u32 %v3158, %v3165
    %v3168 = vshrl.u32 %v3150, %v3166
    %v3169 = vor.u32 %v3167, %v3168
    %v3170 = vsub.s32 4294967266, %v3165
    %v3171 = vadd.s32 %v3170, 127
    %v3172 = vshll.u32 %v3171, 23
    %v3173 = vor.u32 4788187, %v3172
    %v3174 = vand.u32 2147483647, %v3173
    %v3176 = vcvt.s32.f32 %v3169
    %v3177 = vmul.f32 %v3176, %v3174
    %v3178 = vxor.u32 %v3177, 2147483648
    %v3179 = vsel %vm3096, %v3178, %v3177
    %v3180 = vsub.s32 4, %v3156
    %v3181 = vsel %vm3096, %v3180, %v3156
    %v3182 = vsel %vm3095, %v3056, %v3179
    %v3183 = vsel %vm3095, 0, %v3181
    %v3184 = vcosq.f32.pop %v3182
    %v3185 = vsinq.f32.pop %v3182
    %vm3186 = vweird.f32 %v3056
    %v3187 = vadd.s32 %v3183, 3
    %v3188 = vand.u32 %v3187, 3
    %vm3189 = vcmp.lt.s32.totalorder %v3188, 2
    %vm3190 = vcmp.eq.s32.totalorder %v3188, 0
    %v3191 = vxor.u32 %v3185, 2147483648
    %v3192 = vsel %vm3190, %v3184, %v3191
    %vm3193 = vcmp.eq.s32.totalorder %v3188, 2
    %v3194 = vxor.u32 %v3184, 2147483648
    %v3195 = vsel %vm3193, %v3194, %v3185
    %v3196 = vsel %vm3189, %v3192, %v3195
    %v3197 = vsel %vm3186, nan, %v3196
    %v3198 = vand.u32 2147483647, %v3061
    %vm3199 = vcmp.le.f32.partialorder %v3198, 0.7853982
    %vm3200 = vcmp.lt.s32.totalorder %v3061, 0
    %v3201 = vand.u32 %v3061, 2139095040
    %v3202 = vshrl.u32 %v3201, 23
    %v3203 = vsub.s32 %v3202, 127
    %v3204 = vand.u32 2147483647, %v3061
    %v3205 = vand.u32 %v3204, 8388607
    %v3206 = vor.u32 %v3205, 8388608
    %v3207 = vsub.s32 0, %v3206
    %v3208 = vadd.s32 %v3203, 1
    %vm3209 = vcmp.gt.s32.totalorder %v3208, 0
    %v3210 = vsel %vm3209, %v3208, 0
    %v3211 = vshrl.u32 %v3210, 5
    %v3212 = vand.u32 %v3210, 31
    %v3213 = vsub.s32 32, %v3212
    %v3214 = vshrl.u32 683565275, %v3213
    %v3215 = vshll.u32 683565275, %v3212
    %v3216 = vshrl.u32 2475754826, %v3213
    %v3217 = vor.u32 %v3215, %v3216
    %v3218 = vshll.u32 2475754826, %v3212
    %v3219 = vshrl.u32 2131351028, %v3213
    %v3220 = vor.u32 %v3218, %v3219
    %v3221 = vshll.u32 2131351028, %v3212
    %v3222 = vshrl.u32 2102212464, %v3213
    %v3223 = vor.u32 %v3221, %v3222
    %v3224 = vshll.u32 2102212464, %v3212
    %v3225 = vshrl.u32 920167782, %v3213
    %v3226 = vor.u32 %v3224, %v3225
    %v3227 = vshll.u32 920167782, %v3212
    %v3228 = vshrl.u32 1326507024, %v3213
    %v3229 = vor.u32 %v3227, %v3228
    %vm3230 = vcmp.lt.s32.totalorder %v3211, 1
    %vm3231 = vcmp.lt.s32.totalorder %v3211, 2
    %vm3232 = vcmp.lt.s32.totalorder %v3211, 3
    %vm3233 = vcmp.lt.s32.totalorder %v3211, 4
    %v3234 = vsel %vm3230, %v3214, %v3217
    %v3235 = vsel %vm3233, %v3223, 2102212464
    %v3236 = vsel %vm3232, %v3220, %v3235
    %v3237 = vsel %vm3231, %v3234, %v3236
    %v3238 = vsel %vm3230, %v3217, %v3220
    %v3239 = vsel %vm3233, %v3226, 920167782
    %v3240 = vsel %vm3232, %v3223, %v3239
    %v3241 = vsel %vm3231, %v3238, %v3240
    %v3242 = vsel %vm3230, %v3220, %v3223
    %v3243 = vsel %vm3233, %v3229, 1326507024
    %v3244 = vsel %vm3232, %v3226, %v3243
    %v3245 = vsel %vm3231, %v3242, %v3244
    %v3246 = vshll.u32 %v3206, 8
    %v3247 = vmul.u32.u64.compose %v3246, %v3245
    %v3248 = vextract.low.u32 %v3247
    %v3249 = vextract.high.u32 %v3247
    %v3250 = vmul.u32.u64.compose %v3246, %v3241
    %v3251 = vextract.low.u32 %v3250
    %v3252 = vextract.high.u32 %v3250
    %v3253 = vmul.u32 %v3246, %v3237
    %v3254 = vadd.s32 %v3249, %v3251
    %vm3255 = vc.u32 %v3249, %v3251
    %v3256 = vadd.s32 %v3252, 1
    %v3257 = vsel %vm3255, %v3256, %v3252
    %v3258 = vadd.s32 %v3253, %v3257
    %v3259 = vadd.s32 %v3258, 536870912
    %v3260 = vshrl.u32 %v3259, 30
    %v3261 = vshll.u32 %v3260, 30
    %v3262 = vsub.s32 %v3258, %v3261
    %vm3263 = vcmp.lt.s32.totalorder %v3262, 0
    %v3264 = vsub.s32 0, %v3262
    %v3265 = vsel %vm3263, %v3264, %v3262
    %v3266 = vclz %v3265
    %v3267 = vsub.s32 %v3266, 2
    %vm3268 = vcmp.gt.s32.totalorder 0, %v3267
    %v3269 = vsel %vm3268, 0, %v3267
    %v3270 = vsub.s32 32, %v3269
    %v3271 = vshll.u32 %v3262, %v3269
    %v3272 = vshrl.u32 %v3254, %v3270
    %v3273 = vor.u32 %v3271, %v3272
    %v3274 = vsub.s32 4294967266, %v3269
    %v3275 = vadd.s32 %v3274, 127
    %v3276 = vshll.u32 %v3275, 23
    %v3277 = vor.u32 4788187, %v3276
    %v3278 = vand.u32 2147483647, %v3277
    %v3280 = vcvt.s32.f32 %v3273
    %v3281 = vmul.f32 %v3280, %v3278
    %v3282 = vxor.u32 %v3281, 2147483648
    %v3283 = vsel %vm3200, %v3282, %v3281
    %v3284 = vsub.s32 4, %v3260
    %v3285 = vsel %vm3200, %v3284, %v3260
    %v3286 = vsel %vm3199, %v3061, %v3283
    %v3287 = vsel %vm3199, 0, %v3285
    %v3288 = vcosq.f32.pop %v3286
    %v3289 = vsinq.f32.pop %v3286
    %vm3290 = vweird.f32 %v3061
    %v3291 = vadd.s32 %v3287, 3
    %v3292 = vand.u32 %v3291, 3
    %vm3293 = vcmp.lt.s32.totalorder %v3292, 2
    %vm3294 = vcmp.eq.s32.totalorder %v3292, 0
    %v3295 = vxor.u32 %v3289, 2147483648
    %v3296 = vsel %vm3294, %v3288, %v3295
    %vm3297 = vcmp.eq.s32.totalorder %v3292, 2
    %v3298 = vxor.u32 %v3288, 2147483648
    %v3299 = vsel %vm3297, %v3298, %v3289
    %v3300 = vsel %vm3293, %v3296, %v3299
    %v3301 = vsel %vm3290, nan, %v3300
    %v3302 = vand.u32 2147483647, %v3066
    %vm3303 = vcmp.le.f32.partialorder %v3302, 0.7853982
    %vm3304 = vcmp.lt.s32.totalorder %v3066, 0
    %v3305 = vand.u32 %v3066, 2139095040
    %v3306 = vshrl.u32 %v3305, 23
    %v3307 = vsub.s32 %v3306, 127
    %v3308 = vand.u32 2147483647, %v3066
    %v3309 = vand.u32 %v3308, 8388607
    %v3310 = vor.u32 %v3309, 8388608
    %v3311 = vsub.s32 0, %v3310
    %v3312 = vadd.s32 %v3307, 1
    %vm3313 = vcmp.gt.s32.totalorder %v3312, 0
    %v3314 = vsel %vm3313, %v3312, 0
    %v3315 = vshrl.u32 %v3314, 5
    %v3316 = vand.u32 %v3314, 31
    %v3317 = vsub.s32 32, %v3316
    %v3318 = vshrl.u32 683565275, %v3317
    %v3319 = vshll.u32 683565275, %v3316
    %v3320 = vshrl.u32 2475754826, %v3317
    %v3321 = vor.u32 %v3319, %v3320
    %v3322 = vshll.u32 2475754826, %v3316
    %v3323 = vshrl.u32 2131351028, %v3317
    %v3324 = vor.u32 %v3322, %v3323
    %v3325 = vshll.u32 2131351028, %v3316
    %v3326 = vshrl.u32 2102212464, %v3317
    %v3327 = vor.u32 %v3325, %v3326
    %v3328 = vshll.u32 2102212464, %v3316
    %v3329 = vshrl.u32 920167782, %v3317
    %v3330 = vor.u32 %v3328, %v3329
    %v3331 = vshll.u32 920167782, %v3316
    %v3332 = vshrl.u32 1326507024, %v3317
    %v3333 = vor.u32 %v3331, %v3332
    %vm3334 = vcmp.lt.s32.totalorder %v3315, 1
    %vm3335 = vcmp.lt.s32.totalorder %v3315, 2
    %vm3336 = vcmp.lt.s32.totalorder %v3315, 3
    %vm3337 = vcmp.lt.s32.totalorder %v3315, 4
    %v3338 = vsel %vm3334, %v3318, %v3321
    %v3339 = vsel %vm3337, %v3327, 2102212464
    %v3340 = vsel %vm3336, %v3324, %v3339
    %v3341 = vsel %vm3335, %v3338, %v3340
    %v3342 = vsel %vm3334, %v3321, %v3324
    %v3343 = vsel %vm3337, %v3330, 920167782
    %v3344 = vsel %vm3336, %v3327, %v3343
    %v3345 = vsel %vm3335, %v3342, %v3344
    %v3346 = vsel %vm3334, %v3324, %v3327
    %v3347 = vsel %vm3337, %v3333, 1326507024
    %v3348 = vsel %vm3336, %v3330, %v3347
    %v3349 = vsel %vm3335, %v3346, %v3348
    %v3350 = vshll.u32 %v3310, 8
    %v3351 = vmul.u32.u64.compose %v3350, %v3349
    %v3352 = vextract.low.u32 %v3351
    %v3353 = vextract.high.u32 %v3351
    %v3354 = vmul.u32.u64.compose %v3350, %v3345
    %v3355 = vextract.low.u32 %v3354
    %v3356 = vextract.high.u32 %v3354
    %v3357 = vmul.u32 %v3350, %v3341
    %v3358 = vadd.s32 %v3353, %v3355
    %vm3359 = vc.u32 %v3353, %v3355
    %v3360 = vadd.s32 %v3356, 1
    %v3361 = vsel %vm3359, %v3360, %v3356
    %v3362 = vadd.s32 %v3357, %v3361
    %v3363 = vadd.s32 %v3362, 536870912
    %v3364 = vshrl.u32 %v3363, 30
    %v3365 = vshll.u32 %v3364, 30
    %v3366 = vsub.s32 %v3362, %v3365
    %vm3367 = vcmp.lt.s32.totalorder %v3366, 0
    %v3368 = vsub.s32 0, %v3366
    %v3369 = vsel %vm3367, %v3368, %v3366
    %v3370 = vclz %v3369
    %v3371 = vsub.s32 %v3370, 2
    %vm3372 = vcmp.gt.s32.totalorder 0, %v3371
    %v3373 = vsel %vm3372, 0, %v3371
    %v3374 = vsub.s32 32, %v3373
    %v3375 = vshll.u32 %v3366, %v3373
    %v3376 = vshrl.u32 %v3358, %v3374
    %v3377 = vor.u32 %v3375, %v3376
    %v3378 = vsub.s32 4294967266, %v3373
    %v3379 = vadd.s32 %v3378, 127
    %v3380 = vshll.u32 %v3379, 23
    %v3381 = vor.u32 4788187, %v3380
    %v3382 = vand.u32 2147483647, %v3381
    %v3384 = vcvt.s32.f32 %v3377
    %v3385 = vmul.f32 %v3384, %v3382
    %v3386 = vxor.u32 %v3385, 2147483648
    %v3387 = vsel %vm3304, %v3386, %v3385
    %v3388 = vsub.s32 4, %v3364
    %v3389 = vsel %vm3304, %v3388, %v3364
    %v3390 = vsel %vm3303, %v3066, %v3387
    %v3391 = vsel %vm3303, 0, %v3389
    %v3392 = vcosq.f32.pop %v3390
    %v3393 = vsinq.f32.pop %v3390
    %vm3394 = vweird.f32 %v3066
    %v3395 = vadd.s32 %v3391, 3
    %v3396 = vand.u32 %v3395, 3
    %vm3397 = vcmp.lt.s32.totalorder %v3396, 2
    %vm3398 = vcmp.eq.s32.totalorder %v3396, 0
    %v3399 = vxor.u32 %v3393, 2147483648
    %v3400 = vsel %vm3398, %v3392, %v3399
    %vm3401 = vcmp.eq.s32.totalorder %v3396, 2
    %v3402 = vxor.u32 %v3392, 2147483648
    %v3403 = vsel %vm3401, %v3402, %v3393
    %v3404 = vsel %vm3397, %v3400, %v3403
    %v3405 = vsel %vm3394, nan, %v3404
    %v3406 = vand.u32 2147483647, %v3071
    %vm3407 = vcmp.le.f32.partialorder %v3406, 0.7853982
    %vm3408 = vcmp.lt.s32.totalorder %v3071, 0
    %v3409 = vand.u32 %v3071, 2139095040
    %v3410 = vshrl.u32 %v3409, 23
    %v3411 = vsub.s32 %v3410, 127
    %v3412 = vand.u32 2147483647, %v3071
    %v3413 = vand.u32 %v3412, 8388607
    %v3414 = vor.u32 %v3413, 8388608
    %v3415 = vsub.s32 0, %v3414
    %v3416 = vadd.s32 %v3411, 1
    %vm3417 = vcmp.gt.s32.totalorder %v3416, 0
    %v3418 = vsel %vm3417, %v3416, 0
    %v3419 = vshrl.u32 %v3418, 5
    %v3420 = vand.u32 %v3418, 31
    %v3421 = vsub.s32 32, %v3420
    %v3422 = vshrl.u32 683565275, %v3421
    %v3423 = vshll.u32 683565275, %v3420
    %v3424 = vshrl.u32 2475754826, %v3421
    %v3425 = vor.u32 %v3423, %v3424
    %v3426 = vshll.u32 2475754826, %v3420
    %v3427 = vshrl.u32 2131351028, %v3421
    %v3428 = vor.u32 %v3426, %v3427
    %v3429 = vshll.u32 2131351028, %v3420
    %v3430 = vshrl.u32 2102212464, %v3421
    %v3431 = vor.u32 %v3429, %v3430
    %v3432 = vshll.u32 2102212464, %v3420
    %v3433 = vshrl.u32 920167782, %v3421
    %v3434 = vor.u32 %v3432, %v3433
    %v3435 = vshll.u32 920167782, %v3420
    %v3436 = vshrl.u32 1326507024, %v3421
    %v3437 = vor.u32 %v3435, %v3436
    %vm3438 = vcmp.lt.s32.totalorder %v3419, 1
    %vm3439 = vcmp.lt.s32.totalorder %v3419, 2
    %vm3440 = vcmp.lt.s32.totalorder %v3419, 3
    %vm3441 = vcmp.lt.s32.totalorder %v3419, 4
    %v3442 = vsel %vm3438, %v3422, %v3425
    %v3443 = vsel %vm3441, %v3431, 2102212464
    %v3444 = vsel %vm3440, %v3428, %v3443
    %v3445 = vsel %vm3439, %v3442, %v3444
    %v3446 = vsel %vm3438, %v3425, %v3428
    %v3447 = vsel %vm3441, %v3434, 920167782
    %v3448 = vsel %vm3440, %v3431, %v3447
    %v3449 = vsel %vm3439, %v3446, %v3448
    %v3450 = vsel %vm3438, %v3428, %v3431
    %v3451 = vsel %vm3441, %v3437, 1326507024
    %v3452 = vsel %vm3440, %v3434, %v3451
    %v3453 = vsel %vm3439, %v3450, %v3452
    %v3454 = vshll.u32 %v3414, 8
    %v3455 = vmul.u32.u64.compose %v3454, %v3453
    %v3456 = vextract.low.u32 %v3455
    %v3457 = vextract.high.u32 %v3455
    %v3458 = vmul.u32.u64.compose %v3454, %v3449
    %v3459 = vextract.low.u32 %v3458
    %v3460 = vextract.high.u32 %v3458
    %v3461 = vmul.u32 %v3454, %v3445
    %v3462 = vadd.s32 %v3457, %v3459
    %vm3463 = vc.u32 %v3457, %v3459
    %v3464 = vadd.s32 %v3460, 1
    %v3465 = vsel %vm3463, %v3464, %v3460
    %v3466 = vadd.s32 %v3461, %v3465
    %v3467 = vadd.s32 %v3466, 536870912
    %v3468 = vshrl.u32 %v3467, 30
    %v3469 = vshll.u32 %v3468, 30
    %v3470 = vsub.s32 %v3466, %v3469
    %vm3471 = vcmp.lt.s32.totalorder %v3470, 0
    %v3472 = vsub.s32 0, %v3470
    %v3473 = vsel %vm3471, %v3472, %v3470
    %v3474 = vclz %v3473
    %v3475 = vsub.s32 %v3474, 2
    %vm3476 = vcmp.gt.s32.totalorder 0, %v3475
    %v3477 = vsel %vm3476, 0, %v3475
    %v3478 = vsub.s32 32, %v3477
    %v3479 = vshll.u32 %v3470, %v3477
    %v3480 = vshrl.u32 %v3462, %v3478
    %v3481 = vor.u32 %v3479, %v3480
    %v3482 = vsub.s32 4294967266, %v3477
    %v3483 = vadd.s32 %v3482, 127
    %v3484 = vshll.u32 %v3483, 23
    %v3485 = vor.u32 4788187, %v3484
    %v3486 = vand.u32 2147483647, %v3485
    %v3488 = vcvt.s32.f32 %v3481
    %v3489 = vmul.f32 %v3488, %v3486
    %v3490 = vxor.u32 %v3489, 2147483648
    %v3491 = vsel %vm3408, %v3490, %v3489
    %v3492 = vsub.s32 4, %v3468
    %v3493 = vsel %vm3408, %v3492, %v3468
    %v3494 = vsel %vm3407, %v3071, %v3491
    %v3495 = vsel %vm3407, 0, %v3493
    %v3496 = vcosq.f32.pop %v3494
    %v3497 = vsinq.f32.pop %v3494
    %vm3498 = vweird.f32 %v3071
    %v3499 = vadd.s32 %v3495, 3
    %v3500 = vand.u32 %v3499, 3
    %vm3501 = vcmp.lt.s32.totalorder %v3500, 2
    %vm3502 = vcmp.eq.s32.totalorder %v3500, 0
    %v3503 = vxor.u32 %v3497, 2147483648
    %v3504 = vsel %vm3502, %v3496, %v3503
    %vm3505 = vcmp.eq.s32.totalorder %v3500, 2
    %v3506 = vxor.u32 %v3496, 2147483648
    %v3507 = vsel %vm3505, %v3506, %v3497
    %v3508 = vsel %vm3501, %v3504, %v3507
    %v3509 = vsel %vm3498, nan, %v3508
    %v3510 = vand.u32 2147483647, %v3076
    %vm3511 = vcmp.le.f32.partialorder %v3510, 0.7853982
    %vm3512 = vcmp.lt.s32.totalorder %v3076, 0
    %v3513 = vand.u32 %v3076, 2139095040
    %v3514 = vshrl.u32 %v3513, 23
    %v3515 = vsub.s32 %v3514, 127
    %v3516 = vand.u32 2147483647, %v3076
    %v3517 = vand.u32 %v3516, 8388607
    %v3518 = vor.u32 %v3517, 8388608
    %v3519 = vsub.s32 0, %v3518
    %v3520 = vadd.s32 %v3515, 1
    %vm3521 = vcmp.gt.s32.totalorder %v3520, 0
    %v3522 = vsel %vm3521, %v3520, 0
    %v3523 = vshrl.u32 %v3522, 5
    %v3524 = vand.u32 %v3522, 31
    %v3525 = vsub.s32 32, %v3524
    %v3526 = vshrl.u32 683565275, %v3525
    %v3527 = vshll.u32 683565275, %v3524
    %v3528 = vshrl.u32 2475754826, %v3525
    %v3529 = vor.u32 %v3527, %v3528
    %v3530 = vshll.u32 2475754826, %v3524
    %v3531 = vshrl.u32 2131351028, %v3525
    %v3532 = vor.u32 %v3530, %v3531
    %v3533 = vshll.u32 2131351028, %v3524
    %v3534 = vshrl.u32 2102212464, %v3525
    %v3535 = vor.u32 %v3533, %v3534
    %v3536 = vshll.u32 2102212464, %v3524
    %v3537 = vshrl.u32 920167782, %v3525
    %v3538 = vor.u32 %v3536, %v3537
    %v3539 = vshll.u32 920167782, %v3524
    %v3540 = vshrl.u32 1326507024, %v3525
    %v3541 = vor.u32 %v3539, %v3540
    %vm3542 = vcmp.lt.s32.totalorder %v3523, 1
    %vm3543 = vcmp.lt.s32.totalorder %v3523, 2
    %vm3544 = vcmp.lt.s32.totalorder %v3523, 3
    %vm3545 = vcmp.lt.s32.totalorder %v3523, 4
    %v3546 = vsel %vm3542, %v3526, %v3529
    %v3547 = vsel %vm3545, %v3535, 2102212464
    %v3548 = vsel %vm3544, %v3532, %v3547
    %v3549 = vsel %vm3543, %v3546, %v3548
    %v3550 = vsel %vm3542, %v3529, %v3532
    %v3551 = vsel %vm3545, %v3538, 920167782
    %v3552 = vsel %vm3544, %v3535, %v3551
    %v3553 = vsel %vm3543, %v3550, %v3552
    %v3554 = vsel %vm3542, %v3532, %v3535
    %v3555 = vsel %vm3545, %v3541, 1326507024
    %v3556 = vsel %vm3544, %v3538, %v3555
    %v3557 = vsel %vm3543, %v3554, %v3556
    %v3558 = vshll.u32 %v3518, 8
    %v3559 = vmul.u32.u64.compose %v3558, %v3557
    %v3560 = vextract.low.u32 %v3559
    %v3561 = vextract.high.u32 %v3559
    %v3562 = vmul.u32.u64.compose %v3558, %v3553
    %v3563 = vextract.low.u32 %v3562
    %v3564 = vextract.high.u32 %v3562
    %v3565 = vmul.u32 %v3558, %v3549
    %v3566 = vadd.s32 %v3561, %v3563
    %vm3567 = vc.u32 %v3561, %v3563
    %v3568 = vadd.s32 %v3564, 1
    %v3569 = vsel %vm3567, %v3568, %v3564
    %v3570 = vadd.s32 %v3565, %v3569
    %v3571 = vadd.s32 %v3570, 536870912
    %v3572 = vshrl.u32 %v3571, 30
    %v3573 = vshll.u32 %v3572, 30
    %v3574 = vsub.s32 %v3570, %v3573
    %vm3575 = vcmp.lt.s32.totalorder %v3574, 0
    %v3576 = vsub.s32 0, %v3574
    %v3577 = vsel %vm3575, %v3576, %v3574
    %v3578 = vclz %v3577
    %v3579 = vsub.s32 %v3578, 2
    %vm3580 = vcmp.gt.s32.totalorder 0, %v3579
    %v3581 = vsel %vm3580, 0, %v3579
    %v3582 = vsub.s32 32, %v3581
    %v3583 = vshll.u32 %v3574, %v3581
    %v3584 = vshrl.u32 %v3566, %v3582
    %v3585 = vor.u32 %v3583, %v3584
    %v3586 = vsub.s32 4294967266, %v3581
    %v3587 = vadd.s32 %v3586, 127
    %v3588 = vshll.u32 %v3587, 23
    %v3589 = vor.u32 4788187, %v3588
    %v3590 = vand.u32 2147483647, %v3589
    %v3592 = vcvt.s32.f32 %v3585
    %v3593 = vmul.f32 %v3592, %v3590
    %v3594 = vxor.u32 %v3593, 2147483648
    %v3595 = vsel %vm3512, %v3594, %v3593
    %v3596 = vsub.s32 4, %v3572
    %v3597 = vsel %vm3512, %v3596, %v3572
    %v3598 = vsel %vm3511, %v3076, %v3595
    %v3599 = vsel %vm3511, 0, %v3597
    %v3600 = vcosq.f32.pop %v3598
    %v3601 = vsinq.f32.pop %v3598
    %vm3602 = vweird.f32 %v3076
    %v3603 = vadd.s32 %v3599, 3
    %v3604 = vand.u32 %v3603, 3
    %vm3605 = vcmp.lt.s32.totalorder %v3604, 2
    %vm3606 = vcmp.eq.s32.totalorder %v3604, 0
    %v3607 = vxor.u32 %v3601, 2147483648
    %v3608 = vsel %vm3606, %v3600, %v3607
    %vm3609 = vcmp.eq.s32.totalorder %v3604, 2
    %v3610 = vxor.u32 %v3600, 2147483648
    %v3611 = vsel %vm3609, %v3610, %v3601
    %v3612 = vsel %vm3605, %v3608, %v3611
    %v3613 = vsel %vm3602, nan, %v3612
    %v3614 = vand.u32 2147483647, %v3081
    %vm3615 = vcmp.le.f32.partialorder %v3614, 0.7853982
    %vm3616 = vcmp.lt.s32.totalorder %v3081, 0
    %v3617 = vand.u32 %v3081, 2139095040
    %v3618 = vshrl.u32 %v3617, 23
    %v3619 = vsub.s32 %v3618, 127
    %v3620 = vand.u32 2147483647, %v3081
    %v3621 = vand.u32 %v3620, 8388607
    %v3622 = vor.u32 %v3621, 8388608
    %v3623 = vsub.s32 0, %v3622
    %v3624 = vadd.s32 %v3619, 1
    %vm3625 = vcmp.gt.s32.totalorder %v3624, 0
    %v3626 = vsel %vm3625, %v3624, 0
    %v3627 = vshrl.u32 %v3626, 5
    %v3628 = vand.u32 %v3626, 31
    %v3629 = vsub.s32 32, %v3628
    %v3630 = vshrl.u32 683565275, %v3629
    %v3631 = vshll.u32 683565275, %v3628
    %v3632 = vshrl.u32 2475754826, %v3629
    %v3633 = vor.u32 %v3631, %v3632
    %v3634 = vshll.u32 2475754826, %v3628
    %v3635 = vshrl.u32 2131351028, %v3629
    %v3636 = vor.u32 %v3634, %v3635
    %v3637 = vshll.u32 2131351028, %v3628
    %v3638 = vshrl.u32 2102212464, %v3629
    %v3639 = vor.u32 %v3637, %v3638
    %v3640 = vshll.u32 2102212464, %v3628
    %v3641 = vshrl.u32 920167782, %v3629
    %v3642 = vor.u32 %v3640, %v3641
    %v3643 = vshll.u32 920167782, %v3628
    %v3644 = vshrl.u32 1326507024, %v3629
    %v3645 = vor.u32 %v3643, %v3644
    %vm3646 = vcmp.lt.s32.totalorder %v3627, 1
    %vm3647 = vcmp.lt.s32.totalorder %v3627, 2
    %vm3648 = vcmp.lt.s32.totalorder %v3627, 3
    %vm3649 = vcmp.lt.s32.totalorder %v3627, 4
    %v3650 = vsel %vm3646, %v3630, %v3633
    %v3651 = vsel %vm3649, %v3639, 2102212464
    %v3652 = vsel %vm3648, %v3636, %v3651
    %v3653 = vsel %vm3647, %v3650, %v3652
    %v3654 = vsel %vm3646, %v3633, %v3636
    %v3655 = vsel %vm3649, %v3642, 920167782
    %v3656 = vsel %vm3648, %v3639, %v3655
    %v3657 = vsel %vm3647, %v3654, %v3656
    %v3658 = vsel %vm3646, %v3636, %v3639
    %v3659 = vsel %vm3649, %v3645, 1326507024
    %v3660 = vsel %vm3648, %v3642, %v3659
    %v3661 = vsel %vm3647, %v3658, %v3660
    %v3662 = vshll.u32 %v3622, 8
    %v3663 = vmul.u32.u64.compose %v3662, %v3661
    %v3664 = vextract.low.u32 %v3663
    %v3665 = vextract.high.u32 %v3663
    %v3666 = vmul.u32.u64.compose %v3662, %v3657
    %v3667 = vextract.low.u32 %v3666
    %v3668 = vextract.high.u32 %v3666
    %v3669 = vmul.u32 %v3662, %v3653
    %v3670 = vadd.s32 %v3665, %v3667
    %vm3671 = vc.u32 %v3665, %v3667
    %v3672 = vadd.s32 %v3668, 1
    %v3673 = vsel %vm3671, %v3672, %v3668
    %v3674 = vadd.s32 %v3669, %v3673
    %v3675 = vadd.s32 %v3674, 536870912
    %v3676 = vshrl.u32 %v3675, 30
    %v3677 = vshll.u32 %v3676, 30
    %v3678 = vsub.s32 %v3674, %v3677
    %vm3679 = vcmp.lt.s32.totalorder %v3678, 0
    %v3680 = vsub.s32 0, %v3678
    %v3681 = vsel %vm3679, %v3680, %v3678
    %v3682 = vclz %v3681
    %v3683 = vsub.s32 %v3682, 2
    %vm3684 = vcmp.gt.s32.totalorder 0, %v3683
    %v3685 = vsel %vm3684, 0, %v3683
    %v3686 = vsub.s32 32, %v3685
    %v3687 = vshll.u32 %v3678, %v3685
    %v3688 = vshrl.u32 %v3670, %v3686
    %v3689 = vor.u32 %v3687, %v3688
    %v3690 = vsub.s32 4294967266, %v3685
    %v3691 = vadd.s32 %v3690, 127
    %v3692 = vshll.u32 %v3691, 23
    %v3693 = vor.u32 4788187, %v3692
    %v3694 = vand.u32 2147483647, %v3693
    %v3696 = vcvt.s32.f32 %v3689
    %v3697 = vmul.f32 %v3696, %v3694
    %v3698 = vxor.u32 %v3697, 2147483648
    %v3699 = vsel %vm3616, %v3698, %v3697
    %v3700 = vsub.s32 4, %v3676
    %v3701 = vsel %vm3616, %v3700, %v3676
    %v3702 = vsel %vm3615, %v3081, %v3699
    %v3703 = vsel %vm3615, 0, %v3701
    %v3704 = vcosq.f32.pop %v3702
    %v3705 = vsinq.f32.pop %v3702
    %vm3706 = vweird.f32 %v3081
    %v3707 = vadd.s32 %v3703, 3
    %v3708 = vand.u32 %v3707, 3
    %vm3709 = vcmp.lt.s32.totalorder %v3708, 2
    %vm3710 = vcmp.eq.s32.totalorder %v3708, 0
    %v3711 = vxor.u32 %v3705, 2147483648
    %v3712 = vsel %vm3710, %v3704, %v3711
    %vm3713 = vcmp.eq.s32.totalorder %v3708, 2
    %v3714 = vxor.u32 %v3704, 2147483648
    %v3715 = vsel %vm3713, %v3714, %v3705
    %v3716 = vsel %vm3709, %v3712, %v3715
    %v3717 = vsel %vm3706, nan, %v3716
    %v3718 = vand.u32 2147483647, %v3086
    %vm3719 = vcmp.le.f32.partialorder %v3718, 0.7853982
    %vm3720 = vcmp.lt.s32.totalorder %v3086, 0
    %v3721 = vand.u32 %v3086, 2139095040
    %v3722 = vshrl.u32 %v3721, 23
    %v3723 = vsub.s32 %v3722, 127
    %v3724 = vand.u32 2147483647, %v3086
    %v3725 = vand.u32 %v3724, 8388607
    %v3726 = vor.u32 %v3725, 8388608
    %v3727 = vsub.s32 0, %v3726
    %v3728 = vadd.s32 %v3723, 1
    %vm3729 = vcmp.gt.s32.totalorder %v3728, 0
    %v3730 = vsel %vm3729, %v3728, 0
    %v3731 = vshrl.u32 %v3730, 5
    %v3732 = vand.u32 %v3730, 31
    %v3733 = vsub.s32 32, %v3732
    %v3734 = vshrl.u32 683565275, %v3733
    %v3735 = vshll.u32 683565275, %v3732
    %v3736 = vshrl.u32 2475754826, %v3733
    %v3737 = vor.u32 %v3735, %v3736
    %v3738 = vshll.u32 2475754826, %v3732
    %v3739 = vshrl.u32 2131351028, %v3733
    %v3740 = vor.u32 %v3738, %v3739
    %v3741 = vshll.u32 2131351028, %v3732
    %v3742 = vshrl.u32 2102212464, %v3733
    %v3743 = vor.u32 %v3741, %v3742
    %v3744 = vshll.u32 2102212464, %v3732
    %v3745 = vshrl.u32 920167782, %v3733
    %v3746 = vor.u32 %v3744, %v3745
    %v3747 = vshll.u32 920167782, %v3732
    %v3748 = vshrl.u32 1326507024, %v3733
    %v3749 = vor.u32 %v3747, %v3748
    %vm3750 = vcmp.lt.s32.totalorder %v3731, 1
    %vm3751 = vcmp.lt.s32.totalorder %v3731, 2
    %vm3752 = vcmp.lt.s32.totalorder %v3731, 3
    %vm3753 = vcmp.lt.s32.totalorder %v3731, 4
    %v3754 = vsel %vm3750, %v3734, %v3737
    %v3755 = vsel %vm3753, %v3743, 2102212464
    %v3756 = vsel %vm3752, %v3740, %v3755
    %v3757 = vsel %vm3751, %v3754, %v3756
    %v3758 = vsel %vm3750, %v3737, %v3740
    %v3759 = vsel %vm3753, %v3746, 920167782
    %v3760 = vsel %vm3752, %v3743, %v3759
    %v3761 = vsel %vm3751, %v3758, %v3760
    %v3762 = vsel %vm3750, %v3740, %v3743
    %v3763 = vsel %vm3753, %v3749, 1326507024
    %v3764 = vsel %vm3752, %v3746, %v3763
    %v3765 = vsel %vm3751, %v3762, %v3764
    %v3766 = vshll.u32 %v3726, 8
    %v3767 = vmul.u32.u64.compose %v3766, %v3765
    %v3768 = vextract.low.u32 %v3767
    %v3769 = vextract.high.u32 %v3767
    %v3770 = vmul.u32.u64.compose %v3766, %v3761
    %v3771 = vextract.low.u32 %v3770
    %v3772 = vextract.high.u32 %v3770
    %v3773 = vmul.u32 %v3766, %v3757
    %v3774 = vadd.s32 %v3769, %v3771
    %vm3775 = vc.u32 %v3769, %v3771
    %v3776 = vadd.s32 %v3772, 1
    %v3777 = vsel %vm3775, %v3776, %v3772
    %v3778 = vadd.s32 %v3773, %v3777
    %v3779 = vadd.s32 %v3778, 536870912
    %v3780 = vshrl.u32 %v3779, 30
    %v3781 = vshll.u32 %v3780, 30
    %v3782 = vsub.s32 %v3778, %v3781
    %vm3783 = vcmp.lt.s32.totalorder %v3782, 0
    %v3784 = vsub.s32 0, %v3782
    %v3785 = vsel %vm3783, %v3784, %v3782
    %v3786 = vclz %v3785
    %v3787 = vsub.s32 %v3786, 2
    %vm3788 = vcmp.gt.s32.totalorder 0, %v3787
    %v3789 = vsel %vm3788, 0, %v3787
    %v3790 = vsub.s32 32, %v3789
    %v3791 = vshll.u32 %v3782, %v3789
    %v3792 = vshrl.u32 %v3774, %v3790
    %v3793 = vor.u32 %v3791, %v3792
    %v3794 = vsub.s32 4294967266, %v3789
    %v3795 = vadd.s32 %v3794, 127
    %v3796 = vshll.u32 %v3795, 23
    %v3797 = vor.u32 4788187, %v3796
    %v3798 = vand.u32 2147483647, %v3797
    %v3800 = vcvt.s32.f32 %v3793
    %v3801 = vmul.f32 %v3800, %v3798
    %v3802 = vxor.u32 %v3801, 2147483648
    %v3803 = vsel %vm3720, %v3802, %v3801
    %v3804 = vsub.s32 4, %v3780
    %v3805 = vsel %vm3720, %v3804, %v3780
    %v3806 = vsel %vm3719, %v3086, %v3803
    %v3807 = vsel %vm3719, 0, %v3805
    %v3808 = vcosq.f32.pop %v3806
    %v3809 = vsinq.f32.pop %v3806
    %vm3810 = vweird.f32 %v3086
    %v3811 = vadd.s32 %v3807, 3
    %v3812 = vand.u32 %v3811, 3
    %vm3813 = vcmp.lt.s32.totalorder %v3812, 2
    %vm3814 = vcmp.eq.s32.totalorder %v3812, 0
    %v3815 = vxor.u32 %v3809, 2147483648
    %v3816 = vsel %vm3814, %v3808, %v3815
    %vm3817 = vcmp.eq.s32.totalorder %v3812, 2
    %v3818 = vxor.u32 %v3808, 2147483648
    %v3819 = vsel %vm3817, %v3818, %v3809
    %v3820 = vsel %vm3813, %v3816, %v3819
    %v3821 = vsel %vm3810, nan, %v3820
    %v3822 = vand.u32 2147483647, %v3091
    %vm3823 = vcmp.le.f32.partialorder %v3822, 0.7853982
    %vm3824 = vcmp.lt.s32.totalorder %v3091, 0
    %v3825 = vand.u32 %v3091, 2139095040
    %v3826 = vshrl.u32 %v3825, 23
    %v3827 = vsub.s32 %v3826, 127
    %v3828 = vand.u32 2147483647, %v3091
    %v3829 = vand.u32 %v3828, 8388607
    %v3830 = vor.u32 %v3829, 8388608
    %v3831 = vsub.s32 0, %v3830
    %v3832 = vadd.s32 %v3827, 1
    %vm3833 = vcmp.gt.s32.totalorder %v3832, 0
    %v3834 = vsel %vm3833, %v3832, 0
    %v3835 = vshrl.u32 %v3834, 5
    %v3836 = vand.u32 %v3834, 31
    %v3837 = vsub.s32 32, %v3836
    %v3838 = vshrl.u32 683565275, %v3837
    %v3839 = vshll.u32 683565275, %v3836
    %v3840 = vshrl.u32 2475754826, %v3837
    %v3841 = vor.u32 %v3839, %v3840
    %v3842 = vshll.u32 2475754826, %v3836
    %v3843 = vshrl.u32 2131351028, %v3837
    %v3844 = vor.u32 %v3842, %v3843
    %v3845 = vshll.u32 2131351028, %v3836
    %v3846 = vshrl.u32 2102212464, %v3837
    %v3847 = vor.u32 %v3845, %v3846
    %v3848 = vshll.u32 2102212464, %v3836
    %v3849 = vshrl.u32 920167782, %v3837
    %v3850 = vor.u32 %v3848, %v3849
    %v3851 = vshll.u32 920167782, %v3836
    %v3852 = vshrl.u32 1326507024, %v3837
    %v3853 = vor.u32 %v3851, %v3852
    %vm3854 = vcmp.lt.s32.totalorder %v3835, 1
    %vm3855 = vcmp.lt.s32.totalorder %v3835, 2
    %vm3856 = vcmp.lt.s32.totalorder %v3835, 3
    %vm3857 = vcmp.lt.s32.totalorder %v3835, 4
    %v3858 = vsel %vm3854, %v3838, %v3841
    %v3859 = vsel %vm3857, %v3847, 2102212464
    %v3860 = vsel %vm3856, %v3844, %v3859
    %v3861 = vsel %vm3855, %v3858, %v3860
    %v3862 = vsel %vm3854, %v3841, %v3844
    %v3863 = vsel %vm3857, %v3850, 920167782
    %v3864 = vsel %vm3856, %v3847, %v3863
    %v3865 = vsel %vm3855, %v3862, %v3864
    %v3866 = vsel %vm3854, %v3844, %v3847
    %v3867 = vsel %vm3857, %v3853, 1326507024
    %v3868 = vsel %vm3856, %v3850, %v3867
    %v3869 = vsel %vm3855, %v3866, %v3868
    %v3870 = vshll.u32 %v3830, 8
    %v3871 = vmul.u32.u64.compose %v3870, %v3869
    %v3872 = vextract.low.u32 %v3871
    %v3873 = vextract.high.u32 %v3871
    %v3874 = vmul.u32.u64.compose %v3870, %v3865
    %v3875 = vextract.low.u32 %v3874
    %v3876 = vextract.high.u32 %v3874
    %v3877 = vmul.u32 %v3870, %v3861
    %v3878 = vadd.s32 %v3873, %v3875
    %vm3879 = vc.u32 %v3873, %v3875
    %v3880 = vadd.s32 %v3876, 1
    %v3881 = vsel %vm3879, %v3880, %v3876
    %v3882 = vadd.s32 %v3877, %v3881
    %v3883 = vadd.s32 %v3882, 536870912
    %v3884 = vshrl.u32 %v3883, 30
    %v3885 = vshll.u32 %v3884, 30
    %v3886 = vsub.s32 %v3882, %v3885
    %vm3887 = vcmp.lt.s32.totalorder %v3886, 0
    %v3888 = vsub.s32 0, %v3886
    %v3889 = vsel %vm3887, %v3888, %v3886
    %v3890 = vclz %v3889
    %v3891 = vsub.s32 %v3890, 2
    %vm3892 = vcmp.gt.s32.totalorder 0, %v3891
    %v3893 = vsel %vm3892, 0, %v3891
    %v3894 = vsub.s32 32, %v3893
    %v3895 = vshll.u32 %v3886, %v3893
    %v3896 = vshrl.u32 %v3878, %v3894
    %v3897 = vor.u32 %v3895, %v3896
    %v3898 = vsub.s32 4294967266, %v3893
    %v3899 = vadd.s32 %v3898, 127
    %v3900 = vshll.u32 %v3899, 23
    %v3901 = vor.u32 4788187, %v3900
    %v3902 = vand.u32 2147483647, %v3901
    %v3904 = vcvt.s32.f32 %v3897
    %v3905 = vmul.f32 %v3904, %v3902
    %v3906 = vxor.u32 %v3905, 2147483648
    %v3907 = vsel %vm3824, %v3906, %v3905
    %v3908 = vsub.s32 4, %v3884
    %v3909 = vsel %vm3824, %v3908, %v3884
    %v3910 = vsel %vm3823, %v3091, %v3907
    %v3911 = vsel %vm3823, 0, %v3909
    %v3912 = vcosq.f32.pop %v3910
    %v3913 = vsinq.f32.pop %v3910
    %vm3914 = vweird.f32 %v3091
    %v3915 = vadd.s32 %v3911, 3
    %v3916 = vand.u32 %v3915, 3
    %vm3917 = vcmp.lt.s32.totalorder %v3916, 2
    %vm3918 = vcmp.eq.s32.totalorder %v3916, 0
    %v3919 = vxor.u32 %v3913, 2147483648
    %v3920 = vsel %vm3918, %v3912, %v3919
    %vm3921 = vcmp.eq.s32.totalorder %v3916, 2
    %v3922 = vxor.u32 %v3912, 2147483648
    %v3923 = vsel %vm3921, %v3922, %v3913
    %v3924 = vsel %vm3917, %v3920, %v3923
    %v3925 = vsel %vm3914, nan, %v3924
    %s3926 = scalar_lea.vmem [#allocation2], 384
    %v3927 = vld [vmem:[%s3926] sm:$0xff]
    %v3928 = vld [vmem:[%s3926 + $0x8] sm:$0xff]
    %v3929 = vld [vmem:[%s3926 + $0x10] sm:$0xff]
    %v3930 = vld [vmem:[%s3926 + $0x18] sm:$0xff]
    %v3931 = vld [vmem:[%s3926 + $0x20] sm:$0xff]
    %v3932 = vld [vmem:[%s3926 + $0x28] sm:$0xff]
    %v3933 = vld [vmem:[%s3926 + $0x30] sm:$0xff]
    %v3934 = vld [vmem:[%s3926 + $0x38] sm:$0xff]
    %v3935 = vld [vmem:[%s3926 + $0x40] sm:$0xff]
    %v3936 = vld [vmem:[%s3926 + $0x48] sm:$0xff]
    %v3937 = vld [vmem:[%s3926 + $0x50] sm:$0xff]
    %v3938 = vld [vmem:[%s3926 + $0x58] sm:$0xff]
    %v3939 = vld [vmem:[%s3926 + $0x60] sm:$0xff]
    %v3940 = vld [vmem:[%s3926 + $0x68] sm:$0xff]
    %v3941 = vld [vmem:[%s3926 + $0x70] sm:$0xff]
    %v3942 = vld [vmem:[%s3926 + $0x78] sm:$0xff]
    %s3943 = scalar_lea.vmem %s3, 4
    %v3944 = vld [vmem:[%s3943] sm:$0x1]
    %v3946 = vlaneseq
    %v3947 = vshrl.u32 %v3946, 7
    %v3948 = vsub.s32 0, %v3947
    %v3949 = vrot.slane %v3944, %v3948
    %3951 = vmatprep.subr.mxu0 0.0
    %3952 = vmatpush1.msra.mxu0 %v3942
    %3953 = vmatprep.subr.mxu0 0.0
    %3954 = vmatpush1.msra.mxu0 %v3941
    %3955 = vmatprep.subr.mxu0 0.0
    %3956 = vmatpush1.msra.mxu0 %v3940
    %3957 = vmatprep.subr.mxu0 0.0
    %3958 = vmatpush1.msra.mxu0 %v3939
    %3959 = vmatprep.subr.mxu0 0.0
    %3960 = vmatpush1.msra.mxu0 %v3938
    %3961 = vmatprep.subr.mxu0 0.0
    %3962 = vmatpush1.msra.mxu0 %v3937
    %3963 = vmatprep.subr.mxu0 0.0
    %3964 = vmatpush1.msra.mxu0 %v3936
    %3965 = vmatprep.subr.mxu0 0.0
    %3966 = vmatpush1.msra.mxu0 %v3935
    %3967 = vmatprep.subr.mxu0 0.0
    %3968 = vmatpush1.msra.mxu0 %v3934
    %3969 = vmatprep.subr.mxu0 0.0
    %3970 = vmatpush1.msra.mxu0 %v3933
    %3971 = vmatprep.subr.mxu0 0.0
    %3972 = vmatpush1.msra.mxu0 %v3932
    %3973 = vmatprep.subr.mxu0 0.0
    %3974 = vmatpush1.msra.mxu0 %v3931
    %3975 = vmatprep.subr.mxu0 0.0
    %3976 = vmatpush1.msra.mxu0 %v3930
    %3977 = vmatprep.subr.mxu0 0.0
    %3978 = vmatpush1.msra.mxu0 %v3929
    %3979 = vmatprep.subr.mxu0 0.0
    %3980 = vmatpush1.msra.mxu0 %v3928
    %3981 = vmatprep.subr.mxu0 0.0
    %3982 = vmatpush1.msra.mxu0 %v3927
    %3983 = vmatprep.subr.mxu0 0.0
    %3984 = vmatpush2.msra.mxu0 0.0
    %3985 = vmatprep.subr.mxu0 0.0
    %3986 = vmatpush2.msra.mxu0 0.0
    %3987 = vmatprep.subr.mxu0 0.0
    %3988 = vmatpush2.msra.mxu0 0.0
    %3989 = vmatprep.subr.mxu0 0.0
    %3990 = vmatpush2.msra.mxu0 0.0
    %3991 = vmatprep.subr.mxu0 0.0
    %3992 = vmatpush2.msra.mxu0 0.0
    %3993 = vmatprep.subr.mxu0 0.0
    %3994 = vmatpush2.msra.mxu0 0.0
    %3995 = vmatprep.subr.mxu0 0.0
    %3996 = vmatpush2.msra.mxu0 0.0
    %3997 = vmatprep.subr.mxu0 0.0
    %3998 = vmatpush2.msra.mxu0 0.0
    %3999 = vmatprep.subr.mxu0 0.0
    %4000 = vmatpush2.msra.mxu0 0.0
    %4001 = vmatprep.subr.mxu0 0.0
    %4002 = vmatpush2.msra.mxu0 0.0
    %4003 = vmatprep.subr.mxu0 0.0
    %4004 = vmatpush2.msra.mxu0 0.0
    %4005 = vmatprep.subr.mxu0 0.0
    %4006 = vmatpush2.msra.mxu0 0.0
    %4007 = vmatprep.subr.mxu0 0.0
    %4008 = vmatpush2.msra.mxu0 0.0
    %4009 = vmatprep.subr.mxu0 0.0
    %4010 = vmatpush2.msra.mxu0 0.0
    %4011 = vmatprep.subr.mxu0 0.0
    %4012 = vmatpush2.msra.mxu0 0.0
    %4013 = vmatprep.subr.mxu0 0.0
    %4014 = vmatpush2.msra.mxu0 0.0
    %4015 = vmatprep.mubr.f32.mxu0 0.0
    %4016 = vmatmul.mubr.f32.gmra.mxu0 %v3197
    %v4017 = vpop.f32.mrf.mxu0
    %v4018 = vadd.f32 %v3949, %v4017
    %v4019 = vpop.f32.mrf.mxu0
    %4020 = vmatprep.mubr.f32.mxu0 0.0
    %4021 = vmatmul.mubr.f32.gmra.mxu0 %v3301
    %v4022 = vpop.f32.mrf.mxu0
    %v4023 = vadd.f32 %v3949, %v4022
    %v4024 = vpop.f32.mrf.mxu0
    %4025 = vmatprep.mubr.f32.mxu0 0.0
    %4026 = vmatmul.mubr.f32.gmra.mxu0 %v3405
    %v4027 = vpop.f32.mrf.mxu0
    %v4028 = vadd.f32 %v3949, %v4027
    %v4029 = vpop.f32.mrf.mxu0
    %4030 = vmatprep.mubr.f32.mxu0 0.0
    %4031 = vmatmul.mubr.f32.gmra.mxu0 %v3509
    %v4032 = vpop.f32.mrf.mxu0
    %v4033 = vadd.f32 %v3949, %v4032
    %v4034 = vpop.f32.mrf.mxu0
    %4035 = vmatprep.mubr.f32.mxu0 0.0
    %4036 = vmatmul.mubr.f32.gmra.mxu0 %v3613
    %v4037 = vpop.f32.mrf.mxu0
    %v4038 = vadd.f32 %v3949, %v4037
    %v4039 = vpop.f32.mrf.mxu0
    %4040 = vmatprep.mubr.f32.mxu0 0.0
    %4041 = vmatmul.mubr.f32.gmra.mxu0 %v3717
    %v4042 = vpop.f32.mrf.mxu0
    %v4043 = vadd.f32 %v3949, %v4042
    %v4044 = vpop.f32.mrf.mxu0
    %4045 = vmatprep.mubr.f32.mxu0 0.0
    %4046 = vmatmul.mubr.f32.gmra.mxu0 %v3821
    %v4047 = vpop.f32.mrf.mxu0
    %v4048 = vadd.f32 %v3949, %v4047
    %v4049 = vpop.f32.mrf.mxu0
    %4050 = vmatprep.mubr.f32.mxu0 0.0
    %4051 = vmatmul.mubr.f32.gmra.mxu0 %v3925
    %v4052 = vpop.f32.mrf.mxu0
    %v4053 = vadd.f32 %v3949, %v4052
    %v4054 = vpop.f32.mrf.mxu0
    %4055 = vdwg.mxu0
    %v4056 = vand.u32 2147483647, %v4018
    %vm4057 = vcmp.le.f32.partialorder %v4056, 0.7853982
    %vm4058 = vcmp.lt.s32.totalorder %v4018, 0
    %v4059 = vand.u32 %v4018, 2139095040
    %v4060 = vshrl.u32 %v4059, 23
    %v4061 = vsub.s32 %v4060, 127
    %v4062 = vand.u32 2147483647, %v4018
    %v4063 = vand.u32 %v4062, 8388607
    %v4064 = vor.u32 %v4063, 8388608
    %v4065 = vsub.s32 0, %v4064
    %v4066 = vadd.s32 %v4061, 1
    %vm4067 = vcmp.gt.s32.totalorder %v4066, 0
    %v4068 = vsel %vm4067, %v4066, 0
    %v4069 = vshrl.u32 %v4068, 5
    %v4070 = vand.u32 %v4068, 31
    %v4071 = vsub.s32 32, %v4070
    %v4072 = vshrl.u32 683565275, %v4071
    %v4073 = vshll.u32 683565275, %v4070
    %v4074 = vshrl.u32 2475754826, %v4071
    %v4075 = vor.u32 %v4073, %v4074
    %v4076 = vshll.u32 2475754826, %v4070
    %v4077 = vshrl.u32 2131351028, %v4071
    %v4078 = vor.u32 %v4076, %v4077
    %v4079 = vshll.u32 2131351028, %v4070
    %v4080 = vshrl.u32 2102212464, %v4071
    %v4081 = vor.u32 %v4079, %v4080
    %v4082 = vshll.u32 2102212464, %v4070
    %v4083 = vshrl.u32 920167782, %v4071
    %v4084 = vor.u32 %v4082, %v4083
    %v4085 = vshll.u32 920167782, %v4070
    %v4086 = vshrl.u32 1326507024, %v4071
    %v4087 = vor.u32 %v4085, %v4086
    %vm4088 = vcmp.lt.s32.totalorder %v4069, 1
    %vm4089 = vcmp.lt.s32.totalorder %v4069, 2
    %vm4090 = vcmp.lt.s32.totalorder %v4069, 3
    %vm4091 = vcmp.lt.s32.totalorder %v4069, 4
    %v4092 = vsel %vm4088, %v4072, %v4075
    %v4093 = vsel %vm4091, %v4081, 2102212464
    %v4094 = vsel %vm4090, %v4078, %v4093
    %v4095 = vsel %vm4089, %v4092, %v4094
    %v4096 = vsel %vm4088, %v4075, %v4078
    %v4097 = vsel %vm4091, %v4084, 920167782
    %v4098 = vsel %vm4090, %v4081, %v4097
    %v4099 = vsel %vm4089, %v4096, %v4098
    %v4100 = vsel %vm4088, %v4078, %v4081
    %v4101 = vsel %vm4091, %v4087, 1326507024
    %v4102 = vsel %vm4090, %v4084, %v4101
    %v4103 = vsel %vm4089, %v4100, %v4102
    %v4104 = vshll.u32 %v4064, 8
    %v4105 = vmul.u32.u64.compose %v4104, %v4103
    %v4106 = vextract.low.u32 %v4105
    %v4107 = vextract.high.u32 %v4105
    %v4108 = vmul.u32.u64.compose %v4104, %v4099
    %v4109 = vextract.low.u32 %v4108
    %v4110 = vextract.high.u32 %v4108
    %v4111 = vmul.u32 %v4104, %v4095
    %v4112 = vadd.s32 %v4107, %v4109
    %vm4113 = vc.u32 %v4107, %v4109
    %v4114 = vadd.s32 %v4110, 1
    %v4115 = vsel %vm4113, %v4114, %v4110
    %v4116 = vadd.s32 %v4111, %v4115
    %v4117 = vadd.s32 %v4116, 536870912
    %v4118 = vshrl.u32 %v4117, 30
    %v4119 = vshll.u32 %v4118, 30
    %v4120 = vsub.s32 %v4116, %v4119
    %vm4121 = vcmp.lt.s32.totalorder %v4120, 0
    %v4122 = vsub.s32 0, %v4120
    %v4123 = vsel %vm4121, %v4122, %v4120
    %v4124 = vclz %v4123
    %v4125 = vsub.s32 %v4124, 2
    %vm4126 = vcmp.gt.s32.totalorder 0, %v4125
    %v4127 = vsel %vm4126, 0, %v4125
    %v4128 = vsub.s32 32, %v4127
    %v4129 = vshll.u32 %v4120, %v4127
    %v4130 = vshrl.u32 %v4112, %v4128
    %v4131 = vor.u32 %v4129, %v4130
    %v4132 = vsub.s32 4294967266, %v4127
    %v4133 = vadd.s32 %v4132, 127
    %v4134 = vshll.u32 %v4133, 23
    %v4135 = vor.u32 4788187, %v4134
    %v4136 = vand.u32 2147483647, %v4135
    %v4138 = vcvt.s32.f32 %v4131
    %v4139 = vmul.f32 %v4138, %v4136
    %v4140 = vxor.u32 %v4139, 2147483648
    %v4141 = vsel %vm4058, %v4140, %v4139
    %v4142 = vsub.s32 4, %v4118
    %v4143 = vsel %vm4058, %v4142, %v4118
    %v4144 = vsel %vm4057, %v4018, %v4141
    %v4145 = vsel %vm4057, 0, %v4143
    %v4146 = vcosq.f32.pop %v4144
    %v4147 = vsinq.f32.pop %v4144
    %vm4148 = vweird.f32 %v4018
    %v4149 = vadd.s32 %v4145, 3
    %v4150 = vand.u32 %v4149, 3
    %vm4151 = vcmp.lt.s32.totalorder %v4150, 2
    %vm4152 = vcmp.eq.s32.totalorder %v4150, 0
    %v4153 = vxor.u32 %v4147, 2147483648
    %v4154 = vsel %vm4152, %v4146, %v4153
    %vm4155 = vcmp.eq.s32.totalorder %v4150, 2
    %v4156 = vxor.u32 %v4146, 2147483648
    %v4157 = vsel %vm4155, %v4156, %v4147
    %v4158 = vsel %vm4151, %v4154, %v4157
    %v4159 = vsel %vm4148, nan, %v4158
    %v4160 = vand.u32 2147483647, %v4023
    %vm4161 = vcmp.le.f32.partialorder %v4160, 0.7853982
    %vm4162 = vcmp.lt.s32.totalorder %v4023, 0
    %v4163 = vand.u32 %v4023, 2139095040
    %v4164 = vshrl.u32 %v4163, 23
    %v4165 = vsub.s32 %v4164, 127
    %v4166 = vand.u32 2147483647, %v4023
    %v4167 = vand.u32 %v4166, 8388607
    %v4168 = vor.u32 %v4167, 8388608
    %v4169 = vsub.s32 0, %v4168
    %v4170 = vadd.s32 %v4165, 1
    %vm4171 = vcmp.gt.s32.totalorder %v4170, 0
    %v4172 = vsel %vm4171, %v4170, 0
    %v4173 = vshrl.u32 %v4172, 5
    %v4174 = vand.u32 %v4172, 31
    %v4175 = vsub.s32 32, %v4174
    %v4176 = vshrl.u32 683565275, %v4175
    %v4177 = vshll.u32 683565275, %v4174
    %v4178 = vshrl.u32 2475754826, %v4175
    %v4179 = vor.u32 %v4177, %v4178
    %v4180 = vshll.u32 2475754826, %v4174
    %v4181 = vshrl.u32 2131351028, %v4175
    %v4182 = vor.u32 %v4180, %v4181
    %v4183 = vshll.u32 2131351028, %v4174
    %v4184 = vshrl.u32 2102212464, %v4175
    %v4185 = vor.u32 %v4183, %v4184
    %v4186 = vshll.u32 2102212464, %v4174
    %v4187 = vshrl.u32 920167782, %v4175
    %v4188 = vor.u32 %v4186, %v4187
    %v4189 = vshll.u32 920167782, %v4174
    %v4190 = vshrl.u32 1326507024, %v4175
    %v4191 = vor.u32 %v4189, %v4190
    %vm4192 = vcmp.lt.s32.totalorder %v4173, 1
    %vm4193 = vcmp.lt.s32.totalorder %v4173, 2
    %vm4194 = vcmp.lt.s32.totalorder %v4173, 3
    %vm4195 = vcmp.lt.s32.totalorder %v4173, 4
    %v4196 = vsel %vm4192, %v4176, %v4179
    %v4197 = vsel %vm4195, %v4185, 2102212464
    %v4198 = vsel %vm4194, %v4182, %v4197
    %v4199 = vsel %vm4193, %v4196, %v4198
    %v4200 = vsel %vm4192, %v4179, %v4182
    %v4201 = vsel %vm4195, %v4188, 920167782
    %v4202 = vsel %vm4194, %v4185, %v4201
    %v4203 = vsel %vm4193, %v4200, %v4202
    %v4204 = vsel %vm4192, %v4182, %v4185
    %v4205 = vsel %vm4195, %v4191, 1326507024
    %v4206 = vsel %vm4194, %v4188, %v4205
    %v4207 = vsel %vm4193, %v4204, %v4206
    %v4208 = vshll.u32 %v4168, 8
    %v4209 = vmul.u32.u64.compose %v4208, %v4207
    %v4210 = vextract.low.u32 %v4209
    %v4211 = vextract.high.u32 %v4209
    %v4212 = vmul.u32.u64.compose %v4208, %v4203
    %v4213 = vextract.low.u32 %v4212
    %v4214 = vextract.high.u32 %v4212
    %v4215 = vmul.u32 %v4208, %v4199
    %v4216 = vadd.s32 %v4211, %v4213
    %vm4217 = vc.u32 %v4211, %v4213
    %v4218 = vadd.s32 %v4214, 1
    %v4219 = vsel %vm4217, %v4218, %v4214
    %v4220 = vadd.s32 %v4215, %v4219
    %v4221 = vadd.s32 %v4220, 536870912
    %v4222 = vshrl.u32 %v4221, 30
    %v4223 = vshll.u32 %v4222, 30
    %v4224 = vsub.s32 %v4220, %v4223
    %vm4225 = vcmp.lt.s32.totalorder %v4224, 0
    %v4226 = vsub.s32 0, %v4224
    %v4227 = vsel %vm4225, %v4226, %v4224
    %v4228 = vclz %v4227
    %v4229 = vsub.s32 %v4228, 2
    %vm4230 = vcmp.gt.s32.totalorder 0, %v4229
    %v4231 = vsel %vm4230, 0, %v4229
    %v4232 = vsub.s32 32, %v4231
    %v4233 = vshll.u32 %v4224, %v4231
    %v4234 = vshrl.u32 %v4216, %v4232
    %v4235 = vor.u32 %v4233, %v4234
    %v4236 = vsub.s32 4294967266, %v4231
    %v4237 = vadd.s32 %v4236, 127
    %v4238 = vshll.u32 %v4237, 23
    %v4239 = vor.u32 4788187, %v4238
    %v4240 = vand.u32 2147483647, %v4239
    %v4242 = vcvt.s32.f32 %v4235
    %v4243 = vmul.f32 %v4242, %v4240
    %v4244 = vxor.u32 %v4243, 2147483648
    %v4245 = vsel %vm4162, %v4244, %v4243
    %v4246 = vsub.s32 4, %v4222
    %v4247 = vsel %vm4162, %v4246, %v4222
    %v4248 = vsel %vm4161, %v4023, %v4245
    %v4249 = vsel %vm4161, 0, %v4247
    %v4250 = vcosq.f32.pop %v4248
    %v4251 = vsinq.f32.pop %v4248
    %vm4252 = vweird.f32 %v4023
    %v4253 = vadd.s32 %v4249, 3
    %v4254 = vand.u32 %v4253, 3
    %vm4255 = vcmp.lt.s32.totalorder %v4254, 2
    %vm4256 = vcmp.eq.s32.totalorder %v4254, 0
    %v4257 = vxor.u32 %v4251, 2147483648
    %v4258 = vsel %vm4256, %v4250, %v4257
    %vm4259 = vcmp.eq.s32.totalorder %v4254, 2
    %v4260 = vxor.u32 %v4250, 2147483648
    %v4261 = vsel %vm4259, %v4260, %v4251
    %v4262 = vsel %vm4255, %v4258, %v4261
    %v4263 = vsel %vm4252, nan, %v4262
    %v4264 = vand.u32 2147483647, %v4028
    %vm4265 = vcmp.le.f32.partialorder %v4264, 0.7853982
    %vm4266 = vcmp.lt.s32.totalorder %v4028, 0
    %v4267 = vand.u32 %v4028, 2139095040
    %v4268 = vshrl.u32 %v4267, 23
    %v4269 = vsub.s32 %v4268, 127
    %v4270 = vand.u32 2147483647, %v4028
    %v4271 = vand.u32 %v4270, 8388607
    %v4272 = vor.u32 %v4271, 8388608
    %v4273 = vsub.s32 0, %v4272
    %v4274 = vadd.s32 %v4269, 1
    %vm4275 = vcmp.gt.s32.totalorder %v4274, 0
    %v4276 = vsel %vm4275, %v4274, 0
    %v4277 = vshrl.u32 %v4276, 5
    %v4278 = vand.u32 %v4276, 31
    %v4279 = vsub.s32 32, %v4278
    %v4280 = vshrl.u32 683565275, %v4279
    %v4281 = vshll.u32 683565275, %v4278
    %v4282 = vshrl.u32 2475754826, %v4279
    %v4283 = vor.u32 %v4281, %v4282
    %v4284 = vshll.u32 2475754826, %v4278
    %v4285 = vshrl.u32 2131351028, %v4279
    %v4286 = vor.u32 %v4284, %v4285
    %v4287 = vshll.u32 2131351028, %v4278
    %v4288 = vshrl.u32 2102212464, %v4279
    %v4289 = vor.u32 %v4287, %v4288
    %v4290 = vshll.u32 2102212464, %v4278
    %v4291 = vshrl.u32 920167782, %v4279
    %v4292 = vor.u32 %v4290, %v4291
    %v4293 = vshll.u32 920167782, %v4278
    %v4294 = vshrl.u32 1326507024, %v4279
    %v4295 = vor.u32 %v4293, %v4294
    %vm4296 = vcmp.lt.s32.totalorder %v4277, 1
    %vm4297 = vcmp.lt.s32.totalorder %v4277, 2
    %vm4298 = vcmp.lt.s32.totalorder %v4277, 3
    %vm4299 = vcmp.lt.s32.totalorder %v4277, 4
    %v4300 = vsel %vm4296, %v4280, %v4283
    %v4301 = vsel %vm4299, %v4289, 2102212464
    %v4302 = vsel %vm4298, %v4286, %v4301
    %v4303 = vsel %vm4297, %v4300, %v4302
    %v4304 = vsel %vm4296, %v4283, %v4286
    %v4305 = vsel %vm4299, %v4292, 920167782
    %v4306 = vsel %vm4298, %v4289, %v4305
    %v4307 = vsel %vm4297, %v4304, %v4306
    %v4308 = vsel %vm4296, %v4286, %v4289
    %v4309 = vsel %vm4299, %v4295, 1326507024
    %v4310 = vsel %vm4298, %v4292, %v4309
    %v4311 = vsel %vm4297, %v4308, %v4310
    %v4312 = vshll.u32 %v4272, 8
    %v4313 = vmul.u32.u64.compose %v4312, %v4311
    %v4314 = vextract.low.u32 %v4313
    %v4315 = vextract.high.u32 %v4313
    %v4316 = vmul.u32.u64.compose %v4312, %v4307
    %v4317 = vextract.low.u32 %v4316
    %v4318 = vextract.high.u32 %v4316
    %v4319 = vmul.u32 %v4312, %v4303
    %v4320 = vadd.s32 %v4315, %v4317
    %vm4321 = vc.u32 %v4315, %v4317
    %v4322 = vadd.s32 %v4318, 1
    %v4323 = vsel %vm4321, %v4322, %v4318
    %v4324 = vadd.s32 %v4319, %v4323
    %v4325 = vadd.s32 %v4324, 536870912
    %v4326 = vshrl.u32 %v4325, 30
    %v4327 = vshll.u32 %v4326, 30
    %v4328 = vsub.s32 %v4324, %v4327
    %vm4329 = vcmp.lt.s32.totalorder %v4328, 0
    %v4330 = vsub.s32 0, %v4328
    %v4331 = vsel %vm4329, %v4330, %v4328
    %v4332 = vclz %v4331
    %v4333 = vsub.s32 %v4332, 2
    %vm4334 = vcmp.gt.s32.totalorder 0, %v4333
    %v4335 = vsel %vm4334, 0, %v4333
    %v4336 = vsub.s32 32, %v4335
    %v4337 = vshll.u32 %v4328, %v4335
    %v4338 = vshrl.u32 %v4320, %v4336
    %v4339 = vor.u32 %v4337, %v4338
    %v4340 = vsub.s32 4294967266, %v4335
    %v4341 = vadd.s32 %v4340, 127
    %v4342 = vshll.u32 %v4341, 23
    %v4343 = vor.u32 4788187, %v4342
    %v4344 = vand.u32 2147483647, %v4343
    %v4346 = vcvt.s32.f32 %v4339
    %v4347 = vmul.f32 %v4346, %v4344
    %v4348 = vxor.u32 %v4347, 2147483648
    %v4349 = vsel %vm4266, %v4348, %v4347
    %v4350 = vsub.s32 4, %v4326
    %v4351 = vsel %vm4266, %v4350, %v4326
    %v4352 = vsel %vm4265, %v4028, %v4349
    %v4353 = vsel %vm4265, 0, %v4351
    %v4354 = vcosq.f32.pop %v4352
    %v4355 = vsinq.f32.pop %v4352
    %vm4356 = vweird.f32 %v4028
    %v4357 = vadd.s32 %v4353, 3
    %v4358 = vand.u32 %v4357, 3
    %vm4359 = vcmp.lt.s32.totalorder %v4358, 2
    %vm4360 = vcmp.eq.s32.totalorder %v4358, 0
    %v4361 = vxor.u32 %v4355, 2147483648
    %v4362 = vsel %vm4360, %v4354, %v4361
    %vm4363 = vcmp.eq.s32.totalorder %v4358, 2
    %v4364 = vxor.u32 %v4354, 2147483648
    %v4365 = vsel %vm4363, %v4364, %v4355
    %v4366 = vsel %vm4359, %v4362, %v4365
    %v4367 = vsel %vm4356, nan, %v4366
    %v4368 = vand.u32 2147483647, %v4033
    %vm4369 = vcmp.le.f32.partialorder %v4368, 0.7853982
    %vm4370 = vcmp.lt.s32.totalorder %v4033, 0
    %v4371 = vand.u32 %v4033, 2139095040
    %v4372 = vshrl.u32 %v4371, 23
    %v4373 = vsub.s32 %v4372, 127
    %v4374 = vand.u32 2147483647, %v4033
    %v4375 = vand.u32 %v4374, 8388607
    %v4376 = vor.u32 %v4375, 8388608
    %v4377 = vsub.s32 0, %v4376
    %v4378 = vadd.s32 %v4373, 1
    %vm4379 = vcmp.gt.s32.totalorder %v4378, 0
    %v4380 = vsel %vm4379, %v4378, 0
    %v4381 = vshrl.u32 %v4380, 5
    %v4382 = vand.u32 %v4380, 31
    %v4383 = vsub.s32 32, %v4382
    %v4384 = vshrl.u32 683565275, %v4383
    %v4385 = vshll.u32 683565275, %v4382
    %v4386 = vshrl.u32 2475754826, %v4383
    %v4387 = vor.u32 %v4385, %v4386
    %v4388 = vshll.u32 2475754826, %v4382
    %v4389 = vshrl.u32 2131351028, %v4383
    %v4390 = vor.u32 %v4388, %v4389
    %v4391 = vshll.u32 2131351028, %v4382
    %v4392 = vshrl.u32 2102212464, %v4383
    %v4393 = vor.u32 %v4391, %v4392
    %v4394 = vshll.u32 2102212464, %v4382
    %v4395 = vshrl.u32 920167782, %v4383
    %v4396 = vor.u32 %v4394, %v4395
    %v4397 = vshll.u32 920167782, %v4382
    %v4398 = vshrl.u32 1326507024, %v4383
    %v4399 = vor.u32 %v4397, %v4398
    %vm4400 = vcmp.lt.s32.totalorder %v4381, 1
    %vm4401 = vcmp.lt.s32.totalorder %v4381, 2
    %vm4402 = vcmp.lt.s32.totalorder %v4381, 3
    %vm4403 = vcmp.lt.s32.totalorder %v4381, 4
    %v4404 = vsel %vm4400, %v4384, %v4387
    %v4405 = vsel %vm4403, %v4393, 2102212464
    %v4406 = vsel %vm4402, %v4390, %v4405
    %v4407 = vsel %vm4401, %v4404, %v4406
    %v4408 = vsel %vm4400, %v4387, %v4390
    %v4409 = vsel %vm4403, %v4396, 920167782
    %v4410 = vsel %vm4402, %v4393, %v4409
    %v4411 = vsel %vm4401, %v4408, %v4410
    %v4412 = vsel %vm4400, %v4390, %v4393
    %v4413 = vsel %vm4403, %v4399, 1326507024
    %v4414 = vsel %vm4402, %v4396, %v4413
    %v4415 = vsel %vm4401, %v4412, %v4414
    %v4416 = vshll.u32 %v4376, 8
    %v4417 = vmul.u32.u64.compose %v4416, %v4415
    %v4418 = vextract.low.u32 %v4417
    %v4419 = vextract.high.u32 %v4417
    %v4420 = vmul.u32.u64.compose %v4416, %v4411
    %v4421 = vextract.low.u32 %v4420
    %v4422 = vextract.high.u32 %v4420
    %v4423 = vmul.u32 %v4416, %v4407
    %v4424 = vadd.s32 %v4419, %v4421
    %vm4425 = vc.u32 %v4419, %v4421
    %v4426 = vadd.s32 %v4422, 1
    %v4427 = vsel %vm4425, %v4426, %v4422
    %v4428 = vadd.s32 %v4423, %v4427
    %v4429 = vadd.s32 %v4428, 536870912
    %v4430 = vshrl.u32 %v4429, 30
    %v4431 = vshll.u32 %v4430, 30
    %v4432 = vsub.s32 %v4428, %v4431
    %vm4433 = vcmp.lt.s32.totalorder %v4432, 0
    %v4434 = vsub.s32 0, %v4432
    %v4435 = vsel %vm4433, %v4434, %v4432
    %v4436 = vclz %v4435
    %v4437 = vsub.s32 %v4436, 2
    %vm4438 = vcmp.gt.s32.totalorder 0, %v4437
    %v4439 = vsel %vm4438, 0, %v4437
    %v4440 = vsub.s32 32, %v4439
    %v4441 = vshll.u32 %v4432, %v4439
    %v4442 = vshrl.u32 %v4424, %v4440
    %v4443 = vor.u32 %v4441, %v4442
    %v4444 = vsub.s32 4294967266, %v4439
    %v4445 = vadd.s32 %v4444, 127
    %v4446 = vshll.u32 %v4445, 23
    %v4447 = vor.u32 4788187, %v4446
    %v4448 = vand.u32 2147483647, %v4447
    %v4450 = vcvt.s32.f32 %v4443
    %v4451 = vmul.f32 %v4450, %v4448
    %v4452 = vxor.u32 %v4451, 2147483648
    %v4453 = vsel %vm4370, %v4452, %v4451
    %v4454 = vsub.s32 4, %v4430
    %v4455 = vsel %vm4370, %v4454, %v4430
    %v4456 = vsel %vm4369, %v4033, %v4453
    %v4457 = vsel %vm4369, 0, %v4455
    %v4458 = vcosq.f32.pop %v4456
    %v4459 = vsinq.f32.pop %v4456
    %vm4460 = vweird.f32 %v4033
    %v4461 = vadd.s32 %v4457, 3
    %v4462 = vand.u32 %v4461, 3
    %vm4463 = vcmp.lt.s32.totalorder %v4462, 2
    %vm4464 = vcmp.eq.s32.totalorder %v4462, 0
    %v4465 = vxor.u32 %v4459, 2147483648
    %v4466 = vsel %vm4464, %v4458, %v4465
    %vm4467 = vcmp.eq.s32.totalorder %v4462, 2
    %v4468 = vxor.u32 %v4458, 2147483648
    %v4469 = vsel %vm4467, %v4468, %v4459
    %v4470 = vsel %vm4463, %v4466, %v4469
    %v4471 = vsel %vm4460, nan, %v4470
    %v4472 = vand.u32 2147483647, %v4038
    %vm4473 = vcmp.le.f32.partialorder %v4472, 0.7853982
    %vm4474 = vcmp.lt.s32.totalorder %v4038, 0
    %v4475 = vand.u32 %v4038, 2139095040
    %v4476 = vshrl.u32 %v4475, 23
    %v4477 = vsub.s32 %v4476, 127
    %v4478 = vand.u32 2147483647, %v4038
    %v4479 = vand.u32 %v4478, 8388607
    %v4480 = vor.u32 %v4479, 8388608
    %v4481 = vsub.s32 0, %v4480
    %v4482 = vadd.s32 %v4477, 1
    %vm4483 = vcmp.gt.s32.totalorder %v4482, 0
    %v4484 = vsel %vm4483, %v4482, 0
    %v4485 = vshrl.u32 %v4484, 5
    %v4486 = vand.u32 %v4484, 31
    %v4487 = vsub.s32 32, %v4486
    %v4488 = vshrl.u32 683565275, %v4487
    %v4489 = vshll.u32 683565275, %v4486
    %v4490 = vshrl.u32 2475754826, %v4487
    %v4491 = vor.u32 %v4489, %v4490
    %v4492 = vshll.u32 2475754826, %v4486
    %v4493 = vshrl.u32 2131351028, %v4487
    %v4494 = vor.u32 %v4492, %v4493
    %v4495 = vshll.u32 2131351028, %v4486
    %v4496 = vshrl.u32 2102212464, %v4487
    %v4497 = vor.u32 %v4495, %v4496
    %v4498 = vshll.u32 2102212464, %v4486
    %v4499 = vshrl.u32 920167782, %v4487
    %v4500 = vor.u32 %v4498, %v4499
    %v4501 = vshll.u32 920167782, %v4486
    %v4502 = vshrl.u32 1326507024, %v4487
    %v4503 = vor.u32 %v4501, %v4502
    %vm4504 = vcmp.lt.s32.totalorder %v4485, 1
    %vm4505 = vcmp.lt.s32.totalorder %v4485, 2
    %vm4506 = vcmp.lt.s32.totalorder %v4485, 3
    %vm4507 = vcmp.lt.s32.totalorder %v4485, 4
    %v4508 = vsel %vm4504, %v4488, %v4491
    %v4509 = vsel %vm4507, %v4497, 2102212464
    %v4510 = vsel %vm4506, %v4494, %v4509
    %v4511 = vsel %vm4505, %v4508, %v4510
    %v4512 = vsel %vm4504, %v4491, %v4494
    %v4513 = vsel %vm4507, %v4500, 920167782
    %v4514 = vsel %vm4506, %v4497, %v4513
    %v4515 = vsel %vm4505, %v4512, %v4514
    %v4516 = vsel %vm4504, %v4494, %v4497
    %v4517 = vsel %vm4507, %v4503, 1326507024
    %v4518 = vsel %vm4506, %v4500, %v4517
    %v4519 = vsel %vm4505, %v4516, %v4518
    %v4520 = vshll.u32 %v4480, 8
    %v4521 = vmul.u32.u64.compose %v4520, %v4519
    %v4522 = vextract.low.u32 %v4521
    %v4523 = vextract.high.u32 %v4521
    %v4524 = vmul.u32.u64.compose %v4520, %v4515
    %v4525 = vextract.low.u32 %v4524
    %v4526 = vextract.high.u32 %v4524
    %v4527 = vmul.u32 %v4520, %v4511
    %v4528 = vadd.s32 %v4523, %v4525
    %vm4529 = vc.u32 %v4523, %v4525
    %v4530 = vadd.s32 %v4526, 1
    %v4531 = vsel %vm4529, %v4530, %v4526
    %v4532 = vadd.s32 %v4527, %v4531
    %v4533 = vadd.s32 %v4532, 536870912
    %v4534 = vshrl.u32 %v4533, 30
    %v4535 = vshll.u32 %v4534, 30
    %v4536 = vsub.s32 %v4532, %v4535
    %vm4537 = vcmp.lt.s32.totalorder %v4536, 0
    %v4538 = vsub.s32 0, %v4536
    %v4539 = vsel %vm4537, %v4538, %v4536
    %v4540 = vclz %v4539
    %v4541 = vsub.s32 %v4540, 2
    %vm4542 = vcmp.gt.s32.totalorder 0, %v4541
    %v4543 = vsel %vm4542, 0, %v4541
    %v4544 = vsub.s32 32, %v4543
    %v4545 = vshll.u32 %v4536, %v4543
    %v4546 = vshrl.u32 %v4528, %v4544
    %v4547 = vor.u32 %v4545, %v4546
    %v4548 = vsub.s32 4294967266, %v4543
    %v4549 = vadd.s32 %v4548, 127
    %v4550 = vshll.u32 %v4549, 23
    %v4551 = vor.u32 4788187, %v4550
    %v4552 = vand.u32 2147483647, %v4551
    %v4554 = vcvt.s32.f32 %v4547
    %v4555 = vmul.f32 %v4554, %v4552
    %v4556 = vxor.u32 %v4555, 2147483648
    %v4557 = vsel %vm4474, %v4556, %v4555
    %v4558 = vsub.s32 4, %v4534
    %v4559 = vsel %vm4474, %v4558, %v4534
    %v4560 = vsel %vm4473, %v4038, %v4557
    %v4561 = vsel %vm4473, 0, %v4559
    %v4562 = vcosq.f32.pop %v4560
    %v4563 = vsinq.f32.pop %v4560
    %vm4564 = vweird.f32 %v4038
    %v4565 = vadd.s32 %v4561, 3
    %v4566 = vand.u32 %v4565, 3
    %vm4567 = vcmp.lt.s32.totalorder %v4566, 2
    %vm4568 = vcmp.eq.s32.totalorder %v4566, 0
    %v4569 = vxor.u32 %v4563, 2147483648
    %v4570 = vsel %vm4568, %v4562, %v4569
    %vm4571 = vcmp.eq.s32.totalorder %v4566, 2
    %v4572 = vxor.u32 %v4562, 2147483648
    %v4573 = vsel %vm4571, %v4572, %v4563
    %v4574 = vsel %vm4567, %v4570, %v4573
    %v4575 = vsel %vm4564, nan, %v4574
    %v4576 = vand.u32 2147483647, %v4043
    %vm4577 = vcmp.le.f32.partialorder %v4576, 0.7853982
    %vm4578 = vcmp.lt.s32.totalorder %v4043, 0
    %v4579 = vand.u32 %v4043, 2139095040
    %v4580 = vshrl.u32 %v4579, 23
    %v4581 = vsub.s32 %v4580, 127
    %v4582 = vand.u32 2147483647, %v4043
    %v4583 = vand.u32 %v4582, 8388607
    %v4584 = vor.u32 %v4583, 8388608
    %v4585 = vsub.s32 0, %v4584
    %v4586 = vadd.s32 %v4581, 1
    %vm4587 = vcmp.gt.s32.totalorder %v4586, 0
    %v4588 = vsel %vm4587, %v4586, 0
    %v4589 = vshrl.u32 %v4588, 5
    %v4590 = vand.u32 %v4588, 31
    %v4591 = vsub.s32 32, %v4590
    %v4592 = vshrl.u32 683565275, %v4591
    %v4593 = vshll.u32 683565275, %v4590
    %v4594 = vshrl.u32 2475754826, %v4591
    %v4595 = vor.u32 %v4593, %v4594
    %v4596 = vshll.u32 2475754826, %v4590
    %v4597 = vshrl.u32 2131351028, %v4591
    %v4598 = vor.u32 %v4596, %v4597
    %v4599 = vshll.u32 2131351028, %v4590
    %v4600 = vshrl.u32 2102212464, %v4591
    %v4601 = vor.u32 %v4599, %v4600
    %v4602 = vshll.u32 2102212464, %v4590
    %v4603 = vshrl.u32 920167782, %v4591
    %v4604 = vor.u32 %v4602, %v4603
    %v4605 = vshll.u32 920167782, %v4590
    %v4606 = vshrl.u32 1326507024, %v4591
    %v4607 = vor.u32 %v4605, %v4606
    %vm4608 = vcmp.lt.s32.totalorder %v4589, 1
    %vm4609 = vcmp.lt.s32.totalorder %v4589, 2
    %vm4610 = vcmp.lt.s32.totalorder %v4589, 3
    %vm4611 = vcmp.lt.s32.totalorder %v4589, 4
    %v4612 = vsel %vm4608, %v4592, %v4595
    %v4613 = vsel %vm4611, %v4601, 2102212464
    %v4614 = vsel %vm4610, %v4598, %v4613
    %v4615 = vsel %vm4609, %v4612, %v4614
    %v4616 = vsel %vm4608, %v4595, %v4598
    %v4617 = vsel %vm4611, %v4604, 920167782
    %v4618 = vsel %vm4610, %v4601, %v4617
    %v4619 = vsel %vm4609, %v4616, %v4618
    %v4620 = vsel %vm4608, %v4598, %v4601
    %v4621 = vsel %vm4611, %v4607, 1326507024
    %v4622 = vsel %vm4610, %v4604, %v4621
    %v4623 = vsel %vm4609, %v4620, %v4622
    %v4624 = vshll.u32 %v4584, 8
    %v4625 = vmul.u32.u64.compose %v4624, %v4623
    %v4626 = vextract.low.u32 %v4625
    %v4627 = vextract.high.u32 %v4625
    %v4628 = vmul.u32.u64.compose %v4624, %v4619
    %v4629 = vextract.low.u32 %v4628
    %v4630 = vextract.high.u32 %v4628
    %v4631 = vmul.u32 %v4624, %v4615
    %v4632 = vadd.s32 %v4627, %v4629
    %vm4633 = vc.u32 %v4627, %v4629
    %v4634 = vadd.s32 %v4630, 1
    %v4635 = vsel %vm4633, %v4634, %v4630
    %v4636 = vadd.s32 %v4631, %v4635
    %v4637 = vadd.s32 %v4636, 536870912
    %v4638 = vshrl.u32 %v4637, 30
    %v4639 = vshll.u32 %v4638, 30
    %v4640 = vsub.s32 %v4636, %v4639
    %vm4641 = vcmp.lt.s32.totalorder %v4640, 0
    %v4642 = vsub.s32 0, %v4640
    %v4643 = vsel %vm4641, %v4642, %v4640
    %v4644 = vclz %v4643
    %v4645 = vsub.s32 %v4644, 2
    %vm4646 = vcmp.gt.s32.totalorder 0, %v4645
    %v4647 = vsel %vm4646, 0, %v4645
    %v4648 = vsub.s32 32, %v4647
    %v4649 = vshll.u32 %v4640, %v4647
    %v4650 = vshrl.u32 %v4632, %v4648
    %v4651 = vor.u32 %v4649, %v4650
    %v4652 = vsub.s32 4294967266, %v4647
    %v4653 = vadd.s32 %v4652, 127
    %v4654 = vshll.u32 %v4653, 23
    %v4655 = vor.u32 4788187, %v4654
    %v4656 = vand.u32 2147483647, %v4655
    %v4658 = vcvt.s32.f32 %v4651
    %v4659 = vmul.f32 %v4658, %v4656
    %v4660 = vxor.u32 %v4659, 2147483648
    %v4661 = vsel %vm4578, %v4660, %v4659
    %v4662 = vsub.s32 4, %v4638
    %v4663 = vsel %vm4578, %v4662, %v4638
    %v4664 = vsel %vm4577, %v4043, %v4661
    %v4665 = vsel %vm4577, 0, %v4663
    %v4666 = vcosq.f32.pop %v4664
    %v4667 = vsinq.f32.pop %v4664
    %vm4668 = vweird.f32 %v4043
    %v4669 = vadd.s32 %v4665, 3
    %v4670 = vand.u32 %v4669, 3
    %vm4671 = vcmp.lt.s32.totalorder %v4670, 2
    %vm4672 = vcmp.eq.s32.totalorder %v4670, 0
    %v4673 = vxor.u32 %v4667, 2147483648
    %v4674 = vsel %vm4672, %v4666, %v4673
    %vm4675 = vcmp.eq.s32.totalorder %v4670, 2
    %v4676 = vxor.u32 %v4666, 2147483648
    %v4677 = vsel %vm4675, %v4676, %v4667
    %v4678 = vsel %vm4671, %v4674, %v4677
    %v4679 = vsel %vm4668, nan, %v4678
    %v4680 = vand.u32 2147483647, %v4048
    %vm4681 = vcmp.le.f32.partialorder %v4680, 0.7853982
    %vm4682 = vcmp.lt.s32.totalorder %v4048, 0
    %v4683 = vand.u32 %v4048, 2139095040
    %v4684 = vshrl.u32 %v4683, 23
    %v4685 = vsub.s32 %v4684, 127
    %v4686 = vand.u32 2147483647, %v4048
    %v4687 = vand.u32 %v4686, 8388607
    %v4688 = vor.u32 %v4687, 8388608
    %v4689 = vsub.s32 0, %v4688
    %v4690 = vadd.s32 %v4685, 1
    %vm4691 = vcmp.gt.s32.totalorder %v4690, 0
    %v4692 = vsel %vm4691, %v4690, 0
    %v4693 = vshrl.u32 %v4692, 5
    %v4694 = vand.u32 %v4692, 31
    %v4695 = vsub.s32 32, %v4694
    %v4696 = vshrl.u32 683565275, %v4695
    %v4697 = vshll.u32 683565275, %v4694
    %v4698 = vshrl.u32 2475754826, %v4695
    %v4699 = vor.u32 %v4697, %v4698
    %v4700 = vshll.u32 2475754826, %v4694
    %v4701 = vshrl.u32 2131351028, %v4695
    %v4702 = vor.u32 %v4700, %v4701
    %v4703 = vshll.u32 2131351028, %v4694
    %v4704 = vshrl.u32 2102212464, %v4695
    %v4705 = vor.u32 %v4703, %v4704
    %v4706 = vshll.u32 2102212464, %v4694
    %v4707 = vshrl.u32 920167782, %v4695
    %v4708 = vor.u32 %v4706, %v4707
    %v4709 = vshll.u32 920167782, %v4694
    %v4710 = vshrl.u32 1326507024, %v4695
    %v4711 = vor.u32 %v4709, %v4710
    %vm4712 = vcmp.lt.s32.totalorder %v4693, 1
    %vm4713 = vcmp.lt.s32.totalorder %v4693, 2
    %vm4714 = vcmp.lt.s32.totalorder %v4693, 3
    %vm4715 = vcmp.lt.s32.totalorder %v4693, 4
    %v4716 = vsel %vm4712, %v4696, %v4699
    %v4717 = vsel %vm4715, %v4705, 2102212464
    %v4718 = vsel %vm4714, %v4702, %v4717
    %v4719 = vsel %vm4713, %v4716, %v4718
    %v4720 = vsel %vm4712, %v4699, %v4702
    %v4721 = vsel %vm4715, %v4708, 920167782
    %v4722 = vsel %vm4714, %v4705, %v4721
    %v4723 = vsel %vm4713, %v4720, %v4722
    %v4724 = vsel %vm4712, %v4702, %v4705
    %v4725 = vsel %vm4715, %v4711, 1326507024
    %v4726 = vsel %vm4714, %v4708, %v4725
    %v4727 = vsel %vm4713, %v4724, %v4726
    %v4728 = vshll.u32 %v4688, 8
    %v4729 = vmul.u32.u64.compose %v4728, %v4727
    %v4730 = vextract.low.u32 %v4729
    %v4731 = vextract.high.u32 %v4729
    %v4732 = vmul.u32.u64.compose %v4728, %v4723
    %v4733 = vextract.low.u32 %v4732
    %v4734 = vextract.high.u32 %v4732
    %v4735 = vmul.u32 %v4728, %v4719
    %v4736 = vadd.s32 %v4731, %v4733
    %vm4737 = vc.u32 %v4731, %v4733
    %v4738 = vadd.s32 %v4734, 1
    %v4739 = vsel %vm4737, %v4738, %v4734
    %v4740 = vadd.s32 %v4735, %v4739
    %v4741 = vadd.s32 %v4740, 536870912
    %v4742 = vshrl.u32 %v4741, 30
    %v4743 = vshll.u32 %v4742, 30
    %v4744 = vsub.s32 %v4740, %v4743
    %vm4745 = vcmp.lt.s32.totalorder %v4744, 0
    %v4746 = vsub.s32 0, %v4744
    %v4747 = vsel %vm4745, %v4746, %v4744
    %v4748 = vclz %v4747
    %v4749 = vsub.s32 %v4748, 2
    %vm4750 = vcmp.gt.s32.totalorder 0, %v4749
    %v4751 = vsel %vm4750, 0, %v4749
    %v4752 = vsub.s32 32, %v4751
    %v4753 = vshll.u32 %v4744, %v4751
    %v4754 = vshrl.u32 %v4736, %v4752
    %v4755 = vor.u32 %v4753, %v4754
    %v4756 = vsub.s32 4294967266, %v4751
    %v4757 = vadd.s32 %v4756, 127
    %v4758 = vshll.u32 %v4757, 23
    %v4759 = vor.u32 4788187, %v4758
    %v4760 = vand.u32 2147483647, %v4759
    %v4762 = vcvt.s32.f32 %v4755
    %v4763 = vmul.f32 %v4762, %v4760
    %v4764 = vxor.u32 %v4763, 2147483648
    %v4765 = vsel %vm4682, %v4764, %v4763
    %v4766 = vsub.s32 4, %v4742
    %v4767 = vsel %vm4682, %v4766, %v4742
    %v4768 = vsel %vm4681, %v4048, %v4765
    %v4769 = vsel %vm4681, 0, %v4767
    %v4770 = vcosq.f32.pop %v4768
    %v4771 = vsinq.f32.pop %v4768
    %vm4772 = vweird.f32 %v4048
    %v4773 = vadd.s32 %v4769, 3
    %v4774 = vand.u32 %v4773, 3
    %vm4775 = vcmp.lt.s32.totalorder %v4774, 2
    %vm4776 = vcmp.eq.s32.totalorder %v4774, 0
    %v4777 = vxor.u32 %v4771, 2147483648
    %v4778 = vsel %vm4776, %v4770, %v4777
    %vm4779 = vcmp.eq.s32.totalorder %v4774, 2
    %v4780 = vxor.u32 %v4770, 2147483648
    %v4781 = vsel %vm4779, %v4780, %v4771
    %v4782 = vsel %vm4775, %v4778, %v4781
    %v4783 = vsel %vm4772, nan, %v4782
    %v4784 = vand.u32 2147483647, %v4053
    %vm4785 = vcmp.le.f32.partialorder %v4784, 0.7853982
    %vm4786 = vcmp.lt.s32.totalorder %v4053, 0
    %v4787 = vand.u32 %v4053, 2139095040
    %v4788 = vshrl.u32 %v4787, 23
    %v4789 = vsub.s32 %v4788, 127
    %v4790 = vand.u32 2147483647, %v4053
    %v4791 = vand.u32 %v4790, 8388607
    %v4792 = vor.u32 %v4791, 8388608
    %v4793 = vsub.s32 0, %v4792
    %v4794 = vadd.s32 %v4789, 1
    %vm4795 = vcmp.gt.s32.totalorder %v4794, 0
    %v4796 = vsel %vm4795, %v4794, 0
    %v4797 = vshrl.u32 %v4796, 5
    %v4798 = vand.u32 %v4796, 31
    %v4799 = vsub.s32 32, %v4798
    %v4800 = vshrl.u32 683565275, %v4799
    %v4801 = vshll.u32 683565275, %v4798
    %v4802 = vshrl.u32 2475754826, %v4799
    %v4803 = vor.u32 %v4801, %v4802
    %v4804 = vshll.u32 2475754826, %v4798
    %v4805 = vshrl.u32 2131351028, %v4799
    %v4806 = vor.u32 %v4804, %v4805
    %v4807 = vshll.u32 2131351028, %v4798
    %v4808 = vshrl.u32 2102212464, %v4799
    %v4809 = vor.u32 %v4807, %v4808
    %v4810 = vshll.u32 2102212464, %v4798
    %v4811 = vshrl.u32 920167782, %v4799
    %v4812 = vor.u32 %v4810, %v4811
    %v4813 = vshll.u32 920167782, %v4798
    %v4814 = vshrl.u32 1326507024, %v4799
    %v4815 = vor.u32 %v4813, %v4814
    %vm4816 = vcmp.lt.s32.totalorder %v4797, 1
    %vm4817 = vcmp.lt.s32.totalorder %v4797, 2
    %vm4818 = vcmp.lt.s32.totalorder %v4797, 3
    %vm4819 = vcmp.lt.s32.totalorder %v4797, 4
    %v4820 = vsel %vm4816, %v4800, %v4803
    %v4821 = vsel %vm4819, %v4809, 2102212464
    %v4822 = vsel %vm4818, %v4806, %v4821
    %v4823 = vsel %vm4817, %v4820, %v4822
    %v4824 = vsel %vm4816, %v4803, %v4806
    %v4825 = vsel %vm4819, %v4812, 920167782
    %v4826 = vsel %vm4818, %v4809, %v4825
    %v4827 = vsel %vm4817, %v4824, %v4826
    %v4828 = vsel %vm4816, %v4806, %v4809
    %v4829 = vsel %vm4819, %v4815, 1326507024
    %v4830 = vsel %vm4818, %v4812, %v4829
    %v4831 = vsel %vm4817, %v4828, %v4830
    %v4832 = vshll.u32 %v4792, 8
    %v4833 = vmul.u32.u64.compose %v4832, %v4831
    %v4834 = vextract.low.u32 %v4833
    %v4835 = vextract.high.u32 %v4833
    %v4836 = vmul.u32.u64.compose %v4832, %v4827
    %v4837 = vextract.low.u32 %v4836
    %v4838 = vextract.high.u32 %v4836
    %v4839 = vmul.u32 %v4832, %v4823
    %v4840 = vadd.s32 %v4835, %v4837
    %vm4841 = vc.u32 %v4835, %v4837
    %v4842 = vadd.s32 %v4838, 1
    %v4843 = vsel %vm4841, %v4842, %v4838
    %v4844 = vadd.s32 %v4839, %v4843
    %v4845 = vadd.s32 %v4844, 536870912
    %v4846 = vshrl.u32 %v4845, 30
    %v4847 = vshll.u32 %v4846, 30
    %v4848 = vsub.s32 %v4844, %v4847
    %vm4849 = vcmp.lt.s32.totalorder %v4848, 0
    %v4850 = vsub.s32 0, %v4848
    %v4851 = vsel %vm4849, %v4850, %v4848
    %v4852 = vclz %v4851
    %v4853 = vsub.s32 %v4852, 2
    %vm4854 = vcmp.gt.s32.totalorder 0, %v4853
    %v4855 = vsel %vm4854, 0, %v4853
    %v4856 = vsub.s32 32, %v4855
    %v4857 = vshll.u32 %v4848, %v4855
    %v4858 = vshrl.u32 %v4840, %v4856
    %v4859 = vor.u32 %v4857, %v4858
    %v4860 = vsub.s32 4294967266, %v4855
    %v4861 = vadd.s32 %v4860, 127
    %v4862 = vshll.u32 %v4861, 23
    %v4863 = vor.u32 4788187, %v4862
    %v4864 = vand.u32 2147483647, %v4863
    %v4866 = vcvt.s32.f32 %v4859
    %v4867 = vmul.f32 %v4866, %v4864
    %v4868 = vxor.u32 %v4867, 2147483648
    %v4869 = vsel %vm4786, %v4868, %v4867
    %v4870 = vsub.s32 4, %v4846
    %v4871 = vsel %vm4786, %v4870, %v4846
    %v4872 = vsel %vm4785, %v4053, %v4869
    %v4873 = vsel %vm4785, 0, %v4871
    %v4874 = vcosq.f32.pop %v4872
    %v4875 = vsinq.f32.pop %v4872
    %vm4876 = vweird.f32 %v4053
    %v4877 = vadd.s32 %v4873, 3
    %v4878 = vand.u32 %v4877, 3
    %vm4879 = vcmp.lt.s32.totalorder %v4878, 2
    %vm4880 = vcmp.eq.s32.totalorder %v4878, 0
    %v4881 = vxor.u32 %v4875, 2147483648
    %v4882 = vsel %vm4880, %v4874, %v4881
    %vm4883 = vcmp.eq.s32.totalorder %v4878, 2
    %v4884 = vxor.u32 %v4874, 2147483648
    %v4885 = vsel %vm4883, %v4884, %v4875
    %v4886 = vsel %vm4879, %v4882, %v4885
    %v4887 = vsel %vm4876, nan, %v4886
    %s4888 = scalar_lea.vmem [#allocation2], 512
    %v4889 = vld [vmem:[%s4888] sm:$0xff]
    %v4890 = vld [vmem:[%s4888 + $0x8] sm:$0xff]
    %v4891 = vld [vmem:[%s4888 + $0x10] sm:$0xff]
    %v4892 = vld [vmem:[%s4888 + $0x18] sm:$0xff]
    %v4893 = vld [vmem:[%s4888 + $0x20] sm:$0xff]
    %v4894 = vld [vmem:[%s4888 + $0x28] sm:$0xff]
    %v4895 = vld [vmem:[%s4888 + $0x30] sm:$0xff]
    %v4896 = vld [vmem:[%s4888 + $0x38] sm:$0xff]
    %v4897 = vld [vmem:[%s4888 + $0x40] sm:$0xff]
    %v4898 = vld [vmem:[%s4888 + $0x48] sm:$0xff]
    %v4899 = vld [vmem:[%s4888 + $0x50] sm:$0xff]
    %v4900 = vld [vmem:[%s4888 + $0x58] sm:$0xff]
    %v4901 = vld [vmem:[%s4888 + $0x60] sm:$0xff]
    %v4902 = vld [vmem:[%s4888 + $0x68] sm:$0xff]
    %v4903 = vld [vmem:[%s4888 + $0x70] sm:$0xff]
    %v4904 = vld [vmem:[%s4888 + $0x78] sm:$0xff]
    %s4905 = scalar_lea.vmem %s3, 5
    %v4906 = vld [vmem:[%s4905] sm:$0x1]
    %v4908 = vlaneseq
    %v4909 = vshrl.u32 %v4908, 7
    %v4910 = vsub.s32 0, %v4909
    %v4911 = vrot.slane %v4906, %v4910
    %4913 = vmatprep.subr.mxu0 0.0
    %4914 = vmatpush1.msra.mxu0 %v4904
    %4915 = vmatprep.subr.mxu0 0.0
    %4916 = vmatpush1.msra.mxu0 %v4903
    %4917 = vmatprep.subr.mxu0 0.0
    %4918 = vmatpush1.msra.mxu0 %v4902
    %4919 = vmatprep.subr.mxu0 0.0
    %4920 = vmatpush1.msra.mxu0 %v4901
    %4921 = vmatprep.subr.mxu0 0.0
    %4922 = vmatpush1.msra.mxu0 %v4900
    %4923 = vmatprep.subr.mxu0 0.0
    %4924 = vmatpush1.msra.mxu0 %v4899
    %4925 = vmatprep.subr.mxu0 0.0
    %4926 = vmatpush1.msra.mxu0 %v4898
    %4927 = vmatprep.subr.mxu0 0.0
    %4928 = vmatpush1.msra.mxu0 %v4897
    %4929 = vmatprep.subr.mxu0 0.0
    %4930 = vmatpush1.msra.mxu0 %v4896
    %4931 = vmatprep.subr.mxu0 0.0
    %4932 = vmatpush1.msra.mxu0 %v4895
    %4933 = vmatprep.subr.mxu0 0.0
    %4934 = vmatpush1.msra.mxu0 %v4894
    %4935 = vmatprep.subr.mxu0 0.0
    %4936 = vmatpush1.msra.mxu0 %v4893
    %4937 = vmatprep.subr.mxu0 0.0
    %4938 = vmatpush1.msra.mxu0 %v4892
    %4939 = vmatprep.subr.mxu0 0.0
    %4940 = vmatpush1.msra.mxu0 %v4891
    %4941 = vmatprep.subr.mxu0 0.0
    %4942 = vmatpush1.msra.mxu0 %v4890
    %4943 = vmatprep.subr.mxu0 0.0
    %4944 = vmatpush1.msra.mxu0 %v4889
    %4945 = vmatprep.subr.mxu0 0.0
    %4946 = vmatpush2.msra.mxu0 0.0
    %4947 = vmatprep.subr.mxu0 0.0
    %4948 = vmatpush2.msra.mxu0 0.0
    %4949 = vmatprep.subr.mxu0 0.0
    %4950 = vmatpush2.msra.mxu0 0.0
    %4951 = vmatprep.subr.mxu0 0.0
    %4952 = vmatpush2.msra.mxu0 0.0
    %4953 = vmatprep.subr.mxu0 0.0
    %4954 = vmatpush2.msra.mxu0 0.0
    %4955 = vmatprep.subr.mxu0 0.0
    %4956 = vmatpush2.msra.mxu0 0.0
    %4957 = vmatprep.subr.mxu0 0.0
    %4958 = vmatpush2.msra.mxu0 0.0
    %4959 = vmatprep.subr.mxu0 0.0
    %4960 = vmatpush2.msra.mxu0 0.0
    %4961 = vmatprep.subr.mxu0 0.0
    %4962 = vmatpush2.msra.mxu0 0.0
    %4963 = vmatprep.subr.mxu0 0.0
    %4964 = vmatpush2.msra.mxu0 0.0
    %4965 = vmatprep.subr.mxu0 0.0
    %4966 = vmatpush2.msra.mxu0 0.0
    %4967 = vmatprep.subr.mxu0 0.0
    %4968 = vmatpush2.msra.mxu0 0.0
    %4969 = vmatprep.subr.mxu0 0.0
    %4970 = vmatpush2.msra.mxu0 0.0
    %4971 = vmatprep.subr.mxu0 0.0
    %4972 = vmatpush2.msra.mxu0 0.0
    %4973 = vmatprep.subr.mxu0 0.0
    %4974 = vmatpush2.msra.mxu0 0.0
    %4975 = vmatprep.subr.mxu0 0.0
    %4976 = vmatpush2.msra.mxu0 0.0
    %4977 = vmatprep.mubr.f32.mxu0 0.0
    %4978 = vmatmul.mubr.f32.gmra.mxu0 %v4159
    %v4979 = vpop.f32.mrf.mxu0
    %v4980 = vadd.f32 %v4911, %v4979
    %v4981 = vpop.f32.mrf.mxu0
    %4982 = vmatprep.mubr.f32.mxu0 0.0
    %4983 = vmatmul.mubr.f32.gmra.mxu0 %v4263
    %v4984 = vpop.f32.mrf.mxu0
    %v4985 = vadd.f32 %v4911, %v4984
    %v4986 = vpop.f32.mrf.mxu0
    %4987 = vmatprep.mubr.f32.mxu0 0.0
    %4988 = vmatmul.mubr.f32.gmra.mxu0 %v4367
    %v4989 = vpop.f32.mrf.mxu0
    %v4990 = vadd.f32 %v4911, %v4989
    %v4991 = vpop.f32.mrf.mxu0
    %4992 = vmatprep.mubr.f32.mxu0 0.0
    %4993 = vmatmul.mubr.f32.gmra.mxu0 %v4471
    %v4994 = vpop.f32.mrf.mxu0
    %v4995 = vadd.f32 %v4911, %v4994
    %v4996 = vpop.f32.mrf.mxu0
    %4997 = vmatprep.mubr.f32.mxu0 0.0
    %4998 = vmatmul.mubr.f32.gmra.mxu0 %v4575
    %v4999 = vpop.f32.mrf.mxu0
    %v5000 = vadd.f32 %v4911, %v4999
    %v5001 = vpop.f32.mrf.mxu0
    %5002 = vmatprep.mubr.f32.mxu0 0.0
    %5003 = vmatmul.mubr.f32.gmra.mxu0 %v4679
    %v5004 = vpop.f32.mrf.mxu0
    %v5005 = vadd.f32 %v4911, %v5004
    %v5006 = vpop.f32.mrf.mxu0
    %5007 = vmatprep.mubr.f32.mxu0 0.0
    %5008 = vmatmul.mubr.f32.gmra.mxu0 %v4783
    %v5009 = vpop.f32.mrf.mxu0
    %v5010 = vadd.f32 %v4911, %v5009
    %v5011 = vpop.f32.mrf.mxu0
    %5012 = vmatprep.mubr.f32.mxu0 0.0
    %5013 = vmatmul.mubr.f32.gmra.mxu0 %v4887
    %v5014 = vpop.f32.mrf.mxu0
    %v5015 = vadd.f32 %v4911, %v5014
    %v5016 = vpop.f32.mrf.mxu0
    %5017 = vdwg.mxu0
    %5018 = vst [vmem:[#allocation9] sm:$0xff] %v4980
    %5019 = vst [vmem:[#allocation9 + $0x8] sm:$0xff] %v4985
    %5020 = vst [vmem:[#allocation9 + $0x10] sm:$0xff] %v4990
    %5021 = vst [vmem:[#allocation9 + $0x18] sm:$0xff] %v4995
    %5022 = vst [vmem:[#allocation9 + $0x20] sm:$0xff] %v5000
    %5023 = vst [vmem:[#allocation9 + $0x28] sm:$0xff] %v5005
    %5024 = vst [vmem:[#allocation9 + $0x30] sm:$0xff] %v5010
    %5025 = vst [vmem:[#allocation9 + $0x38] sm:$0xff] %v5015
    // Predicated region
    $region22: #{tpu_custom_call.1} parent=1 // pred_check
      _
    $region23: #{tpu_custom_call.1} parent=1 // pred_check_branch
      %5027 = sbr.rel (0) target = $region25
    $region24: #{tpu_custom_call.1} parent=1 // pred_region
      %s5029 = ssub.s32 1024, 1024
      %5030 = vsyncadd [#allocation4], %s5029
      %s5031 = sshll.u32 [#allocation5], 4
      %s5032 = int_to_ptr.vmem [resolvable:$true] %s5031
      %5037 = dma.vmem_to_hbm [thread:$0]  %s5032, 1024, %s4, [#allocation4], 128, 128, 8
    $region25: #{tpu_custom_call.1} parent=1 // pred_fallthru
      _
    // Predicated region
    $region26: #{tpu_custom_call.1} parent=1 // pred_check
      _
    $region27: #{tpu_custom_call.1} parent=1 // pred_check_branch
      %5039 = sbr.rel (0) target = $region29
    $region28: #{tpu_custom_call.1} parent=1 // pred_region
      %s5041 = ssub.s32 1024, 1024
      %5042 = vsyncadd [#allocation7], %s5041
      %s5043 = sshll.u32 [#allocation6], 4
      %s5044 = int_to_ptr.vmem [resolvable:$true] %s5043
      %5049 = dma.vmem_to_hbm [thread:$0]  %s5044, 1024, %s5, [#allocation7], 128, 128, 8
    $region29: #{tpu_custom_call.1} parent=1 // pred_fallthru
      _
    // Predicated region
    $region30: #{tpu_custom_call.1} parent=1 // pred_check
      _
    $region31: #{tpu_custom_call.1} parent=1 // pred_check_branch
      %5051 = sbr.rel (0) target = $region33
    $region32: #{tpu_custom_call.1} parent=1 // pred_region
      %s5053 = ssub.s32 1024, 1024
      %5054 = vsyncadd [#allocation7], %s5053
      %s5055 = sshll.u32 [#allocation8], 4
      %s5056 = int_to_ptr.vmem [resolvable:$true] %s5055
      %5061 = dma.vmem_to_hbm [thread:$0]  %s5056, 1024, %s6, [#allocation7], 128, 128, 8
    $region33: #{tpu_custom_call.1} parent=1 // pred_fallthru
      _
    // Predicated region
    $region34: #{tpu_custom_call.1} parent=1 // pred_check
      _
    $region35: #{tpu_custom_call.1} parent=1 // pred_check_branch
      %5063 = sbr.rel (0) target = $region37
    $region36: #{tpu_custom_call.1} parent=1 // pred_region
      %s5065 = ssub.s32 1024, 1024
      %5066 = vsyncadd [#allocation10], %s5065
      %s5067 = sshll.u32 [#allocation9], 4
      %s5068 = int_to_ptr.vmem [resolvable:$true] %s5067
      %5073 = dma.vmem_to_hbm [thread:$0]  %s5068, 1024, %s7, [#allocation10], 128, 128, 8
    $region37: #{tpu_custom_call.1} parent=1 // pred_fallthru
      _
    // Predicated region
    $region38: #{tpu_custom_call.1} parent=1 // pred_check
      _
    $region39: #{tpu_custom_call.1} parent=1 // pred_check_branch
      %5075 = sbr.rel (0) target = $region41
    $region40: #{tpu_custom_call.1} parent=1 // pred_region
      %5076 = dma.done [#allocation4], 1024
    $region41: #{tpu_custom_call.1} parent=1 // pred_fallthru
      _
    // Predicated region
    $region42: #{tpu_custom_call.1} parent=1 // pred_check
      _
    $region43: #{tpu_custom_call.1} parent=1 // pred_check_branch
      %5078 = sbr.rel (0) target = $region45
    $region44: #{tpu_custom_call.1} parent=1 // pred_region
      %5079 = dma.done [#allocation7], 1024
    $region45: #{tpu_custom_call.1} parent=1 // pred_fallthru
      _
    // Predicated region
    $region46: #{tpu_custom_call.1} parent=1 // pred_check
      _
    $region47: #{tpu_custom_call.1} parent=1 // pred_check_branch
      %5081 = sbr.rel (0) target = $region49
    $region48: #{tpu_custom_call.1} parent=1 // pred_region
      %5082 = dma.done [#allocation7], 1024
    $region49: #{tpu_custom_call.1} parent=1 // pred_fallthru
      _
    // Predicated region
    $region50: #{tpu_custom_call.1} parent=1 // pred_check
      _
    $region51: #{tpu_custom_call.1} parent=1 // pred_check_branch
      %5084 = sbr.rel (0) target = $region53
    $region52: #{tpu_custom_call.1} parent=1 // pred_region
      %5085 = dma.done [#allocation10], 1024
    $region53: #{tpu_custom_call.1} parent=1 // pred_fallthru
      _
    %5086 = vsyncpa [#allocation3], 1
    %5087 = vsyncpa [#allocation4], 1
    %5088 = vsyncpa [#allocation7], 1
    %5089 = vsyncpa [#allocation10], 1

</llo_original>
